<compile_context>
chip_gen: v7x
topology: tpu7x:2x2x1
jax: 0.10.0
libtpu: 0.0.40
codegen_flags: <defaults>
</compile_context>

<pallas_src>
import functools

import jax
import jax.numpy as jnp
from jax import lax
from jax.experimental import pallas as pl
from jax.experimental.pallas import tpu as pltpu

TM_MAX = 1024   # cap on rows per output tile (double-buffered working set ~2 MiB max)


def _round_up(x, m):
    return (x + m - 1) // m * m


# ----------------------------- Pallas kernel -------------------------------- #
def _mm_bias_lrelu_kernel(x_ref, w_ref, b_ref, o_ref):
    """One (tm, tn) output tile; K is a single full block (no reduction axis)."""
    y = jnp.dot(x_ref[...], w_ref[...], preferred_element_type=jnp.float32)
    y = y + b_ref[...]                                   # f32 epilogue (v5e-safe)
    o_ref[...] = jnp.maximum(y, 0.2 * y).astype(o_ref.dtype)   # LeakyReLU(0.2)


def _pick_tm(M, n_blocks_n):
    """Largest M tile that divides M exactly, capped at TM_MAX, keeping >=2
    blocks in the grid when the N axis has only one (so both v7x TCs are used)."""
    if M % 8 != 0:                       # tiny M (Linear: M = batch) -> one full-M block
        return M
    tm = M
    if n_blocks_n < 2 and M % 16 == 0:
        tm = M // 2                      # guarantee a 2-way parallel grid
    while tm > TM_MAX and tm % 16 == 0:
        tm //= 2
    if M % tm != 0 or tm % 8 != 0:       # safety fallback: full-M block is always legal
        tm = M
    return tm


def matmul_bias_lrelu(x, w, b, out_dtype=jnp.bfloat16):
    """y = leaky_relu(x @ w + b, 0.2) as a single-K-block Pallas TPU GEMM.

    x: (M, K) bf16, w: (Kp, N) bf16 with Kp in [K, K+16) (weight K pre-padded at
    init), b: (1, N) f32.  No M/N padding and no output slicing: tm divides M
    exactly and tn is either 128 or the full N.
    """
    M, K = x.shape
    Kp, N = w.shape
    if Kp != K:                                     # conv0 only: K 27 -> 32
        x = jnp.pad(x, ((0, 0), (0, Kp - K)))
        K = Kp
    x = x.astype(jnp.bfloat16)

    tn = 128 if (N > 128 and N % 128 == 0) else N   # lane-dense or full-dim block
    tm = _pick_tm(M, N // tn)

    return pl.pallas_call(
        _mm_bias_lrelu_kernel,
        out_shape=jax.ShapeDtypeStruct((M, N), out_dtype),
        grid=(M // tm, N // tn),
        in_specs=[
            pl.BlockSpec((tm, K), lambda i, j: (i, 0)),   # full-K activation block
            pl.BlockSpec((K, tn), lambda i, j: (0, j)),   # full-K weight block
            pl.BlockSpec((1, tn), lambda i, j: (0, j)),   # bias (broadcast over rows)
        ],
        out_specs=pl.BlockSpec((tm, tn), lambda i, j: (i, j)),
        compiler_params=pltpu.CompilerParams(
            dimension_semantics=("parallel", "parallel")),
    )(x, w, b)


# ------------------------------ Conv wrapper --------------------------------- #
def conv3x3_s2_lrelu(x_nhwc, w_gemm, b):
    """Conv2d(k=3, stride=2, pad=1) + LeakyReLU(0.2).  GEMM hot path in Pallas.

    im2col is bf16 XLA glue (slices + concat fuse into one write).
    # TODO(synk): fuse im2col into the kernel itself — the in-kernel strided
    # tap gather + (B,Ho,Wo,C)->(M,C) reshape is not reliably lowerable today.
    """
    B, H, W, Cin = x_nhwc.shape
    Cout = w_gemm.shape[-1]
    Ho, Wo = H // 2, W // 2
    xp = jnp.pad(x_nhwc.astype(jnp.bfloat16), ((0, 0), (1, 1), (1, 1), (0, 0)))
    cols = []
    for kh in range(3):
        for kw in range(3):
            cols.append(lax.slice(
                xp,
                (0, kh, kw, 0),
                (B, kh + 2 * Ho - 1, kw + 2 * Wo - 1, Cin),
                (1, 2, 2, 1)))
    patches = jnp.concatenate(cols, axis=-1).reshape(B * Ho * Wo, 9 * Cin)
    y = matmul_bias_lrelu(patches, w_gemm, b, out_dtype=jnp.bfloat16)
    return y.reshape(B, Ho, Wo, Cout)


# ------------------------------ Parameters ----------------------------------- #
def spectral_normalize(w_hwio, iters=50, eps=1e-12):
    """W / sigma(W) with sigma from (converged) power iteration.

    Matches PyTorch spectral_norm on W.view(Cout, -1) at steady state
    (singular values are invariant to the HWIO vs OIHW flattening order).
    """
    kh, kw, cin, cout = w_hwio.shape
    m = w_hwio.reshape(kh * kw * cin, cout)
    v0 = jnp.full((cout,), 1.0 / jnp.sqrt(cout), jnp.float32)

    def body(_, v):
        u = m @ v
        u = u / (jnp.linalg.norm(u) + eps)
        v = m.T @ u
        v = v / (jnp.linalg.norm(v) + eps)
        return v

    v = lax.fori_loop(0, iters, body, v0)
    sigma = jnp.linalg.norm(m @ v)
    return w_hwio / (sigma + eps)


def init_encoder_params(key, img_dim, latent_dim):
    """All weight preprocessing (reshape / pad / permute / cast) happens here,
    once, so the per-forward path only runs the Pallas GEMMs plus im2col glue."""
    dims = [64, 128, 128, 256]
    cins = [img_dim] + dims[:-1]
    keys = jax.random.split(key, 10)
    params = {}
    for i in range(4):
        w = 0.02 * jax.random.normal(keys[2 * i], (3, 3, cins[i], dims[i]), jnp.float32)
        b = 0.02 * jax.random.normal(keys[2 * i + 1], (dims[i],), jnp.float32)
        w = spectral_normalize(w)                     # spectral_norm(Conv2d.weight)
        K = 9 * cins[i]
        Kp = _round_up(K, 16)                         # bf16 sublane packing (conv0: 27->32)
        wg = jnp.pad(w.reshape(K, dims[i]), ((0, Kp - K), (0, 0)))
        params[f"conv{i}_w"] = wg.astype(jnp.bfloat16)            # GEMM-ready (Kp, Cout)
        params[f"conv{i}_b"] = b.reshape(1, dims[i]).astype(jnp.float32)
    # nn.Linear(256*4*4, latent_dim): PyTorch stores (out_features, in_features)
    # with in_features flattened in (C, H, W) order.  Pre-transpose to (in, out)
    # and pre-permute the rows to our NHWC (H, W, C) flatten order so the
    # forward pass needs no feature transpose at all.
    wl = 0.02 * jax.random.normal(keys[8], (latent_dim, dims[3] * 4 * 4), jnp.float32)
    bl = 0.02 * jax.random.normal(keys[9], (latent_dim,), jnp.float32)
    wl = wl.reshape(latent_dim, dims[3], 4, 4).transpose(2, 3, 1, 0)   # (H, W, C, out)
    params["linear_w"] = wl.reshape(4 * 4 * dims[3], latent_dim).astype(jnp.bfloat16)
    params["linear_b"] = bl.reshape(1, latent_dim).astype(jnp.float32)
    return params


# ------------------------------- Forward pass -------------------------------- #
def encoder_forward(params, x_nchw):
    # x: (B, img_dim, 64, 64), NCHW like the PyTorch module.
    x = jnp.transpose(x_nchw, (0, 2, 3, 1)).astype(jnp.bfloat16)  # -> NHWC, bf16
    for i in range(4):
        x = conv3x3_s2_lrelu(x, params[f"conv{i}_w"], params[f"conv{i}_b"])
    B = x.shape[0]
    # NHWC flatten (free reshape); linear_w rows were pre-permuted to match
    # PyTorch's nn.Flatten(1) on NCHW, so no runtime transpose is needed.
    feat = x.reshape(B, -1)
    # Linear + LeakyReLU(0.2) via the same Pallas kernel, f32 out, no padding.
    return matmul_bias_lrelu(feat, params["linear_w"], params["linear_b"],
                             out_dtype=jnp.float32)


if __name__ == "__main__":
    img_dim, latent_dim = 3, 32
    # Spatial size 64 is implied by the module (Linear expects 256 * 4 * 4 features).
    key = jax.random.PRNGKey(0)
    pkey, xkey = jax.random.split(key)
    params = init_encoder_params(pkey, img_dim, latent_dim)
    x = jax.random.normal(xkey, (2, img_dim, 64, 64), jnp.float32)

    fwd = jax.jit(functools.partial(encoder_forward, params))
    y = fwd(x)
    jax.block_until_ready(y)
    assert y.shape == (2, latent_dim) and y.dtype == jnp.float32
    print("KERNEL_OK")
</pallas_src>

<mosaic_0001>
module attributes {stable_mosaic.version = 11 : i64} {
  func.func @_mm_bias_lrelu_kernel(%arg0: i32, %arg1: i32, %arg2: memref<1024x32xbf16, #tpu.memory_space<vmem>>, %arg3: memref<32x64xbf16, #tpu.memory_space<vmem>>, %arg4: memref<1x64xf32, #tpu.memory_space<vmem>>, %arg5: memref<1024x64xbf16, #tpu.memory_space<vmem>>) attributes {dimension_semantics = [#tpu.dimension_semantics<parallel>, #tpu.dimension_semantics<parallel>], iteration_bounds = array<i64: 2, 1>, scalar_prefetch = 0 : i64, scratch_operands = 0 : i64, tpu.core_type = #tpu.core_type<tc>, window_params = [{transform_indices = @transform_0, window_bounds = array<i64: 1024, 32>}, {transform_indices = @transform_1, window_bounds = array<i64: 32, 64>}, {transform_indices = @transform_2, window_bounds = array<i64: 1, 64>}, {transform_indices = @transform_3, window_bounds = array<i64: 1024, 64>}]} {
    %c0 = arith.constant 0 : index
    %c0_0 = arith.constant 0 : index
    %0 = vector.load %arg2[%c0, %c0_0] : memref<1024x32xbf16, #tpu.memory_space<vmem>>, vector<1024x32xbf16>
    %c0_1 = arith.constant 0 : index
    %c0_2 = arith.constant 0 : index
    %1 = vector.load %arg3[%c0_1, %c0_2] : memref<32x64xbf16, #tpu.memory_space<vmem>>, vector<32x64xbf16>
    %cst = arith.constant dense<0.000000e+00> : vector<1024x64xf32>
    %2 = tpu.matmul %0, %1, %cst {dimension_numbers = #tpu.dot_dimension_numbers<[1], [0], [0], [1], [0, 0, 1, 1], [], []>} : vector<1024x32xbf16>, vector<32x64xbf16>, vector<1024x64xf32> -> vector<1024x64xf32>
    %c0_3 = arith.constant 0 : index
    %c0_4 = arith.constant 0 : index
    %3 = vector.load %arg4[%c0_3, %c0_4] : memref<1x64xf32, #tpu.memory_space<vmem>>, vector<1x64xf32>
    %4 = vector.broadcast %3 : vector<1x64xf32> to vector<1024x64xf32>
    %5 = arith.addf %2, %4 : vector<1024x64xf32>
    %cst_5 = arith.constant 2.000000e-01 : f32
    %6 = vector.broadcast %cst_5 : f32 to vector<1024x64xf32>
    %7 = arith.mulf %6, %5 : vector<1024x64xf32>
    %8 = arith.maximumf %5, %7 : vector<1024x64xf32>
    %9 = arith.truncf %8 : vector<1024x64xf32> to vector<1024x64xbf16>
    %c0_6 = arith.constant 0 : index
    %c0_7 = arith.constant 0 : index
    %10 = vector.load %arg5[%c0_6, %c0_7] : memref<1024x64xbf16, #tpu.memory_space<vmem>>, vector<1024x64xbf16>
    tpu.vector_store %arg5[%c0_6, %c0_7], %9 {strides = array<i32>} : memref<1024x64xbf16, #tpu.memory_space<vmem>>, vector<1024x64xbf16>,
    return
  }
  func.func @transform_0(%arg0: i32, %arg1: i32) -> (i32, i32) {
    %c0_i32 = arith.constant 0 : i32
    %c0_i32_0 = arith.constant 0 : i32
    return %arg0, %c0_i32 : i32, i32
  }
  func.func @transform_1(%arg0: i32, %arg1: i32) -> (i32, i32) {
    %c0_i32 = arith.constant 0 : i32
    %c0_i32_0 = arith.constant 0 : i32
    return %c0_i32, %arg1 : i32, i32
  }
  func.func @transform_2(%arg0: i32, %arg1: i32) -> (i32, i32) {
    %c0_i32 = arith.constant 0 : i32
    %c0_i32_0 = arith.constant 0 : i32
    return %c0_i32, %arg1 : i32, i32
  }
  func.func @transform_3(%arg0: i32, %arg1: i32) -> (i32, i32) {
    %c0_i32 = arith.constant 0 : i32
    return %arg0, %arg1 : i32, i32
  }
}

module attributes {stable_mosaic.version = 11 : i64} {
  func.func @_mm_bias_lrelu_kernel(%arg0: i32, %arg1: i32, %arg2: memref<256x576xbf16, #tpu.memory_space<vmem>>, %arg3: memref<576x128xbf16, #tpu.memory_space<vmem>>, %arg4: memref<1x128xf32, #tpu.memory_space<vmem>>, %arg5: memref<256x128xbf16, #tpu.memory_space<vmem>>) attributes {dimension_semantics = [#tpu.dimension_semantics<parallel>, #tpu.dimension_semantics<parallel>], iteration_bounds = array<i64: 2, 1>, scalar_prefetch = 0 : i64, scratch_operands = 0 : i64, tpu.core_type = #tpu.core_type<tc>, window_params = [{transform_indices = @transform_0, window_bounds = array<i64: 256, 576>}, {transform_indices = @transform_1, window_bounds = array<i64: 576, 128>}, {transform_indices = @transform_2, window_bounds = array<i64: 1, 128>}, {transform_indices = @transform_3, window_bounds = array<i64: 256, 128>}]} {
    %c0 = arith.constant 0 : index
    %c0_0 = arith.constant 0 : index
    %0 = vector.load %arg2[%c0, %c0_0] : memref<256x576xbf16, #tpu.memory_space<vmem>>, vector<256x576xbf16>
    %c0_1 = arith.constant 0 : index
    %c0_2 = arith.constant 0 : index
    %1 = vector.load %arg3[%c0_1, %c0_2] : memref<576x128xbf16, #tpu.memory_space<vmem>>, vector<576x128xbf16>
    %cst = arith.constant dense<0.000000e+00> : vector<256x128xf32>
    %2 = tpu.matmul %0, %1, %cst {dimension_numbers = #tpu.dot_dimension_numbers<[1], [0], [0], [1], [0, 0, 1, 1], [], []>} : vector<256x576xbf16>, vector<576x128xbf16>, vector<256x128xf32> -> vector<256x128xf32>
    %c0_3 = arith.constant 0 : index
    %c0_4 = arith.constant 0 : index
    %3 = vector.load %arg4[%c0_3, %c0_4] : memref<1x128xf32, #tpu.memory_space<vmem>>, vector<1x128xf32>
    %4 = vector.broadcast %3 : vector<1x128xf32> to vector<256x128xf32>
    %5 = arith.addf %2, %4 : vector<256x128xf32>
    %cst_5 = arith.constant 2.000000e-01 : f32
    %6 = vector.broadcast %cst_5 : f32 to vector<256x128xf32>
    %7 = arith.mulf %6, %5 : vector<256x128xf32>
    %8 = arith.maximumf %5, %7 : vector<256x128xf32>
    %9 = arith.truncf %8 : vector<256x128xf32> to vector<256x128xbf16>
    %c0_6 = arith.constant 0 : index
    %c0_7 = arith.constant 0 : index
    %10 = vector.load %arg5[%c0_6, %c0_7] : memref<256x128xbf16, #tpu.memory_space<vmem>>, vector<256x128xbf16>
    tpu.vector_store %arg5[%c0_6, %c0_7], %9 {strides = array<i32>} : memref<256x128xbf16, #tpu.memory_space<vmem>>, vector<256x128xbf16>,
    return
  }
  func.func @transform_0(%arg0: i32, %arg1: i32) -> (i32, i32) {
    %c0_i32 = arith.constant 0 : i32
    %c0_i32_0 = arith.constant 0 : i32
    return %arg0, %c0_i32 : i32, i32
  }
  func.func @transform_1(%arg0: i32, %arg1: i32) -> (i32, i32) {
    %c0_i32 = arith.constant 0 : i32
    %c0_i32_0 = arith.constant 0 : i32
    return %c0_i32, %arg1 : i32, i32
  }
  func.func @transform_2(%arg0: i32, %arg1: i32) -> (i32, i32) {
    %c0_i32 = arith.constant 0 : i32
    %c0_i32_0 = arith.constant 0 : i32
    return %c0_i32, %arg1 : i32, i32
  }
  func.func @transform_3(%arg0: i32, %arg1: i32) -> (i32, i32) {
    %c0_i32 = arith.constant 0 : i32
    return %arg0, %arg1 : i32, i32
  }
}

module attributes {stable_mosaic.version = 11 : i64} {
  func.func @_mm_bias_lrelu_kernel(%arg0: i32, %arg1: i32, %arg2: memref<64x1152xbf16, #tpu.memory_space<vmem>>, %arg3: memref<1152x128xbf16, #tpu.memory_space<vmem>>, %arg4: memref<1x128xf32, #tpu.memory_space<vmem>>, %arg5: memref<64x128xbf16, #tpu.memory_space<vmem>>) attributes {dimension_semantics = [#tpu.dimension_semantics<parallel>, #tpu.dimension_semantics<parallel>], iteration_bounds = array<i64: 2, 1>, scalar_prefetch = 0 : i64, scratch_operands = 0 : i64, tpu.core_type = #tpu.core_type<tc>, window_params = [{transform_indices = @transform_0, window_bounds = array<i64: 64, 1152>}, {transform_indices = @transform_1, window_bounds = array<i64: 1152, 128>}, {transform_indices = @transform_2, window_bounds = array<i64: 1, 128>}, {transform_indices = @transform_3, window_bounds = array<i64: 64, 128>}]} {
    %c0 = arith.constant 0 : index
    %c0_0 = arith.constant 0 : index
    %0 = vector.load %arg2[%c0, %c0_0] : memref<64x1152xbf16, #tpu.memory_space<vmem>>, vector<64x1152xbf16>
    %c0_1 = arith.constant 0 : index
    %c0_2 = arith.constant 0 : index
    %1 = vector.load %arg3[%c0_1, %c0_2] : memref<1152x128xbf16, #tpu.memory_space<vmem>>, vector<1152x128xbf16>
    %cst = arith.constant dense<0.000000e+00> : vector<64x128xf32>
    %2 = tpu.matmul %0, %1, %cst {dimension_numbers = #tpu.dot_dimension_numbers<[1], [0], [0], [1], [0, 0, 1, 1], [], []>} : vector<64x1152xbf16>, vector<1152x128xbf16>, vector<64x128xf32> -> vector<64x128xf32>
    %c0_3 = arith.constant 0 : index
    %c0_4 = arith.constant 0 : index
    %3 = vector.load %arg4[%c0_3, %c0_4] : memref<1x128xf32, #tpu.memory_space<vmem>>, vector<1x128xf32>
    %4 = vector.broadcast %3 : vector<1x128xf32> to vector<64x128xf32>
    %5 = arith.addf %2, %4 : vector<64x128xf32>
    %cst_5 = arith.constant 2.000000e-01 : f32
    %6 = vector.broadcast %cst_5 : f32 to vector<64x128xf32>
    %7 = arith.mulf %6, %5 : vector<64x128xf32>
    %8 = arith.maximumf %5, %7 : vector<64x128xf32>
    %9 = arith.truncf %8 : vector<64x128xf32> to vector<64x128xbf16>
    %c0_6 = arith.constant 0 : index
    %c0_7 = arith.constant 0 : index
    %10 = vector.load %arg5[%c0_6, %c0_7] : memref<64x128xbf16, #tpu.memory_space<vmem>>, vector<64x128xbf16>
    tpu.vector_store %arg5[%c0_6, %c0_7], %9 {strides = array<i32>} : memref<64x128xbf16, #tpu.memory_space<vmem>>, vector<64x128xbf16>,
    return
  }
  func.func @transform_0(%arg0: i32, %arg1: i32) -> (i32, i32) {
    %c0_i32 = arith.constant 0 : i32
    %c0_i32_0 = arith.constant 0 : i32
    return %arg0, %c0_i32 : i32, i32
  }
  func.func @transform_1(%arg0: i32, %arg1: i32) -> (i32, i32) {
    %c0_i32 = arith.constant 0 : i32
    %c0_i32_0 = arith.constant 0 : i32
    return %c0_i32, %arg1 : i32, i32
  }
  func.func @transform_2(%arg0: i32, %arg1: i32) -> (i32, i32) {
    %c0_i32 = arith.constant 0 : i32
    %c0_i32_0 = arith.constant 0 : i32
    return %c0_i32, %arg1 : i32, i32
  }
  func.func @transform_3(%arg0: i32, %arg1: i32) -> (i32, i32) {
    %c0_i32 = arith.constant 0 : i32
    return %arg0, %arg1 : i32, i32
  }
}

module attributes {stable_mosaic.version = 11 : i64} {
  func.func @_mm_bias_lrelu_kernel(%arg0: i32, %arg1: i32, %arg2: memref<32x1152xbf16, #tpu.memory_space<vmem>>, %arg3: memref<1152x128xbf16, #tpu.memory_space<vmem>>, %arg4: memref<1x128xf32, #tpu.memory_space<vmem>>, %arg5: memref<32x128xbf16, #tpu.memory_space<vmem>>) attributes {dimension_semantics = [#tpu.dimension_semantics<parallel>, #tpu.dimension_semantics<parallel>], iteration_bounds = array<i64: 1, 2>, scalar_prefetch = 0 : i64, scratch_operands = 0 : i64, tpu.core_type = #tpu.core_type<tc>, window_params = [{transform_indices = @transform_0, window_bounds = array<i64: 32, 1152>}, {transform_indices = @transform_1, window_bounds = array<i64: 1152, 128>}, {transform_indices = @transform_2, window_bounds = array<i64: 1, 128>}, {transform_indices = @transform_3, window_bounds = array<i64: 32, 128>}]} {
    %c0 = arith.constant 0 : index
    %c0_0 = arith.constant 0 : index
    %0 = vector.load %arg2[%c0, %c0_0] : memref<32x1152xbf16, #tpu.memory_space<vmem>>, vector<32x1152xbf16>
    %c0_1 = arith.constant 0 : index
    %c0_2 = arith.constant 0 : index
    %1 = vector.load %arg3[%c0_1, %c0_2] : memref<1152x128xbf16, #tpu.memory_space<vmem>>, vector<1152x128xbf16>
    %cst = arith.constant dense<0.000000e+00> : vector<32x128xf32>
    %2 = tpu.matmul %0, %1, %cst {dimension_numbers = #tpu.dot_dimension_numbers<[1], [0], [0], [1], [0, 0, 1, 1], [], []>} : vector<32x1152xbf16>, vector<1152x128xbf16>, vector<32x128xf32> -> vector<32x128xf32>
    %c0_3 = arith.constant 0 : index
    %c0_4 = arith.constant 0 : index
    %3 = vector.load %arg4[%c0_3, %c0_4] : memref<1x128xf32, #tpu.memory_space<vmem>>, vector<1x128xf32>
    %4 = vector.broadcast %3 : vector<1x128xf32> to vector<32x128xf32>
    %5 = arith.addf %2, %4 : vector<32x128xf32>
    %cst_5 = arith.constant 2.000000e-01 : f32
    %6 = vector.broadcast %cst_5 : f32 to vector<32x128xf32>
    %7 = arith.mulf %6, %5 : vector<32x128xf32>
    %8 = arith.maximumf %5, %7 : vector<32x128xf32>
    %9 = arith.truncf %8 : vector<32x128xf32> to vector<32x128xbf16>
    %c0_6 = arith.constant 0 : index
    %c0_7 = arith.constant 0 : index
    %10 = vector.load %arg5[%c0_6, %c0_7] : memref<32x128xbf16, #tpu.memory_space<vmem>>, vector<32x128xbf16>
    tpu.vector_store %arg5[%c0_6, %c0_7], %9 {strides = array<i32>} : memref<32x128xbf16, #tpu.memory_space<vmem>>, vector<32x128xbf16>,
    return
  }
  func.func @transform_0(%arg0: i32, %arg1: i32) -> (i32, i32) {
    %c0_i32 = arith.constant 0 : i32
    %c0_i32_0 = arith.constant 0 : i32
    return %arg0, %c0_i32 : i32, i32
  }
  func.func @transform_1(%arg0: i32, %arg1: i32) -> (i32, i32) {
    %c0_i32 = arith.constant 0 : i32
    %c0_i32_0 = arith.constant 0 : i32
    return %c0_i32, %arg1 : i32, i32
  }
  func.func @transform_2(%arg0: i32, %arg1: i32) -> (i32, i32) {
    %c0_i32 = arith.constant 0 : i32
    %c0_i32_0 = arith.constant 0 : i32
    return %c0_i32, %arg1 : i32, i32
  }
  func.func @transform_3(%arg0: i32, %arg1: i32) -> (i32, i32) {
    %c0_i32 = arith.constant 0 : i32
    return %arg0, %arg1 : i32, i32
  }
}

module attributes {stable_mosaic.version = 11 : i64} {
  func.func @_mm_bias_lrelu_kernel(%arg0: i32, %arg1: i32, %arg2: memref<2x4096xbf16, #tpu.memory_space<vmem>>, %arg3: memref<4096x32xbf16, #tpu.memory_space<vmem>>, %arg4: memref<1x32xf32, #tpu.memory_space<vmem>>, %arg5: memref<2x32xf32, #tpu.memory_space<vmem>>) attributes {dimension_semantics = [#tpu.dimension_semantics<parallel>, #tpu.dimension_semantics<parallel>], iteration_bounds = array<i64: 1, 1>, scalar_prefetch = 0 : i64, scratch_operands = 0 : i64, tpu.core_type = #tpu.core_type<tc>, window_params = [{transform_indices = @transform_0, window_bounds = array<i64: 2, 4096>}, {transform_indices = @transform_1, window_bounds = array<i64: 4096, 32>}, {transform_indices = @transform_2, window_bounds = array<i64: 1, 32>}, {transform_indices = @transform_3, window_bounds = array<i64: 2, 32>}]} {
    %c0 = arith.constant 0 : index
    %c0_0 = arith.constant 0 : index
    %0 = vector.load %arg2[%c0, %c0_0] : memref<2x4096xbf16, #tpu.memory_space<vmem>>, vector<2x4096xbf16>
    %c0_1 = arith.constant 0 : index
    %c0_2 = arith.constant 0 : index
    %1 = vector.load %arg3[%c0_1, %c0_2] : memref<4096x32xbf16, #tpu.memory_space<vmem>>, vector<4096x32xbf16>
    %cst = arith.constant dense<0.000000e+00> : vector<2x32xf32>
    %2 = tpu.matmul %0, %1, %cst {dimension_numbers = #tpu.dot_dimension_numbers<[1], [0], [0], [1], [0, 0, 1, 1], [], []>} : vector<2x4096xbf16>, vector<4096x32xbf16>, vector<2x32xf32> -> vector<2x32xf32>
    %c0_3 = arith.constant 0 : index
    %c0_4 = arith.constant 0 : index
    %3 = vector.load %arg4[%c0_3, %c0_4] : memref<1x32xf32, #tpu.memory_space<vmem>>, vector<1x32xf32>
    %4 = vector.broadcast %3 : vector<1x32xf32> to vector<2x32xf32>
    %5 = arith.addf %2, %4 : vector<2x32xf32>
    %cst_5 = arith.constant 2.000000e-01 : f32
    %6 = vector.broadcast %cst_5 : f32 to vector<2x32xf32>
    %7 = arith.mulf %6, %5 : vector<2x32xf32>
    %8 = arith.maximumf %5, %7 : vector<2x32xf32>
    %c0_6 = arith.constant 0 : index
    %c0_7 = arith.constant 0 : index
    %9 = vector.load %arg5[%c0_6, %c0_7] : memref<2x32xf32, #tpu.memory_space<vmem>>, vector<2x32xf32>
    tpu.vector_store %arg5[%c0_6, %c0_7], %8 {strides = array<i32>} : memref<2x32xf32, #tpu.memory_space<vmem>>, vector<2x32xf32>,
    return
  }
  func.func @transform_0(%arg0: i32, %arg1: i32) -> (i32, i32) {
    %c0_i32 = arith.constant 0 : i32
    %c0_i32_0 = arith.constant 0 : i32
    return %arg0, %c0_i32 : i32, i32
  }
  func.func @transform_1(%arg0: i32, %arg1: i32) -> (i32, i32) {
    %c0_i32 = arith.constant 0 : i32
    %c0_i32_0 = arith.constant 0 : i32
    return %c0_i32, %arg1 : i32, i32
  }
  func.func @transform_2(%arg0: i32, %arg1: i32) -> (i32, i32) {
    %c0_i32 = arith.constant 0 : i32
    %c0_i32_0 = arith.constant 0 : i32
    return %c0_i32, %arg1 : i32, i32
  }
  func.func @transform_3(%arg0: i32, %arg1: i32) -> (i32, i32) {
    %c0_i32 = arith.constant 0 : i32
    return %arg0, %arg1 : i32, i32
  }
}

</mosaic_0001>

<llo_original>
// kernel: encoder_forward.5
$region0: #{encoder_forward.5}
  #allocation0 [shape = 'u32[]', space=smem, size = 0x4, offset = 0x4, fixed_abs, tag = 'smem constant byte address 0x4 - core index']
  #allocation1 [shape = 'u32[144,128]{1,0:T(1,128)}', space=vmem, size = 0x12000, scoped, tag = 'internal scratch']
  %s0 = inlined_call_operand.vmem [shape: bf16[2048,32], index: 0, kind: input, shape index: {}]
  %s1 = inlined_call_operand.vmem [shape: bf16[32,64], index: 1, kind: input, shape index: {}]
  %s2 = inlined_call_operand.vmem [shape: f32[1,64], index: 2, kind: input, shape index: {}]
  %s3 = inlined_call_operand.vmem [shape: bf16[2048,64], index: 3, kind: output, shape index: {}]
  %s4 = sld [smem:[#allocation0]]
  $region45: #{encoder_forward.5} parent=0
    _
  %s6 = ssub.s32 1, %s4
  %s7 = scalar_select 0, %s6, %s4
  loop: start=0, step=1, limit=4
  $region2: #{encoder_forward.5} parent=0 // loop_pre_header
    _
  $region3: #{encoder_forward.5} parent=0 // loop_header
    %s9 = sphi 0, %s13
    %p10 = scmp.ge.s32.totalorder %s9, 4
    %s16 = sphi 0, %s28
    %s17 = sphi 0, %s24
    %s18 = sphi 0, %s16
    %s19 = sphi 0, %s17
    %s20 = sphi 0, %s18
    %s21 = sphi 0, %s19
    %s31 = sphi 0, %s33
    %s34 = sphi 0, %s31
    %s35 = sphi 0, %s34
    %s51 = sphi 0, %s35
    %s57 = sphi 0, %s59
    %s60 = sphi 0, %s57
    %s61 = sphi 0, %s60
    %s77 = sphi 0, %s61
    %s83 = sphi 0, %s85
    %s86 = sphi 0, %s83
    %s87 = sphi 0, %s86
    %s103 = sphi 0, %s87
    %s111 = sphi 0, %s113
    %s114 = sphi 0, %s111
    %s115 = sphi 0, %s114
    %s131 = sphi 0, %s115
  $region4: #{encoder_forward.5} parent=0 // loop_header_branch
    %12 = sbr.rel (%p10) target = $region8
  $region5: #{encoder_forward.5} parent=0 // loop_body
    %s14 = ssub.s32 %s9, 1
    %s15 = ssub.s32 %s9, 2
    %s22 = sadd.s32 1, %s17
    %p23 = scmp.ge.s32.totalorder %s22, 1
    %s24 = scalar_select %p23, 0, %s22
    %s25 = sadd.s32 1, %s16
    %s26 = scalar_select %p23, %s25, %s16
    %p27 = scmp.ge.s32.totalorder %s26, 2
    %s28 = scalar_select %p27, 0, %s26
    %s29 = ssub.s32 %s16, %s28
    %p30 = scmp.eq.s32.totalorder %s29, 0
    %s32 = sadd.s32 %s31, 1
    %s33 = scalar_select %p30, %s31, %s32
    %p36 = pneg %p30
    %p37 = scmp.eq.s32.totalorder %s9, 1
    %p38 = por %p36, %p37
    %p39 = scmp.ne.s32.totalorder %s31, %s34
    %p40 = scmp.eq.s32.totalorder %s9, 0
    %p41 = por %p39, %p40
    %p42 = scmp.ne.s32.totalorder %s31, %s34
    %p43 = scmp.eq.s32.totalorder %s14, 1
    %p44 = por %p42, %p43
    %p45 = scmp.ne.s32.totalorder %s34, %s35
    %p46 = scmp.eq.s32.totalorder %s14, 0
    %p47 = por %p45, %p46
    %p48 = scmp.ne.s32.totalorder %s34, %s35
    %p49 = scmp.eq.s32.totalorder %s15, 1
    %p50 = por %p48, %p49
    %p52 = scmp.ne.s32.totalorder %s35, %s51
    %p53 = scmp.eq.s32.totalorder %s15, 0
    %p54 = por %p52, %p53
    %s55 = ssub.s32 %s17, %s24
    %p56 = scmp.eq.s32.totalorder %s55, 0
    %s58 = sadd.s32 %s57, 1
    %s59 = scalar_select %p56, %s57, %s58
    %p62 = pneg %p56
    %p63 = scmp.eq.s32.totalorder %s9, 1
    %p64 = por %p62, %p63
    %p65 = scmp.ne.s32.totalorder %s57, %s60
    %p66 = scmp.eq.s32.totalorder %s9, 0
    %p67 = por %p65, %p66
    %p68 = scmp.ne.s32.totalorder %s57, %s60
    %p69 = scmp.eq.s32.totalorder %s14, 1
    %p70 = por %p68, %p69
    %p71 = scmp.ne.s32.totalorder %s60, %s61
    %p72 = scmp.eq.s32.totalorder %s14, 0
    %p73 = por %p71, %p72
    %p74 = scmp.ne.s32.totalorder %s60, %s61
    %p75 = scmp.eq.s32.totalorder %s15, 1
    %p76 = por %p74, %p75
    %p78 = scmp.ne.s32.totalorder %s61, %s77
    %p79 = scmp.eq.s32.totalorder %s15, 0
    %p80 = por %p78, %p79
    %s81 = ssub.s32 %s17, %s24
    %p82 = scmp.eq.s32.totalorder %s81, 0
    %s84 = sadd.s32 %s83, 1
    %s85 = scalar_select %p82, %s83, %s84
    %p88 = pneg %p82
    %p89 = scmp.eq.s32.totalorder %s9, 1
    %p90 = por %p88, %p89
    %p91 = scmp.ne.s32.totalorder %s83, %s86
    %p92 = scmp.eq.s32.totalorder %s9, 0
    %p93 = por %p91, %p92
    %p94 = scmp.ne.s32.totalorder %s83, %s86
    %p95 = scmp.eq.s32.totalorder %s14, 1
    %p96 = por %p94, %p95
    %p97 = scmp.ne.s32.totalorder %s86, %s87
    %p98 = scmp.eq.s32.totalorder %s14, 0
    %p99 = por %p97, %p98
    %p100 = scmp.ne.s32.totalorder %s86, %s87
    %p101 = scmp.eq.s32.totalorder %s15, 1
    %p102 = por %p100, %p101
    %p104 = scmp.ne.s32.totalorder %s87, %s103
    %p105 = scmp.eq.s32.totalorder %s15, 0
    %p106 = por %p104, %p105
    %s107 = ssub.s32 %s16, %s28
    %s108 = ssub.s32 %s17, %s24
    %s109 = sor.u32 %s107, %s108
    %p110 = scmp.eq.s32.totalorder %s109, 0
    %s112 = sadd.s32 %s111, 1
    %s113 = scalar_select %p110, %s111, %s112
    %p116 = pneg %p110
    %p117 = scmp.eq.s32.totalorder %s9, 1
    %p118 = por %p116, %p117
    %p119 = scmp.ne.s32.totalorder %s111, %s114
    %p120 = scmp.eq.s32.totalorder %s9, 0
    %p121 = por %p119, %p120
    %p122 = scmp.ne.s32.totalorder %s111, %s114
    %p123 = scmp.eq.s32.totalorder %s14, 1
    %p124 = por %p122, %p123
    %p125 = scmp.ne.s32.totalorder %s114, %s115
    %p126 = scmp.eq.s32.totalorder %s14, 0
    %p127 = por %p125, %p126
    %p128 = scmp.ne.s32.totalorder %s114, %s115
    %p129 = scmp.eq.s32.totalorder %s15, 1
    %p130 = por %p128, %p129
    %p132 = scmp.ne.s32.totalorder %s115, %s131
    %p133 = scmp.eq.s32.totalorder %s15, 0
    %p134 = por %p132, %p133
    %p135 = scmp.le.s32.totalorder 1, %s9
    %p136 = scmp.lt.s32.totalorder %s9, 3
    %p137 = pnand %p135, %p136
    %p138 = pneg %p137
    // Predicated region
    $region9: #{encoder_forward.5} parent=5 // pred_check
      _
    $region10: #{encoder_forward.5} parent=5 // pred_check_branch
      %140 = sbr.rel (%p137) target = $region12
    $region11: #{encoder_forward.5} parent=5 // pred_region
      %s141 = ssub.s32 %s9, 1
      // Predicated region
      $region13: #{encoder_forward.5} parent=11 // pred_check
        %p142 = pneg %p73
      $region14: #{encoder_forward.5} parent=11 // pred_check_branch
        %144 = sbr.rel (%p142) target = $region16
      $region15: #{encoder_forward.5} parent=11 // pred_region
        %p145 = scmp.lt.s32.totalorder %s19, 0
        %s146 = scalar_select %p145, %s19, 0
        %s147 = smul.addr %s146, 4
        %s148 = scalar_lea.vmem %s1, %s147
      $region16: #{encoder_forward.5} parent=11 // pred_fallthru
        _
      // Predicated region
      $region17: #{encoder_forward.5} parent=11 // pred_check
        %p149 = pneg %p99
      $region18: #{encoder_forward.5} parent=11 // pred_check_branch
        %151 = sbr.rel (%p149) target = $region20
      $region19: #{encoder_forward.5} parent=11 // pred_region
        %p152 = scmp.lt.s32.totalorder %s19, 0
        %s153 = scalar_select %p152, %s19, 0
        %s154 = scalar_lea.vmem %s2, %s153
      $region20: #{encoder_forward.5} parent=11 // pred_fallthru
        _
    $region12: #{encoder_forward.5} parent=5 // pred_fallthru
      _
    %p155 = scmp.lt.s32.totalorder %s9, 2
    // Predicated region
    $region21: #{encoder_forward.5} parent=5 // pred_check
      %p156 = pneg %p155
    $region22: #{encoder_forward.5} parent=5 // pred_check_branch
      %158 = sbr.rel (%p156) target = $region24
    $region23: #{encoder_forward.5} parent=5 // pred_region
      // Predicated region
      $region25: #{encoder_forward.5} parent=23 // pred_check
        %p159 = pneg %p41
      $region26: #{encoder_forward.5} parent=23 // pred_check_branch
        %161 = sbr.rel (%p159) target = $region28
      $region27: #{encoder_forward.5} parent=23 // pred_region
        %s162 = smul.u32 128, %s16
        %p163 = scmp.lt.s32.totalorder %s162, 255
        %s164 = scalar_select %p163, %s162, 255
        %s165 = smul.addr %s164, 4
        %s166 = scalar_lea.vmem %s0, %s165
        %s167 = smul.u32 128, %s16
      $region28: #{encoder_forward.5} parent=23 // pred_fallthru
        _
    $region24: #{encoder_forward.5} parent=5 // pred_fallthru
      _
    %p168 = scmp.le.s32.totalorder 1, %s9
    %p169 = scmp.lt.s32.totalorder %s9, 3
    %p170 = pnand %p168, %p169
    %p171 = pneg %p170
    // Predicated region
    $region29: #{encoder_forward.5} parent=5 // pred_check
      _
    $region30: #{encoder_forward.5} parent=5 // pred_check_branch
      %173 = sbr.rel (%p170) target = $region32
    $region31: #{encoder_forward.5} parent=5 // pred_region
      %s174 = ssub.s32 %s9, 1
      %s175 = smul.u32 128, %s18
      %p176 = scmp.lt.s32.totalorder %s175, 255
      %s177 = scalar_select %p176, %s175, 255
      %s178 = smul.addr %s177, 4
      %s179 = scalar_lea.vmem %s0, %s178
      %p180 = pneg %p47
      %p181 = pneg %p44
      %p182 = scmp.lt.s32.totalorder %s19, 0
      %s183 = scalar_select %p182, %s19, 0
      %s184 = smul.addr %s183, 4
      %s185 = scalar_lea.vmem %s1, %s184
      %p186 = pneg %p73
      %p187 = pneg %p70
      %p188 = scmp.lt.s32.totalorder %s19, 0
      %s189 = scalar_select %p188, %s19, 0
      %s190 = scalar_lea.vmem %s2, %s189
      %p191 = pneg %p99
      %p192 = pneg %p96
      %p193 = pneg %p127
      %p194 = pneg %p124
      %s195 = smul.u32 128, %s18
      %p196 = scmp.lt.s32.totalorder %s195, 255
      %s197 = scalar_select %p196, %s195, 255
      %p198 = scmp.lt.s32.totalorder %s19, 0
      %s199 = scalar_select %p198, %s19, 0
      %s200 = sadd.s32 %s199, %s197
      %s201 = smul.addr %s200, 4
      %s202 = scalar_lea.vmem %s3, %s201
      %s203 = smul.u32 128, %s18
      %p204 = scmp.lt.s32.totalorder %s203, 255
      %s205 = scalar_select %p204, %s203, 255
      %s206 = smul.addr %s205, 4
      %s207 = scalar_lea.vmem %s0, %s206
      %s208 = smul.u32 128, %s18
      %p209 = scmp.lt.s32.totalorder %s19, 0
      %s210 = scalar_select %p209, %s19, 0
      %s211 = smul.addr %s210, 4
      %s212 = scalar_lea.vmem %s1, %s211
      %p213 = scmp.lt.s32.totalorder %s19, 0
      %s214 = scalar_select %p213, %s19, 0
      %s215 = scalar_lea.vmem %s2, %s214
      %s216 = smul.u32 128, %s18
      %p217 = scmp.lt.s32.totalorder %s216, 255
      %s218 = scalar_select %p217, %s216, 255
      %p219 = scmp.lt.s32.totalorder %s19, 0
      %s220 = scalar_select %p219, %s19, 0
      %s221 = sadd.s32 %s220, %s218
      %s222 = smul.addr %s221, 4
      %s223 = scalar_lea.vmem %s3, %s222
      %s224 = smul.u32 128, %s18
      %v226 = vld [vmem:[%s207] sm:$0xf]
      %v227 = vld [vmem:[%s207 + $0x4] sm:$0xf]
      %v228 = vld [vmem:[%s207 + $0x8] sm:$0xf]
      %v229 = vld [vmem:[%s207 + $0xc] sm:$0xf]
      %v230 = vld [vmem:[%s207 + $0x10] sm:$0xf]
      %v231 = vld [vmem:[%s207 + $0x14] sm:$0xf]
      %v232 = vld [vmem:[%s207 + $0x18] sm:$0xf]
      %v233 = vld [vmem:[%s207 + $0x1c] sm:$0xf]
      %v234 = vld [vmem:[%s207 + $0x20] sm:$0xf]
      %v235 = vld [vmem:[%s207 + $0x24] sm:$0xf]
      %v236 = vld [vmem:[%s207 + $0x28] sm:$0xf]
      %v237 = vld [vmem:[%s207 + $0x2c] sm:$0xf]
      %v238 = vld [vmem:[%s207 + $0x30] sm:$0xf]
      %v239 = vld [vmem:[%s207 + $0x34] sm:$0xf]
      %v240 = vld [vmem:[%s207 + $0x38] sm:$0xf]
      %v241 = vld [vmem:[%s207 + $0x3c] sm:$0xf]
      %v242 = vld [vmem:[%s207 + $0x40] sm:$0xf]
      %v243 = vld [vmem:[%s207 + $0x44] sm:$0xf]
      %v244 = vld [vmem:[%s207 + $0x48] sm:$0xf]
      %v245 = vld [vmem:[%s207 + $0x4c] sm:$0xf]
      %v246 = vld [vmem:[%s207 + $0x50] sm:$0xf]
      %v247 = vld [vmem:[%s207 + $0x54] sm:$0xf]
      %v248 = vld [vmem:[%s207 + $0x58] sm:$0xf]
      %v249 = vld [vmem:[%s207 + $0x5c] sm:$0xf]
      %v250 = vld [vmem:[%s207 + $0x60] sm:$0xf]
      %v251 = vld [vmem:[%s207 + $0x64] sm:$0xf]
      %v252 = vld [vmem:[%s207 + $0x68] sm:$0xf]
      %v253 = vld [vmem:[%s207 + $0x6c] sm:$0xf]
      %v254 = vld [vmem:[%s207 + $0x70] sm:$0xf]
      %v255 = vld [vmem:[%s207 + $0x74] sm:$0xf]
      %v256 = vld [vmem:[%s207 + $0x78] sm:$0xf]
      %v257 = vld [vmem:[%s207 + $0x7c] sm:$0xf]
      %v258 = vld [vmem:[%s207 + $0x80] sm:$0xf]
      %v259 = vld [vmem:[%s207 + $0x84] sm:$0xf]
      %v260 = vld [vmem:[%s207 + $0x88] sm:$0xf]
      %v261 = vld [vmem:[%s207 + $0x8c] sm:$0xf]
      %v262 = vld [vmem:[%s207 + $0x90] sm:$0xf]
      %v263 = vld [vmem:[%s207 + $0x94] sm:$0xf]
      %v264 = vld [vmem:[%s207 + $0x98] sm:$0xf]
      %v265 = vld [vmem:[%s207 + $0x9c] sm:$0xf]
      %v266 = vld [vmem:[%s207 + $0xa0] sm:$0xf]
      %v267 = vld [vmem:[%s207 + $0xa4] sm:$0xf]
      %v268 = vld [vmem:[%s207 + $0xa8] sm:$0xf]
      %v269 = vld [vmem:[%s207 + $0xac] sm:$0xf]
      %v270 = vld [vmem:[%s207 + $0xb0] sm:$0xf]
      %v271 = vld [vmem:[%s207 + $0xb4] sm:$0xf]
      %v272 = vld [vmem:[%s207 + $0xb8] sm:$0xf]
      %v273 = vld [vmem:[%s207 + $0xbc] sm:$0xf]
      %v274 = vld [vmem:[%s207 + $0xc0] sm:$0xf]
      %v275 = vld [vmem:[%s207 + $0xc4] sm:$0xf]
      %v276 = vld [vmem:[%s207 + $0xc8] sm:$0xf]
      %v277 = vld [vmem:[%s207 + $0xcc] sm:$0xf]
      %v278 = vld [vmem:[%s207 + $0xd0] sm:$0xf]
      %v279 = vld [vmem:[%s207 + $0xd4] sm:$0xf]
      %v280 = vld [vmem:[%s207 + $0xd8] sm:$0xf]
      %v281 = vld [vmem:[%s207 + $0xdc] sm:$0xf]
      %v282 = vld [vmem:[%s207 + $0xe0] sm:$0xf]
      %v283 = vld [vmem:[%s207 + $0xe4] sm:$0xf]
      %v284 = vld [vmem:[%s207 + $0xe8] sm:$0xf]
      %v285 = vld [vmem:[%s207 + $0xec] sm:$0xf]
      %v286 = vld [vmem:[%s207 + $0xf0] sm:$0xf]
      %v287 = vld [vmem:[%s207 + $0xf4] sm:$0xf]
      %v288 = vld [vmem:[%s207 + $0xf8] sm:$0xf]
      %v289 = vld [vmem:[%s207 + $0xfc] sm:$0xf]
      %v290 = vld [vmem:[%s207 + $0x100] sm:$0xf]
      %v291 = vld [vmem:[%s207 + $0x104] sm:$0xf]
      %v292 = vld [vmem:[%s207 + $0x108] sm:$0xf]
      %v293 = vld [vmem:[%s207 + $0x10c] sm:$0xf]
      %v294 = vld [vmem:[%s207 + $0x110] sm:$0xf]
      %v295 = vld [vmem:[%s207 + $0x114] sm:$0xf]
      %v296 = vld [vmem:[%s207 + $0x118] sm:$0xf]
      %v297 = vld [vmem:[%s207 + $0x11c] sm:$0xf]
      %v298 = vld [vmem:[%s207 + $0x120] sm:$0xf]
      %v299 = vld [vmem:[%s207 + $0x124] sm:$0xf]
      %v300 = vld [vmem:[%s207 + $0x128] sm:$0xf]
      %v301 = vld [vmem:[%s207 + $0x12c] sm:$0xf]
      %v302 = vld [vmem:[%s207 + $0x130] sm:$0xf]
      %v303 = vld [vmem:[%s207 + $0x134] sm:$0xf]
      %v304 = vld [vmem:[%s207 + $0x138] sm:$0xf]
      %v305 = vld [vmem:[%s207 + $0x13c] sm:$0xf]
      %v306 = vld [vmem:[%s207 + $0x140] sm:$0xf]
      %v307 = vld [vmem:[%s207 + $0x144] sm:$0xf]
      %v308 = vld [vmem:[%s207 + $0x148] sm:$0xf]
      %v309 = vld [vmem:[%s207 + $0x14c] sm:$0xf]
      %v310 = vld [vmem:[%s207 + $0x150] sm:$0xf]
      %v311 = vld [vmem:[%s207 + $0x154] sm:$0xf]
      %v312 = vld [vmem:[%s207 + $0x158] sm:$0xf]
      %v313 = vld [vmem:[%s207 + $0x15c] sm:$0xf]
      %v314 = vld [vmem:[%s207 + $0x160] sm:$0xf]
      %v315 = vld [vmem:[%s207 + $0x164] sm:$0xf]
      %v316 = vld [vmem:[%s207 + $0x168] sm:$0xf]
      %v317 = vld [vmem:[%s207 + $0x16c] sm:$0xf]
      %v318 = vld [vmem:[%s207 + $0x170] sm:$0xf]
      %v319 = vld [vmem:[%s207 + $0x174] sm:$0xf]
      %v320 = vld [vmem:[%s207 + $0x178] sm:$0xf]
      %v321 = vld [vmem:[%s207 + $0x17c] sm:$0xf]
      %v322 = vld [vmem:[%s207 + $0x180] sm:$0xf]
      %v323 = vld [vmem:[%s207 + $0x184] sm:$0xf]
      %v324 = vld [vmem:[%s207 + $0x188] sm:$0xf]
      %v325 = vld [vmem:[%s207 + $0x18c] sm:$0xf]
      %v326 = vld [vmem:[%s207 + $0x190] sm:$0xf]
      %v327 = vld [vmem:[%s207 + $0x194] sm:$0xf]
      %v328 = vld [vmem:[%s207 + $0x198] sm:$0xf]
      %v329 = vld [vmem:[%s207 + $0x19c] sm:$0xf]
      %v330 = vld [vmem:[%s207 + $0x1a0] sm:$0xf]
      %v331 = vld [vmem:[%s207 + $0x1a4] sm:$0xf]
      %v332 = vld [vmem:[%s207 + $0x1a8] sm:$0xf]
      %v333 = vld [vmem:[%s207 + $0x1ac] sm:$0xf]
      %v334 = vld [vmem:[%s207 + $0x1b0] sm:$0xf]
      %v335 = vld [vmem:[%s207 + $0x1b4] sm:$0xf]
      %v336 = vld [vmem:[%s207 + $0x1b8] sm:$0xf]
      %v337 = vld [vmem:[%s207 + $0x1bc] sm:$0xf]
      %v338 = vld [vmem:[%s207 + $0x1c0] sm:$0xf]
      %v339 = vld [vmem:[%s207 + $0x1c4] sm:$0xf]
      %v340 = vld [vmem:[%s207 + $0x1c8] sm:$0xf]
      %v341 = vld [vmem:[%s207 + $0x1cc] sm:$0xf]
      %v342 = vld [vmem:[%s207 + $0x1d0] sm:$0xf]
      %v343 = vld [vmem:[%s207 + $0x1d4] sm:$0xf]
      %v344 = vld [vmem:[%s207 + $0x1d8] sm:$0xf]
      %v345 = vld [vmem:[%s207 + $0x1dc] sm:$0xf]
      %v346 = vld [vmem:[%s207 + $0x1e0] sm:$0xf]
      %v347 = vld [vmem:[%s207 + $0x1e4] sm:$0xf]
      %v348 = vld [vmem:[%s207 + $0x1e8] sm:$0xf]
      %v349 = vld [vmem:[%s207 + $0x1ec] sm:$0xf]
      %v350 = vld [vmem:[%s207 + $0x1f0] sm:$0xf]
      %v351 = vld [vmem:[%s207 + $0x1f4] sm:$0xf]
      %v352 = vld [vmem:[%s207 + $0x1f8] sm:$0xf]
      %v353 = vld [vmem:[%s207 + $0x1fc] sm:$0xf]
      %v354 = vld [vmem:[%s212] sm:$0xf]
      %v355 = vld [vmem:[%s212 + $0x4] sm:$0xf]
      %v356 = vld [vmem:[%s212 + $0x8] sm:$0xf]
      %v357 = vld [vmem:[%s212 + $0xc] sm:$0xf]
      %v358 = vld [vmem:[%s215] sm:$0x1]
      %v360 = vlaneseq
      %v361 = vshrl.u32 %v360, 7
      %v362 = vsub.s32 0, %v361
      %v363 = vrot.slane %v358, %v362
      %v493 = vunpack.c.l.b16 %v226
      %v494 = vunpack.c.l.b16 %v227
      %v495 = vunpack.c.l.b16 %v228
      %v496 = vunpack.c.l.b16 %v229
      %v497 = vunpack.c.l.b16 %v230
      %v498 = vunpack.c.l.b16 %v231
      %v499 = vunpack.c.l.b16 %v232
      %v500 = vunpack.c.l.b16 %v233
      %v501 = vunpack.c.l.b16 %v234
      %v502 = vunpack.c.l.b16 %v235
      %v503 = vunpack.c.l.b16 %v236
      %v504 = vunpack.c.l.b16 %v237
      %v505 = vunpack.c.l.b16 %v238
      %v506 = vunpack.c.l.b16 %v239
      %v507 = vunpack.c.l.b16 %v240
      %v508 = vunpack.c.l.b16 %v241
      %v509 = vunpack.c.l.b16 %v242
      %v510 = vunpack.c.l.b16 %v243
      %v511 = vunpack.c.l.b16 %v244
      %v512 = vunpack.c.l.b16 %v245
      %v513 = vunpack.c.l.b16 %v246
      %v514 = vunpack.c.l.b16 %v247
      %v515 = vunpack.c.l.b16 %v248
      %v516 = vunpack.c.l.b16 %v249
      %v517 = vunpack.c.l.b16 %v250
      %v518 = vunpack.c.l.b16 %v251
      %v519 = vunpack.c.l.b16 %v252
      %v520 = vunpack.c.l.b16 %v253
      %v521 = vunpack.c.l.b16 %v254
      %v522 = vunpack.c.l.b16 %v255
      %v523 = vunpack.c.l.b16 %v256
      %v524 = vunpack.c.l.b16 %v257
      %v525 = vunpack.c.l.b16 %v258
      %v526 = vunpack.c.l.b16 %v259
      %v527 = vunpack.c.l.b16 %v260
      %v528 = vunpack.c.l.b16 %v261
      %v529 = vunpack.c.l.b16 %v262
      %v530 = vunpack.c.l.b16 %v263
      %v531 = vunpack.c.l.b16 %v264
      %v532 = vunpack.c.l.b16 %v265
      %v533 = vunpack.c.l.b16 %v266
      %v534 = vunpack.c.l.b16 %v267
      %v535 = vunpack.c.l.b16 %v268
      %v536 = vunpack.c.l.b16 %v269
      %v537 = vunpack.c.l.b16 %v270
      %v538 = vunpack.c.l.b16 %v271
      %v539 = vunpack.c.l.b16 %v272
      %v540 = vunpack.c.l.b16 %v273
      %v541 = vunpack.c.l.b16 %v274
      %v542 = vunpack.c.l.b16 %v275
      %v543 = vunpack.c.l.b16 %v276
      %v544 = vunpack.c.l.b16 %v277
      %v545 = vunpack.c.l.b16 %v278
      %v546 = vunpack.c.l.b16 %v279
      %v547 = vunpack.c.l.b16 %v280
      %v548 = vunpack.c.l.b16 %v281
      %v549 = vunpack.c.l.b16 %v282
      %v550 = vunpack.c.l.b16 %v283
      %v551 = vunpack.c.l.b16 %v284
      %v552 = vunpack.c.l.b16 %v285
      %v553 = vunpack.c.l.b16 %v286
      %v554 = vunpack.c.l.b16 %v287
      %v555 = vunpack.c.l.b16 %v288
      %v556 = vunpack.c.l.b16 %v289
      %v557 = vunpack.c.l.b16 %v290
      %v558 = vunpack.c.l.b16 %v291
      %v559 = vunpack.c.l.b16 %v292
      %v560 = vunpack.c.l.b16 %v293
      %v561 = vunpack.c.l.b16 %v294
      %v562 = vunpack.c.l.b16 %v295
      %v563 = vunpack.c.l.b16 %v296
      %v564 = vunpack.c.l.b16 %v297
      %v565 = vunpack.c.l.b16 %v298
      %v566 = vunpack.c.l.b16 %v299
      %v567 = vunpack.c.l.b16 %v300
      %v568 = vunpack.c.l.b16 %v301
      %v569 = vunpack.c.l.b16 %v302
      %v570 = vunpack.c.l.b16 %v303
      %v571 = vunpack.c.l.b16 %v304
      %v572 = vunpack.c.l.b16 %v305
      %v573 = vunpack.c.l.b16 %v306
      %v574 = vunpack.c.l.b16 %v307
      %v575 = vunpack.c.l.b16 %v308
      %v576 = vunpack.c.l.b16 %v309
      %v577 = vunpack.c.l.b16 %v310
      %v578 = vunpack.c.l.b16 %v311
      %v579 = vunpack.c.l.b16 %v312
      %v580 = vunpack.c.l.b16 %v313
      %v581 = vunpack.c.l.b16 %v314
      %v582 = vunpack.c.l.b16 %v315
      %v583 = vunpack.c.l.b16 %v316
      %v584 = vunpack.c.l.b16 %v317
      %v585 = vunpack.c.l.b16 %v318
      %v586 = vunpack.c.l.b16 %v319
      %v587 = vunpack.c.l.b16 %v320
      %v588 = vunpack.c.l.b16 %v321
      %v589 = vunpack.c.l.b16 %v322
      %v590 = vunpack.c.l.b16 %v323
      %v591 = vunpack.c.l.b16 %v324
      %v592 = vunpack.c.l.b16 %v325
      %v593 = vunpack.c.l.b16 %v326
      %v594 = vunpack.c.l.b16 %v327
      %v595 = vunpack.c.l.b16 %v328
      %v596 = vunpack.c.l.b16 %v329
      %v597 = vunpack.c.l.b16 %v330
      %v598 = vunpack.c.l.b16 %v331
      %v599 = vunpack.c.l.b16 %v332
      %v600 = vunpack.c.l.b16 %v333
      %v601 = vunpack.c.l.b16 %v334
      %v602 = vunpack.c.l.b16 %v335
      %v603 = vunpack.c.l.b16 %v336
      %v604 = vunpack.c.l.b16 %v337
      %v605 = vunpack.c.l.b16 %v338
      %v606 = vunpack.c.l.b16 %v339
      %v607 = vunpack.c.l.b16 %v340
      %v608 = vunpack.c.l.b16 %v341
      %v609 = vunpack.c.l.b16 %v342
      %v610 = vunpack.c.l.b16 %v343
      %v611 = vunpack.c.l.b16 %v344
      %v612 = vunpack.c.l.b16 %v345
      %v613 = vunpack.c.l.b16 %v346
      %v614 = vunpack.c.l.b16 %v347
      %v615 = vunpack.c.l.b16 %v348
      %v616 = vunpack.c.l.b16 %v349
      %v617 = vunpack.c.l.b16 %v350
      %v618 = vunpack.c.l.b16 %v351
      %v619 = vunpack.c.l.b16 %v352
      %v620 = vunpack.c.l.b16 %v353
      %v621 = vpack.c.b16 %v494, %v493
      %v622 = vpack.c.b16 %v496, %v495
      %v623 = vpack.c.b16 %v498, %v497
      %v624 = vpack.c.b16 %v500, %v499
      %v625 = vpack.c.b16 %v502, %v501
      %v626 = vpack.c.b16 %v504, %v503
      %v627 = vpack.c.b16 %v506, %v505
      %v628 = vpack.c.b16 %v508, %v507
      %v629 = vpack.c.b16 %v510, %v509
      %v630 = vpack.c.b16 %v512, %v511
      %v631 = vpack.c.b16 %v514, %v513
      %v632 = vpack.c.b16 %v516, %v515
      %v633 = vpack.c.b16 %v518, %v517
      %v634 = vpack.c.b16 %v520, %v519
      %v635 = vpack.c.b16 %v522, %v521
      %v636 = vpack.c.b16 %v524, %v523
      %v637 = vpack.c.b16 %v526, %v525
      %v638 = vpack.c.b16 %v528, %v527
      %v639 = vpack.c.b16 %v530, %v529
      %v640 = vpack.c.b16 %v532, %v531
      %v641 = vpack.c.b16 %v534, %v533
      %v642 = vpack.c.b16 %v536, %v535
      %v643 = vpack.c.b16 %v538, %v537
      %v644 = vpack.c.b16 %v540, %v539
      %v645 = vpack.c.b16 %v542, %v541
      %v646 = vpack.c.b16 %v544, %v543
      %v647 = vpack.c.b16 %v546, %v545
      %v648 = vpack.c.b16 %v548, %v547
      %v649 = vpack.c.b16 %v550, %v549
      %v650 = vpack.c.b16 %v552, %v551
      %v651 = vpack.c.b16 %v554, %v553
      %v652 = vpack.c.b16 %v556, %v555
      %v653 = vpack.c.b16 %v558, %v557
      %v654 = vpack.c.b16 %v560, %v559
      %v655 = vpack.c.b16 %v562, %v561
      %v656 = vpack.c.b16 %v564, %v563
      %v657 = vpack.c.b16 %v566, %v565
      %v658 = vpack.c.b16 %v568, %v567
      %v659 = vpack.c.b16 %v570, %v569
      %v660 = vpack.c.b16 %v572, %v571
      %v661 = vpack.c.b16 %v574, %v573
      %v662 = vpack.c.b16 %v576, %v575
      %v663 = vpack.c.b16 %v578, %v577
      %v664 = vpack.c.b16 %v580, %v579
      %v665 = vpack.c.b16 %v582, %v581
      %v666 = vpack.c.b16 %v584, %v583
      %v667 = vpack.c.b16 %v586, %v585
      %v668 = vpack.c.b16 %v588, %v587
      %v669 = vpack.c.b16 %v590, %v589
      %v670 = vpack.c.b16 %v592, %v591
      %v671 = vpack.c.b16 %v594, %v593
      %v672 = vpack.c.b16 %v596, %v595
      %v673 = vpack.c.b16 %v598, %v597
      %v674 = vpack.c.b16 %v600, %v599
      %v675 = vpack.c.b16 %v602, %v601
      %v676 = vpack.c.b16 %v604, %v603
      %v677 = vpack.c.b16 %v606, %v605
      %v678 = vpack.c.b16 %v608, %v607
      %v679 = vpack.c.b16 %v610, %v609
      %v680 = vpack.c.b16 %v612, %v611
      %v681 = vpack.c.b16 %v614, %v613
      %v682 = vpack.c.b16 %v616, %v615
      %v683 = vpack.c.b16 %v618, %v617
      %v684 = vpack.c.b16 %v620, %v619
      %v689 = vunpack.c.l.b16 %v354
      %v690 = vunpack.c.l.b16 %v355
      %v691 = vunpack.c.l.b16 %v356
      %v692 = vunpack.c.l.b16 %v357
      %v693 = vpack.c.b16 %v690, %v689
      %v694 = vpack.c.b16 %v692, %v691
      %vm697 = vcmask 261120
      %v699 = vsel %vm697, %v621, 0
      %v702 = vsel %vm697, %v622, 0
      %v705 = vsel %vm697, %v623, 0
      %v708 = vsel %vm697, %v624, 0
      %v711 = vsel %vm697, %v625, 0
      %v714 = vsel %vm697, %v626, 0
      %v717 = vsel %vm697, %v627, 0
      %v720 = vsel %vm697, %v628, 0
      %v723 = vsel %vm697, %v629, 0
      %v726 = vsel %vm697, %v630, 0
      %v729 = vsel %vm697, %v631, 0
      %v732 = vsel %vm697, %v632, 0
      %v735 = vsel %vm697, %v633, 0
      %v738 = vsel %vm697, %v634, 0
      %v741 = vsel %vm697, %v635, 0
      %v744 = vsel %vm697, %v636, 0
      %v747 = vsel %vm697, %v637, 0
      %v750 = vsel %vm697, %v638, 0
      %v753 = vsel %vm697, %v639, 0
      %v756 = vsel %vm697, %v640, 0
      %v759 = vsel %vm697, %v641, 0
      %v762 = vsel %vm697, %v642, 0
      %v765 = vsel %vm697, %v643, 0
      %v768 = vsel %vm697, %v644, 0
      %v771 = vsel %vm697, %v645, 0
      %v774 = vsel %vm697, %v646, 0
      %v777 = vsel %vm697, %v647, 0
      %v780 = vsel %vm697, %v648, 0
      %v783 = vsel %vm697, %v649, 0
      %v786 = vsel %vm697, %v650, 0
      %v789 = vsel %vm697, %v651, 0
      %v792 = vsel %vm697, %v652, 0
      %v795 = vsel %vm697, %v653, 0
      %v798 = vsel %vm697, %v654, 0
      %v801 = vsel %vm697, %v655, 0
      %v804 = vsel %vm697, %v656, 0
      %v807 = vsel %vm697, %v657, 0
      %v810 = vsel %vm697, %v658, 0
      %v813 = vsel %vm697, %v659, 0
      %v816 = vsel %vm697, %v660, 0
      %v819 = vsel %vm697, %v661, 0
      %v822 = vsel %vm697, %v662, 0
      %v825 = vsel %vm697, %v663, 0
      %v828 = vsel %vm697, %v664, 0
      %v831 = vsel %vm697, %v665, 0
      %v834 = vsel %vm697, %v666, 0
      %v837 = vsel %vm697, %v667, 0
      %v840 = vsel %vm697, %v668, 0
      %v843 = vsel %vm697, %v669, 0
      %v846 = vsel %vm697, %v670, 0
      %v849 = vsel %vm697, %v671, 0
      %v852 = vsel %vm697, %v672, 0
      %v855 = vsel %vm697, %v673, 0
      %v858 = vsel %vm697, %v674, 0
      %v861 = vsel %vm697, %v675, 0
      %v864 = vsel %vm697, %v676, 0
      %v867 = vsel %vm697, %v677, 0
      %v870 = vsel %vm697, %v678, 0
      %v873 = vsel %vm697, %v679, 0
      %v876 = vsel %vm697, %v680, 0
      %v879 = vsel %vm697, %v681, 0
      %v882 = vsel %vm697, %v682, 0
      %v885 = vsel %vm697, %v683, 0
      %v888 = vsel %vm697, %v684, 0
      %890 = vmatprep.subr.bf16.mxu0 0
      %891 = vmatpush1.bf16.msra.mxu0 %v693
      %892 = vmatprep.subr.bf16.mxu0 0
      %893 = vmatpush1.bf16.msra.mxu0 %v694
      %894 = vmatprep.subr.bf16.mxu0 0
      %895 = vmatpush1.bf16.msra.mxu0 0
      %896 = vmatprep.subr.bf16.mxu0 0
      %897 = vmatpush1.bf16.msra.mxu0 0
      %898 = vmatprep.subr.bf16.mxu0 0
      %899 = vmatpush1.bf16.msra.mxu0 0
      %900 = vmatprep.subr.bf16.mxu0 0
      %901 = vmatpush1.bf16.msra.mxu0 0
      %902 = vmatprep.subr.bf16.mxu0 0
      %903 = vmatpush1.bf16.msra.mxu0 0
      %904 = vmatprep.subr.bf16.mxu0 0
      %905 = vmatpush1.bf16.msra.mxu0 0
      %906 = vmatprep.subr.bf16.mxu0 0
      %907 = vmatpush1.bf16.msra.mxu0 0
      %908 = vmatprep.subr.bf16.mxu0 0
      %909 = vmatpush1.bf16.msra.mxu0 0
      %910 = vmatprep.subr.bf16.mxu0 0
      %911 = vmatpush1.bf16.msra.mxu0 0
      %912 = vmatprep.subr.bf16.mxu0 0
      %913 = vmatpush1.bf16.msra.mxu0 0
      %914 = vmatprep.subr.bf16.mxu0 0
      %915 = vmatpush1.bf16.msra.mxu0 0
      %916 = vmatprep.subr.bf16.mxu0 0
      %917 = vmatpush1.bf16.msra.mxu0 0
      %918 = vmatprep.subr.bf16.mxu0 0
      %919 = vmatpush1.bf16.msra.mxu0 0
      %920 = vmatprep.subr.bf16.mxu0 0
      %921 = vmatpush1.bf16.msra.mxu0 0
      %922 = vmatprep.mubr.bf16.mxu0 0
      %923 = vmatmul.mubr.bf16.gmra.mrb[0].mxu0 %v699
      %v924 = vpop.f32.mrb[0].mxu0
      %v925 = vadd.f32 %v363, %v924
      %v926 = vpop.f32.mrb[0].mxu0
      %v927 = vpop.f32.mrb[0].mxu0
      %v928 = vadd.f32 %v363, %v927
      %v929 = vpop.f32.mrb[0].mxu0
      %930 = vmatprep.mubr.bf16.mxu0 0
      %931 = vmatmul.mubr.bf16.gmra.mrb[0].mxu0 %v702
      %v932 = vpop.f32.mrb[0].mxu0
      %v933 = vadd.f32 %v363, %v932
      %v934 = vpop.f32.mrb[0].mxu0
      %v935 = vpop.f32.mrb[0].mxu0
      %v936 = vadd.f32 %v363, %v935
      %v937 = vpop.f32.mrb[0].mxu0
      %938 = vmatprep.mubr.bf16.mxu0 0
      %939 = vmatmul.mubr.bf16.gmra.mrb[0].mxu0 %v705
      %v940 = vpop.f32.mrb[0].mxu0
      %v941 = vadd.f32 %v363, %v940
      %v942 = vpop.f32.mrb[0].mxu0
      %v943 = vpop.f32.mrb[0].mxu0
      %v944 = vadd.f32 %v363, %v943
      %v945 = vpop.f32.mrb[0].mxu0
      %946 = vmatprep.mubr.bf16.mxu0 0
      %947 = vmatmul.mubr.bf16.gmra.mrb[0].mxu0 %v708
      %v948 = vpop.f32.mrb[0].mxu0
      %v949 = vadd.f32 %v363, %v948
      %v950 = vpop.f32.mrb[0].mxu0
      %v951 = vpop.f32.mrb[0].mxu0
      %v952 = vadd.f32 %v363, %v951
      %v953 = vpop.f32.mrb[0].mxu0
      %954 = vmatprep.mubr.bf16.mxu0 0
      %955 = vmatmul.mubr.bf16.gmra.mrb[0].mxu0 %v711
      %v956 = vpop.f32.mrb[0].mxu0
      %v957 = vadd.f32 %v363, %v956
      %v958 = vpop.f32.mrb[0].mxu0
      %v959 = vpop.f32.mrb[0].mxu0
      %v960 = vadd.f32 %v363, %v959
      %v961 = vpop.f32.mrb[0].mxu0
      %962 = vmatprep.mubr.bf16.mxu0 0
      %963 = vmatmul.mubr.bf16.gmra.mrb[0].mxu0 %v714
      %v964 = vpop.f32.mrb[0].mxu0
      %v965 = vadd.f32 %v363, %v964
      %v966 = vpop.f32.mrb[0].mxu0
      %v967 = vpop.f32.mrb[0].mxu0
      %v968 = vadd.f32 %v363, %v967
      %v969 = vpop.f32.mrb[0].mxu0
      %970 = vmatprep.mubr.bf16.mxu0 0
      %971 = vmatmul.mubr.bf16.gmra.mrb[0].mxu0 %v717
      %v972 = vpop.f32.mrb[0].mxu0
      %v973 = vadd.f32 %v363, %v972
      %v974 = vpop.f32.mrb[0].mxu0
      %v975 = vpop.f32.mrb[0].mxu0
      %v976 = vadd.f32 %v363, %v975
      %v977 = vpop.f32.mrb[0].mxu0
      %978 = vmatprep.mubr.bf16.mxu0 0
      %979 = vmatmul.mubr.bf16.gmra.mrb[0].mxu0 %v720
      %v980 = vpop.f32.mrb[0].mxu0
      %v981 = vadd.f32 %v363, %v980
      %v982 = vpop.f32.mrb[0].mxu0
      %v983 = vpop.f32.mrb[0].mxu0
      %v984 = vadd.f32 %v363, %v983
      %v985 = vpop.f32.mrb[0].mxu0
      %986 = vmatprep.mubr.bf16.mxu0 0
      %987 = vmatmul.mubr.bf16.gmra.mrb[0].mxu0 %v723
      %v988 = vpop.f32.mrb[0].mxu0
      %v989 = vadd.f32 %v363, %v988
      %v990 = vpop.f32.mrb[0].mxu0
      %v991 = vpop.f32.mrb[0].mxu0
      %v992 = vadd.f32 %v363, %v991
      %v993 = vpop.f32.mrb[0].mxu0
      %994 = vmatprep.mubr.bf16.mxu0 0
      %995 = vmatmul.mubr.bf16.gmra.mrb[0].mxu0 %v726
      %v996 = vpop.f32.mrb[0].mxu0
      %v997 = vadd.f32 %v363, %v996
      %v998 = vpop.f32.mrb[0].mxu0
      %v999 = vpop.f32.mrb[0].mxu0
      %v1000 = vadd.f32 %v363, %v999
      %v1001 = vpop.f32.mrb[0].mxu0
      %1002 = vmatprep.mubr.bf16.mxu0 0
      %1003 = vmatmul.mubr.bf16.gmra.mrb[0].mxu0 %v729
      %v1004 = vpop.f32.mrb[0].mxu0
      %v1005 = vadd.f32 %v363, %v1004
      %v1006 = vpop.f32.mrb[0].mxu0
      %v1007 = vpop.f32.mrb[0].mxu0
      %v1008 = vadd.f32 %v363, %v1007
      %v1009 = vpop.f32.mrb[0].mxu0
      %1010 = vmatprep.mubr.bf16.mxu0 0
      %1011 = vmatmul.mubr.bf16.gmra.mrb[0].mxu0 %v732
      %v1012 = vpop.f32.mrb[0].mxu0
      %v1013 = vadd.f32 %v363, %v1012
      %v1014 = vpop.f32.mrb[0].mxu0
      %v1015 = vpop.f32.mrb[0].mxu0
      %v1016 = vadd.f32 %v363, %v1015
      %v1017 = vpop.f32.mrb[0].mxu0
      %1018 = vmatprep.mubr.bf16.mxu0 0
      %1019 = vmatmul.mubr.bf16.gmra.mrb[0].mxu0 %v735
      %v1020 = vpop.f32.mrb[0].mxu0
      %v1021 = vadd.f32 %v363, %v1020
      %v1022 = vpop.f32.mrb[0].mxu0
      %v1023 = vpop.f32.mrb[0].mxu0
      %v1024 = vadd.f32 %v363, %v1023
      %v1025 = vpop.f32.mrb[0].mxu0
      %1026 = vmatprep.mubr.bf16.mxu0 0
      %1027 = vmatmul.mubr.bf16.gmra.mrb[0].mxu0 %v738
      %v1028 = vpop.f32.mrb[0].mxu0
      %v1029 = vadd.f32 %v363, %v1028
      %v1030 = vpop.f32.mrb[0].mxu0
      %v1031 = vpop.f32.mrb[0].mxu0
      %v1032 = vadd.f32 %v363, %v1031
      %v1033 = vpop.f32.mrb[0].mxu0
      %1034 = vmatprep.mubr.bf16.mxu0 0
      %1035 = vmatmul.mubr.bf16.gmra.mrb[0].mxu0 %v741
      %v1036 = vpop.f32.mrb[0].mxu0
      %v1037 = vadd.f32 %v363, %v1036
      %v1038 = vpop.f32.mrb[0].mxu0
      %v1039 = vpop.f32.mrb[0].mxu0
      %v1040 = vadd.f32 %v363, %v1039
      %v1041 = vpop.f32.mrb[0].mxu0
      %1042 = vmatprep.mubr.bf16.mxu0 0
      %1043 = vmatmul.mubr.bf16.gmra.mrb[0].mxu0 %v744
      %v1044 = vpop.f32.mrb[0].mxu0
      %v1045 = vadd.f32 %v363, %v1044
      %v1046 = vpop.f32.mrb[0].mxu0
      %v1047 = vpop.f32.mrb[0].mxu0
      %v1048 = vadd.f32 %v363, %v1047
      %v1049 = vpop.f32.mrb[0].mxu0
      %1050 = vmatprep.mubr.bf16.mxu0 0
      %1051 = vmatmul.mubr.bf16.gmra.mrb[0].mxu0 %v747
      %v1052 = vpop.f32.mrb[0].mxu0
      %v1053 = vadd.f32 %v363, %v1052
      %v1054 = vpop.f32.mrb[0].mxu0
      %v1055 = vpop.f32.mrb[0].mxu0
      %v1056 = vadd.f32 %v363, %v1055
      %v1057 = vpop.f32.mrb[0].mxu0
      %1058 = vmatprep.mubr.bf16.mxu0 0
      %1059 = vmatmul.mubr.bf16.gmra.mrb[0].mxu0 %v750
      %v1060 = vpop.f32.mrb[0].mxu0
      %v1061 = vadd.f32 %v363, %v1060
      %v1062 = vpop.f32.mrb[0].mxu0
      %v1063 = vpop.f32.mrb[0].mxu0
      %v1064 = vadd.f32 %v363, %v1063
      %v1065 = vpop.f32.mrb[0].mxu0
      %1066 = vmatprep.mubr.bf16.mxu0 0
      %1067 = vmatmul.mubr.bf16.gmra.mrb[0].mxu0 %v753
      %v1068 = vpop.f32.mrb[0].mxu0
      %v1069 = vadd.f32 %v363, %v1068
      %v1070 = vpop.f32.mrb[0].mxu0
      %v1071 = vpop.f32.mrb[0].mxu0
      %v1072 = vadd.f32 %v363, %v1071
      %v1073 = vpop.f32.mrb[0].mxu0
      %1074 = vmatprep.mubr.bf16.mxu0 0
      %1075 = vmatmul.mubr.bf16.gmra.mrb[0].mxu0 %v756
      %v1076 = vpop.f32.mrb[0].mxu0
      %v1077 = vadd.f32 %v363, %v1076
      %v1078 = vpop.f32.mrb[0].mxu0
      %v1079 = vpop.f32.mrb[0].mxu0
      %v1080 = vadd.f32 %v363, %v1079
      %v1081 = vpop.f32.mrb[0].mxu0
      %1082 = vmatprep.mubr.bf16.mxu0 0
      %1083 = vmatmul.mubr.bf16.gmra.mrb[0].mxu0 %v759
      %v1084 = vpop.f32.mrb[0].mxu0
      %v1085 = vadd.f32 %v363, %v1084
      %v1086 = vpop.f32.mrb[0].mxu0
      %v1087 = vpop.f32.mrb[0].mxu0
      %v1088 = vadd.f32 %v363, %v1087
      %v1089 = vpop.f32.mrb[0].mxu0
      %1090 = vmatprep.mubr.bf16.mxu0 0
      %1091 = vmatmul.mubr.bf16.gmra.mrb[0].mxu0 %v762
      %v1092 = vpop.f32.mrb[0].mxu0
      %v1093 = vadd.f32 %v363, %v1092
      %v1094 = vpop.f32.mrb[0].mxu0
      %v1095 = vpop.f32.mrb[0].mxu0
      %v1096 = vadd.f32 %v363, %v1095
      %v1097 = vpop.f32.mrb[0].mxu0
      %1098 = vmatprep.mubr.bf16.mxu0 0
      %1099 = vmatmul.mubr.bf16.gmra.mrb[0].mxu0 %v765
      %v1100 = vpop.f32.mrb[0].mxu0
      %v1101 = vadd.f32 %v363, %v1100
      %v1102 = vpop.f32.mrb[0].mxu0
      %v1103 = vpop.f32.mrb[0].mxu0
      %v1104 = vadd.f32 %v363, %v1103
      %v1105 = vpop.f32.mrb[0].mxu0
      %1106 = vmatprep.mubr.bf16.mxu0 0
      %1107 = vmatmul.mubr.bf16.gmra.mrb[0].mxu0 %v768
      %v1108 = vpop.f32.mrb[0].mxu0
      %v1109 = vadd.f32 %v363, %v1108
      %v1110 = vpop.f32.mrb[0].mxu0
      %v1111 = vpop.f32.mrb[0].mxu0
      %v1112 = vadd.f32 %v363, %v1111
      %v1113 = vpop.f32.mrb[0].mxu0
      %1114 = vmatprep.mubr.bf16.mxu0 0
      %1115 = vmatmul.mubr.bf16.gmra.mrb[0].mxu0 %v771
      %v1116 = vpop.f32.mrb[0].mxu0
      %v1117 = vadd.f32 %v363, %v1116
      %v1118 = vpop.f32.mrb[0].mxu0
      %v1119 = vpop.f32.mrb[0].mxu0
      %v1120 = vadd.f32 %v363, %v1119
      %v1121 = vpop.f32.mrb[0].mxu0
      %1122 = vmatprep.mubr.bf16.mxu0 0
      %1123 = vmatmul.mubr.bf16.gmra.mrb[0].mxu0 %v774
      %v1124 = vpop.f32.mrb[0].mxu0
      %v1125 = vadd.f32 %v363, %v1124
      %v1126 = vpop.f32.mrb[0].mxu0
      %v1127 = vpop.f32.mrb[0].mxu0
      %v1128 = vadd.f32 %v363, %v1127
      %v1129 = vpop.f32.mrb[0].mxu0
      %1130 = vmatprep.mubr.bf16.mxu0 0
      %1131 = vmatmul.mubr.bf16.gmra.mrb[0].mxu0 %v777
      %v1132 = vpop.f32.mrb[0].mxu0
      %v1133 = vadd.f32 %v363, %v1132
      %v1134 = vpop.f32.mrb[0].mxu0
      %v1135 = vpop.f32.mrb[0].mxu0
      %v1136 = vadd.f32 %v363, %v1135
      %v1137 = vpop.f32.mrb[0].mxu0
      %1138 = vmatprep.mubr.bf16.mxu0 0
      %1139 = vmatmul.mubr.bf16.gmra.mrb[0].mxu0 %v780
      %v1140 = vpop.f32.mrb[0].mxu0
      %v1141 = vadd.f32 %v363, %v1140
      %v1142 = vpop.f32.mrb[0].mxu0
      %v1143 = vpop.f32.mrb[0].mxu0
      %v1144 = vadd.f32 %v363, %v1143
      %v1145 = vpop.f32.mrb[0].mxu0
      %1146 = vmatprep.mubr.bf16.mxu0 0
      %1147 = vmatmul.mubr.bf16.gmra.mrb[0].mxu0 %v783
      %v1148 = vpop.f32.mrb[0].mxu0
      %v1149 = vadd.f32 %v363, %v1148
      %v1150 = vpop.f32.mrb[0].mxu0
      %v1151 = vpop.f32.mrb[0].mxu0
      %v1152 = vadd.f32 %v363, %v1151
      %v1153 = vpop.f32.mrb[0].mxu0
      %1154 = vmatprep.mubr.bf16.mxu0 0
      %1155 = vmatmul.mubr.bf16.gmra.mrb[0].mxu0 %v786
      %v1156 = vpop.f32.mrb[0].mxu0
      %v1157 = vadd.f32 %v363, %v1156
      %v1158 = vpop.f32.mrb[0].mxu0
      %v1159 = vpop.f32.mrb[0].mxu0
      %v1160 = vadd.f32 %v363, %v1159
      %v1161 = vpop.f32.mrb[0].mxu0
      %1162 = vmatprep.mubr.bf16.mxu0 0
      %1163 = vmatmul.mubr.bf16.gmra.mrb[0].mxu0 %v789
      %v1164 = vpop.f32.mrb[0].mxu0
      %v1165 = vadd.f32 %v363, %v1164
      %v1166 = vpop.f32.mrb[0].mxu0
      %v1167 = vpop.f32.mrb[0].mxu0
      %v1168 = vadd.f32 %v363, %v1167
      %v1169 = vpop.f32.mrb[0].mxu0
      %1170 = vmatprep.mubr.bf16.mxu0 0
      %1171 = vmatmul.mubr.bf16.gmra.mrb[0].mxu0 %v792
      %v1172 = vpop.f32.mrb[0].mxu0
      %v1173 = vadd.f32 %v363, %v1172
      %v1174 = vpop.f32.mrb[0].mxu0
      %v1175 = vpop.f32.mrb[0].mxu0
      %v1176 = vadd.f32 %v363, %v1175
      %v1177 = vpop.f32.mrb[0].mxu0
      %1178 = vmatprep.mubr.bf16.mxu0 0
      %1179 = vmatmul.mubr.bf16.gmra.mrb[0].mxu0 %v795
      %v1180 = vpop.f32.mrb[0].mxu0
      %v1181 = vadd.f32 %v363, %v1180
      %v1182 = vpop.f32.mrb[0].mxu0
      %v1183 = vpop.f32.mrb[0].mxu0
      %v1184 = vadd.f32 %v363, %v1183
      %v1185 = vpop.f32.mrb[0].mxu0
      %1186 = vmatprep.mubr.bf16.mxu0 0
      %1187 = vmatmul.mubr.bf16.gmra.mrb[0].mxu0 %v798
      %v1188 = vpop.f32.mrb[0].mxu0
      %v1189 = vadd.f32 %v363, %v1188
      %v1190 = vpop.f32.mrb[0].mxu0
      %v1191 = vpop.f32.mrb[0].mxu0
      %v1192 = vadd.f32 %v363, %v1191
      %v1193 = vpop.f32.mrb[0].mxu0
      %1194 = vmatprep.mubr.bf16.mxu0 0
      %1195 = vmatmul.mubr.bf16.gmra.mrb[0].mxu0 %v801
      %v1196 = vpop.f32.mrb[0].mxu0
      %v1197 = vadd.f32 %v363, %v1196
      %v1198 = vpop.f32.mrb[0].mxu0
      %v1199 = vpop.f32.mrb[0].mxu0
      %v1200 = vadd.f32 %v363, %v1199
      %v1201 = vpop.f32.mrb[0].mxu0
      %1202 = vmatprep.mubr.bf16.mxu0 0
      %1203 = vmatmul.mubr.bf16.gmra.mrb[0].mxu0 %v804
      %v1204 = vpop.f32.mrb[0].mxu0
      %v1205 = vadd.f32 %v363, %v1204
      %v1206 = vpop.f32.mrb[0].mxu0
      %v1207 = vpop.f32.mrb[0].mxu0
      %v1208 = vadd.f32 %v363, %v1207
      %v1209 = vpop.f32.mrb[0].mxu0
      %1210 = vmatprep.mubr.bf16.mxu0 0
      %1211 = vmatmul.mubr.bf16.gmra.mrb[0].mxu0 %v807
      %v1212 = vpop.f32.mrb[0].mxu0
      %v1213 = vadd.f32 %v363, %v1212
      %v1214 = vpop.f32.mrb[0].mxu0
      %v1215 = vpop.f32.mrb[0].mxu0
      %v1216 = vadd.f32 %v363, %v1215
      %v1217 = vpop.f32.mrb[0].mxu0
      %1218 = vmatprep.mubr.bf16.mxu0 0
      %1219 = vmatmul.mubr.bf16.gmra.mrb[0].mxu0 %v810
      %v1220 = vpop.f32.mrb[0].mxu0
      %v1221 = vadd.f32 %v363, %v1220
      %v1222 = vpop.f32.mrb[0].mxu0
      %v1223 = vpop.f32.mrb[0].mxu0
      %v1224 = vadd.f32 %v363, %v1223
      %v1225 = vpop.f32.mrb[0].mxu0
      %1226 = vmatprep.mubr.bf16.mxu0 0
      %1227 = vmatmul.mubr.bf16.gmra.mrb[0].mxu0 %v813
      %v1228 = vpop.f32.mrb[0].mxu0
      %v1229 = vadd.f32 %v363, %v1228
      %v1230 = vpop.f32.mrb[0].mxu0
      %v1231 = vpop.f32.mrb[0].mxu0
      %v1232 = vadd.f32 %v363, %v1231
      %v1233 = vpop.f32.mrb[0].mxu0
      %1234 = vmatprep.mubr.bf16.mxu0 0
      %1235 = vmatmul.mubr.bf16.gmra.mrb[0].mxu0 %v816
      %v1236 = vpop.f32.mrb[0].mxu0
      %v1237 = vadd.f32 %v363, %v1236
      %v1238 = vpop.f32.mrb[0].mxu0
      %v1239 = vpop.f32.mrb[0].mxu0
      %v1240 = vadd.f32 %v363, %v1239
      %v1241 = vpop.f32.mrb[0].mxu0
      %1242 = vmatprep.mubr.bf16.mxu0 0
      %1243 = vmatmul.mubr.bf16.gmra.mrb[0].mxu0 %v819
      %v1244 = vpop.f32.mrb[0].mxu0
      %v1245 = vadd.f32 %v363, %v1244
      %v1246 = vpop.f32.mrb[0].mxu0
      %v1247 = vpop.f32.mrb[0].mxu0
      %v1248 = vadd.f32 %v363, %v1247
      %v1249 = vpop.f32.mrb[0].mxu0
      %1250 = vmatprep.mubr.bf16.mxu0 0
      %1251 = vmatmul.mubr.bf16.gmra.mrb[0].mxu0 %v822
      %v1252 = vpop.f32.mrb[0].mxu0
      %v1253 = vadd.f32 %v363, %v1252
      %v1254 = vpop.f32.mrb[0].mxu0
      %v1255 = vpop.f32.mrb[0].mxu0
      %v1256 = vadd.f32 %v363, %v1255
      %v1257 = vpop.f32.mrb[0].mxu0
      %1258 = vmatprep.mubr.bf16.mxu0 0
      %1259 = vmatmul.mubr.bf16.gmra.mrb[0].mxu0 %v825
      %v1260 = vpop.f32.mrb[0].mxu0
      %v1261 = vadd.f32 %v363, %v1260
      %v1262 = vpop.f32.mrb[0].mxu0
      %v1263 = vpop.f32.mrb[0].mxu0
      %v1264 = vadd.f32 %v363, %v1263
      %v1265 = vpop.f32.mrb[0].mxu0
      %1266 = vmatprep.mubr.bf16.mxu0 0
      %1267 = vmatmul.mubr.bf16.gmra.mrb[0].mxu0 %v828
      %v1268 = vpop.f32.mrb[0].mxu0
      %v1269 = vadd.f32 %v363, %v1268
      %v1270 = vpop.f32.mrb[0].mxu0
      %v1271 = vpop.f32.mrb[0].mxu0
      %v1272 = vadd.f32 %v363, %v1271
      %v1273 = vpop.f32.mrb[0].mxu0
      %1274 = vmatprep.mubr.bf16.mxu0 0
      %1275 = vmatmul.mubr.bf16.gmra.mrb[0].mxu0 %v831
      %v1276 = vpop.f32.mrb[0].mxu0
      %v1277 = vadd.f32 %v363, %v1276
      %v1278 = vpop.f32.mrb[0].mxu0
      %v1279 = vpop.f32.mrb[0].mxu0
      %v1280 = vadd.f32 %v363, %v1279
      %v1281 = vpop.f32.mrb[0].mxu0
      %1282 = vmatprep.mubr.bf16.mxu0 0
      %1283 = vmatmul.mubr.bf16.gmra.mrb[0].mxu0 %v834
      %v1284 = vpop.f32.mrb[0].mxu0
      %v1285 = vadd.f32 %v363, %v1284
      %v1286 = vpop.f32.mrb[0].mxu0
      %v1287 = vpop.f32.mrb[0].mxu0
      %v1288 = vadd.f32 %v363, %v1287
      %v1289 = vpop.f32.mrb[0].mxu0
      %1290 = vmatprep.mubr.bf16.mxu0 0
      %1291 = vmatmul.mubr.bf16.gmra.mrb[0].mxu0 %v837
      %v1292 = vpop.f32.mrb[0].mxu0
      %v1293 = vadd.f32 %v363, %v1292
      %v1294 = vpop.f32.mrb[0].mxu0
      %v1295 = vpop.f32.mrb[0].mxu0
      %v1296 = vadd.f32 %v363, %v1295
      %v1297 = vpop.f32.mrb[0].mxu0
      %1298 = vmatprep.mubr.bf16.mxu0 0
      %1299 = vmatmul.mubr.bf16.gmra.mrb[0].mxu0 %v840
      %v1300 = vpop.f32.mrb[0].mxu0
      %v1301 = vadd.f32 %v363, %v1300
      %v1302 = vpop.f32.mrb[0].mxu0
      %v1303 = vpop.f32.mrb[0].mxu0
      %v1304 = vadd.f32 %v363, %v1303
      %v1305 = vpop.f32.mrb[0].mxu0
      %1306 = vmatprep.mubr.bf16.mxu0 0
      %1307 = vmatmul.mubr.bf16.gmra.mrb[0].mxu0 %v843
      %v1308 = vpop.f32.mrb[0].mxu0
      %v1309 = vadd.f32 %v363, %v1308
      %v1310 = vpop.f32.mrb[0].mxu0
      %v1311 = vpop.f32.mrb[0].mxu0
      %v1312 = vadd.f32 %v363, %v1311
      %v1313 = vpop.f32.mrb[0].mxu0
      %1314 = vmatprep.mubr.bf16.mxu0 0
      %1315 = vmatmul.mubr.bf16.gmra.mrb[0].mxu0 %v846
      %v1316 = vpop.f32.mrb[0].mxu0
      %v1317 = vadd.f32 %v363, %v1316
      %v1318 = vpop.f32.mrb[0].mxu0
      %v1319 = vpop.f32.mrb[0].mxu0
      %v1320 = vadd.f32 %v363, %v1319
      %v1321 = vpop.f32.mrb[0].mxu0
      %1322 = vmatprep.mubr.bf16.mxu0 0
      %1323 = vmatmul.mubr.bf16.gmra.mrb[0].mxu0 %v849
      %v1324 = vpop.f32.mrb[0].mxu0
      %v1325 = vadd.f32 %v363, %v1324
      %v1326 = vpop.f32.mrb[0].mxu0
      %v1327 = vpop.f32.mrb[0].mxu0
      %v1328 = vadd.f32 %v363, %v1327
      %v1329 = vpop.f32.mrb[0].mxu0
      %1330 = vmatprep.mubr.bf16.mxu0 0
      %1331 = vmatmul.mubr.bf16.gmra.mrb[0].mxu0 %v852
      %v1332 = vpop.f32.mrb[0].mxu0
      %v1333 = vadd.f32 %v363, %v1332
      %v1334 = vpop.f32.mrb[0].mxu0
      %v1335 = vpop.f32.mrb[0].mxu0
      %v1336 = vadd.f32 %v363, %v1335
      %v1337 = vpop.f32.mrb[0].mxu0
      %1338 = vmatprep.mubr.bf16.mxu0 0
      %1339 = vmatmul.mubr.bf16.gmra.mrb[0].mxu0 %v855
      %v1340 = vpop.f32.mrb[0].mxu0
      %v1341 = vadd.f32 %v363, %v1340
      %v1342 = vpop.f32.mrb[0].mxu0
      %v1343 = vpop.f32.mrb[0].mxu0
      %v1344 = vadd.f32 %v363, %v1343
      %v1345 = vpop.f32.mrb[0].mxu0
      %1346 = vmatprep.mubr.bf16.mxu0 0
      %1347 = vmatmul.mubr.bf16.gmra.mrb[0].mxu0 %v858
      %v1348 = vpop.f32.mrb[0].mxu0
      %v1349 = vadd.f32 %v363, %v1348
      %v1350 = vpop.f32.mrb[0].mxu0
      %v1351 = vpop.f32.mrb[0].mxu0
      %v1352 = vadd.f32 %v363, %v1351
      %v1353 = vpop.f32.mrb[0].mxu0
      %1354 = vmatprep.mubr.bf16.mxu0 0
      %1355 = vmatmul.mubr.bf16.gmra.mrb[0].mxu0 %v861
      %v1356 = vpop.f32.mrb[0].mxu0
      %v1357 = vadd.f32 %v363, %v1356
      %v1358 = vpop.f32.mrb[0].mxu0
      %v1359 = vpop.f32.mrb[0].mxu0
      %v1360 = vadd.f32 %v363, %v1359
      %v1361 = vpop.f32.mrb[0].mxu0
      %1362 = vmatprep.mubr.bf16.mxu0 0
      %1363 = vmatmul.mubr.bf16.gmra.mrb[0].mxu0 %v864
      %v1364 = vpop.f32.mrb[0].mxu0
      %v1365 = vadd.f32 %v363, %v1364
      %v1366 = vpop.f32.mrb[0].mxu0
      %v1367 = vpop.f32.mrb[0].mxu0
      %v1368 = vadd.f32 %v363, %v1367
      %v1369 = vpop.f32.mrb[0].mxu0
      %1370 = vmatprep.mubr.bf16.mxu0 0
      %1371 = vmatmul.mubr.bf16.gmra.mrb[0].mxu0 %v867
      %v1372 = vpop.f32.mrb[0].mxu0
      %v1373 = vadd.f32 %v363, %v1372
      %v1374 = vpop.f32.mrb[0].mxu0
      %v1375 = vpop.f32.mrb[0].mxu0
      %v1376 = vadd.f32 %v363, %v1375
      %v1377 = vpop.f32.mrb[0].mxu0
      %1378 = vmatprep.mubr.bf16.mxu0 0
      %1379 = vmatmul.mubr.bf16.gmra.mrb[0].mxu0 %v870
      %v1380 = vpop.f32.mrb[0].mxu0
      %v1381 = vadd.f32 %v363, %v1380
      %v1382 = vpop.f32.mrb[0].mxu0
      %v1383 = vpop.f32.mrb[0].mxu0
      %v1384 = vadd.f32 %v363, %v1383
      %v1385 = vpop.f32.mrb[0].mxu0
      %1386 = vmatprep.mubr.bf16.mxu0 0
      %1387 = vmatmul.mubr.bf16.gmra.mrb[0].mxu0 %v873
      %v1388 = vpop.f32.mrb[0].mxu0
      %v1389 = vadd.f32 %v363, %v1388
      %v1390 = vpop.f32.mrb[0].mxu0
      %v1391 = vpop.f32.mrb[0].mxu0
      %v1392 = vadd.f32 %v363, %v1391
      %v1393 = vpop.f32.mrb[0].mxu0
      %1394 = vmatprep.mubr.bf16.mxu0 0
      %1395 = vmatmul.mubr.bf16.gmra.mrb[0].mxu0 %v876
      %v1396 = vpop.f32.mrb[0].mxu0
      %v1397 = vadd.f32 %v363, %v1396
      %v1398 = vpop.f32.mrb[0].mxu0
      %v1399 = vpop.f32.mrb[0].mxu0
      %v1400 = vadd.f32 %v363, %v1399
      %v1401 = vpop.f32.mrb[0].mxu0
      %1402 = vmatprep.mubr.bf16.mxu0 0
      %1403 = vmatmul.mubr.bf16.gmra.mrb[0].mxu0 %v879
      %v1404 = vpop.f32.mrb[0].mxu0
      %v1405 = vadd.f32 %v363, %v1404
      %v1406 = vpop.f32.mrb[0].mxu0
      %v1407 = vpop.f32.mrb[0].mxu0
      %v1408 = vadd.f32 %v363, %v1407
      %v1409 = vpop.f32.mrb[0].mxu0
      %1410 = vmatprep.mubr.bf16.mxu0 0
      %1411 = vmatmul.mubr.bf16.gmra.mrb[0].mxu0 %v882
      %v1412 = vpop.f32.mrb[0].mxu0
      %v1413 = vadd.f32 %v363, %v1412
      %v1414 = vpop.f32.mrb[0].mxu0
      %v1415 = vpop.f32.mrb[0].mxu0
      %v1416 = vadd.f32 %v363, %v1415
      %v1417 = vpop.f32.mrb[0].mxu0
      %1418 = vmatprep.mubr.bf16.mxu0 0
      %1419 = vmatmul.mubr.bf16.gmra.mrb[0].mxu0 %v885
      %v1420 = vpop.f32.mrb[0].mxu0
      %v1421 = vadd.f32 %v363, %v1420
      %v1422 = vpop.f32.mrb[0].mxu0
      %v1423 = vpop.f32.mrb[0].mxu0
      %v1424 = vadd.f32 %v363, %v1423
      %v1425 = vpop.f32.mrb[0].mxu0
      %1426 = vmatprep.mubr.bf16.mxu0 0
      %1427 = vmatmul.mubr.bf16.gmra.mrb[0].mxu0 %v888
      %v1428 = vpop.f32.mrb[0].mxu0
      %v1429 = vadd.f32 %v363, %v1428
      %v1430 = vpop.f32.mrb[0].mxu0
      %v1431 = vpop.f32.mrb[0].mxu0
      %v1432 = vadd.f32 %v363, %v1431
      %v1433 = vpop.f32.mrb[0].mxu0
      %1434 = vdwg.mxu0
      %v1435 = vmul.f32 %v925, 0.2
      %v1436 = vmul.f32 %v928, 0.2
      %v1437 = vmul.f32 %v933, 0.2
      %v1438 = vmul.f32 %v936, 0.2
      %v1439 = vmul.f32 %v941, 0.2
      %v1440 = vmul.f32 %v944, 0.2
      %v1441 = vmul.f32 %v949, 0.2
      %v1442 = vmul.f32 %v952, 0.2
      %v1443 = vmul.f32 %v957, 0.2
      %v1444 = vmul.f32 %v960, 0.2
      %v1445 = vmul.f32 %v965, 0.2
      %v1446 = vmul.f32 %v968, 0.2
      %v1447 = vmul.f32 %v973, 0.2
      %v1448 = vmul.f32 %v976, 0.2
      %v1449 = vmul.f32 %v981, 0.2
      %v1450 = vmul.f32 %v984, 0.2
      %v1451 = vmul.f32 %v989, 0.2
      %v1452 = vmul.f32 %v992, 0.2
      %v1453 = vmul.f32 %v997, 0.2
      %v1454 = vmul.f32 %v1000, 0.2
      %v1455 = vmul.f32 %v1005, 0.2
      %v1456 = vmul.f32 %v1008, 0.2
      %v1457 = vmul.f32 %v1013, 0.2
      %v1458 = vmul.f32 %v1016, 0.2
      %v1459 = vmul.f32 %v1021, 0.2
      %v1460 = vmul.f32 %v1024, 0.2
      %v1461 = vmul.f32 %v1029, 0.2
      %v1462 = vmul.f32 %v1032, 0.2
      %v1463 = vmul.f32 %v1037, 0.2
      %v1464 = vmul.f32 %v1040, 0.2
      %v1465 = vmul.f32 %v1045, 0.2
      %v1466 = vmul.f32 %v1048, 0.2
      %v1467 = vmul.f32 %v1053, 0.2
      %v1468 = vmul.f32 %v1056, 0.2
      %v1469 = vmul.f32 %v1061, 0.2
      %v1470 = vmul.f32 %v1064, 0.2
      %v1471 = vmul.f32 %v1069, 0.2
      %v1472 = vmul.f32 %v1072, 0.2
      %v1473 = vmul.f32 %v1077, 0.2
      %v1474 = vmul.f32 %v1080, 0.2
      %v1475 = vmul.f32 %v1085, 0.2
      %v1476 = vmul.f32 %v1088, 0.2
      %v1477 = vmul.f32 %v1093, 0.2
      %v1478 = vmul.f32 %v1096, 0.2
      %v1479 = vmul.f32 %v1101, 0.2
      %v1480 = vmul.f32 %v1104, 0.2
      %v1481 = vmul.f32 %v1109, 0.2
      %v1482 = vmul.f32 %v1112, 0.2
      %v1483 = vmul.f32 %v1117, 0.2
      %v1484 = vmul.f32 %v1120, 0.2
      %v1485 = vmul.f32 %v1125, 0.2
      %v1486 = vmul.f32 %v1128, 0.2
      %v1487 = vmul.f32 %v1133, 0.2
      %v1488 = vmul.f32 %v1136, 0.2
      %v1489 = vmul.f32 %v1141, 0.2
      %v1490 = vmul.f32 %v1144, 0.2
      %v1491 = vmul.f32 %v1149, 0.2
      %v1492 = vmul.f32 %v1152, 0.2
      %v1493 = vmul.f32 %v1157, 0.2
      %v1494 = vmul.f32 %v1160, 0.2
      %v1495 = vmul.f32 %v1165, 0.2
      %v1496 = vmul.f32 %v1168, 0.2
      %v1497 = vmul.f32 %v1173, 0.2
      %v1498 = vmul.f32 %v1176, 0.2
      %v1499 = vmul.f32 %v1181, 0.2
      %v1500 = vmul.f32 %v1184, 0.2
      %v1501 = vmul.f32 %v1189, 0.2
      %v1502 = vmul.f32 %v1192, 0.2
      %v1503 = vmul.f32 %v1197, 0.2
      %v1504 = vmul.f32 %v1200, 0.2
      %v1505 = vmul.f32 %v1205, 0.2
      %v1506 = vmul.f32 %v1208, 0.2
      %v1507 = vmul.f32 %v1213, 0.2
      %v1508 = vmul.f32 %v1216, 0.2
      %v1509 = vmul.f32 %v1221, 0.2
      %v1510 = vmul.f32 %v1224, 0.2
      %v1511 = vmul.f32 %v1229, 0.2
      %v1512 = vmul.f32 %v1232, 0.2
      %v1513 = vmul.f32 %v1237, 0.2
      %v1514 = vmul.f32 %v1240, 0.2
      %v1515 = vmul.f32 %v1245, 0.2
      %v1516 = vmul.f32 %v1248, 0.2
      %v1517 = vmul.f32 %v1253, 0.2
      %v1518 = vmul.f32 %v1256, 0.2
      %v1519 = vmul.f32 %v1261, 0.2
      %v1520 = vmul.f32 %v1264, 0.2
      %v1521 = vmul.f32 %v1269, 0.2
      %v1522 = vmul.f32 %v1272, 0.2
      %v1523 = vmul.f32 %v1277, 0.2
      %v1524 = vmul.f32 %v1280, 0.2
      %v1525 = vmul.f32 %v1285, 0.2
      %v1526 = vmul.f32 %v1288, 0.2
      %v1527 = vmul.f32 %v1293, 0.2
      %v1528 = vmul.f32 %v1296, 0.2
      %v1529 = vmul.f32 %v1301, 0.2
      %v1530 = vmul.f32 %v1304, 0.2
      %v1531 = vmul.f32 %v1309, 0.2
      %v1532 = vmul.f32 %v1312, 0.2
      %v1533 = vmul.f32 %v1317, 0.2
      %v1534 = vmul.f32 %v1320, 0.2
      %v1535 = vmul.f32 %v1325, 0.2
      %v1536 = vmul.f32 %v1328, 0.2
      %v1537 = vmul.f32 %v1333, 0.2
      %v1538 = vmul.f32 %v1336, 0.2
      %v1539 = vmul.f32 %v1341, 0.2
      %v1540 = vmul.f32 %v1344, 0.2
      %v1541 = vmul.f32 %v1349, 0.2
      %v1542 = vmul.f32 %v1352, 0.2
      %v1543 = vmul.f32 %v1357, 0.2
      %v1544 = vmul.f32 %v1360, 0.2
      %v1545 = vmul.f32 %v1365, 0.2
      %v1546 = vmul.f32 %v1368, 0.2
      %v1547 = vmul.f32 %v1373, 0.2
      %v1548 = vmul.f32 %v1376, 0.2
      %v1549 = vmul.f32 %v1381, 0.2
      %v1550 = vmul.f32 %v1384, 0.2
      %v1551 = vmul.f32 %v1389, 0.2
      %v1552 = vmul.f32 %v1392, 0.2
      %v1553 = vmul.f32 %v1397, 0.2
      %v1554 = vmul.f32 %v1400, 0.2
      %v1555 = vmul.f32 %v1405, 0.2
      %v1556 = vmul.f32 %v1408, 0.2
      %v1557 = vmul.f32 %v1413, 0.2
      %v1558 = vmul.f32 %v1416, 0.2
      %v1559 = vmul.f32 %v1421, 0.2
      %v1560 = vmul.f32 %v1424, 0.2
      %v1561 = vmul.f32 %v1429, 0.2
      %v1562 = vmul.f32 %v1432, 0.2
      %v1563 = vmax.f32 %v925, %v1435
      %v1564 = vmax.f32 %v928, %v1436
      %v1565 = vmax.f32 %v933, %v1437
      %v1566 = vmax.f32 %v936, %v1438
      %v1567 = vmax.f32 %v941, %v1439
      %v1568 = vmax.f32 %v944, %v1440
      %v1569 = vmax.f32 %v949, %v1441
      %v1570 = vmax.f32 %v952, %v1442
      %v1571 = vmax.f32 %v957, %v1443
      %v1572 = vmax.f32 %v960, %v1444
      %v1573 = vmax.f32 %v965, %v1445
      %v1574 = vmax.f32 %v968, %v1446
      %v1575 = vmax.f32 %v973, %v1447
      %v1576 = vmax.f32 %v976, %v1448
      %v1577 = vmax.f32 %v981, %v1449
      %v1578 = vmax.f32 %v984, %v1450
      %v1579 = vmax.f32 %v989, %v1451
      %v1580 = vmax.f32 %v992, %v1452
      %v1581 = vmax.f32 %v997, %v1453
      %v1582 = vmax.f32 %v1000, %v1454
      %v1583 = vmax.f32 %v1005, %v1455
      %v1584 = vmax.f32 %v1008, %v1456
      %v1585 = vmax.f32 %v1013, %v1457
      %v1586 = vmax.f32 %v1016, %v1458
      %v1587 = vmax.f32 %v1021, %v1459
      %v1588 = vmax.f32 %v1024, %v1460
      %v1589 = vmax.f32 %v1029, %v1461
      %v1590 = vmax.f32 %v1032, %v1462
      %v1591 = vmax.f32 %v1037, %v1463
      %v1592 = vmax.f32 %v1040, %v1464
      %v1593 = vmax.f32 %v1045, %v1465
      %v1594 = vmax.f32 %v1048, %v1466
      %v1595 = vmax.f32 %v1053, %v1467
      %v1596 = vmax.f32 %v1056, %v1468
      %v1597 = vmax.f32 %v1061, %v1469
      %v1598 = vmax.f32 %v1064, %v1470
      %v1599 = vmax.f32 %v1069, %v1471
      %v1600 = vmax.f32 %v1072, %v1472
      %v1601 = vmax.f32 %v1077, %v1473
      %v1602 = vmax.f32 %v1080, %v1474
      %v1603 = vmax.f32 %v1085, %v1475
      %v1604 = vmax.f32 %v1088, %v1476
      %v1605 = vmax.f32 %v1093, %v1477
      %v1606 = vmax.f32 %v1096, %v1478
      %v1607 = vmax.f32 %v1101, %v1479
      %v1608 = vmax.f32 %v1104, %v1480
      %v1609 = vmax.f32 %v1109, %v1481
      %v1610 = vmax.f32 %v1112, %v1482
      %v1611 = vmax.f32 %v1117, %v1483
      %v1612 = vmax.f32 %v1120, %v1484
      %v1613 = vmax.f32 %v1125, %v1485
      %v1614 = vmax.f32 %v1128, %v1486
      %v1615 = vmax.f32 %v1133, %v1487
      %v1616 = vmax.f32 %v1136, %v1488
      %v1617 = vmax.f32 %v1141, %v1489
      %v1618 = vmax.f32 %v1144, %v1490
      %v1619 = vmax.f32 %v1149, %v1491
      %v1620 = vmax.f32 %v1152, %v1492
      %v1621 = vmax.f32 %v1157, %v1493
      %v1622 = vmax.f32 %v1160, %v1494
      %v1623 = vmax.f32 %v1165, %v1495
      %v1624 = vmax.f32 %v1168, %v1496
      %v1625 = vmax.f32 %v1173, %v1497
      %v1626 = vmax.f32 %v1176, %v1498
      %v1627 = vmax.f32 %v1181, %v1499
      %v1628 = vmax.f32 %v1184, %v1500
      %v1629 = vmax.f32 %v1189, %v1501
      %v1630 = vmax.f32 %v1192, %v1502
      %v1631 = vmax.f32 %v1197, %v1503
      %v1632 = vmax.f32 %v1200, %v1504
      %v1633 = vmax.f32 %v1205, %v1505
      %v1634 = vmax.f32 %v1208, %v1506
      %v1635 = vmax.f32 %v1213, %v1507
      %v1636 = vmax.f32 %v1216, %v1508
      %v1637 = vmax.f32 %v1221, %v1509
      %v1638 = vmax.f32 %v1224, %v1510
      %v1639 = vmax.f32 %v1229, %v1511
      %v1640 = vmax.f32 %v1232, %v1512
      %v1641 = vmax.f32 %v1237, %v1513
      %v1642 = vmax.f32 %v1240, %v1514
      %v1643 = vmax.f32 %v1245, %v1515
      %v1644 = vmax.f32 %v1248, %v1516
      %v1645 = vmax.f32 %v1253, %v1517
      %v1646 = vmax.f32 %v1256, %v1518
      %v1647 = vmax.f32 %v1261, %v1519
      %v1648 = vmax.f32 %v1264, %v1520
      %v1649 = vmax.f32 %v1269, %v1521
      %v1650 = vmax.f32 %v1272, %v1522
      %v1651 = vmax.f32 %v1277, %v1523
      %v1652 = vmax.f32 %v1280, %v1524
      %v1653 = vmax.f32 %v1285, %v1525
      %v1654 = vmax.f32 %v1288, %v1526
      %v1655 = vmax.f32 %v1293, %v1527
      %v1656 = vmax.f32 %v1296, %v1528
      %v1657 = vmax.f32 %v1301, %v1529
      %v1658 = vmax.f32 %v1304, %v1530
      %v1659 = vmax.f32 %v1309, %v1531
      %v1660 = vmax.f32 %v1312, %v1532
      %v1661 = vmax.f32 %v1317, %v1533
      %v1662 = vmax.f32 %v1320, %v1534
      %v1663 = vmax.f32 %v1325, %v1535
      %v1664 = vmax.f32 %v1328, %v1536
      %v1665 = vmax.f32 %v1333, %v1537
      %v1666 = vmax.f32 %v1336, %v1538
      %v1667 = vmax.f32 %v1341, %v1539
      %v1668 = vmax.f32 %v1344, %v1540
      %v1669 = vmax.f32 %v1349, %v1541
      %v1670 = vmax.f32 %v1352, %v1542
      %v1671 = vmax.f32 %v1357, %v1543
      %v1672 = vmax.f32 %v1360, %v1544
      %v1673 = vmax.f32 %v1365, %v1545
      %v1674 = vmax.f32 %v1368, %v1546
      %v1675 = vmax.f32 %v1373, %v1547
      %v1676 = vmax.f32 %v1376, %v1548
      %v1677 = vmax.f32 %v1381, %v1549
      %v1678 = vmax.f32 %v1384, %v1550
      %v1679 = vmax.f32 %v1389, %v1551
      %v1680 = vmax.f32 %v1392, %v1552
      %v1681 = vmax.f32 %v1397, %v1553
      %v1682 = vmax.f32 %v1400, %v1554
      %v1683 = vmax.f32 %v1405, %v1555
      %v1684 = vmax.f32 %v1408, %v1556
      %v1685 = vmax.f32 %v1413, %v1557
      %v1686 = vmax.f32 %v1416, %v1558
      %v1687 = vmax.f32 %v1421, %v1559
      %v1688 = vmax.f32 %v1424, %v1560
      %v1689 = vmax.f32 %v1429, %v1561
      %v1690 = vmax.f32 %v1432, %v1562
      %v1691 = vpack.c.bf16 %v1564, %v1563
      %v1692 = vpack.c.bf16 %v1566, %v1565
      %v1693 = vpack.c.bf16 %v1568, %v1567
      %v1694 = vpack.c.bf16 %v1570, %v1569
      %v1695 = vpack.c.bf16 %v1572, %v1571
      %v1696 = vpack.c.bf16 %v1574, %v1573
      %v1697 = vpack.c.bf16 %v1576, %v1575
      %v1698 = vpack.c.bf16 %v1578, %v1577
      %v1699 = vpack.c.bf16 %v1580, %v1579
      %v1700 = vpack.c.bf16 %v1582, %v1581
      %v1701 = vpack.c.bf16 %v1584, %v1583
      %v1702 = vpack.c.bf16 %v1586, %v1585
      %v1703 = vpack.c.bf16 %v1588, %v1587
      %v1704 = vpack.c.bf16 %v1590, %v1589
      %v1705 = vpack.c.bf16 %v1592, %v1591
      %v1706 = vpack.c.bf16 %v1594, %v1593
      %v1707 = vpack.c.bf16 %v1596, %v1595
      %v1708 = vpack.c.bf16 %v1598, %v1597
      %v1709 = vpack.c.bf16 %v1600, %v1599
      %v1710 = vpack.c.bf16 %v1602, %v1601
      %v1711 = vpack.c.bf16 %v1604, %v1603
      %v1712 = vpack.c.bf16 %v1606, %v1605
      %v1713 = vpack.c.bf16 %v1608, %v1607
      %v1714 = vpack.c.bf16 %v1610, %v1609
      %v1715 = vpack.c.bf16 %v1612, %v1611
      %v1716 = vpack.c.bf16 %v1614, %v1613
      %v1717 = vpack.c.bf16 %v1616, %v1615
      %v1718 = vpack.c.bf16 %v1618, %v1617
      %v1719 = vpack.c.bf16 %v1620, %v1619
      %v1720 = vpack.c.bf16 %v1622, %v1621
      %v1721 = vpack.c.bf16 %v1624, %v1623
      %v1722 = vpack.c.bf16 %v1626, %v1625
      %v1723 = vpack.c.bf16 %v1628, %v1627
      %v1724 = vpack.c.bf16 %v1630, %v1629
      %v1725 = vpack.c.bf16 %v1632, %v1631
      %v1726 = vpack.c.bf16 %v1634, %v1633
      %v1727 = vpack.c.bf16 %v1636, %v1635
      %v1728 = vpack.c.bf16 %v1638, %v1637
      %v1729 = vpack.c.bf16 %v1640, %v1639
      %v1730 = vpack.c.bf16 %v1642, %v1641
      %v1731 = vpack.c.bf16 %v1644, %v1643
      %v1732 = vpack.c.bf16 %v1646, %v1645
      %v1733 = vpack.c.bf16 %v1648, %v1647
      %v1734 = vpack.c.bf16 %v1650, %v1649
      %v1735 = vpack.c.bf16 %v1652, %v1651
      %v1736 = vpack.c.bf16 %v1654, %v1653
      %v1737 = vpack.c.bf16 %v1656, %v1655
      %v1738 = vpack.c.bf16 %v1658, %v1657
      %v1739 = vpack.c.bf16 %v1660, %v1659
      %v1740 = vpack.c.bf16 %v1662, %v1661
      %v1741 = vpack.c.bf16 %v1664, %v1663
      %v1742 = vpack.c.bf16 %v1666, %v1665
      %v1743 = vpack.c.bf16 %v1668, %v1667
      %v1744 = vpack.c.bf16 %v1670, %v1669
      %v1745 = vpack.c.bf16 %v1672, %v1671
      %v1746 = vpack.c.bf16 %v1674, %v1673
      %v1747 = vpack.c.bf16 %v1676, %v1675
      %v1748 = vpack.c.bf16 %v1678, %v1677
      %v1749 = vpack.c.bf16 %v1680, %v1679
      %v1750 = vpack.c.bf16 %v1682, %v1681
      %v1751 = vpack.c.bf16 %v1684, %v1683
      %v1752 = vpack.c.bf16 %v1686, %v1685
      %v1753 = vpack.c.bf16 %v1688, %v1687
      %v1754 = vpack.c.bf16 %v1690, %v1689
      %v1819 = vunpack.c.l.b16 %v1691
      %v1820 = vunpack.c.h.b16 %v1691
      %v1821 = vunpack.c.l.b16 %v1692
      %v1822 = vunpack.c.h.b16 %v1692
      %v1823 = vunpack.c.l.b16 %v1693
      %v1824 = vunpack.c.h.b16 %v1693
      %v1825 = vunpack.c.l.b16 %v1694
      %v1826 = vunpack.c.h.b16 %v1694
      %v1827 = vunpack.c.l.b16 %v1695
      %v1828 = vunpack.c.h.b16 %v1695
      %v1829 = vunpack.c.l.b16 %v1696
      %v1830 = vunpack.c.h.b16 %v1696
      %v1831 = vunpack.c.l.b16 %v1697
      %v1832 = vunpack.c.h.b16 %v1697
      %v1833 = vunpack.c.l.b16 %v1698
      %v1834 = vunpack.c.h.b16 %v1698
      %v1835 = vunpack.c.l.b16 %v1699
      %v1836 = vunpack.c.h.b16 %v1699
      %v1837 = vunpack.c.l.b16 %v1700
      %v1838 = vunpack.c.h.b16 %v1700
      %v1839 = vunpack.c.l.b16 %v1701
      %v1840 = vunpack.c.h.b16 %v1701
      %v1841 = vunpack.c.l.b16 %v1702
      %v1842 = vunpack.c.h.b16 %v1702
      %v1843 = vunpack.c.l.b16 %v1703
      %v1844 = vunpack.c.h.b16 %v1703
      %v1845 = vunpack.c.l.b16 %v1704
      %v1846 = vunpack.c.h.b16 %v1704
      %v1847 = vunpack.c.l.b16 %v1705
      %v1848 = vunpack.c.h.b16 %v1705
      %v1849 = vunpack.c.l.b16 %v1706
      %v1850 = vunpack.c.h.b16 %v1706
      %v1851 = vunpack.c.l.b16 %v1707
      %v1852 = vunpack.c.h.b16 %v1707
      %v1853 = vunpack.c.l.b16 %v1708
      %v1854 = vunpack.c.h.b16 %v1708
      %v1855 = vunpack.c.l.b16 %v1709
      %v1856 = vunpack.c.h.b16 %v1709
      %v1857 = vunpack.c.l.b16 %v1710
      %v1858 = vunpack.c.h.b16 %v1710
      %v1859 = vunpack.c.l.b16 %v1711
      %v1860 = vunpack.c.h.b16 %v1711
      %v1861 = vunpack.c.l.b16 %v1712
      %v1862 = vunpack.c.h.b16 %v1712
      %v1863 = vunpack.c.l.b16 %v1713
      %v1864 = vunpack.c.h.b16 %v1713
      %v1865 = vunpack.c.l.b16 %v1714
      %v1866 = vunpack.c.h.b16 %v1714
      %v1867 = vunpack.c.l.b16 %v1715
      %v1868 = vunpack.c.h.b16 %v1715
      %v1869 = vunpack.c.l.b16 %v1716
      %v1870 = vunpack.c.h.b16 %v1716
      %v1871 = vunpack.c.l.b16 %v1717
      %v1872 = vunpack.c.h.b16 %v1717
      %v1873 = vunpack.c.l.b16 %v1718
      %v1874 = vunpack.c.h.b16 %v1718
      %v1875 = vunpack.c.l.b16 %v1719
      %v1876 = vunpack.c.h.b16 %v1719
      %v1877 = vunpack.c.l.b16 %v1720
      %v1878 = vunpack.c.h.b16 %v1720
      %v1879 = vunpack.c.l.b16 %v1721
      %v1880 = vunpack.c.h.b16 %v1721
      %v1881 = vunpack.c.l.b16 %v1722
      %v1882 = vunpack.c.h.b16 %v1722
      %v1883 = vunpack.c.l.b16 %v1723
      %v1884 = vunpack.c.h.b16 %v1723
      %v1885 = vunpack.c.l.b16 %v1724
      %v1886 = vunpack.c.h.b16 %v1724
      %v1887 = vunpack.c.l.b16 %v1725
      %v1888 = vunpack.c.h.b16 %v1725
      %v1889 = vunpack.c.l.b16 %v1726
      %v1890 = vunpack.c.h.b16 %v1726
      %v1891 = vunpack.c.l.b16 %v1727
      %v1892 = vunpack.c.h.b16 %v1727
      %v1893 = vunpack.c.l.b16 %v1728
      %v1894 = vunpack.c.h.b16 %v1728
      %v1895 = vunpack.c.l.b16 %v1729
      %v1896 = vunpack.c.h.b16 %v1729
      %v1897 = vunpack.c.l.b16 %v1730
      %v1898 = vunpack.c.h.b16 %v1730
      %v1899 = vunpack.c.l.b16 %v1731
      %v1900 = vunpack.c.h.b16 %v1731
      %v1901 = vunpack.c.l.b16 %v1732
      %v1902 = vunpack.c.h.b16 %v1732
      %v1903 = vunpack.c.l.b16 %v1733
      %v1904 = vunpack.c.h.b16 %v1733
      %v1905 = vunpack.c.l.b16 %v1734
      %v1906 = vunpack.c.h.b16 %v1734
      %v1907 = vunpack.c.l.b16 %v1735
      %v1908 = vunpack.c.h.b16 %v1735
      %v1909 = vunpack.c.l.b16 %v1736
      %v1910 = vunpack.c.h.b16 %v1736
      %v1911 = vunpack.c.l.b16 %v1737
      %v1912 = vunpack.c.h.b16 %v1737
      %v1913 = vunpack.c.l.b16 %v1738
      %v1914 = vunpack.c.h.b16 %v1738
      %v1915 = vunpack.c.l.b16 %v1739
      %v1916 = vunpack.c.h.b16 %v1739
      %v1917 = vunpack.c.l.b16 %v1740
      %v1918 = vunpack.c.h.b16 %v1740
      %v1919 = vunpack.c.l.b16 %v1741
      %v1920 = vunpack.c.h.b16 %v1741
      %v1921 = vunpack.c.l.b16 %v1742
      %v1922 = vunpack.c.h.b16 %v1742
      %v1923 = vunpack.c.l.b16 %v1743
      %v1924 = vunpack.c.h.b16 %v1743
      %v1925 = vunpack.c.l.b16 %v1744
      %v1926 = vunpack.c.h.b16 %v1744
      %v1927 = vunpack.c.l.b16 %v1745
      %v1928 = vunpack.c.h.b16 %v1745
      %v1929 = vunpack.c.l.b16 %v1746
      %v1930 = vunpack.c.h.b16 %v1746
      %v1931 = vunpack.c.l.b16 %v1747
      %v1932 = vunpack.c.h.b16 %v1747
      %v1933 = vunpack.c.l.b16 %v1748
      %v1934 = vunpack.c.h.b16 %v1748
      %v1935 = vunpack.c.l.b16 %v1749
      %v1936 = vunpack.c.h.b16 %v1749
      %v1937 = vunpack.c.l.b16 %v1750
      %v1938 = vunpack.c.h.b16 %v1750
      %v1939 = vunpack.c.l.b16 %v1751
      %v1940 = vunpack.c.h.b16 %v1751
      %v1941 = vunpack.c.l.b16 %v1752
      %v1942 = vunpack.c.h.b16 %v1752
      %v1943 = vunpack.c.l.b16 %v1753
      %v1944 = vunpack.c.h.b16 %v1753
      %v1945 = vunpack.c.l.b16 %v1754
      %v1946 = vunpack.c.h.b16 %v1754
      %v1947 = vpack.c.b16 %v1819, %v1819
      %v1948 = vpack.c.b16 %v1820, %v1820
      %v1949 = vpack.c.b16 %v1821, %v1821
      %v1950 = vpack.c.b16 %v1822, %v1822
      %v1951 = vpack.c.b16 %v1823, %v1823
      %v1952 = vpack.c.b16 %v1824, %v1824
      %v1953 = vpack.c.b16 %v1825, %v1825
      %v1954 = vpack.c.b16 %v1826, %v1826
      %v1955 = vpack.c.b16 %v1827, %v1827
      %v1956 = vpack.c.b16 %v1828, %v1828
      %v1957 = vpack.c.b16 %v1829, %v1829
      %v1958 = vpack.c.b16 %v1830, %v1830
      %v1959 = vpack.c.b16 %v1831, %v1831
      %v1960 = vpack.c.b16 %v1832, %v1832
      %v1961 = vpack.c.b16 %v1833, %v1833
      %v1962 = vpack.c.b16 %v1834, %v1834
      %v1963 = vpack.c.b16 %v1835, %v1835
      %v1964 = vpack.c.b16 %v1836, %v1836
      %v1965 = vpack.c.b16 %v1837, %v1837
      %v1966 = vpack.c.b16 %v1838, %v1838
      %v1967 = vpack.c.b16 %v1839, %v1839
      %v1968 = vpack.c.b16 %v1840, %v1840
      %v1969 = vpack.c.b16 %v1841, %v1841
      %v1970 = vpack.c.b16 %v1842, %v1842
      %v1971 = vpack.c.b16 %v1843, %v1843
      %v1972 = vpack.c.b16 %v1844, %v1844
      %v1973 = vpack.c.b16 %v1845, %v1845
      %v1974 = vpack.c.b16 %v1846, %v1846
      %v1975 = vpack.c.b16 %v1847, %v1847
      %v1976 = vpack.c.b16 %v1848, %v1848
      %v1977 = vpack.c.b16 %v1849, %v1849
      %v1978 = vpack.c.b16 %v1850, %v1850
      %v1979 = vpack.c.b16 %v1851, %v1851
      %v1980 = vpack.c.b16 %v1852, %v1852
      %v1981 = vpack.c.b16 %v1853, %v1853
      %v1982 = vpack.c.b16 %v1854, %v1854
      %v1983 = vpack.c.b16 %v1855, %v1855
      %v1984 = vpack.c.b16 %v1856, %v1856
      %v1985 = vpack.c.b16 %v1857, %v1857
      %v1986 = vpack.c.b16 %v1858, %v1858
      %v1987 = vpack.c.b16 %v1859, %v1859
      %v1988 = vpack.c.b16 %v1860, %v1860
      %v1989 = vpack.c.b16 %v1861, %v1861
      %v1990 = vpack.c.b16 %v1862, %v1862
      %v1991 = vpack.c.b16 %v1863, %v1863
      %v1992 = vpack.c.b16 %v1864, %v1864
      %v1993 = vpack.c.b16 %v1865, %v1865
      %v1994 = vpack.c.b16 %v1866, %v1866
      %v1995 = vpack.c.b16 %v1867, %v1867
      %v1996 = vpack.c.b16 %v1868, %v1868
      %v1997 = vpack.c.b16 %v1869, %v1869
      %v1998 = vpack.c.b16 %v1870, %v1870
      %v1999 = vpack.c.b16 %v1871, %v1871
      %v2000 = vpack.c.b16 %v1872, %v1872
      %v2001 = vpack.c.b16 %v1873, %v1873
      %v2002 = vpack.c.b16 %v1874, %v1874
      %v2003 = vpack.c.b16 %v1875, %v1875
      %v2004 = vpack.c.b16 %v1876, %v1876
      %v2005 = vpack.c.b16 %v1877, %v1877
      %v2006 = vpack.c.b16 %v1878, %v1878
      %v2007 = vpack.c.b16 %v1879, %v1879
      %v2008 = vpack.c.b16 %v1880, %v1880
      %v2009 = vpack.c.b16 %v1881, %v1881
      %v2010 = vpack.c.b16 %v1882, %v1882
      %v2011 = vpack.c.b16 %v1883, %v1883
      %v2012 = vpack.c.b16 %v1884, %v1884
      %v2013 = vpack.c.b16 %v1885, %v1885
      %v2014 = vpack.c.b16 %v1886, %v1886
      %v2015 = vpack.c.b16 %v1887, %v1887
      %v2016 = vpack.c.b16 %v1888, %v1888
      %v2017 = vpack.c.b16 %v1889, %v1889
      %v2018 = vpack.c.b16 %v1890, %v1890
      %v2019 = vpack.c.b16 %v1891, %v1891
      %v2020 = vpack.c.b16 %v1892, %v1892
      %v2021 = vpack.c.b16 %v1893, %v1893
      %v2022 = vpack.c.b16 %v1894, %v1894
      %v2023 = vpack.c.b16 %v1895, %v1895
      %v2024 = vpack.c.b16 %v1896, %v1896
      %v2025 = vpack.c.b16 %v1897, %v1897
      %v2026 = vpack.c.b16 %v1898, %v1898
      %v2027 = vpack.c.b16 %v1899, %v1899
      %v2028 = vpack.c.b16 %v1900, %v1900
      %v2029 = vpack.c.b16 %v1901, %v1901
      %v2030 = vpack.c.b16 %v1902, %v1902
      %v2031 = vpack.c.b16 %v1903, %v1903
      %v2032 = vpack.c.b16 %v1904, %v1904
      %v2033 = vpack.c.b16 %v1905, %v1905
      %v2034 = vpack.c.b16 %v1906, %v1906
      %v2035 = vpack.c.b16 %v1907, %v1907
      %v2036 = vpack.c.b16 %v1908, %v1908
      %v2037 = vpack.c.b16 %v1909, %v1909
      %v2038 = vpack.c.b16 %v1910, %v1910
      %v2039 = vpack.c.b16 %v1911, %v1911
      %v2040 = vpack.c.b16 %v1912, %v1912
      %v2041 = vpack.c.b16 %v1913, %v1913
      %v2042 = vpack.c.b16 %v1914, %v1914
      %v2043 = vpack.c.b16 %v1915, %v1915
      %v2044 = vpack.c.b16 %v1916, %v1916
      %v2045 = vpack.c.b16 %v1917, %v1917
      %v2046 = vpack.c.b16 %v1918, %v1918
      %v2047 = vpack.c.b16 %v1919, %v1919
      %v2048 = vpack.c.b16 %v1920, %v1920
      %v2049 = vpack.c.b16 %v1921, %v1921
      %v2050 = vpack.c.b16 %v1922, %v1922
      %v2051 = vpack.c.b16 %v1923, %v1923
      %v2052 = vpack.c.b16 %v1924, %v1924
      %v2053 = vpack.c.b16 %v1925, %v1925
      %v2054 = vpack.c.b16 %v1926, %v1926
      %v2055 = vpack.c.b16 %v1927, %v1927
      %v2056 = vpack.c.b16 %v1928, %v1928
      %v2057 = vpack.c.b16 %v1929, %v1929
      %v2058 = vpack.c.b16 %v1930, %v1930
      %v2059 = vpack.c.b16 %v1931, %v1931
      %v2060 = vpack.c.b16 %v1932, %v1932
      %v2061 = vpack.c.b16 %v1933, %v1933
      %v2062 = vpack.c.b16 %v1934, %v1934
      %v2063 = vpack.c.b16 %v1935, %v1935
      %v2064 = vpack.c.b16 %v1936, %v1936
      %v2065 = vpack.c.b16 %v1937, %v1937
      %v2066 = vpack.c.b16 %v1938, %v1938
      %v2067 = vpack.c.b16 %v1939, %v1939
      %v2068 = vpack.c.b16 %v1940, %v1940
      %v2069 = vpack.c.b16 %v1941, %v1941
      %v2070 = vpack.c.b16 %v1942, %v1942
      %v2071 = vpack.c.b16 %v1943, %v1943
      %v2072 = vpack.c.b16 %v1944, %v1944
      %v2073 = vpack.c.b16 %v1945, %v1945
      %v2074 = vpack.c.b16 %v1946, %v1946
      %vm2203 = vcmask 519168
      %2204 = vst.msk [vmem:[%s223] sm:$0xf] %vm2203, %v1947
      %2205 = vst.msk [vmem:[%s223 + $0x4] sm:$0xf] %vm2203, %v1948
      %2206 = vst.msk [vmem:[%s223 + $0x8] sm:$0xf] %vm2203, %v1949
      %2207 = vst.msk [vmem:[%s223 + $0xc] sm:$0xf] %vm2203, %v1950
      %2208 = vst.msk [vmem:[%s223 + $0x10] sm:$0xf] %vm2203, %v1951
      %2209 = vst.msk [vmem:[%s223 + $0x14] sm:$0xf] %vm2203, %v1952
      %2210 = vst.msk [vmem:[%s223 + $0x18] sm:$0xf] %vm2203, %v1953
      %2211 = vst.msk [vmem:[%s223 + $0x1c] sm:$0xf] %vm2203, %v1954
      %2212 = vst.msk [vmem:[%s223 + $0x20] sm:$0xf] %vm2203, %v1955
      %2213 = vst.msk [vmem:[%s223 + $0x24] sm:$0xf] %vm2203, %v1956
      %2214 = vst.msk [vmem:[%s223 + $0x28] sm:$0xf] %vm2203, %v1957
      %2215 = vst.msk [vmem:[%s223 + $0x2c] sm:$0xf] %vm2203, %v1958
      %2216 = vst.msk [vmem:[%s223 + $0x30] sm:$0xf] %vm2203, %v1959
      %2217 = vst.msk [vmem:[%s223 + $0x34] sm:$0xf] %vm2203, %v1960
      %2218 = vst.msk [vmem:[%s223 + $0x38] sm:$0xf] %vm2203, %v1961
      %2219 = vst.msk [vmem:[%s223 + $0x3c] sm:$0xf] %vm2203, %v1962
      %2220 = vst.msk [vmem:[%s223 + $0x40] sm:$0xf] %vm2203, %v1963
      %2221 = vst.msk [vmem:[%s223 + $0x44] sm:$0xf] %vm2203, %v1964
      %2222 = vst.msk [vmem:[%s223 + $0x48] sm:$0xf] %vm2203, %v1965
      %2223 = vst.msk [vmem:[%s223 + $0x4c] sm:$0xf] %vm2203, %v1966
      %2224 = vst.msk [vmem:[%s223 + $0x50] sm:$0xf] %vm2203, %v1967
      %2225 = vst.msk [vmem:[%s223 + $0x54] sm:$0xf] %vm2203, %v1968
      %2226 = vst.msk [vmem:[%s223 + $0x58] sm:$0xf] %vm2203, %v1969
      %2227 = vst.msk [vmem:[%s223 + $0x5c] sm:$0xf] %vm2203, %v1970
      %2228 = vst.msk [vmem:[%s223 + $0x60] sm:$0xf] %vm2203, %v1971
      %2229 = vst.msk [vmem:[%s223 + $0x64] sm:$0xf] %vm2203, %v1972
      %2230 = vst.msk [vmem:[%s223 + $0x68] sm:$0xf] %vm2203, %v1973
      %2231 = vst.msk [vmem:[%s223 + $0x6c] sm:$0xf] %vm2203, %v1974
      %2232 = vst.msk [vmem:[%s223 + $0x70] sm:$0xf] %vm2203, %v1975
      %2233 = vst.msk [vmem:[%s223 + $0x74] sm:$0xf] %vm2203, %v1976
      %2234 = vst.msk [vmem:[%s223 + $0x78] sm:$0xf] %vm2203, %v1977
      %2235 = vst.msk [vmem:[%s223 + $0x7c] sm:$0xf] %vm2203, %v1978
      %2236 = vst.msk [vmem:[%s223 + $0x80] sm:$0xf] %vm2203, %v1979
      %2237 = vst.msk [vmem:[%s223 + $0x84] sm:$0xf] %vm2203, %v1980
      %2238 = vst.msk [vmem:[%s223 + $0x88] sm:$0xf] %vm2203, %v1981
      %2239 = vst.msk [vmem:[%s223 + $0x8c] sm:$0xf] %vm2203, %v1982
      %2240 = vst.msk [vmem:[%s223 + $0x90] sm:$0xf] %vm2203, %v1983
      %2241 = vst.msk [vmem:[%s223 + $0x94] sm:$0xf] %vm2203, %v1984
      %2242 = vst.msk [vmem:[%s223 + $0x98] sm:$0xf] %vm2203, %v1985
      %2243 = vst.msk [vmem:[%s223 + $0x9c] sm:$0xf] %vm2203, %v1986
      %2244 = vst.msk [vmem:[%s223 + $0xa0] sm:$0xf] %vm2203, %v1987
      %2245 = vst.msk [vmem:[%s223 + $0xa4] sm:$0xf] %vm2203, %v1988
      %2246 = vst.msk [vmem:[%s223 + $0xa8] sm:$0xf] %vm2203, %v1989
      %2247 = vst.msk [vmem:[%s223 + $0xac] sm:$0xf] %vm2203, %v1990
      %2248 = vst.msk [vmem:[%s223 + $0xb0] sm:$0xf] %vm2203, %v1991
      %2249 = vst.msk [vmem:[%s223 + $0xb4] sm:$0xf] %vm2203, %v1992
      %2250 = vst.msk [vmem:[%s223 + $0xb8] sm:$0xf] %vm2203, %v1993
      %2251 = vst.msk [vmem:[%s223 + $0xbc] sm:$0xf] %vm2203, %v1994
      %2252 = vst.msk [vmem:[%s223 + $0xc0] sm:$0xf] %vm2203, %v1995
      %2253 = vst.msk [vmem:[%s223 + $0xc4] sm:$0xf] %vm2203, %v1996
      %2254 = vst.msk [vmem:[%s223 + $0xc8] sm:$0xf] %vm2203, %v1997
      %2255 = vst.msk [vmem:[%s223 + $0xcc] sm:$0xf] %vm2203, %v1998
      %2256 = vst.msk [vmem:[%s223 + $0xd0] sm:$0xf] %vm2203, %v1999
      %2257 = vst.msk [vmem:[%s223 + $0xd4] sm:$0xf] %vm2203, %v2000
      %2258 = vst.msk [vmem:[%s223 + $0xd8] sm:$0xf] %vm2203, %v2001
      %2259 = vst.msk [vmem:[%s223 + $0xdc] sm:$0xf] %vm2203, %v2002
      %2260 = vst.msk [vmem:[%s223 + $0xe0] sm:$0xf] %vm2203, %v2003
      %2261 = vst.msk [vmem:[%s223 + $0xe4] sm:$0xf] %vm2203, %v2004
      %2262 = vst.msk [vmem:[%s223 + $0xe8] sm:$0xf] %vm2203, %v2005
      %2263 = vst.msk [vmem:[%s223 + $0xec] sm:$0xf] %vm2203, %v2006
      %2264 = vst.msk [vmem:[%s223 + $0xf0] sm:$0xf] %vm2203, %v2007
      %2265 = vst.msk [vmem:[%s223 + $0xf4] sm:$0xf] %vm2203, %v2008
      %2266 = vst.msk [vmem:[%s223 + $0xf8] sm:$0xf] %vm2203, %v2009
      %2267 = vst.msk [vmem:[%s223 + $0xfc] sm:$0xf] %vm2203, %v2010
      %2268 = vst.msk [vmem:[%s223 + $0x100] sm:$0xf] %vm2203, %v2011
      %2269 = vst.msk [vmem:[%s223 + $0x104] sm:$0xf] %vm2203, %v2012
      %2270 = vst.msk [vmem:[%s223 + $0x108] sm:$0xf] %vm2203, %v2013
      %2271 = vst.msk [vmem:[%s223 + $0x10c] sm:$0xf] %vm2203, %v2014
      %2272 = vst.msk [vmem:[%s223 + $0x110] sm:$0xf] %vm2203, %v2015
      %2273 = vst.msk [vmem:[%s223 + $0x114] sm:$0xf] %vm2203, %v2016
      %2274 = vst.msk [vmem:[%s223 + $0x118] sm:$0xf] %vm2203, %v2017
      %2275 = vst.msk [vmem:[%s223 + $0x11c] sm:$0xf] %vm2203, %v2018
      %2276 = vst.msk [vmem:[%s223 + $0x120] sm:$0xf] %vm2203, %v2019
      %2277 = vst.msk [vmem:[%s223 + $0x124] sm:$0xf] %vm2203, %v2020
      %2278 = vst.msk [vmem:[%s223 + $0x128] sm:$0xf] %vm2203, %v2021
      %2279 = vst.msk [vmem:[%s223 + $0x12c] sm:$0xf] %vm2203, %v2022
      %2280 = vst.msk [vmem:[%s223 + $0x130] sm:$0xf] %vm2203, %v2023
      %2281 = vst.msk [vmem:[%s223 + $0x134] sm:$0xf] %vm2203, %v2024
      %2282 = vst.msk [vmem:[%s223 + $0x138] sm:$0xf] %vm2203, %v2025
      %2283 = vst.msk [vmem:[%s223 + $0x13c] sm:$0xf] %vm2203, %v2026
      %2284 = vst.msk [vmem:[%s223 + $0x140] sm:$0xf] %vm2203, %v2027
      %2285 = vst.msk [vmem:[%s223 + $0x144] sm:$0xf] %vm2203, %v2028
      %2286 = vst.msk [vmem:[%s223 + $0x148] sm:$0xf] %vm2203, %v2029
      %2287 = vst.msk [vmem:[%s223 + $0x14c] sm:$0xf] %vm2203, %v2030
      %2288 = vst.msk [vmem:[%s223 + $0x150] sm:$0xf] %vm2203, %v2031
      %2289 = vst.msk [vmem:[%s223 + $0x154] sm:$0xf] %vm2203, %v2032
      %2290 = vst.msk [vmem:[%s223 + $0x158] sm:$0xf] %vm2203, %v2033
      %2291 = vst.msk [vmem:[%s223 + $0x15c] sm:$0xf] %vm2203, %v2034
      %2292 = vst.msk [vmem:[%s223 + $0x160] sm:$0xf] %vm2203, %v2035
      %2293 = vst.msk [vmem:[%s223 + $0x164] sm:$0xf] %vm2203, %v2036
      %2294 = vst.msk [vmem:[%s223 + $0x168] sm:$0xf] %vm2203, %v2037
      %2295 = vst.msk [vmem:[%s223 + $0x16c] sm:$0xf] %vm2203, %v2038
      %2296 = vst.msk [vmem:[%s223 + $0x170] sm:$0xf] %vm2203, %v2039
      %2297 = vst.msk [vmem:[%s223 + $0x174] sm:$0xf] %vm2203, %v2040
      %2298 = vst.msk [vmem:[%s223 + $0x178] sm:$0xf] %vm2203, %v2041
      %2299 = vst.msk [vmem:[%s223 + $0x17c] sm:$0xf] %vm2203, %v2042
      %2300 = vst.msk [vmem:[%s223 + $0x180] sm:$0xf] %vm2203, %v2043
      %2301 = vst.msk [vmem:[%s223 + $0x184] sm:$0xf] %vm2203, %v2044
      %2302 = vst.msk [vmem:[%s223 + $0x188] sm:$0xf] %vm2203, %v2045
      %2303 = vst.msk [vmem:[%s223 + $0x18c] sm:$0xf] %vm2203, %v2046
      %2304 = vst.msk [vmem:[%s223 + $0x190] sm:$0xf] %vm2203, %v2047
      %2305 = vst.msk [vmem:[%s223 + $0x194] sm:$0xf] %vm2203, %v2048
      %2306 = vst.msk [vmem:[%s223 + $0x198] sm:$0xf] %vm2203, %v2049
      %2307 = vst.msk [vmem:[%s223 + $0x19c] sm:$0xf] %vm2203, %v2050
      %2308 = vst.msk [vmem:[%s223 + $0x1a0] sm:$0xf] %vm2203, %v2051
      %2309 = vst.msk [vmem:[%s223 + $0x1a4] sm:$0xf] %vm2203, %v2052
      %2310 = vst.msk [vmem:[%s223 + $0x1a8] sm:$0xf] %vm2203, %v2053
      %2311 = vst.msk [vmem:[%s223 + $0x1ac] sm:$0xf] %vm2203, %v2054
      %2312 = vst.msk [vmem:[%s223 + $0x1b0] sm:$0xf] %vm2203, %v2055
      %2313 = vst.msk [vmem:[%s223 + $0x1b4] sm:$0xf] %vm2203, %v2056
      %2314 = vst.msk [vmem:[%s223 + $0x1b8] sm:$0xf] %vm2203, %v2057
      %2315 = vst.msk [vmem:[%s223 + $0x1bc] sm:$0xf] %vm2203, %v2058
      %2316 = vst.msk [vmem:[%s223 + $0x1c0] sm:$0xf] %vm2203, %v2059
      %2317 = vst.msk [vmem:[%s223 + $0x1c4] sm:$0xf] %vm2203, %v2060
      %2318 = vst.msk [vmem:[%s223 + $0x1c8] sm:$0xf] %vm2203, %v2061
      %2319 = vst.msk [vmem:[%s223 + $0x1cc] sm:$0xf] %vm2203, %v2062
      %2320 = vst.msk [vmem:[%s223 + $0x1d0] sm:$0xf] %vm2203, %v2063
      %2321 = vst.msk [vmem:[%s223 + $0x1d4] sm:$0xf] %vm2203, %v2064
      %2322 = vst.msk [vmem:[%s223 + $0x1d8] sm:$0xf] %vm2203, %v2065
      %2323 = vst.msk [vmem:[%s223 + $0x1dc] sm:$0xf] %vm2203, %v2066
      %2324 = vst.msk [vmem:[%s223 + $0x1e0] sm:$0xf] %vm2203, %v2067
      %2325 = vst.msk [vmem:[%s223 + $0x1e4] sm:$0xf] %vm2203, %v2068
      %2326 = vst.msk [vmem:[%s223 + $0x1e8] sm:$0xf] %vm2203, %v2069
      %2327 = vst.msk [vmem:[%s223 + $0x1ec] sm:$0xf] %vm2203, %v2070
      %2328 = vst.msk [vmem:[%s223 + $0x1f0] sm:$0xf] %vm2203, %v2071
      %2329 = vst.msk [vmem:[%s223 + $0x1f4] sm:$0xf] %vm2203, %v2072
      %2330 = vst.msk [vmem:[%s223 + $0x1f8] sm:$0xf] %vm2203, %v2073
      %2331 = vst.msk [vmem:[%s223 + $0x1fc] sm:$0xf] %vm2203, %v2074
      %s2332 = smul.u32 128, %s18
      %p2333 = scmp.lt.s32.totalorder %s2332, 255
      %s2334 = scalar_select %p2333, %s2332, 255
      %p2335 = scmp.lt.s32.totalorder %s19, 0
      %s2336 = scalar_select %p2335, %s19, 0
      %s2337 = sadd.s32 %s2336, %s2334
      %s2338 = smul.addr %s2337, 4
      %s2339 = scalar_lea.vmem %s3, %s2338
      // Predicated region
      $region33: #{encoder_forward.5} parent=31 // pred_check
        %p2340 = pneg %p124
      $region34: #{encoder_forward.5} parent=31 // pred_check_branch
        %2342 = sbr.rel (%p2340) target = $region36
      $region35: #{encoder_forward.5} parent=31 // pred_region
        %s2343 = smul.u32 128, %s18
      $region36: #{encoder_forward.5} parent=31 // pred_fallthru
        _
    $region32: #{encoder_forward.5} parent=5 // pred_fallthru
      _
    %p2344 = scmp.le.s32.totalorder 2, %s9
    // Predicated region
    $region37: #{encoder_forward.5} parent=5 // pred_check
      %p2345 = pneg %p2344
    $region38: #{encoder_forward.5} parent=5 // pred_check_branch
      %2347 = sbr.rel (%p2345) target = $region40
    $region39: #{encoder_forward.5} parent=5 // pred_region
      %s2348 = ssub.s32 %s9, 2
      // Predicated region
      $region41: #{encoder_forward.5} parent=39 // pred_check
        %p2349 = pneg %p130
      $region42: #{encoder_forward.5} parent=39 // pred_check_branch
        %2351 = sbr.rel (%p2349) target = $region44
      $region43: #{encoder_forward.5} parent=39 // pred_region
        %s2352 = smul.u32 128, %s20
        %p2353 = scmp.lt.s32.totalorder %s2352, 255
        %s2354 = scalar_select %p2353, %s2352, 255
        %p2355 = scmp.lt.s32.totalorder %s21, 0
        %s2356 = scalar_select %p2355, %s21, 0
        %s2357 = sadd.s32 %s2356, %s2354
        %s2358 = smul.addr %s2357, 4
        %s2359 = scalar_lea.vmem %s3, %s2358
      $region44: #{encoder_forward.5} parent=39 // pred_fallthru
        _
    $region40: #{encoder_forward.5} parent=5 // pred_fallthru
      _
  $region6: #{encoder_forward.5} parent=0 // loop_footer
    %s13 = sadd.s32 1, %s9
  $region7: #{encoder_forward.5} parent=0 // loop_footer_branch
    %8 = sbr.rel target = $region3
  $region8: #{encoder_forward.5} parent=0 // loop_exit
    _

// kernel: encoder_forward.6
$region0: #{encoder_forward.6}
  #allocation0 [shape = 'u32[]', space=smem, size = 0x4, offset = 0x4, fixed_abs, tag = 'smem constant byte address 0x4 - core index']
  #allocation1 [shape = 'u32[144,128]{1,0:T(1,128)}', space=vmem, size = 0x12000, scoped, tag = 'internal scratch']
  %s0 = inlined_call_operand.vmem [shape: bf16[512,576], index: 0, kind: input, shape index: {}]
  %s1 = inlined_call_operand.vmem [shape: bf16[576,128], index: 1, kind: input, shape index: {}]
  %s2 = inlined_call_operand.vmem [shape: f32[1,128], index: 2, kind: input, shape index: {}]
  %s3 = inlined_call_operand.vmem [shape: bf16[512,128], index: 3, kind: output, shape index: {}]
  %s4 = sld [smem:[#allocation0]]
  $region45: #{encoder_forward.6} parent=0
    _
  %s6 = ssub.s32 1, %s4
  %s7 = scalar_select 0, %s6, %s4
  loop: start=0, step=1, limit=4
  $region2: #{encoder_forward.6} parent=0 // loop_pre_header
    _
  $region3: #{encoder_forward.6} parent=0 // loop_header
    %s9 = sphi 0, %s13
    %p10 = scmp.ge.s32.totalorder %s9, 4
    %s16 = sphi 0, %s28
    %s17 = sphi 0, %s24
    %s18 = sphi 0, %s16
    %s19 = sphi 0, %s17
    %s20 = sphi 0, %s18
    %s21 = sphi 0, %s19
    %s31 = sphi 0, %s33
    %s34 = sphi 0, %s31
    %s35 = sphi 0, %s34
    %s51 = sphi 0, %s35
    %s57 = sphi 0, %s59
    %s60 = sphi 0, %s57
    %s61 = sphi 0, %s60
    %s77 = sphi 0, %s61
    %s83 = sphi 0, %s85
    %s86 = sphi 0, %s83
    %s87 = sphi 0, %s86
    %s103 = sphi 0, %s87
    %s111 = sphi 0, %s113
    %s114 = sphi 0, %s111
    %s115 = sphi 0, %s114
    %s131 = sphi 0, %s115
  $region4: #{encoder_forward.6} parent=0 // loop_header_branch
    %12 = sbr.rel (%p10) target = $region8
  $region5: #{encoder_forward.6} parent=0 // loop_body
    %s14 = ssub.s32 %s9, 1
    %s15 = ssub.s32 %s9, 2
    %s22 = sadd.s32 1, %s17
    %p23 = scmp.ge.s32.totalorder %s22, 1
    %s24 = scalar_select %p23, 0, %s22
    %s25 = sadd.s32 1, %s16
    %s26 = scalar_select %p23, %s25, %s16
    %p27 = scmp.ge.s32.totalorder %s26, 2
    %s28 = scalar_select %p27, 0, %s26
    %s29 = ssub.s32 %s16, %s28
    %p30 = scmp.eq.s32.totalorder %s29, 0
    %s32 = sadd.s32 %s31, 1
    %s33 = scalar_select %p30, %s31, %s32
    %p36 = pneg %p30
    %p37 = scmp.eq.s32.totalorder %s9, 1
    %p38 = por %p36, %p37
    %p39 = scmp.ne.s32.totalorder %s31, %s34
    %p40 = scmp.eq.s32.totalorder %s9, 0
    %p41 = por %p39, %p40
    %p42 = scmp.ne.s32.totalorder %s31, %s34
    %p43 = scmp.eq.s32.totalorder %s14, 1
    %p44 = por %p42, %p43
    %p45 = scmp.ne.s32.totalorder %s34, %s35
    %p46 = scmp.eq.s32.totalorder %s14, 0
    %p47 = por %p45, %p46
    %p48 = scmp.ne.s32.totalorder %s34, %s35
    %p49 = scmp.eq.s32.totalorder %s15, 1
    %p50 = por %p48, %p49
    %p52 = scmp.ne.s32.totalorder %s35, %s51
    %p53 = scmp.eq.s32.totalorder %s15, 0
    %p54 = por %p52, %p53
    %s55 = ssub.s32 %s17, %s24
    %p56 = scmp.eq.s32.totalorder %s55, 0
    %s58 = sadd.s32 %s57, 1
    %s59 = scalar_select %p56, %s57, %s58
    %p62 = pneg %p56
    %p63 = scmp.eq.s32.totalorder %s9, 1
    %p64 = por %p62, %p63
    %p65 = scmp.ne.s32.totalorder %s57, %s60
    %p66 = scmp.eq.s32.totalorder %s9, 0
    %p67 = por %p65, %p66
    %p68 = scmp.ne.s32.totalorder %s57, %s60
    %p69 = scmp.eq.s32.totalorder %s14, 1
    %p70 = por %p68, %p69
    %p71 = scmp.ne.s32.totalorder %s60, %s61
    %p72 = scmp.eq.s32.totalorder %s14, 0
    %p73 = por %p71, %p72
    %p74 = scmp.ne.s32.totalorder %s60, %s61
    %p75 = scmp.eq.s32.totalorder %s15, 1
    %p76 = por %p74, %p75
    %p78 = scmp.ne.s32.totalorder %s61, %s77
    %p79 = scmp.eq.s32.totalorder %s15, 0
    %p80 = por %p78, %p79
    %s81 = ssub.s32 %s17, %s24
    %p82 = scmp.eq.s32.totalorder %s81, 0
    %s84 = sadd.s32 %s83, 1
    %s85 = scalar_select %p82, %s83, %s84
    %p88 = pneg %p82
    %p89 = scmp.eq.s32.totalorder %s9, 1
    %p90 = por %p88, %p89
    %p91 = scmp.ne.s32.totalorder %s83, %s86
    %p92 = scmp.eq.s32.totalorder %s9, 0
    %p93 = por %p91, %p92
    %p94 = scmp.ne.s32.totalorder %s83, %s86
    %p95 = scmp.eq.s32.totalorder %s14, 1
    %p96 = por %p94, %p95
    %p97 = scmp.ne.s32.totalorder %s86, %s87
    %p98 = scmp.eq.s32.totalorder %s14, 0
    %p99 = por %p97, %p98
    %p100 = scmp.ne.s32.totalorder %s86, %s87
    %p101 = scmp.eq.s32.totalorder %s15, 1
    %p102 = por %p100, %p101
    %p104 = scmp.ne.s32.totalorder %s87, %s103
    %p105 = scmp.eq.s32.totalorder %s15, 0
    %p106 = por %p104, %p105
    %s107 = ssub.s32 %s16, %s28
    %s108 = ssub.s32 %s17, %s24
    %s109 = sor.u32 %s107, %s108
    %p110 = scmp.eq.s32.totalorder %s109, 0
    %s112 = sadd.s32 %s111, 1
    %s113 = scalar_select %p110, %s111, %s112
    %p116 = pneg %p110
    %p117 = scmp.eq.s32.totalorder %s9, 1
    %p118 = por %p116, %p117
    %p119 = scmp.ne.s32.totalorder %s111, %s114
    %p120 = scmp.eq.s32.totalorder %s9, 0
    %p121 = por %p119, %p120
    %p122 = scmp.ne.s32.totalorder %s111, %s114
    %p123 = scmp.eq.s32.totalorder %s14, 1
    %p124 = por %p122, %p123
    %p125 = scmp.ne.s32.totalorder %s114, %s115
    %p126 = scmp.eq.s32.totalorder %s14, 0
    %p127 = por %p125, %p126
    %p128 = scmp.ne.s32.totalorder %s114, %s115
    %p129 = scmp.eq.s32.totalorder %s15, 1
    %p130 = por %p128, %p129
    %p132 = scmp.ne.s32.totalorder %s115, %s131
    %p133 = scmp.eq.s32.totalorder %s15, 0
    %p134 = por %p132, %p133
    %p135 = scmp.le.s32.totalorder 1, %s9
    %p136 = scmp.lt.s32.totalorder %s9, 3
    %p137 = pnand %p135, %p136
    %p138 = pneg %p137
    // Predicated region
    $region9: #{encoder_forward.6} parent=5 // pred_check
      _
    $region10: #{encoder_forward.6} parent=5 // pred_check_branch
      %140 = sbr.rel (%p137) target = $region12
    $region11: #{encoder_forward.6} parent=5 // pred_region
      %s141 = ssub.s32 %s9, 1
      // Predicated region
      $region13: #{encoder_forward.6} parent=11 // pred_check
        %p142 = pneg %p73
      $region14: #{encoder_forward.6} parent=11 // pred_check_branch
        %144 = sbr.rel (%p142) target = $region16
      $region15: #{encoder_forward.6} parent=11 // pred_region
        %p145 = scmp.lt.s32.totalorder %s19, 0
        %s146 = scalar_select %p145, %s19, 0
        %s147 = smul.addr %s146, 4
        %s148 = scalar_lea.vmem %s1, %s147
      $region16: #{encoder_forward.6} parent=11 // pred_fallthru
        _
      // Predicated region
      $region17: #{encoder_forward.6} parent=11 // pred_check
        %p149 = pneg %p99
      $region18: #{encoder_forward.6} parent=11 // pred_check_branch
        %151 = sbr.rel (%p149) target = $region20
      $region19: #{encoder_forward.6} parent=11 // pred_region
        %p152 = scmp.lt.s32.totalorder %s19, 0
        %s153 = scalar_select %p152, %s19, 0
        %s154 = scalar_lea.vmem %s2, %s153
      $region20: #{encoder_forward.6} parent=11 // pred_fallthru
        _
    $region12: #{encoder_forward.6} parent=5 // pred_fallthru
      _
    %p155 = scmp.lt.s32.totalorder %s9, 2
    // Predicated region
    $region21: #{encoder_forward.6} parent=5 // pred_check
      %p156 = pneg %p155
    $region22: #{encoder_forward.6} parent=5 // pred_check_branch
      %158 = sbr.rel (%p156) target = $region24
    $region23: #{encoder_forward.6} parent=5 // pred_region
      // Predicated region
      $region25: #{encoder_forward.6} parent=23 // pred_check
        %p159 = pneg %p41
      $region26: #{encoder_forward.6} parent=23 // pred_check_branch
        %161 = sbr.rel (%p159) target = $region28
      $region27: #{encoder_forward.6} parent=23 // pred_region
        %s162 = smul.u32 32, %s16
        %p163 = scmp.lt.s32.totalorder %s162, 63
        %s164 = scalar_select %p163, %s162, 63
        %s165 = smul.addr %s164, 5
        %s166 = smul.addr %s165, 4
        %s167 = scalar_lea.vmem %s0, %s166
        %s168 = smul.u32 32, %s16
      $region28: #{encoder_forward.6} parent=23 // pred_fallthru
        _
    $region24: #{encoder_forward.6} parent=5 // pred_fallthru
      _
    %p169 = scmp.le.s32.totalorder 1, %s9
    %p170 = scmp.lt.s32.totalorder %s9, 3
    %p171 = pnand %p169, %p170
    %p172 = pneg %p171
    // Predicated region
    $region29: #{encoder_forward.6} parent=5 // pred_check
      _
    $region30: #{encoder_forward.6} parent=5 // pred_check_branch
      %174 = sbr.rel (%p171) target = $region32
    $region31: #{encoder_forward.6} parent=5 // pred_region
      %s175 = ssub.s32 %s9, 1
      %s176 = smul.u32 32, %s18
      %p177 = scmp.lt.s32.totalorder %s176, 63
      %s178 = scalar_select %p177, %s176, 63
      %s179 = smul.addr %s178, 5
      %s180 = smul.addr %s179, 4
      %s181 = scalar_lea.vmem %s0, %s180
      %p182 = pneg %p47
      %p183 = pneg %p44
      %p184 = scmp.lt.s32.totalorder %s19, 0
      %s185 = scalar_select %p184, %s19, 0
      %s186 = smul.addr %s185, 4
      %s187 = scalar_lea.vmem %s1, %s186
      %p188 = pneg %p73
      %p189 = pneg %p70
      %p190 = scmp.lt.s32.totalorder %s19, 0
      %s191 = scalar_select %p190, %s19, 0
      %s192 = scalar_lea.vmem %s2, %s191
      %p193 = pneg %p99
      %p194 = pneg %p96
      %p195 = pneg %p127
      %p196 = pneg %p124
      %s197 = smul.u32 32, %s18
      %p198 = scmp.lt.s32.totalorder %s197, 63
      %s199 = scalar_select %p198, %s197, 63
      %p200 = scmp.lt.s32.totalorder %s19, 0
      %s201 = scalar_select %p200, %s19, 0
      %s202 = sadd.s32 %s201, %s199
      %s203 = smul.addr %s202, 4
      %s204 = scalar_lea.vmem %s3, %s203
      %s205 = smul.u32 32, %s18
      %p206 = scmp.lt.s32.totalorder %s205, 63
      %s207 = scalar_select %p206, %s205, 63
      %s208 = smul.addr %s207, 5
      %s209 = smul.addr %s208, 4
      %s210 = scalar_lea.vmem %s0, %s209
      %s211 = smul.u32 32, %s18
      %p212 = scmp.lt.s32.totalorder %s19, 0
      %s213 = scalar_select %p212, %s19, 0
      %s214 = smul.addr %s213, 4
      %s215 = scalar_lea.vmem %s1, %s214
      %p216 = scmp.lt.s32.totalorder %s19, 0
      %s217 = scalar_select %p216, %s19, 0
      %s218 = scalar_lea.vmem %s2, %s217
      %s219 = smul.u32 32, %s18
      %p220 = scmp.lt.s32.totalorder %s219, 63
      %s221 = scalar_select %p220, %s219, 63
      %p222 = scmp.lt.s32.totalorder %s19, 0
      %s223 = scalar_select %p222, %s19, 0
      %s224 = sadd.s32 %s223, %s221
      %s225 = smul.addr %s224, 4
      %s226 = scalar_lea.vmem %s3, %s225
      %s227 = smul.u32 32, %s18
      %v229 = vld [vmem:[%s210] sm:$0xff]
      %v230 = vld [vmem:[%s210 + $0x8] sm:$0xff]
      %v231 = vld [vmem:[%s210 + $0x10] sm:$0xf]
      %v232 = vld [vmem:[%s210 + $0x14] sm:$0xff]
      %v233 = vld [vmem:[%s210 + $0x1c] sm:$0xff]
      %v234 = vld [vmem:[%s210 + $0x24] sm:$0xf]
      %v235 = vld [vmem:[%s210 + $0x28] sm:$0xff]
      %v236 = vld [vmem:[%s210 + $0x30] sm:$0xff]
      %v237 = vld [vmem:[%s210 + $0x38] sm:$0xf]
      %v238 = vld [vmem:[%s210 + $0x3c] sm:$0xff]
      %v239 = vld [vmem:[%s210 + $0x44] sm:$0xff]
      %v240 = vld [vmem:[%s210 + $0x4c] sm:$0xf]
      %v241 = vld [vmem:[%s210 + $0x50] sm:$0xff]
      %v242 = vld [vmem:[%s210 + $0x58] sm:$0xff]
      %v243 = vld [vmem:[%s210 + $0x60] sm:$0xf]
      %v244 = vld [vmem:[%s210 + $0x64] sm:$0xff]
      %v245 = vld [vmem:[%s210 + $0x6c] sm:$0xff]
      %v246 = vld [vmem:[%s210 + $0x74] sm:$0xf]
      %v247 = vld [vmem:[%s210 + $0x78] sm:$0xff]
      %v248 = vld [vmem:[%s210 + $0x80] sm:$0xff]
      %v249 = vld [vmem:[%s210 + $0x88] sm:$0xf]
      %v250 = vld [vmem:[%s210 + $0x8c] sm:$0xff]
      %v251 = vld [vmem:[%s210 + $0x94] sm:$0xff]
      %v252 = vld [vmem:[%s210 + $0x9c] sm:$0xf]
      %v253 = vld [vmem:[%s210 + $0xa0] sm:$0xff]
      %v254 = vld [vmem:[%s210 + $0xa8] sm:$0xff]
      %v255 = vld [vmem:[%s210 + $0xb0] sm:$0xf]
      %v256 = vld [vmem:[%s210 + $0xb4] sm:$0xff]
      %v257 = vld [vmem:[%s210 + $0xbc] sm:$0xff]
      %v258 = vld [vmem:[%s210 + $0xc4] sm:$0xf]
      %v259 = vld [vmem:[%s210 + $0xc8] sm:$0xff]
      %v260 = vld [vmem:[%s210 + $0xd0] sm:$0xff]
      %v261 = vld [vmem:[%s210 + $0xd8] sm:$0xf]
      %v262 = vld [vmem:[%s210 + $0xdc] sm:$0xff]
      %v263 = vld [vmem:[%s210 + $0xe4] sm:$0xff]
      %v264 = vld [vmem:[%s210 + $0xec] sm:$0xf]
      %v265 = vld [vmem:[%s210 + $0xf0] sm:$0xff]
      %v266 = vld [vmem:[%s210 + $0xf8] sm:$0xff]
      %v267 = vld [vmem:[%s210 + $0x100] sm:$0xf]
      %v268 = vld [vmem:[%s210 + $0x104] sm:$0xff]
      %v269 = vld [vmem:[%s210 + $0x10c] sm:$0xff]
      %v270 = vld [vmem:[%s210 + $0x114] sm:$0xf]
      %v271 = vld [vmem:[%s210 + $0x118] sm:$0xff]
      %v272 = vld [vmem:[%s210 + $0x120] sm:$0xff]
      %v273 = vld [vmem:[%s210 + $0x128] sm:$0xf]
      %v274 = vld [vmem:[%s210 + $0x12c] sm:$0xff]
      %v275 = vld [vmem:[%s210 + $0x134] sm:$0xff]
      %v276 = vld [vmem:[%s210 + $0x13c] sm:$0xf]
      %v277 = vld [vmem:[%s210 + $0x140] sm:$0xff]
      %v278 = vld [vmem:[%s210 + $0x148] sm:$0xff]
      %v279 = vld [vmem:[%s210 + $0x150] sm:$0xf]
      %v280 = vld [vmem:[%s210 + $0x154] sm:$0xff]
      %v281 = vld [vmem:[%s210 + $0x15c] sm:$0xff]
      %v282 = vld [vmem:[%s210 + $0x164] sm:$0xf]
      %v283 = vld [vmem:[%s210 + $0x168] sm:$0xff]
      %v284 = vld [vmem:[%s210 + $0x170] sm:$0xff]
      %v285 = vld [vmem:[%s210 + $0x178] sm:$0xf]
      %v286 = vld [vmem:[%s210 + $0x17c] sm:$0xff]
      %v287 = vld [vmem:[%s210 + $0x184] sm:$0xff]
      %v288 = vld [vmem:[%s210 + $0x18c] sm:$0xf]
      %v289 = vld [vmem:[%s210 + $0x190] sm:$0xff]
      %v290 = vld [vmem:[%s210 + $0x198] sm:$0xff]
      %v291 = vld [vmem:[%s210 + $0x1a0] sm:$0xf]
      %v292 = vld [vmem:[%s210 + $0x1a4] sm:$0xff]
      %v293 = vld [vmem:[%s210 + $0x1ac] sm:$0xff]
      %v294 = vld [vmem:[%s210 + $0x1b4] sm:$0xf]
      %v295 = vld [vmem:[%s210 + $0x1b8] sm:$0xff]
      %v296 = vld [vmem:[%s210 + $0x1c0] sm:$0xff]
      %v297 = vld [vmem:[%s210 + $0x1c8] sm:$0xf]
      %v298 = vld [vmem:[%s210 + $0x1cc] sm:$0xff]
      %v299 = vld [vmem:[%s210 + $0x1d4] sm:$0xff]
      %v300 = vld [vmem:[%s210 + $0x1dc] sm:$0xf]
      %v301 = vld [vmem:[%s210 + $0x1e0] sm:$0xff]
      %v302 = vld [vmem:[%s210 + $0x1e8] sm:$0xff]
      %v303 = vld [vmem:[%s210 + $0x1f0] sm:$0xf]
      %v304 = vld [vmem:[%s210 + $0x1f4] sm:$0xff]
      %v305 = vld [vmem:[%s210 + $0x1fc] sm:$0xff]
      %v306 = vld [vmem:[%s210 + $0x204] sm:$0xf]
      %v307 = vld [vmem:[%s210 + $0x208] sm:$0xff]
      %v308 = vld [vmem:[%s210 + $0x210] sm:$0xff]
      %v309 = vld [vmem:[%s210 + $0x218] sm:$0xf]
      %v310 = vld [vmem:[%s210 + $0x21c] sm:$0xff]
      %v311 = vld [vmem:[%s210 + $0x224] sm:$0xff]
      %v312 = vld [vmem:[%s210 + $0x22c] sm:$0xf]
      %v313 = vld [vmem:[%s210 + $0x230] sm:$0xff]
      %v314 = vld [vmem:[%s210 + $0x238] sm:$0xff]
      %v315 = vld [vmem:[%s210 + $0x240] sm:$0xf]
      %v316 = vld [vmem:[%s210 + $0x244] sm:$0xff]
      %v317 = vld [vmem:[%s210 + $0x24c] sm:$0xff]
      %v318 = vld [vmem:[%s210 + $0x254] sm:$0xf]
      %v319 = vld [vmem:[%s210 + $0x258] sm:$0xff]
      %v320 = vld [vmem:[%s210 + $0x260] sm:$0xff]
      %v321 = vld [vmem:[%s210 + $0x268] sm:$0xf]
      %v322 = vld [vmem:[%s210 + $0x26c] sm:$0xff]
      %v323 = vld [vmem:[%s210 + $0x274] sm:$0xff]
      %v324 = vld [vmem:[%s210 + $0x27c] sm:$0xf]
      %v325 = vld [vmem:[%s215] sm:$0xf]
      %v326 = vld [vmem:[%s215 + $0x4] sm:$0xf]
      %v327 = vld [vmem:[%s215 + $0x8] sm:$0xf]
      %v328 = vld [vmem:[%s215 + $0xc] sm:$0xf]
      %v329 = vld [vmem:[%s215 + $0x10] sm:$0xf]
      %v330 = vld [vmem:[%s215 + $0x14] sm:$0xf]
      %v331 = vld [vmem:[%s215 + $0x18] sm:$0xf]
      %v332 = vld [vmem:[%s215 + $0x1c] sm:$0xf]
      %v333 = vld [vmem:[%s215 + $0x20] sm:$0xf]
      %v334 = vld [vmem:[%s215 + $0x24] sm:$0xf]
      %v335 = vld [vmem:[%s215 + $0x28] sm:$0xf]
      %v336 = vld [vmem:[%s215 + $0x2c] sm:$0xf]
      %v337 = vld [vmem:[%s215 + $0x30] sm:$0xf]
      %v338 = vld [vmem:[%s215 + $0x34] sm:$0xf]
      %v339 = vld [vmem:[%s215 + $0x38] sm:$0xf]
      %v340 = vld [vmem:[%s215 + $0x3c] sm:$0xf]
      %v341 = vld [vmem:[%s215 + $0x40] sm:$0xf]
      %v342 = vld [vmem:[%s215 + $0x44] sm:$0xf]
      %v343 = vld [vmem:[%s215 + $0x48] sm:$0xf]
      %v344 = vld [vmem:[%s215 + $0x4c] sm:$0xf]
      %v345 = vld [vmem:[%s215 + $0x50] sm:$0xf]
      %v346 = vld [vmem:[%s215 + $0x54] sm:$0xf]
      %v347 = vld [vmem:[%s215 + $0x58] sm:$0xf]
      %v348 = vld [vmem:[%s215 + $0x5c] sm:$0xf]
      %v349 = vld [vmem:[%s215 + $0x60] sm:$0xf]
      %v350 = vld [vmem:[%s215 + $0x64] sm:$0xf]
      %v351 = vld [vmem:[%s215 + $0x68] sm:$0xf]
      %v352 = vld [vmem:[%s215 + $0x6c] sm:$0xf]
      %v353 = vld [vmem:[%s215 + $0x70] sm:$0xf]
      %v354 = vld [vmem:[%s215 + $0x74] sm:$0xf]
      %v355 = vld [vmem:[%s215 + $0x78] sm:$0xf]
      %v356 = vld [vmem:[%s215 + $0x7c] sm:$0xf]
      %v357 = vld [vmem:[%s215 + $0x80] sm:$0xf]
      %v358 = vld [vmem:[%s215 + $0x84] sm:$0xf]
      %v359 = vld [vmem:[%s215 + $0x88] sm:$0xf]
      %v360 = vld [vmem:[%s215 + $0x8c] sm:$0xf]
      %v361 = vld [vmem:[%s215 + $0x90] sm:$0xf]
      %v362 = vld [vmem:[%s215 + $0x94] sm:$0xf]
      %v363 = vld [vmem:[%s215 + $0x98] sm:$0xf]
      %v364 = vld [vmem:[%s215 + $0x9c] sm:$0xf]
      %v365 = vld [vmem:[%s215 + $0xa0] sm:$0xf]
      %v366 = vld [vmem:[%s215 + $0xa4] sm:$0xf]
      %v367 = vld [vmem:[%s215 + $0xa8] sm:$0xf]
      %v368 = vld [vmem:[%s215 + $0xac] sm:$0xf]
      %v369 = vld [vmem:[%s215 + $0xb0] sm:$0xf]
      %v370 = vld [vmem:[%s215 + $0xb4] sm:$0xf]
      %v371 = vld [vmem:[%s215 + $0xb8] sm:$0xf]
      %v372 = vld [vmem:[%s215 + $0xbc] sm:$0xf]
      %v373 = vld [vmem:[%s215 + $0xc0] sm:$0xf]
      %v374 = vld [vmem:[%s215 + $0xc4] sm:$0xf]
      %v375 = vld [vmem:[%s215 + $0xc8] sm:$0xf]
      %v376 = vld [vmem:[%s215 + $0xcc] sm:$0xf]
      %v377 = vld [vmem:[%s215 + $0xd0] sm:$0xf]
      %v378 = vld [vmem:[%s215 + $0xd4] sm:$0xf]
      %v379 = vld [vmem:[%s215 + $0xd8] sm:$0xf]
      %v380 = vld [vmem:[%s215 + $0xdc] sm:$0xf]
      %v381 = vld [vmem:[%s215 + $0xe0] sm:$0xf]
      %v382 = vld [vmem:[%s215 + $0xe4] sm:$0xf]
      %v383 = vld [vmem:[%s215 + $0xe8] sm:$0xf]
      %v384 = vld [vmem:[%s215 + $0xec] sm:$0xf]
      %v385 = vld [vmem:[%s215 + $0xf0] sm:$0xf]
      %v386 = vld [vmem:[%s215 + $0xf4] sm:$0xf]
      %v387 = vld [vmem:[%s215 + $0xf8] sm:$0xf]
      %v388 = vld [vmem:[%s215 + $0xfc] sm:$0xf]
      %v389 = vld [vmem:[%s215 + $0x100] sm:$0xf]
      %v390 = vld [vmem:[%s215 + $0x104] sm:$0xf]
      %v391 = vld [vmem:[%s215 + $0x108] sm:$0xf]
      %v392 = vld [vmem:[%s215 + $0x10c] sm:$0xf]
      %v393 = vld [vmem:[%s215 + $0x110] sm:$0xf]
      %v394 = vld [vmem:[%s215 + $0x114] sm:$0xf]
      %v395 = vld [vmem:[%s215 + $0x118] sm:$0xf]
      %v396 = vld [vmem:[%s215 + $0x11c] sm:$0xf]
      %v397 = vld [vmem:[%s218] sm:$0x1]
      %v399 = vlaneseq
      %v400 = vshrl.u32 %v399, 7
      %v401 = vsub.s32 0, %v400
      %v402 = vrot.slane %v397, %v401
      %v500 = vunpack.c.l.b16 %v229
      %v501 = vunpack.c.h.b16 %v229
      %v502 = vunpack.c.l.b16 %v230
      %v503 = vunpack.c.h.b16 %v230
      %v504 = vunpack.c.l.b16 %v231
      %v505 = vunpack.c.l.b16 %v232
      %v506 = vunpack.c.h.b16 %v232
      %v507 = vunpack.c.l.b16 %v233
      %v508 = vunpack.c.h.b16 %v233
      %v509 = vunpack.c.l.b16 %v234
      %v510 = vunpack.c.l.b16 %v235
      %v511 = vunpack.c.h.b16 %v235
      %v512 = vunpack.c.l.b16 %v236
      %v513 = vunpack.c.h.b16 %v236
      %v514 = vunpack.c.l.b16 %v237
      %v515 = vunpack.c.l.b16 %v238
      %v516 = vunpack.c.h.b16 %v238
      %v517 = vunpack.c.l.b16 %v239
      %v518 = vunpack.c.h.b16 %v239
      %v519 = vunpack.c.l.b16 %v240
      %v520 = vunpack.c.l.b16 %v241
      %v521 = vunpack.c.h.b16 %v241
      %v522 = vunpack.c.l.b16 %v242
      %v523 = vunpack.c.h.b16 %v242
      %v524 = vunpack.c.l.b16 %v243
      %v525 = vunpack.c.l.b16 %v244
      %v526 = vunpack.c.h.b16 %v244
      %v527 = vunpack.c.l.b16 %v245
      %v528 = vunpack.c.h.b16 %v245
      %v529 = vunpack.c.l.b16 %v246
      %v530 = vunpack.c.l.b16 %v247
      %v531 = vunpack.c.h.b16 %v247
      %v532 = vunpack.c.l.b16 %v248
      %v533 = vunpack.c.h.b16 %v248
      %v534 = vunpack.c.l.b16 %v249
      %v535 = vunpack.c.l.b16 %v250
      %v536 = vunpack.c.h.b16 %v250
      %v537 = vunpack.c.l.b16 %v251
      %v538 = vunpack.c.h.b16 %v251
      %v539 = vunpack.c.l.b16 %v252
      %v540 = vunpack.c.l.b16 %v253
      %v541 = vunpack.c.h.b16 %v253
      %v542 = vunpack.c.l.b16 %v254
      %v543 = vunpack.c.h.b16 %v254
      %v544 = vunpack.c.l.b16 %v255
      %v545 = vunpack.c.l.b16 %v256
      %v546 = vunpack.c.h.b16 %v256
      %v547 = vunpack.c.l.b16 %v257
      %v548 = vunpack.c.h.b16 %v257
      %v549 = vunpack.c.l.b16 %v258
      %v550 = vunpack.c.l.b16 %v259
      %v551 = vunpack.c.h.b16 %v259
      %v552 = vunpack.c.l.b16 %v260
      %v553 = vunpack.c.h.b16 %v260
      %v554 = vunpack.c.l.b16 %v261
      %v555 = vunpack.c.l.b16 %v262
      %v556 = vunpack.c.h.b16 %v262
      %v557 = vunpack.c.l.b16 %v263
      %v558 = vunpack.c.h.b16 %v263
      %v559 = vunpack.c.l.b16 %v264
      %v560 = vunpack.c.l.b16 %v265
      %v561 = vunpack.c.h.b16 %v265
      %v562 = vunpack.c.l.b16 %v266
      %v563 = vunpack.c.h.b16 %v266
      %v564 = vunpack.c.l.b16 %v267
      %v565 = vunpack.c.l.b16 %v268
      %v566 = vunpack.c.h.b16 %v268
      %v567 = vunpack.c.l.b16 %v269
      %v568 = vunpack.c.h.b16 %v269
      %v569 = vunpack.c.l.b16 %v270
      %v570 = vunpack.c.l.b16 %v271
      %v571 = vunpack.c.h.b16 %v271
      %v572 = vunpack.c.l.b16 %v272
      %v573 = vunpack.c.h.b16 %v272
      %v574 = vunpack.c.l.b16 %v273
      %v575 = vunpack.c.l.b16 %v274
      %v576 = vunpack.c.h.b16 %v274
      %v577 = vunpack.c.l.b16 %v275
      %v578 = vunpack.c.h.b16 %v275
      %v579 = vunpack.c.l.b16 %v276
      %v580 = vunpack.c.l.b16 %v277
      %v581 = vunpack.c.h.b16 %v277
      %v582 = vunpack.c.l.b16 %v278
      %v583 = vunpack.c.h.b16 %v278
      %v584 = vunpack.c.l.b16 %v279
      %v585 = vunpack.c.l.b16 %v280
      %v586 = vunpack.c.h.b16 %v280
      %v587 = vunpack.c.l.b16 %v281
      %v588 = vunpack.c.h.b16 %v281
      %v589 = vunpack.c.l.b16 %v282
      %v590 = vunpack.c.l.b16 %v283
      %v591 = vunpack.c.h.b16 %v283
      %v592 = vunpack.c.l.b16 %v284
      %v593 = vunpack.c.h.b16 %v284
      %v594 = vunpack.c.l.b16 %v285
      %v595 = vunpack.c.l.b16 %v286
      %v596 = vunpack.c.h.b16 %v286
      %v597 = vunpack.c.l.b16 %v287
      %v598 = vunpack.c.h.b16 %v287
      %v599 = vunpack.c.l.b16 %v288
      %v600 = vunpack.c.l.b16 %v289
      %v601 = vunpack.c.h.b16 %v289
      %v602 = vunpack.c.l.b16 %v290
      %v603 = vunpack.c.h.b16 %v290
      %v604 = vunpack.c.l.b16 %v291
      %v605 = vunpack.c.l.b16 %v292
      %v606 = vunpack.c.h.b16 %v292
      %v607 = vunpack.c.l.b16 %v293
      %v608 = vunpack.c.h.b16 %v293
      %v609 = vunpack.c.l.b16 %v294
      %v610 = vunpack.c.l.b16 %v295
      %v611 = vunpack.c.h.b16 %v295
      %v612 = vunpack.c.l.b16 %v296
      %v613 = vunpack.c.h.b16 %v296
      %v614 = vunpack.c.l.b16 %v297
      %v615 = vunpack.c.l.b16 %v298
      %v616 = vunpack.c.h.b16 %v298
      %v617 = vunpack.c.l.b16 %v299
      %v618 = vunpack.c.h.b16 %v299
      %v619 = vunpack.c.l.b16 %v300
      %v620 = vunpack.c.l.b16 %v301
      %v621 = vunpack.c.h.b16 %v301
      %v622 = vunpack.c.l.b16 %v302
      %v623 = vunpack.c.h.b16 %v302
      %v624 = vunpack.c.l.b16 %v303
      %v625 = vunpack.c.l.b16 %v304
      %v626 = vunpack.c.h.b16 %v304
      %v627 = vunpack.c.l.b16 %v305
      %v628 = vunpack.c.h.b16 %v305
      %v629 = vunpack.c.l.b16 %v306
      %v630 = vunpack.c.l.b16 %v307
      %v631 = vunpack.c.h.b16 %v307
      %v632 = vunpack.c.l.b16 %v308
      %v633 = vunpack.c.h.b16 %v308
      %v634 = vunpack.c.l.b16 %v309
      %v635 = vunpack.c.l.b16 %v310
      %v636 = vunpack.c.h.b16 %v310
      %v637 = vunpack.c.l.b16 %v311
      %v638 = vunpack.c.h.b16 %v311
      %v639 = vunpack.c.l.b16 %v312
      %v640 = vunpack.c.l.b16 %v313
      %v641 = vunpack.c.h.b16 %v313
      %v642 = vunpack.c.l.b16 %v314
      %v643 = vunpack.c.h.b16 %v314
      %v644 = vunpack.c.l.b16 %v315
      %v645 = vunpack.c.l.b16 %v316
      %v646 = vunpack.c.h.b16 %v316
      %v647 = vunpack.c.l.b16 %v317
      %v648 = vunpack.c.h.b16 %v317
      %v649 = vunpack.c.l.b16 %v318
      %v650 = vunpack.c.l.b16 %v319
      %v651 = vunpack.c.h.b16 %v319
      %v652 = vunpack.c.l.b16 %v320
      %v653 = vunpack.c.h.b16 %v320
      %v654 = vunpack.c.l.b16 %v321
      %v655 = vunpack.c.l.b16 %v322
      %v656 = vunpack.c.h.b16 %v322
      %v657 = vunpack.c.l.b16 %v323
      %v658 = vunpack.c.h.b16 %v323
      %v659 = vunpack.c.l.b16 %v324
      %v660 = vpack.c.b16 %v505, %v500
      %v661 = vpack.c.b16 %v506, %v501
      %v662 = vpack.c.b16 %v507, %v502
      %v663 = vpack.c.b16 %v508, %v503
      %v664 = vpack.c.b16 %v509, %v504
      %v665 = vpack.c.b16 %v515, %v510
      %v666 = vpack.c.b16 %v516, %v511
      %v667 = vpack.c.b16 %v517, %v512
      %v668 = vpack.c.b16 %v518, %v513
      %v669 = vpack.c.b16 %v519, %v514
      %v670 = vpack.c.b16 %v525, %v520
      %v671 = vpack.c.b16 %v526, %v521
      %v672 = vpack.c.b16 %v527, %v522
      %v673 = vpack.c.b16 %v528, %v523
      %v674 = vpack.c.b16 %v529, %v524
      %v675 = vpack.c.b16 %v535, %v530
      %v676 = vpack.c.b16 %v536, %v531
      %v677 = vpack.c.b16 %v537, %v532
      %v678 = vpack.c.b16 %v538, %v533
      %v679 = vpack.c.b16 %v539, %v534
      %v680 = vpack.c.b16 %v545, %v540
      %v681 = vpack.c.b16 %v546, %v541
      %v682 = vpack.c.b16 %v547, %v542
      %v683 = vpack.c.b16 %v548, %v543
      %v684 = vpack.c.b16 %v549, %v544
      %v685 = vpack.c.b16 %v555, %v550
      %v686 = vpack.c.b16 %v556, %v551
      %v687 = vpack.c.b16 %v557, %v552
      %v688 = vpack.c.b16 %v558, %v553
      %v689 = vpack.c.b16 %v559, %v554
      %v690 = vpack.c.b16 %v565, %v560
      %v691 = vpack.c.b16 %v566, %v561
      %v692 = vpack.c.b16 %v567, %v562
      %v693 = vpack.c.b16 %v568, %v563
      %v694 = vpack.c.b16 %v569, %v564
      %v695 = vpack.c.b16 %v575, %v570
      %v696 = vpack.c.b16 %v576, %v571
      %v697 = vpack.c.b16 %v577, %v572
      %v698 = vpack.c.b16 %v578, %v573
      %v699 = vpack.c.b16 %v579, %v574
      %v700 = vpack.c.b16 %v585, %v580
      %v701 = vpack.c.b16 %v586, %v581
      %v702 = vpack.c.b16 %v587, %v582
      %v703 = vpack.c.b16 %v588, %v583
      %v704 = vpack.c.b16 %v589, %v584
      %v705 = vpack.c.b16 %v595, %v590
      %v706 = vpack.c.b16 %v596, %v591
      %v707 = vpack.c.b16 %v597, %v592
      %v708 = vpack.c.b16 %v598, %v593
      %v709 = vpack.c.b16 %v599, %v594
      %v710 = vpack.c.b16 %v605, %v600
      %v711 = vpack.c.b16 %v606, %v601
      %v712 = vpack.c.b16 %v607, %v602
      %v713 = vpack.c.b16 %v608, %v603
      %v714 = vpack.c.b16 %v609, %v604
      %v715 = vpack.c.b16 %v615, %v610
      %v716 = vpack.c.b16 %v616, %v611
      %v717 = vpack.c.b16 %v617, %v612
      %v718 = vpack.c.b16 %v618, %v613
      %v719 = vpack.c.b16 %v619, %v614
      %v720 = vpack.c.b16 %v625, %v620
      %v721 = vpack.c.b16 %v626, %v621
      %v722 = vpack.c.b16 %v627, %v622
      %v723 = vpack.c.b16 %v628, %v623
      %v724 = vpack.c.b16 %v629, %v624
      %v725 = vpack.c.b16 %v635, %v630
      %v726 = vpack.c.b16 %v636, %v631
      %v727 = vpack.c.b16 %v637, %v632
      %v728 = vpack.c.b16 %v638, %v633
      %v729 = vpack.c.b16 %v639, %v634
      %v730 = vpack.c.b16 %v645, %v640
      %v731 = vpack.c.b16 %v646, %v641
      %v732 = vpack.c.b16 %v647, %v642
      %v733 = vpack.c.b16 %v648, %v643
      %v734 = vpack.c.b16 %v649, %v644
      %v735 = vpack.c.b16 %v655, %v650
      %v736 = vpack.c.b16 %v656, %v651
      %v737 = vpack.c.b16 %v657, %v652
      %v738 = vpack.c.b16 %v658, %v653
      %v739 = vpack.c.b16 %v659, %v654
      %v876 = vunpack.c.l.b16 %v325
      %v877 = vunpack.c.l.b16 %v326
      %v878 = vunpack.c.l.b16 %v327
      %v879 = vunpack.c.l.b16 %v328
      %v880 = vunpack.c.l.b16 %v329
      %v881 = vunpack.c.l.b16 %v330
      %v882 = vunpack.c.l.b16 %v331
      %v883 = vunpack.c.l.b16 %v332
      %v884 = vunpack.c.l.b16 %v333
      %v885 = vunpack.c.l.b16 %v334
      %v886 = vunpack.c.l.b16 %v335
      %v887 = vunpack.c.l.b16 %v336
      %v888 = vunpack.c.l.b16 %v337
      %v889 = vunpack.c.l.b16 %v338
      %v890 = vunpack.c.l.b16 %v339
      %v891 = vunpack.c.l.b16 %v340
      %v892 = vunpack.c.l.b16 %v341
      %v893 = vunpack.c.l.b16 %v342
      %v894 = vunpack.c.l.b16 %v343
      %v895 = vunpack.c.l.b16 %v344
      %v896 = vunpack.c.l.b16 %v345
      %v897 = vunpack.c.l.b16 %v346
      %v898 = vunpack.c.l.b16 %v347
      %v899 = vunpack.c.l.b16 %v348
      %v900 = vunpack.c.l.b16 %v349
      %v901 = vunpack.c.l.b16 %v350
      %v902 = vunpack.c.l.b16 %v351
      %v903 = vunpack.c.l.b16 %v352
      %v904 = vunpack.c.l.b16 %v353
      %v905 = vunpack.c.l.b16 %v354
      %v906 = vunpack.c.l.b16 %v355
      %v907 = vunpack.c.l.b16 %v356
      %v908 = vunpack.c.l.b16 %v357
      %v909 = vunpack.c.l.b16 %v358
      %v910 = vunpack.c.l.b16 %v359
      %v911 = vunpack.c.l.b16 %v360
      %v912 = vunpack.c.l.b16 %v361
      %v913 = vunpack.c.l.b16 %v362
      %v914 = vunpack.c.l.b16 %v363
      %v915 = vunpack.c.l.b16 %v364
      %v916 = vunpack.c.l.b16 %v365
      %v917 = vunpack.c.l.b16 %v366
      %v918 = vunpack.c.l.b16 %v367
      %v919 = vunpack.c.l.b16 %v368
      %v920 = vunpack.c.l.b16 %v369
      %v921 = vunpack.c.l.b16 %v370
      %v922 = vunpack.c.l.b16 %v371
      %v923 = vunpack.c.l.b16 %v372
      %v924 = vunpack.c.l.b16 %v373
      %v925 = vunpack.c.l.b16 %v374
      %v926 = vunpack.c.l.b16 %v375
      %v927 = vunpack.c.l.b16 %v376
      %v928 = vunpack.c.l.b16 %v377
      %v929 = vunpack.c.l.b16 %v378
      %v930 = vunpack.c.l.b16 %v379
      %v931 = vunpack.c.l.b16 %v380
      %v932 = vunpack.c.l.b16 %v381
      %v933 = vunpack.c.l.b16 %v382
      %v934 = vunpack.c.l.b16 %v383
      %v935 = vunpack.c.l.b16 %v384
      %v936 = vunpack.c.l.b16 %v385
      %v937 = vunpack.c.l.b16 %v386
      %v938 = vunpack.c.l.b16 %v387
      %v939 = vunpack.c.l.b16 %v388
      %v940 = vunpack.c.l.b16 %v389
      %v941 = vunpack.c.l.b16 %v390
      %v942 = vunpack.c.l.b16 %v391
      %v943 = vunpack.c.l.b16 %v392
      %v944 = vunpack.c.l.b16 %v393
      %v945 = vunpack.c.l.b16 %v394
      %v946 = vunpack.c.l.b16 %v395
      %v947 = vunpack.c.l.b16 %v396
      %v948 = vpack.c.b16 %v877, %v876
      %v949 = vpack.c.b16 %v879, %v878
      %v950 = vpack.c.b16 %v881, %v880
      %v951 = vpack.c.b16 %v883, %v882
      %v952 = vpack.c.b16 %v885, %v884
      %v953 = vpack.c.b16 %v887, %v886
      %v954 = vpack.c.b16 %v889, %v888
      %v955 = vpack.c.b16 %v891, %v890
      %v956 = vpack.c.b16 %v893, %v892
      %v957 = vpack.c.b16 %v895, %v894
      %v958 = vpack.c.b16 %v897, %v896
      %v959 = vpack.c.b16 %v899, %v898
      %v960 = vpack.c.b16 %v901, %v900
      %v961 = vpack.c.b16 %v903, %v902
      %v962 = vpack.c.b16 %v905, %v904
      %v963 = vpack.c.b16 %v907, %v906
      %v964 = vpack.c.b16 %v909, %v908
      %v965 = vpack.c.b16 %v911, %v910
      %v966 = vpack.c.b16 %v913, %v912
      %v967 = vpack.c.b16 %v915, %v914
      %v968 = vpack.c.b16 %v917, %v916
      %v969 = vpack.c.b16 %v919, %v918
      %v970 = vpack.c.b16 %v921, %v920
      %v971 = vpack.c.b16 %v923, %v922
      %v972 = vpack.c.b16 %v925, %v924
      %v973 = vpack.c.b16 %v927, %v926
      %v974 = vpack.c.b16 %v929, %v928
      %v975 = vpack.c.b16 %v931, %v930
      %v976 = vpack.c.b16 %v933, %v932
      %v977 = vpack.c.b16 %v935, %v934
      %v978 = vpack.c.b16 %v937, %v936
      %v979 = vpack.c.b16 %v939, %v938
      %v980 = vpack.c.b16 %v941, %v940
      %v981 = vpack.c.b16 %v943, %v942
      %v982 = vpack.c.b16 %v945, %v944
      %v983 = vpack.c.b16 %v947, %v946
      %vm1020 = vcmask 523264
      %v1022 = vsel %vm1020, %v664, 0
      %v1025 = vsel %vm1020, %v669, 0
      %v1028 = vsel %vm1020, %v674, 0
      %v1031 = vsel %vm1020, %v679, 0
      %v1034 = vsel %vm1020, %v684, 0
      %v1037 = vsel %vm1020, %v689, 0
      %v1040 = vsel %vm1020, %v694, 0
      %v1043 = vsel %vm1020, %v699, 0
      %v1046 = vsel %vm1020, %v704, 0
      %v1049 = vsel %vm1020, %v709, 0
      %v1052 = vsel %vm1020, %v714, 0
      %v1055 = vsel %vm1020, %v719, 0
      %v1058 = vsel %vm1020, %v724, 0
      %v1061 = vsel %vm1020, %v729, 0
      %v1064 = vsel %vm1020, %v734, 0
      %v1067 = vsel %vm1020, %v739, 0
      %1069 = vmatprep.subr.bf16.mxu0 0
      %1070 = vmatpush1.bf16.msra.mxu0 %v948
      %1071 = vmatprep.subr.bf16.mxu0 0
      %1072 = vmatpush1.bf16.msra.mxu0 %v949
      %1073 = vmatprep.subr.bf16.mxu0 0
      %1074 = vmatpush1.bf16.msra.mxu0 %v950
      %1075 = vmatprep.subr.bf16.mxu0 0
      %1076 = vmatpush1.bf16.msra.mxu0 %v951
      %1077 = vmatprep.subr.bf16.mxu0 0
      %1078 = vmatpush1.bf16.msra.mxu0 %v952
      %1079 = vmatprep.subr.bf16.mxu0 0
      %1080 = vmatpush1.bf16.msra.mxu0 %v953
      %1081 = vmatprep.subr.bf16.mxu0 0
      %1082 = vmatpush1.bf16.msra.mxu0 %v954
      %1083 = vmatprep.subr.bf16.mxu0 0
      %1084 = vmatpush1.bf16.msra.mxu0 %v955
      %1085 = vmatprep.subr.bf16.mxu0 0
      %1086 = vmatpush1.bf16.msra.mxu0 %v956
      %1087 = vmatprep.subr.bf16.mxu0 0
      %1088 = vmatpush1.bf16.msra.mxu0 %v957
      %1089 = vmatprep.subr.bf16.mxu0 0
      %1090 = vmatpush1.bf16.msra.mxu0 %v958
      %1091 = vmatprep.subr.bf16.mxu0 0
      %1092 = vmatpush1.bf16.msra.mxu0 %v959
      %1093 = vmatprep.subr.bf16.mxu0 0
      %1094 = vmatpush1.bf16.msra.mxu0 %v960
      %1095 = vmatprep.subr.bf16.mxu0 0
      %1096 = vmatpush1.bf16.msra.mxu0 %v961
      %1097 = vmatprep.subr.bf16.mxu0 0
      %1098 = vmatpush1.bf16.msra.mxu0 %v962
      %1099 = vmatprep.subr.bf16.mxu0 0
      %1100 = vmatpush1.bf16.msra.mxu0 %v963
      %1101 = vmatprep.mubr.bf16.mxu0 %v661
      %1102 = vmatmul.mubr.bf16.gmra.mrb[0].mxu0 %v660
      %v1103 = vpop.f32.mrb[0].mxu0
      %v1104 = vadd.f32 %v402, %v1103
      %v1105 = vpop.f32.mrb[0].mxu0
      %v1106 = vpop.f32.mrb[0].mxu0
      %v1107 = vadd.f32 %v402, %v1106
      %v1108 = vpop.f32.mrb[0].mxu0
      %1109 = vmatprep.mubr.bf16.mxu0 %v666
      %1110 = vmatmul.mubr.bf16.gmra.mrb[0].mxu0 %v665
      %v1111 = vpop.f32.mrb[0].mxu0
      %v1112 = vadd.f32 %v402, %v1111
      %v1113 = vpop.f32.mrb[0].mxu0
      %v1114 = vpop.f32.mrb[0].mxu0
      %v1115 = vadd.f32 %v402, %v1114
      %v1116 = vpop.f32.mrb[0].mxu0
      %1117 = vmatprep.mubr.bf16.mxu0 %v671
      %1118 = vmatmul.mubr.bf16.gmra.mrb[0].mxu0 %v670
      %v1119 = vpop.f32.mrb[0].mxu0
      %v1120 = vadd.f32 %v402, %v1119
      %v1121 = vpop.f32.mrb[0].mxu0
      %v1122 = vpop.f32.mrb[0].mxu0
      %v1123 = vadd.f32 %v402, %v1122
      %v1124 = vpop.f32.mrb[0].mxu0
      %1125 = vmatprep.mubr.bf16.mxu0 %v676
      %1126 = vmatmul.mubr.bf16.gmra.mrb[0].mxu0 %v675
      %v1127 = vpop.f32.mrb[0].mxu0
      %v1128 = vadd.f32 %v402, %v1127
      %v1129 = vpop.f32.mrb[0].mxu0
      %v1130 = vpop.f32.mrb[0].mxu0
      %v1131 = vadd.f32 %v402, %v1130
      %v1132 = vpop.f32.mrb[0].mxu0
      %1133 = vmatprep.mubr.bf16.mxu0 %v681
      %1134 = vmatmul.mubr.bf16.gmra.mrb[0].mxu0 %v680
      %v1135 = vpop.f32.mrb[0].mxu0
      %v1136 = vadd.f32 %v402, %v1135
      %v1137 = vpop.f32.mrb[0].mxu0
      %v1138 = vpop.f32.mrb[0].mxu0
      %v1139 = vadd.f32 %v402, %v1138
      %v1140 = vpop.f32.mrb[0].mxu0
      %1141 = vmatprep.mubr.bf16.mxu0 %v686
      %1142 = vmatmul.mubr.bf16.gmra.mrb[0].mxu0 %v685
      %v1143 = vpop.f32.mrb[0].mxu0
      %v1144 = vadd.f32 %v402, %v1143
      %v1145 = vpop.f32.mrb[0].mxu0
      %v1146 = vpop.f32.mrb[0].mxu0
      %v1147 = vadd.f32 %v402, %v1146
      %v1148 = vpop.f32.mrb[0].mxu0
      %1149 = vmatprep.mubr.bf16.mxu0 %v691
      %1150 = vmatmul.mubr.bf16.gmra.mrb[0].mxu0 %v690
      %v1151 = vpop.f32.mrb[0].mxu0
      %v1152 = vadd.f32 %v402, %v1151
      %v1153 = vpop.f32.mrb[0].mxu0
      %v1154 = vpop.f32.mrb[0].mxu0
      %v1155 = vadd.f32 %v402, %v1154
      %v1156 = vpop.f32.mrb[0].mxu0
      %1157 = vmatprep.mubr.bf16.mxu0 %v696
      %1158 = vmatmul.mubr.bf16.gmra.mrb[0].mxu0 %v695
      %v1159 = vpop.f32.mrb[0].mxu0
      %v1160 = vadd.f32 %v402, %v1159
      %v1161 = vpop.f32.mrb[0].mxu0
      %v1162 = vpop.f32.mrb[0].mxu0
      %v1163 = vadd.f32 %v402, %v1162
      %v1164 = vpop.f32.mrb[0].mxu0
      %1165 = vmatprep.mubr.bf16.mxu0 %v701
      %1166 = vmatmul.mubr.bf16.gmra.mrb[0].mxu0 %v700
      %v1167 = vpop.f32.mrb[0].mxu0
      %v1168 = vadd.f32 %v402, %v1167
      %v1169 = vpop.f32.mrb[0].mxu0
      %v1170 = vpop.f32.mrb[0].mxu0
      %v1171 = vadd.f32 %v402, %v1170
      %v1172 = vpop.f32.mrb[0].mxu0
      %1173 = vmatprep.mubr.bf16.mxu0 %v706
      %1174 = vmatmul.mubr.bf16.gmra.mrb[0].mxu0 %v705
      %v1175 = vpop.f32.mrb[0].mxu0
      %v1176 = vadd.f32 %v402, %v1175
      %v1177 = vpop.f32.mrb[0].mxu0
      %v1178 = vpop.f32.mrb[0].mxu0
      %v1179 = vadd.f32 %v402, %v1178
      %v1180 = vpop.f32.mrb[0].mxu0
      %1181 = vmatprep.mubr.bf16.mxu0 %v711
      %1182 = vmatmul.mubr.bf16.gmra.mrb[0].mxu0 %v710
      %v1183 = vpop.f32.mrb[0].mxu0
      %v1184 = vadd.f32 %v402, %v1183
      %v1185 = vpop.f32.mrb[0].mxu0
      %v1186 = vpop.f32.mrb[0].mxu0
      %v1187 = vadd.f32 %v402, %v1186
      %v1188 = vpop.f32.mrb[0].mxu0
      %1189 = vmatprep.mubr.bf16.mxu0 %v716
      %1190 = vmatmul.mubr.bf16.gmra.mrb[0].mxu0 %v715
      %v1191 = vpop.f32.mrb[0].mxu0
      %v1192 = vadd.f32 %v402, %v1191
      %v1193 = vpop.f32.mrb[0].mxu0
      %v1194 = vpop.f32.mrb[0].mxu0
      %v1195 = vadd.f32 %v402, %v1194
      %v1196 = vpop.f32.mrb[0].mxu0
      %1197 = vmatprep.mubr.bf16.mxu0 %v721
      %1198 = vmatmul.mubr.bf16.gmra.mrb[0].mxu0 %v720
      %v1199 = vpop.f32.mrb[0].mxu0
      %v1200 = vadd.f32 %v402, %v1199
      %v1201 = vpop.f32.mrb[0].mxu0
      %v1202 = vpop.f32.mrb[0].mxu0
      %v1203 = vadd.f32 %v402, %v1202
      %v1204 = vpop.f32.mrb[0].mxu0
      %1205 = vmatprep.mubr.bf16.mxu0 %v726
      %1206 = vmatmul.mubr.bf16.gmra.mrb[0].mxu0 %v725
      %v1207 = vpop.f32.mrb[0].mxu0
      %v1208 = vadd.f32 %v402, %v1207
      %v1209 = vpop.f32.mrb[0].mxu0
      %v1210 = vpop.f32.mrb[0].mxu0
      %v1211 = vadd.f32 %v402, %v1210
      %v1212 = vpop.f32.mrb[0].mxu0
      %1213 = vmatprep.mubr.bf16.mxu0 %v731
      %1214 = vmatmul.mubr.bf16.gmra.mrb[0].mxu0 %v730
      %v1215 = vpop.f32.mrb[0].mxu0
      %v1216 = vadd.f32 %v402, %v1215
      %v1217 = vpop.f32.mrb[0].mxu0
      %v1218 = vpop.f32.mrb[0].mxu0
      %v1219 = vadd.f32 %v402, %v1218
      %v1220 = vpop.f32.mrb[0].mxu0
      %1221 = vmatprep.mubr.bf16.mxu0 %v736
      %1222 = vmatmul.mubr.bf16.gmra.mrb[0].mxu0 %v735
      %v1223 = vpop.f32.mrb[0].mxu0
      %v1224 = vadd.f32 %v402, %v1223
      %v1225 = vpop.f32.mrb[0].mxu0
      %v1226 = vpop.f32.mrb[0].mxu0
      %v1227 = vadd.f32 %v402, %v1226
      %v1228 = vpop.f32.mrb[0].mxu0
      %1229 = vdwg.mxu0
      %1230 = vmatprep.subr.bf16.mxu0 0
      %1231 = vmatpush1.bf16.msra.mxu0 %v964
      %1232 = vmatprep.subr.bf16.mxu0 0
      %1233 = vmatpush1.bf16.msra.mxu0 %v965
      %1234 = vmatprep.subr.bf16.mxu0 0
      %1235 = vmatpush1.bf16.msra.mxu0 %v966
      %1236 = vmatprep.subr.bf16.mxu0 0
      %1237 = vmatpush1.bf16.msra.mxu0 %v967
      %1238 = vmatprep.subr.bf16.mxu0 0
      %1239 = vmatpush1.bf16.msra.mxu0 %v968
      %1240 = vmatprep.subr.bf16.mxu0 0
      %1241 = vmatpush1.bf16.msra.mxu0 %v969
      %1242 = vmatprep.subr.bf16.mxu0 0
      %1243 = vmatpush1.bf16.msra.mxu0 %v970
      %1244 = vmatprep.subr.bf16.mxu0 0
      %1245 = vmatpush1.bf16.msra.mxu0 %v971
      %1246 = vmatprep.subr.bf16.mxu0 0
      %1247 = vmatpush1.bf16.msra.mxu0 %v972
      %1248 = vmatprep.subr.bf16.mxu0 0
      %1249 = vmatpush1.bf16.msra.mxu0 %v973
      %1250 = vmatprep.subr.bf16.mxu0 0
      %1251 = vmatpush1.bf16.msra.mxu0 %v974
      %1252 = vmatprep.subr.bf16.mxu0 0
      %1253 = vmatpush1.bf16.msra.mxu0 %v975
      %1254 = vmatprep.subr.bf16.mxu0 0
      %1255 = vmatpush1.bf16.msra.mxu0 %v976
      %1256 = vmatprep.subr.bf16.mxu0 0
      %1257 = vmatpush1.bf16.msra.mxu0 %v977
      %1258 = vmatprep.subr.bf16.mxu0 0
      %1259 = vmatpush1.bf16.msra.mxu0 %v978
      %1260 = vmatprep.subr.bf16.mxu0 0
      %1261 = vmatpush1.bf16.msra.mxu0 %v979
      %1262 = vmatprep.mubr.bf16.mxu0 %v663
      %1263 = vmatmul.mubr.bf16.gmra.mrb[0].mxu0 %v662
      %v1264 = vpop.f32.mrb[0].mxu0
      %v1265 = vadd.f32 %v1104, %v1264
      %v1266 = vpop.f32.mrb[0].mxu0
      %v1267 = vpop.f32.mrb[0].mxu0
      %v1268 = vadd.f32 %v1107, %v1267
      %v1269 = vpop.f32.mrb[0].mxu0
      %1270 = vmatprep.mubr.bf16.mxu0 %v668
      %1271 = vmatmul.mubr.bf16.gmra.mrb[0].mxu0 %v667
      %v1272 = vpop.f32.mrb[0].mxu0
      %v1273 = vadd.f32 %v1112, %v1272
      %v1274 = vpop.f32.mrb[0].mxu0
      %v1275 = vpop.f32.mrb[0].mxu0
      %v1276 = vadd.f32 %v1115, %v1275
      %v1277 = vpop.f32.mrb[0].mxu0
      %1278 = vmatprep.mubr.bf16.mxu0 %v673
      %1279 = vmatmul.mubr.bf16.gmra.mrb[0].mxu0 %v672
      %v1280 = vpop.f32.mrb[0].mxu0
      %v1281 = vadd.f32 %v1120, %v1280
      %v1282 = vpop.f32.mrb[0].mxu0
      %v1283 = vpop.f32.mrb[0].mxu0
      %v1284 = vadd.f32 %v1123, %v1283
      %v1285 = vpop.f32.mrb[0].mxu0
      %1286 = vmatprep.mubr.bf16.mxu0 %v678
      %1287 = vmatmul.mubr.bf16.gmra.mrb[0].mxu0 %v677
      %v1288 = vpop.f32.mrb[0].mxu0
      %v1289 = vadd.f32 %v1128, %v1288
      %v1290 = vpop.f32.mrb[0].mxu0
      %v1291 = vpop.f32.mrb[0].mxu0
      %v1292 = vadd.f32 %v1131, %v1291
      %v1293 = vpop.f32.mrb[0].mxu0
      %1294 = vmatprep.mubr.bf16.mxu0 %v683
      %1295 = vmatmul.mubr.bf16.gmra.mrb[0].mxu0 %v682
      %v1296 = vpop.f32.mrb[0].mxu0
      %v1297 = vadd.f32 %v1136, %v1296
      %v1298 = vpop.f32.mrb[0].mxu0
      %v1299 = vpop.f32.mrb[0].mxu0
      %v1300 = vadd.f32 %v1139, %v1299
      %v1301 = vpop.f32.mrb[0].mxu0
      %1302 = vmatprep.mubr.bf16.mxu0 %v688
      %1303 = vmatmul.mubr.bf16.gmra.mrb[0].mxu0 %v687
      %v1304 = vpop.f32.mrb[0].mxu0
      %v1305 = vadd.f32 %v1144, %v1304
      %v1306 = vpop.f32.mrb[0].mxu0
      %v1307 = vpop.f32.mrb[0].mxu0
      %v1308 = vadd.f32 %v1147, %v1307
      %v1309 = vpop.f32.mrb[0].mxu0
      %1310 = vmatprep.mubr.bf16.mxu0 %v693
      %1311 = vmatmul.mubr.bf16.gmra.mrb[0].mxu0 %v692
      %v1312 = vpop.f32.mrb[0].mxu0
      %v1313 = vadd.f32 %v1152, %v1312
      %v1314 = vpop.f32.mrb[0].mxu0
      %v1315 = vpop.f32.mrb[0].mxu0
      %v1316 = vadd.f32 %v1155, %v1315
      %v1317 = vpop.f32.mrb[0].mxu0
      %1318 = vmatprep.mubr.bf16.mxu0 %v698
      %1319 = vmatmul.mubr.bf16.gmra.mrb[0].mxu0 %v697
      %v1320 = vpop.f32.mrb[0].mxu0
      %v1321 = vadd.f32 %v1160, %v1320
      %v1322 = vpop.f32.mrb[0].mxu0
      %v1323 = vpop.f32.mrb[0].mxu0
      %v1324 = vadd.f32 %v1163, %v1323
      %v1325 = vpop.f32.mrb[0].mxu0
      %1326 = vmatprep.mubr.bf16.mxu0 %v703
      %1327 = vmatmul.mubr.bf16.gmra.mrb[0].mxu0 %v702
      %v1328 = vpop.f32.mrb[0].mxu0
      %v1329 = vadd.f32 %v1168, %v1328
      %v1330 = vpop.f32.mrb[0].mxu0
      %v1331 = vpop.f32.mrb[0].mxu0
      %v1332 = vadd.f32 %v1171, %v1331
      %v1333 = vpop.f32.mrb[0].mxu0
      %1334 = vmatprep.mubr.bf16.mxu0 %v708
      %1335 = vmatmul.mubr.bf16.gmra.mrb[0].mxu0 %v707
      %v1336 = vpop.f32.mrb[0].mxu0
      %v1337 = vadd.f32 %v1176, %v1336
      %v1338 = vpop.f32.mrb[0].mxu0
      %v1339 = vpop.f32.mrb[0].mxu0
      %v1340 = vadd.f32 %v1179, %v1339
      %v1341 = vpop.f32.mrb[0].mxu0
      %1342 = vmatprep.mubr.bf16.mxu0 %v713
      %1343 = vmatmul.mubr.bf16.gmra.mrb[0].mxu0 %v712
      %v1344 = vpop.f32.mrb[0].mxu0
      %v1345 = vadd.f32 %v1184, %v1344
      %v1346 = vpop.f32.mrb[0].mxu0
      %v1347 = vpop.f32.mrb[0].mxu0
      %v1348 = vadd.f32 %v1187, %v1347
      %v1349 = vpop.f32.mrb[0].mxu0
      %1350 = vmatprep.mubr.bf16.mxu0 %v718
      %1351 = vmatmul.mubr.bf16.gmra.mrb[0].mxu0 %v717
      %v1352 = vpop.f32.mrb[0].mxu0
      %v1353 = vadd.f32 %v1192, %v1352
      %v1354 = vpop.f32.mrb[0].mxu0
      %v1355 = vpop.f32.mrb[0].mxu0
      %v1356 = vadd.f32 %v1195, %v1355
      %v1357 = vpop.f32.mrb[0].mxu0
      %1358 = vmatprep.mubr.bf16.mxu0 %v723
      %1359 = vmatmul.mubr.bf16.gmra.mrb[0].mxu0 %v722
      %v1360 = vpop.f32.mrb[0].mxu0
      %v1361 = vadd.f32 %v1200, %v1360
      %v1362 = vpop.f32.mrb[0].mxu0
      %v1363 = vpop.f32.mrb[0].mxu0
      %v1364 = vadd.f32 %v1203, %v1363
      %v1365 = vpop.f32.mrb[0].mxu0
      %1366 = vmatprep.mubr.bf16.mxu0 %v728
      %1367 = vmatmul.mubr.bf16.gmra.mrb[0].mxu0 %v727
      %v1368 = vpop.f32.mrb[0].mxu0
      %v1369 = vadd.f32 %v1208, %v1368
      %v1370 = vpop.f32.mrb[0].mxu0
      %v1371 = vpop.f32.mrb[0].mxu0
      %v1372 = vadd.f32 %v1211, %v1371
      %v1373 = vpop.f32.mrb[0].mxu0
      %1374 = vmatprep.mubr.bf16.mxu0 %v733
      %1375 = vmatmul.mubr.bf16.gmra.mrb[0].mxu0 %v732
      %v1376 = vpop.f32.mrb[0].mxu0
      %v1377 = vadd.f32 %v1216, %v1376
      %v1378 = vpop.f32.mrb[0].mxu0
      %v1379 = vpop.f32.mrb[0].mxu0
      %v1380 = vadd.f32 %v1219, %v1379
      %v1381 = vpop.f32.mrb[0].mxu0
      %1382 = vmatprep.mubr.bf16.mxu0 %v738
      %1383 = vmatmul.mubr.bf16.gmra.mrb[0].mxu0 %v737
      %v1384 = vpop.f32.mrb[0].mxu0
      %v1385 = vadd.f32 %v1224, %v1384
      %v1386 = vpop.f32.mrb[0].mxu0
      %v1387 = vpop.f32.mrb[0].mxu0
      %v1388 = vadd.f32 %v1227, %v1387
      %v1389 = vpop.f32.mrb[0].mxu0
      %1390 = vdwg.mxu0
      %1391 = vmatprep.subr.bf16.mxu0 0
      %1392 = vmatpush1.bf16.msra.mxu0 %v980
      %1393 = vmatprep.subr.bf16.mxu0 0
      %1394 = vmatpush1.bf16.msra.mxu0 %v981
      %1395 = vmatprep.subr.bf16.mxu0 0
      %1396 = vmatpush1.bf16.msra.mxu0 %v982
      %1397 = vmatprep.subr.bf16.mxu0 0
      %1398 = vmatpush1.bf16.msra.mxu0 %v983
      %1399 = vmatprep.subr.bf16.mxu0 0
      %1400 = vmatpush1.bf16.msra.mxu0 0
      %1401 = vmatprep.subr.bf16.mxu0 0
      %1402 = vmatpush1.bf16.msra.mxu0 0
      %1403 = vmatprep.subr.bf16.mxu0 0
      %1404 = vmatpush1.bf16.msra.mxu0 0
      %1405 = vmatprep.subr.bf16.mxu0 0
      %1406 = vmatpush1.bf16.msra.mxu0 0
      %1407 = vmatprep.subr.bf16.mxu0 0
      %1408 = vmatpush1.bf16.msra.mxu0 0
      %1409 = vmatprep.subr.bf16.mxu0 0
      %1410 = vmatpush1.bf16.msra.mxu0 0
      %1411 = vmatprep.subr.bf16.mxu0 0
      %1412 = vmatpush1.bf16.msra.mxu0 0
      %1413 = vmatprep.subr.bf16.mxu0 0
      %1414 = vmatpush1.bf16.msra.mxu0 0
      %1415 = vmatprep.subr.bf16.mxu0 0
      %1416 = vmatpush1.bf16.msra.mxu0 0
      %1417 = vmatprep.subr.bf16.mxu0 0
      %1418 = vmatpush1.bf16.msra.mxu0 0
      %1419 = vmatprep.subr.bf16.mxu0 0
      %1420 = vmatpush1.bf16.msra.mxu0 0
      %1421 = vmatprep.subr.bf16.mxu0 0
      %1422 = vmatpush1.bf16.msra.mxu0 0
      %1423 = vmatprep.mubr.bf16.mxu0 0
      %1424 = vmatmul.mubr.bf16.gmra.mrb[0].mxu0 %v1022
      %v1425 = vpop.f32.mrb[0].mxu0
      %v1426 = vadd.f32 %v1265, %v1425
      %v1427 = vpop.f32.mrb[0].mxu0
      %v1428 = vpop.f32.mrb[0].mxu0
      %v1429 = vadd.f32 %v1268, %v1428
      %v1430 = vpop.f32.mrb[0].mxu0
      %1431 = vmatprep.mubr.bf16.mxu0 0
      %1432 = vmatmul.mubr.bf16.gmra.mrb[0].mxu0 %v1025
      %v1433 = vpop.f32.mrb[0].mxu0
      %v1434 = vadd.f32 %v1273, %v1433
      %v1435 = vpop.f32.mrb[0].mxu0
      %v1436 = vpop.f32.mrb[0].mxu0
      %v1437 = vadd.f32 %v1276, %v1436
      %v1438 = vpop.f32.mrb[0].mxu0
      %1439 = vmatprep.mubr.bf16.mxu0 0
      %1440 = vmatmul.mubr.bf16.gmra.mrb[0].mxu0 %v1028
      %v1441 = vpop.f32.mrb[0].mxu0
      %v1442 = vadd.f32 %v1281, %v1441
      %v1443 = vpop.f32.mrb[0].mxu0
      %v1444 = vpop.f32.mrb[0].mxu0
      %v1445 = vadd.f32 %v1284, %v1444
      %v1446 = vpop.f32.mrb[0].mxu0
      %1447 = vmatprep.mubr.bf16.mxu0 0
      %1448 = vmatmul.mubr.bf16.gmra.mrb[0].mxu0 %v1031
      %v1449 = vpop.f32.mrb[0].mxu0
      %v1450 = vadd.f32 %v1289, %v1449
      %v1451 = vpop.f32.mrb[0].mxu0
      %v1452 = vpop.f32.mrb[0].mxu0
      %v1453 = vadd.f32 %v1292, %v1452
      %v1454 = vpop.f32.mrb[0].mxu0
      %1455 = vmatprep.mubr.bf16.mxu0 0
      %1456 = vmatmul.mubr.bf16.gmra.mrb[0].mxu0 %v1034
      %v1457 = vpop.f32.mrb[0].mxu0
      %v1458 = vadd.f32 %v1297, %v1457
      %v1459 = vpop.f32.mrb[0].mxu0
      %v1460 = vpop.f32.mrb[0].mxu0
      %v1461 = vadd.f32 %v1300, %v1460
      %v1462 = vpop.f32.mrb[0].mxu0
      %1463 = vmatprep.mubr.bf16.mxu0 0
      %1464 = vmatmul.mubr.bf16.gmra.mrb[0].mxu0 %v1037
      %v1465 = vpop.f32.mrb[0].mxu0
      %v1466 = vadd.f32 %v1305, %v1465
      %v1467 = vpop.f32.mrb[0].mxu0
      %v1468 = vpop.f32.mrb[0].mxu0
      %v1469 = vadd.f32 %v1308, %v1468
      %v1470 = vpop.f32.mrb[0].mxu0
      %1471 = vmatprep.mubr.bf16.mxu0 0
      %1472 = vmatmul.mubr.bf16.gmra.mrb[0].mxu0 %v1040
      %v1473 = vpop.f32.mrb[0].mxu0
      %v1474 = vadd.f32 %v1313, %v1473
      %v1475 = vpop.f32.mrb[0].mxu0
      %v1476 = vpop.f32.mrb[0].mxu0
      %v1477 = vadd.f32 %v1316, %v1476
      %v1478 = vpop.f32.mrb[0].mxu0
      %1479 = vmatprep.mubr.bf16.mxu0 0
      %1480 = vmatmul.mubr.bf16.gmra.mrb[0].mxu0 %v1043
      %v1481 = vpop.f32.mrb[0].mxu0
      %v1482 = vadd.f32 %v1321, %v1481
      %v1483 = vpop.f32.mrb[0].mxu0
      %v1484 = vpop.f32.mrb[0].mxu0
      %v1485 = vadd.f32 %v1324, %v1484
      %v1486 = vpop.f32.mrb[0].mxu0
      %1487 = vmatprep.mubr.bf16.mxu0 0
      %1488 = vmatmul.mubr.bf16.gmra.mrb[0].mxu0 %v1046
      %v1489 = vpop.f32.mrb[0].mxu0
      %v1490 = vadd.f32 %v1329, %v1489
      %v1491 = vpop.f32.mrb[0].mxu0
      %v1492 = vpop.f32.mrb[0].mxu0
      %v1493 = vadd.f32 %v1332, %v1492
      %v1494 = vpop.f32.mrb[0].mxu0
      %1495 = vmatprep.mubr.bf16.mxu0 0
      %1496 = vmatmul.mubr.bf16.gmra.mrb[0].mxu0 %v1049
      %v1497 = vpop.f32.mrb[0].mxu0
      %v1498 = vadd.f32 %v1337, %v1497
      %v1499 = vpop.f32.mrb[0].mxu0
      %v1500 = vpop.f32.mrb[0].mxu0
      %v1501 = vadd.f32 %v1340, %v1500
      %v1502 = vpop.f32.mrb[0].mxu0
      %1503 = vmatprep.mubr.bf16.mxu0 0
      %1504 = vmatmul.mubr.bf16.gmra.mrb[0].mxu0 %v1052
      %v1505 = vpop.f32.mrb[0].mxu0
      %v1506 = vadd.f32 %v1345, %v1505
      %v1507 = vpop.f32.mrb[0].mxu0
      %v1508 = vpop.f32.mrb[0].mxu0
      %v1509 = vadd.f32 %v1348, %v1508
      %v1510 = vpop.f32.mrb[0].mxu0
      %1511 = vmatprep.mubr.bf16.mxu0 0
      %1512 = vmatmul.mubr.bf16.gmra.mrb[0].mxu0 %v1055
      %v1513 = vpop.f32.mrb[0].mxu0
      %v1514 = vadd.f32 %v1353, %v1513
      %v1515 = vpop.f32.mrb[0].mxu0
      %v1516 = vpop.f32.mrb[0].mxu0
      %v1517 = vadd.f32 %v1356, %v1516
      %v1518 = vpop.f32.mrb[0].mxu0
      %1519 = vmatprep.mubr.bf16.mxu0 0
      %1520 = vmatmul.mubr.bf16.gmra.mrb[0].mxu0 %v1058
      %v1521 = vpop.f32.mrb[0].mxu0
      %v1522 = vadd.f32 %v1361, %v1521
      %v1523 = vpop.f32.mrb[0].mxu0
      %v1524 = vpop.f32.mrb[0].mxu0
      %v1525 = vadd.f32 %v1364, %v1524
      %v1526 = vpop.f32.mrb[0].mxu0
      %1527 = vmatprep.mubr.bf16.mxu0 0
      %1528 = vmatmul.mubr.bf16.gmra.mrb[0].mxu0 %v1061
      %v1529 = vpop.f32.mrb[0].mxu0
      %v1530 = vadd.f32 %v1369, %v1529
      %v1531 = vpop.f32.mrb[0].mxu0
      %v1532 = vpop.f32.mrb[0].mxu0
      %v1533 = vadd.f32 %v1372, %v1532
      %v1534 = vpop.f32.mrb[0].mxu0
      %1535 = vmatprep.mubr.bf16.mxu0 0
      %1536 = vmatmul.mubr.bf16.gmra.mrb[0].mxu0 %v1064
      %v1537 = vpop.f32.mrb[0].mxu0
      %v1538 = vadd.f32 %v1377, %v1537
      %v1539 = vpop.f32.mrb[0].mxu0
      %v1540 = vpop.f32.mrb[0].mxu0
      %v1541 = vadd.f32 %v1380, %v1540
      %v1542 = vpop.f32.mrb[0].mxu0
      %1543 = vmatprep.mubr.bf16.mxu0 0
      %1544 = vmatmul.mubr.bf16.gmra.mrb[0].mxu0 %v1067
      %v1545 = vpop.f32.mrb[0].mxu0
      %v1546 = vadd.f32 %v1385, %v1545
      %v1547 = vpop.f32.mrb[0].mxu0
      %v1548 = vpop.f32.mrb[0].mxu0
      %v1549 = vadd.f32 %v1388, %v1548
      %v1550 = vpop.f32.mrb[0].mxu0
      %1551 = vdwg.mxu0
      %v1552 = vmul.f32 %v1426, 0.2
      %v1553 = vmul.f32 %v1429, 0.2
      %v1554 = vmul.f32 %v1434, 0.2
      %v1555 = vmul.f32 %v1437, 0.2
      %v1556 = vmul.f32 %v1442, 0.2
      %v1557 = vmul.f32 %v1445, 0.2
      %v1558 = vmul.f32 %v1450, 0.2
      %v1559 = vmul.f32 %v1453, 0.2
      %v1560 = vmul.f32 %v1458, 0.2
      %v1561 = vmul.f32 %v1461, 0.2
      %v1562 = vmul.f32 %v1466, 0.2
      %v1563 = vmul.f32 %v1469, 0.2
      %v1564 = vmul.f32 %v1474, 0.2
      %v1565 = vmul.f32 %v1477, 0.2
      %v1566 = vmul.f32 %v1482, 0.2
      %v1567 = vmul.f32 %v1485, 0.2
      %v1568 = vmul.f32 %v1490, 0.2
      %v1569 = vmul.f32 %v1493, 0.2
      %v1570 = vmul.f32 %v1498, 0.2
      %v1571 = vmul.f32 %v1501, 0.2
      %v1572 = vmul.f32 %v1506, 0.2
      %v1573 = vmul.f32 %v1509, 0.2
      %v1574 = vmul.f32 %v1514, 0.2
      %v1575 = vmul.f32 %v1517, 0.2
      %v1576 = vmul.f32 %v1522, 0.2
      %v1577 = vmul.f32 %v1525, 0.2
      %v1578 = vmul.f32 %v1530, 0.2
      %v1579 = vmul.f32 %v1533, 0.2
      %v1580 = vmul.f32 %v1538, 0.2
      %v1581 = vmul.f32 %v1541, 0.2
      %v1582 = vmul.f32 %v1546, 0.2
      %v1583 = vmul.f32 %v1549, 0.2
      %v1584 = vmax.f32 %v1426, %v1552
      %v1585 = vmax.f32 %v1429, %v1553
      %v1586 = vmax.f32 %v1434, %v1554
      %v1587 = vmax.f32 %v1437, %v1555
      %v1588 = vmax.f32 %v1442, %v1556
      %v1589 = vmax.f32 %v1445, %v1557
      %v1590 = vmax.f32 %v1450, %v1558
      %v1591 = vmax.f32 %v1453, %v1559
      %v1592 = vmax.f32 %v1458, %v1560
      %v1593 = vmax.f32 %v1461, %v1561
      %v1594 = vmax.f32 %v1466, %v1562
      %v1595 = vmax.f32 %v1469, %v1563
      %v1596 = vmax.f32 %v1474, %v1564
      %v1597 = vmax.f32 %v1477, %v1565
      %v1598 = vmax.f32 %v1482, %v1566
      %v1599 = vmax.f32 %v1485, %v1567
      %v1600 = vmax.f32 %v1490, %v1568
      %v1601 = vmax.f32 %v1493, %v1569
      %v1602 = vmax.f32 %v1498, %v1570
      %v1603 = vmax.f32 %v1501, %v1571
      %v1604 = vmax.f32 %v1506, %v1572
      %v1605 = vmax.f32 %v1509, %v1573
      %v1606 = vmax.f32 %v1514, %v1574
      %v1607 = vmax.f32 %v1517, %v1575
      %v1608 = vmax.f32 %v1522, %v1576
      %v1609 = vmax.f32 %v1525, %v1577
      %v1610 = vmax.f32 %v1530, %v1578
      %v1611 = vmax.f32 %v1533, %v1579
      %v1612 = vmax.f32 %v1538, %v1580
      %v1613 = vmax.f32 %v1541, %v1581
      %v1614 = vmax.f32 %v1546, %v1582
      %v1615 = vmax.f32 %v1549, %v1583
      %v1616 = vpack.c.bf16 %v1585, %v1584
      %v1617 = vpack.c.bf16 %v1587, %v1586
      %v1618 = vpack.c.bf16 %v1589, %v1588
      %v1619 = vpack.c.bf16 %v1591, %v1590
      %v1620 = vpack.c.bf16 %v1593, %v1592
      %v1621 = vpack.c.bf16 %v1595, %v1594
      %v1622 = vpack.c.bf16 %v1597, %v1596
      %v1623 = vpack.c.bf16 %v1599, %v1598
      %v1624 = vpack.c.bf16 %v1601, %v1600
      %v1625 = vpack.c.bf16 %v1603, %v1602
      %v1626 = vpack.c.bf16 %v1605, %v1604
      %v1627 = vpack.c.bf16 %v1607, %v1606
      %v1628 = vpack.c.bf16 %v1609, %v1608
      %v1629 = vpack.c.bf16 %v1611, %v1610
      %v1630 = vpack.c.bf16 %v1613, %v1612
      %v1631 = vpack.c.bf16 %v1615, %v1614
      %v1648 = vunpack.c.l.b16 %v1616
      %v1649 = vunpack.c.h.b16 %v1616
      %v1650 = vunpack.c.l.b16 %v1617
      %v1651 = vunpack.c.h.b16 %v1617
      %v1652 = vunpack.c.l.b16 %v1618
      %v1653 = vunpack.c.h.b16 %v1618
      %v1654 = vunpack.c.l.b16 %v1619
      %v1655 = vunpack.c.h.b16 %v1619
      %v1656 = vunpack.c.l.b16 %v1620
      %v1657 = vunpack.c.h.b16 %v1620
      %v1658 = vunpack.c.l.b16 %v1621
      %v1659 = vunpack.c.h.b16 %v1621
      %v1660 = vunpack.c.l.b16 %v1622
      %v1661 = vunpack.c.h.b16 %v1622
      %v1662 = vunpack.c.l.b16 %v1623
      %v1663 = vunpack.c.h.b16 %v1623
      %v1664 = vunpack.c.l.b16 %v1624
      %v1665 = vunpack.c.h.b16 %v1624
      %v1666 = vunpack.c.l.b16 %v1625
      %v1667 = vunpack.c.h.b16 %v1625
      %v1668 = vunpack.c.l.b16 %v1626
      %v1669 = vunpack.c.h.b16 %v1626
      %v1670 = vunpack.c.l.b16 %v1627
      %v1671 = vunpack.c.h.b16 %v1627
      %v1672 = vunpack.c.l.b16 %v1628
      %v1673 = vunpack.c.h.b16 %v1628
      %v1674 = vunpack.c.l.b16 %v1629
      %v1675 = vunpack.c.h.b16 %v1629
      %v1676 = vunpack.c.l.b16 %v1630
      %v1677 = vunpack.c.h.b16 %v1630
      %v1678 = vunpack.c.l.b16 %v1631
      %v1679 = vunpack.c.h.b16 %v1631
      %v1680 = vpack.c.b16 %v1648, %v1648
      %v1681 = vpack.c.b16 %v1649, %v1649
      %v1682 = vpack.c.b16 %v1650, %v1650
      %v1683 = vpack.c.b16 %v1651, %v1651
      %v1684 = vpack.c.b16 %v1652, %v1652
      %v1685 = vpack.c.b16 %v1653, %v1653
      %v1686 = vpack.c.b16 %v1654, %v1654
      %v1687 = vpack.c.b16 %v1655, %v1655
      %v1688 = vpack.c.b16 %v1656, %v1656
      %v1689 = vpack.c.b16 %v1657, %v1657
      %v1690 = vpack.c.b16 %v1658, %v1658
      %v1691 = vpack.c.b16 %v1659, %v1659
      %v1692 = vpack.c.b16 %v1660, %v1660
      %v1693 = vpack.c.b16 %v1661, %v1661
      %v1694 = vpack.c.b16 %v1662, %v1662
      %v1695 = vpack.c.b16 %v1663, %v1663
      %v1696 = vpack.c.b16 %v1664, %v1664
      %v1697 = vpack.c.b16 %v1665, %v1665
      %v1698 = vpack.c.b16 %v1666, %v1666
      %v1699 = vpack.c.b16 %v1667, %v1667
      %v1700 = vpack.c.b16 %v1668, %v1668
      %v1701 = vpack.c.b16 %v1669, %v1669
      %v1702 = vpack.c.b16 %v1670, %v1670
      %v1703 = vpack.c.b16 %v1671, %v1671
      %v1704 = vpack.c.b16 %v1672, %v1672
      %v1705 = vpack.c.b16 %v1673, %v1673
      %v1706 = vpack.c.b16 %v1674, %v1674
      %v1707 = vpack.c.b16 %v1675, %v1675
      %v1708 = vpack.c.b16 %v1676, %v1676
      %v1709 = vpack.c.b16 %v1677, %v1677
      %v1710 = vpack.c.b16 %v1678, %v1678
      %v1711 = vpack.c.b16 %v1679, %v1679
      %1744 = vst [vmem:[%s226] sm:$0xf] %v1680
      %1745 = vst [vmem:[%s226 + $0x4] sm:$0xf] %v1681
      %1746 = vst [vmem:[%s226 + $0x8] sm:$0xf] %v1682
      %1747 = vst [vmem:[%s226 + $0xc] sm:$0xf] %v1683
      %1748 = vst [vmem:[%s226 + $0x10] sm:$0xf] %v1684
      %1749 = vst [vmem:[%s226 + $0x14] sm:$0xf] %v1685
      %1750 = vst [vmem:[%s226 + $0x18] sm:$0xf] %v1686
      %1751 = vst [vmem:[%s226 + $0x1c] sm:$0xf] %v1687
      %1752 = vst [vmem:[%s226 + $0x20] sm:$0xf] %v1688
      %1753 = vst [vmem:[%s226 + $0x24] sm:$0xf] %v1689
      %1754 = vst [vmem:[%s226 + $0x28] sm:$0xf] %v1690
      %1755 = vst [vmem:[%s226 + $0x2c] sm:$0xf] %v1691
      %1756 = vst [vmem:[%s226 + $0x30] sm:$0xf] %v1692
      %1757 = vst [vmem:[%s226 + $0x34] sm:$0xf] %v1693
      %1758 = vst [vmem:[%s226 + $0x38] sm:$0xf] %v1694
      %1759 = vst [vmem:[%s226 + $0x3c] sm:$0xf] %v1695
      %1760 = vst [vmem:[%s226 + $0x40] sm:$0xf] %v1696
      %1761 = vst [vmem:[%s226 + $0x44] sm:$0xf] %v1697
      %1762 = vst [vmem:[%s226 + $0x48] sm:$0xf] %v1698
      %1763 = vst [vmem:[%s226 + $0x4c] sm:$0xf] %v1699
      %1764 = vst [vmem:[%s226 + $0x50] sm:$0xf] %v1700
      %1765 = vst [vmem:[%s226 + $0x54] sm:$0xf] %v1701
      %1766 = vst [vmem:[%s226 + $0x58] sm:$0xf] %v1702
      %1767 = vst [vmem:[%s226 + $0x5c] sm:$0xf] %v1703
      %1768 = vst [vmem:[%s226 + $0x60] sm:$0xf] %v1704
      %1769 = vst [vmem:[%s226 + $0x64] sm:$0xf] %v1705
      %1770 = vst [vmem:[%s226 + $0x68] sm:$0xf] %v1706
      %1771 = vst [vmem:[%s226 + $0x6c] sm:$0xf] %v1707
      %1772 = vst [vmem:[%s226 + $0x70] sm:$0xf] %v1708
      %1773 = vst [vmem:[%s226 + $0x74] sm:$0xf] %v1709
      %1774 = vst [vmem:[%s226 + $0x78] sm:$0xf] %v1710
      %1775 = vst [vmem:[%s226 + $0x7c] sm:$0xf] %v1711
      %s1776 = smul.u32 32, %s18
      %p1777 = scmp.lt.s32.totalorder %s1776, 63
      %s1778 = scalar_select %p1777, %s1776, 63
      %p1779 = scmp.lt.s32.totalorder %s19, 0
      %s1780 = scalar_select %p1779, %s19, 0
      %s1781 = sadd.s32 %s1780, %s1778
      %s1782 = smul.addr %s1781, 4
      %s1783 = scalar_lea.vmem %s3, %s1782
      // Predicated region
      $region33: #{encoder_forward.6} parent=31 // pred_check
        %p1784 = pneg %p124
      $region34: #{encoder_forward.6} parent=31 // pred_check_branch
        %1786 = sbr.rel (%p1784) target = $region36
      $region35: #{encoder_forward.6} parent=31 // pred_region
        %s1787 = smul.u32 32, %s18
      $region36: #{encoder_forward.6} parent=31 // pred_fallthru
        _
    $region32: #{encoder_forward.6} parent=5 // pred_fallthru
      _
    %p1788 = scmp.le.s32.totalorder 2, %s9
    // Predicated region
    $region37: #{encoder_forward.6} parent=5 // pred_check
      %p1789 = pneg %p1788
    $region38: #{encoder_forward.6} parent=5 // pred_check_branch
      %1791 = sbr.rel (%p1789) target = $region40
    $region39: #{encoder_forward.6} parent=5 // pred_region
      %s1792 = ssub.s32 %s9, 2
      // Predicated region
      $region41: #{encoder_forward.6} parent=39 // pred_check
        %p1793 = pneg %p130
      $region42: #{encoder_forward.6} parent=39 // pred_check_branch
        %1795 = sbr.rel (%p1793) target = $region44
      $region43: #{encoder_forward.6} parent=39 // pred_region
        %s1796 = smul.u32 32, %s20
        %p1797 = scmp.lt.s32.totalorder %s1796, 63
        %s1798 = scalar_select %p1797, %s1796, 63
        %p1799 = scmp.lt.s32.totalorder %s21, 0
        %s1800 = scalar_select %p1799, %s21, 0
        %s1801 = sadd.s32 %s1800, %s1798
        %s1802 = smul.addr %s1801, 4
        %s1803 = scalar_lea.vmem %s3, %s1802
      $region44: #{encoder_forward.6} parent=39 // pred_fallthru
        _
    $region40: #{encoder_forward.6} parent=5 // pred_fallthru
      _
  $region6: #{encoder_forward.6} parent=0 // loop_footer
    %s13 = sadd.s32 1, %s9
  $region7: #{encoder_forward.6} parent=0 // loop_footer_branch
    %8 = sbr.rel target = $region3
  $region8: #{encoder_forward.6} parent=0 // loop_exit
    _

// kernel: encoder_forward.8
$region0: #{encoder_forward.8}
  #allocation0 [shape = 'u32[]', space=smem, size = 0x4, offset = 0x4, fixed_abs, tag = 'smem constant byte address 0x4 - core index']
  #allocation1 [shape = 'u32[144,128]{1,0:T(1,128)}', space=vmem, size = 0x12000, scoped, tag = 'internal scratch']
  %s0 = inlined_call_operand.vmem [shape: bf16[32,1152], index: 0, kind: input, shape index: {}]
  %s1 = inlined_call_operand.vmem [shape: bf16[1152,256], index: 1, kind: input, shape index: {}]
  %s2 = inlined_call_operand.vmem [shape: f32[1,256], index: 2, kind: input, shape index: {}]
  %s3 = inlined_call_operand.vmem [shape: bf16[32,256], index: 3, kind: output, shape index: {}]
  %s4 = sld [smem:[#allocation0]]
  $region123: #{encoder_forward.8} parent=0
    _
  %s6 = ssub.s32 1, %s4
  %s7 = scalar_select 0, %s6, %s4
  $region1: #{encoder_forward.8} parent=0
    #allocation2 [shape = 'u8[589824]{0}', space=vmem, size = 0x90000, scoped, tag = 'input window, operand 1']
    #allocation3 [shape = 'u8[16384]{0}', space=vmem, size = 0x4000, scoped, tag = 'output window, operand 0']
    loop: start=0, step=1, limit=4
    $region2: #{encoder_forward.8} parent=1 // loop_pre_header
      _
    $region3: #{encoder_forward.8} parent=1 // loop_header
      %s9 = sphi 0, %s13
      %p10 = scmp.ge.s32.totalorder %s9, 4
      %s16 = sphi 0, %s28
      %s17 = sphi 0, %s24
      %s18 = sphi 0, %s16
      %s19 = sphi 0, %s17
      %s20 = sphi 0, %s18
      %s21 = sphi 0, %s19
      %s31 = sphi 0, %s33
      %s34 = sphi 0, %s31
      %s35 = sphi 0, %s34
      %s51 = sphi 0, %s35
      %s57 = sphi 0, %s59
      %s60 = sphi 0, %s57
      %s61 = sphi 0, %s60
      %s77 = sphi 0, %s61
      %s83 = sphi 0, %s85
      %s86 = sphi 0, %s83
      %s87 = sphi 0, %s86
      %s103 = sphi 0, %s87
      %s111 = sphi 0, %s113
      %s114 = sphi 0, %s111
      %s115 = sphi 0, %s114
      %s131 = sphi 0, %s115
    $region4: #{encoder_forward.8} parent=1 // loop_header_branch
      %12 = sbr.rel (%p10) target = $region8
    $region5: #{encoder_forward.8} parent=1 // loop_body
      %s14 = ssub.s32 %s9, 1
      %s15 = ssub.s32 %s9, 2
      %s22 = sadd.s32 1, %s17
      %p23 = scmp.ge.s32.totalorder %s22, 2
      %s24 = scalar_select %p23, 0, %s22
      %s25 = sadd.s32 1, %s16
      %s26 = scalar_select %p23, %s25, %s16
      %p27 = scmp.ge.s32.totalorder %s26, 1
      %s28 = scalar_select %p27, 0, %s26
      %s29 = ssub.s32 %s16, %s28
      %p30 = scmp.eq.s32.totalorder %s29, 0
      %s32 = sadd.s32 %s31, 1
      %s33 = scalar_select %p30, %s31, %s32
      %p36 = pneg %p30
      %p37 = scmp.eq.s32.totalorder %s9, 1
      %p38 = por %p36, %p37
      %p39 = scmp.ne.s32.totalorder %s31, %s34
      %p40 = scmp.eq.s32.totalorder %s9, 0
      %p41 = por %p39, %p40
      %p42 = scmp.ne.s32.totalorder %s31, %s34
      %p43 = scmp.eq.s32.totalorder %s14, 1
      %p44 = por %p42, %p43
      %p45 = scmp.ne.s32.totalorder %s34, %s35
      %p46 = scmp.eq.s32.totalorder %s14, 0
      %p47 = por %p45, %p46
      %p48 = scmp.ne.s32.totalorder %s34, %s35
      %p49 = scmp.eq.s32.totalorder %s15, 1
      %p50 = por %p48, %p49
      %p52 = scmp.ne.s32.totalorder %s35, %s51
      %p53 = scmp.eq.s32.totalorder %s15, 0
      %p54 = por %p52, %p53
      %s55 = ssub.s32 %s17, %s24
      %p56 = scmp.eq.s32.totalorder %s55, 0
      %s58 = sadd.s32 %s57, 1
      %s59 = scalar_select %p56, %s57, %s58
      %p62 = pneg %p56
      %p63 = scmp.eq.s32.totalorder %s9, 1
      %p64 = por %p62, %p63
      %p65 = scmp.ne.s32.totalorder %s57, %s60
      %p66 = scmp.eq.s32.totalorder %s9, 0
      %p67 = por %p65, %p66
      %p68 = scmp.ne.s32.totalorder %s57, %s60
      %p69 = scmp.eq.s32.totalorder %s14, 1
      %p70 = por %p68, %p69
      %p71 = scmp.ne.s32.totalorder %s60, %s61
      %p72 = scmp.eq.s32.totalorder %s14, 0
      %p73 = por %p71, %p72
      %p74 = scmp.ne.s32.totalorder %s60, %s61
      %p75 = scmp.eq.s32.totalorder %s15, 1
      %p76 = por %p74, %p75
      %p78 = scmp.ne.s32.totalorder %s61, %s77
      %p79 = scmp.eq.s32.totalorder %s15, 0
      %p80 = por %p78, %p79
      %s81 = ssub.s32 %s17, %s24
      %p82 = scmp.eq.s32.totalorder %s81, 0
      %s84 = sadd.s32 %s83, 1
      %s85 = scalar_select %p82, %s83, %s84
      %p88 = pneg %p82
      %p89 = scmp.eq.s32.totalorder %s9, 1
      %p90 = por %p88, %p89
      %p91 = scmp.ne.s32.totalorder %s83, %s86
      %p92 = scmp.eq.s32.totalorder %s9, 0
      %p93 = por %p91, %p92
      %p94 = scmp.ne.s32.totalorder %s83, %s86
      %p95 = scmp.eq.s32.totalorder %s14, 1
      %p96 = por %p94, %p95
      %p97 = scmp.ne.s32.totalorder %s86, %s87
      %p98 = scmp.eq.s32.totalorder %s14, 0
      %p99 = por %p97, %p98
      %p100 = scmp.ne.s32.totalorder %s86, %s87
      %p101 = scmp.eq.s32.totalorder %s15, 1
      %p102 = por %p100, %p101
      %p104 = scmp.ne.s32.totalorder %s87, %s103
      %p105 = scmp.eq.s32.totalorder %s15, 0
      %p106 = por %p104, %p105
      %s107 = ssub.s32 %s16, %s28
      %s108 = ssub.s32 %s17, %s24
      %s109 = sor.u32 %s107, %s108
      %p110 = scmp.eq.s32.totalorder %s109, 0
      %s112 = sadd.s32 %s111, 1
      %s113 = scalar_select %p110, %s111, %s112
      %p116 = pneg %p110
      %p117 = scmp.eq.s32.totalorder %s9, 1
      %p118 = por %p116, %p117
      %p119 = scmp.ne.s32.totalorder %s111, %s114
      %p120 = scmp.eq.s32.totalorder %s9, 0
      %p121 = por %p119, %p120
      %p122 = scmp.ne.s32.totalorder %s111, %s114
      %p123 = scmp.eq.s32.totalorder %s14, 1
      %p124 = por %p122, %p123
      %p125 = scmp.ne.s32.totalorder %s114, %s115
      %p126 = scmp.eq.s32.totalorder %s14, 0
      %p127 = por %p125, %p126
      %p128 = scmp.ne.s32.totalorder %s114, %s115
      %p129 = scmp.eq.s32.totalorder %s15, 1
      %p130 = por %p128, %p129
      %p132 = scmp.ne.s32.totalorder %s115, %s131
      %p133 = scmp.eq.s32.totalorder %s15, 0
      %p134 = por %p132, %p133
      %p135 = scmp.le.s32.totalorder 1, %s9
      %p136 = scmp.lt.s32.totalorder %s9, 3
      %p137 = pnand %p135, %p136
      %p138 = pneg %p137
      // Predicated region
      $region9: #{encoder_forward.8} parent=5 // pred_check
        _
      $region10: #{encoder_forward.8} parent=5 // pred_check_branch
        %140 = sbr.rel (%p137) target = $region12
      $region11: #{encoder_forward.8} parent=5 // pred_region
        %s141 = ssub.s32 %s9, 1
        // Predicated region
        $region13: #{encoder_forward.8} parent=11 // pred_check
          %p142 = pneg %p47
        $region14: #{encoder_forward.8} parent=11 // pred_check_branch
          %144 = sbr.rel (%p142) target = $region16
        $region15: #{encoder_forward.8} parent=11 // pred_region
          %s145 = smul.u32 4, %s18
          %p146 = scmp.lt.s32.totalorder %s145, 3
          %s147 = scalar_select %p146, %s145, 3
          %s148 = smul.addr %s147, 9
          %s149 = smul.addr %s148, 4
          %s150 = scalar_lea.vmem %s0, %s149
          %s151 = smul.u32 4, %s18
        $region16: #{encoder_forward.8} parent=11 // pred_fallthru
          _
      $region12: #{encoder_forward.8} parent=5 // pred_fallthru
        _
      %p152 = scmp.lt.s32.totalorder %s9, 2
      // Predicated region
      $region17: #{encoder_forward.8} parent=5 // pred_check
        %p153 = pneg %p152
      $region18: #{encoder_forward.8} parent=5 // pred_check_branch
        %155 = sbr.rel (%p153) target = $region20
      $region19: #{encoder_forward.8} parent=5 // pred_region
        // Predicated region
        $region21: #{encoder_forward.8} parent=19 // pred_check
          %p156 = pneg %p67
        $region22: #{encoder_forward.8} parent=19 // pred_check_branch
          %158 = sbr.rel (%p156) target = $region24
        $region23: #{encoder_forward.8} parent=19 // pred_region
          %s159 = sand.u32 %s57, 1
          %s160 = sand.u32 %s57, 1
          %s161 = smul.addr %s160, 576
          %s162 = scalar_lea.vmem [#allocation2], %s161
          %s163 = smul.addr %s17, 4
          %s164 = scalar_lea.vmem %s1, %s163
          // Predicated region
          $region25: #{encoder_forward.8} parent=23 // pred_check
            _
          $region26: #{encoder_forward.8} parent=23 // pred_check_branch
            %166 = sbr.rel (0) target = $region28
          $region27: #{encoder_forward.8} parent=23 // pred_region
            // Predicated region
            $region29: #{encoder_forward.8} parent=27 // pred_check
              _
            $region30: #{encoder_forward.8} parent=27 // pred_check_branch
              %168 = sbr.rel target = $region32
            $region31: #{encoder_forward.8} parent=27 // pred_region
              // Predicated region
              $region44: #{encoder_forward.8} parent=31 // pred_check
                _
              $region45: #{encoder_forward.8} parent=31 // pred_check_branch
                %469 = sbr.rel (0) target = $region47
              $region46: #{encoder_forward.8} parent=31 // pred_region
                loop: start=0, step=1, limit=1
                $region48: #{encoder_forward.8} parent=46 // loop_pre_header
                  _
                $region49: #{encoder_forward.8} parent=46 // loop_header
                  %s471 = sphi 0, %s475
                  %p472 = scmp.ge.s32.totalorder %s471, 1
                  %s476 = sphi %s164, %s164
                  %s477 = sphi %s162, %s162
                $region50: #{encoder_forward.8} parent=46 // loop_header_branch
                  %474 = sbr.rel (%p472) target = $region54
                $region51: #{encoder_forward.8} parent=46 // loop_body
                  _
                $region52: #{encoder_forward.8} parent=46 // loop_footer
                  %s475 = sadd.s32 1, %s471
                $region53: #{encoder_forward.8} parent=46 // loop_footer_branch
                  %470 = sbr.rel target = $region49
                $region54: #{encoder_forward.8} parent=46 // loop_exit
                  _
                loop: start=0, step=1, limit=1
                $region55: #{encoder_forward.8} parent=46 // loop_pre_header
                  _
                $region56: #{encoder_forward.8} parent=46 // loop_header
                  %s480 = sphi 0, %s484
                  %p481 = scmp.ge.s32.totalorder %s480, 1
                  %s485 = sphi %s164, %s164
                  %s486 = sphi %s162, %s162
                $region57: #{encoder_forward.8} parent=46 // loop_header_branch
                  %483 = sbr.rel (%p481) target = $region61
                $region58: #{encoder_forward.8} parent=46 // loop_body
                  %v487 = vld [vmem:[%s485] sm:$0xf]
                  %488 = vst [vmem:[%s486] sm:$0xf] %v487
                  %v489 = vld [vmem:[%s485 + $0x8] sm:$0xf]
                  %490 = vst [vmem:[%s486 + $0x4] sm:$0xf] %v489
                  %v491 = vld [vmem:[%s485 + $0x10] sm:$0xf]
                  %492 = vst [vmem:[%s486 + $0x8] sm:$0xf] %v491
                  %v493 = vld [vmem:[%s485 + $0x18] sm:$0xf]
                  %494 = vst [vmem:[%s486 + $0xc] sm:$0xf] %v493
                  %v495 = vld [vmem:[%s485 + $0x20] sm:$0xf]
                  %496 = vst [vmem:[%s486 + $0x10] sm:$0xf] %v495
                  %v497 = vld [vmem:[%s485 + $0x28] sm:$0xf]
                  %498 = vst [vmem:[%s486 + $0x14] sm:$0xf] %v497
                  %v499 = vld [vmem:[%s485 + $0x30] sm:$0xf]
                  %500 = vst [vmem:[%s486 + $0x18] sm:$0xf] %v499
                  %v501 = vld [vmem:[%s485 + $0x38] sm:$0xf]
                  %502 = vst [vmem:[%s486 + $0x1c] sm:$0xf] %v501
                  %v503 = vld [vmem:[%s485 + $0x40] sm:$0xf]
                  %504 = vst [vmem:[%s486 + $0x20] sm:$0xf] %v503
                  %v505 = vld [vmem:[%s485 + $0x48] sm:$0xf]
                  %506 = vst [vmem:[%s486 + $0x24] sm:$0xf] %v505
                  %v507 = vld [vmem:[%s485 + $0x50] sm:$0xf]
                  %508 = vst [vmem:[%s486 + $0x28] sm:$0xf] %v507
                  %v509 = vld [vmem:[%s485 + $0x58] sm:$0xf]
                  %510 = vst [vmem:[%s486 + $0x2c] sm:$0xf] %v509
                  %v511 = vld [vmem:[%s485 + $0x60] sm:$0xf]
                  %512 = vst [vmem:[%s486 + $0x30] sm:$0xf] %v511
                  %v513 = vld [vmem:[%s485 + $0x68] sm:$0xf]
                  %514 = vst [vmem:[%s486 + $0x34] sm:$0xf] %v513
                  %v515 = vld [vmem:[%s485 + $0x70] sm:$0xf]
                  %516 = vst [vmem:[%s486 + $0x38] sm:$0xf] %v515
                  %v517 = vld [vmem:[%s485 + $0x78] sm:$0xf]
                  %518 = vst [vmem:[%s486 + $0x3c] sm:$0xf] %v517
                  %v519 = vld [vmem:[%s485 + $0x80] sm:$0xf]
                  %520 = vst [vmem:[%s486 + $0x40] sm:$0xf] %v519
                  %v521 = vld [vmem:[%s485 + $0x88] sm:$0xf]
                  %522 = vst [vmem:[%s486 + $0x44] sm:$0xf] %v521
                  %v523 = vld [vmem:[%s485 + $0x90] sm:$0xf]
                  %524 = vst [vmem:[%s486 + $0x48] sm:$0xf] %v523
                  %v525 = vld [vmem:[%s485 + $0x98] sm:$0xf]
                  %526 = vst [vmem:[%s486 + $0x4c] sm:$0xf] %v525
                  %v527 = vld [vmem:[%s485 + $0xa0] sm:$0xf]
                  %528 = vst [vmem:[%s486 + $0x50] sm:$0xf] %v527
                  %v529 = vld [vmem:[%s485 + $0xa8] sm:$0xf]
                  %530 = vst [vmem:[%s486 + $0x54] sm:$0xf] %v529
                  %v531 = vld [vmem:[%s485 + $0xb0] sm:$0xf]
                  %532 = vst [vmem:[%s486 + $0x58] sm:$0xf] %v531
                  %v533 = vld [vmem:[%s485 + $0xb8] sm:$0xf]
                  %534 = vst [vmem:[%s486 + $0x5c] sm:$0xf] %v533
                  %v535 = vld [vmem:[%s485 + $0xc0] sm:$0xf]
                  %536 = vst [vmem:[%s486 + $0x60] sm:$0xf] %v535
                  %v537 = vld [vmem:[%s485 + $0xc8] sm:$0xf]
                  %538 = vst [vmem:[%s486 + $0x64] sm:$0xf] %v537
                  %v539 = vld [vmem:[%s485 + $0xd0] sm:$0xf]
                  %540 = vst [vmem:[%s486 + $0x68] sm:$0xf] %v539
                  %v541 = vld [vmem:[%s485 + $0xd8] sm:$0xf]
                  %542 = vst [vmem:[%s486 + $0x6c] sm:$0xf] %v541
                  %v543 = vld [vmem:[%s485 + $0xe0] sm:$0xf]
                  %544 = vst [vmem:[%s486 + $0x70] sm:$0xf] %v543
                  %v545 = vld [vmem:[%s485 + $0xe8] sm:$0xf]
                  %546 = vst [vmem:[%s486 + $0x74] sm:$0xf] %v545
                  %v547 = vld [vmem:[%s485 + $0xf0] sm:$0xf]
                  %548 = vst [vmem:[%s486 + $0x78] sm:$0xf] %v547
                  %v549 = vld [vmem:[%s485 + $0xf8] sm:$0xf]
                  %550 = vst [vmem:[%s486 + $0x7c] sm:$0xf] %v549
                  %v551 = vld [vmem:[%s485 + $0x100] sm:$0xf]
                  %552 = vst [vmem:[%s486 + $0x80] sm:$0xf] %v551
                  %v553 = vld [vmem:[%s485 + $0x108] sm:$0xf]
                  %554 = vst [vmem:[%s486 + $0x84] sm:$0xf] %v553
                  %v555 = vld [vmem:[%s485 + $0x110] sm:$0xf]
                  %556 = vst [vmem:[%s486 + $0x88] sm:$0xf] %v555
                  %v557 = vld [vmem:[%s485 + $0x118] sm:$0xf]
                  %558 = vst [vmem:[%s486 + $0x8c] sm:$0xf] %v557
                  %v559 = vld [vmem:[%s485 + $0x120] sm:$0xf]
                  %560 = vst [vmem:[%s486 + $0x90] sm:$0xf] %v559
                  %v561 = vld [vmem:[%s485 + $0x128] sm:$0xf]
                  %562 = vst [vmem:[%s486 + $0x94] sm:$0xf] %v561
                  %v563 = vld [vmem:[%s485 + $0x130] sm:$0xf]
                  %564 = vst [vmem:[%s486 + $0x98] sm:$0xf] %v563
                  %v565 = vld [vmem:[%s485 + $0x138] sm:$0xf]
                  %566 = vst [vmem:[%s486 + $0x9c] sm:$0xf] %v565
                  %v567 = vld [vmem:[%s485 + $0x140] sm:$0xf]
                  %568 = vst [vmem:[%s486 + $0xa0] sm:$0xf] %v567
                  %v569 = vld [vmem:[%s485 + $0x148] sm:$0xf]
                  %570 = vst [vmem:[%s486 + $0xa4] sm:$0xf] %v569
                  %v571 = vld [vmem:[%s485 + $0x150] sm:$0xf]
                  %572 = vst [vmem:[%s486 + $0xa8] sm:$0xf] %v571
                  %v573 = vld [vmem:[%s485 + $0x158] sm:$0xf]
                  %574 = vst [vmem:[%s486 + $0xac] sm:$0xf] %v573
                  %v575 = vld [vmem:[%s485 + $0x160] sm:$0xf]
                  %576 = vst [vmem:[%s486 + $0xb0] sm:$0xf] %v575
                  %v577 = vld [vmem:[%s485 + $0x168] sm:$0xf]
                  %578 = vst [vmem:[%s486 + $0xb4] sm:$0xf] %v577
                  %v579 = vld [vmem:[%s485 + $0x170] sm:$0xf]
                  %580 = vst [vmem:[%s486 + $0xb8] sm:$0xf] %v579
                  %v581 = vld [vmem:[%s485 + $0x178] sm:$0xf]
                  %582 = vst [vmem:[%s486 + $0xbc] sm:$0xf] %v581
                  %v583 = vld [vmem:[%s485 + $0x180] sm:$0xf]
                  %584 = vst [vmem:[%s486 + $0xc0] sm:$0xf] %v583
                  %v585 = vld [vmem:[%s485 + $0x188] sm:$0xf]
                  %586 = vst [vmem:[%s486 + $0xc4] sm:$0xf] %v585
                  %v587 = vld [vmem:[%s485 + $0x190] sm:$0xf]
                  %588 = vst [vmem:[%s486 + $0xc8] sm:$0xf] %v587
                  %v589 = vld [vmem:[%s485 + $0x198] sm:$0xf]
                  %590 = vst [vmem:[%s486 + $0xcc] sm:$0xf] %v589
                  %v591 = vld [vmem:[%s485 + $0x1a0] sm:$0xf]
                  %592 = vst [vmem:[%s486 + $0xd0] sm:$0xf] %v591
                  %v593 = vld [vmem:[%s485 + $0x1a8] sm:$0xf]
                  %594 = vst [vmem:[%s486 + $0xd4] sm:$0xf] %v593
                  %v595 = vld [vmem:[%s485 + $0x1b0] sm:$0xf]
                  %596 = vst [vmem:[%s486 + $0xd8] sm:$0xf] %v595
                  %v597 = vld [vmem:[%s485 + $0x1b8] sm:$0xf]
                  %598 = vst [vmem:[%s486 + $0xdc] sm:$0xf] %v597
                  %v599 = vld [vmem:[%s485 + $0x1c0] sm:$0xf]
                  %600 = vst [vmem:[%s486 + $0xe0] sm:$0xf] %v599
                  %v601 = vld [vmem:[%s485 + $0x1c8] sm:$0xf]
                  %602 = vst [vmem:[%s486 + $0xe4] sm:$0xf] %v601
                  %v603 = vld [vmem:[%s485 + $0x1d0] sm:$0xf]
                  %604 = vst [vmem:[%s486 + $0xe8] sm:$0xf] %v603
                  %v605 = vld [vmem:[%s485 + $0x1d8] sm:$0xf]
                  %606 = vst [vmem:[%s486 + $0xec] sm:$0xf] %v605
                  %v607 = vld [vmem:[%s485 + $0x1e0] sm:$0xf]
                  %608 = vst [vmem:[%s486 + $0xf0] sm:$0xf] %v607
                  %v609 = vld [vmem:[%s485 + $0x1e8] sm:$0xf]
                  %610 = vst [vmem:[%s486 + $0xf4] sm:$0xf] %v609
                  %v611 = vld [vmem:[%s485 + $0x1f0] sm:$0xf]
                  %612 = vst [vmem:[%s486 + $0xf8] sm:$0xf] %v611
                  %v613 = vld [vmem:[%s485 + $0x1f8] sm:$0xf]
                  %614 = vst [vmem:[%s486 + $0xfc] sm:$0xf] %v613
                  %v615 = vld [vmem:[%s485 + $0x200] sm:$0xf]
                  %616 = vst [vmem:[%s486 + $0x100] sm:$0xf] %v615
                  %v617 = vld [vmem:[%s485 + $0x208] sm:$0xf]
                  %618 = vst [vmem:[%s486 + $0x104] sm:$0xf] %v617
                  %v619 = vld [vmem:[%s485 + $0x210] sm:$0xf]
                  %620 = vst [vmem:[%s486 + $0x108] sm:$0xf] %v619
                  %v621 = vld [vmem:[%s485 + $0x218] sm:$0xf]
                  %622 = vst [vmem:[%s486 + $0x10c] sm:$0xf] %v621
                  %v623 = vld [vmem:[%s485 + $0x220] sm:$0xf]
                  %624 = vst [vmem:[%s486 + $0x110] sm:$0xf] %v623
                  %v625 = vld [vmem:[%s485 + $0x228] sm:$0xf]
                  %626 = vst [vmem:[%s486 + $0x114] sm:$0xf] %v625
                  %v627 = vld [vmem:[%s485 + $0x230] sm:$0xf]
                  %628 = vst [vmem:[%s486 + $0x118] sm:$0xf] %v627
                  %v629 = vld [vmem:[%s485 + $0x238] sm:$0xf]
                  %630 = vst [vmem:[%s486 + $0x11c] sm:$0xf] %v629
                  %v631 = vld [vmem:[%s485 + $0x240] sm:$0xf]
                  %632 = vst [vmem:[%s486 + $0x120] sm:$0xf] %v631
                  %v633 = vld [vmem:[%s485 + $0x248] sm:$0xf]
                  %634 = vst [vmem:[%s486 + $0x124] sm:$0xf] %v633
                  %v635 = vld [vmem:[%s485 + $0x250] sm:$0xf]
                  %636 = vst [vmem:[%s486 + $0x128] sm:$0xf] %v635
                  %v637 = vld [vmem:[%s485 + $0x258] sm:$0xf]
                  %638 = vst [vmem:[%s486 + $0x12c] sm:$0xf] %v637
                  %v639 = vld [vmem:[%s485 + $0x260] sm:$0xf]
                  %640 = vst [vmem:[%s486 + $0x130] sm:$0xf] %v639
                  %v641 = vld [vmem:[%s485 + $0x268] sm:$0xf]
                  %642 = vst [vmem:[%s486 + $0x134] sm:$0xf] %v641
                  %v643 = vld [vmem:[%s485 + $0x270] sm:$0xf]
                  %644 = vst [vmem:[%s486 + $0x138] sm:$0xf] %v643
                  %v645 = vld [vmem:[%s485 + $0x278] sm:$0xf]
                  %646 = vst [vmem:[%s486 + $0x13c] sm:$0xf] %v645
                  %v647 = vld [vmem:[%s485 + $0x280] sm:$0xf]
                  %648 = vst [vmem:[%s486 + $0x140] sm:$0xf] %v647
                  %v649 = vld [vmem:[%s485 + $0x288] sm:$0xf]
                  %650 = vst [vmem:[%s486 + $0x144] sm:$0xf] %v649
                  %v651 = vld [vmem:[%s485 + $0x290] sm:$0xf]
                  %652 = vst [vmem:[%s486 + $0x148] sm:$0xf] %v651
                  %v653 = vld [vmem:[%s485 + $0x298] sm:$0xf]
                  %654 = vst [vmem:[%s486 + $0x14c] sm:$0xf] %v653
                  %v655 = vld [vmem:[%s485 + $0x2a0] sm:$0xf]
                  %656 = vst [vmem:[%s486 + $0x150] sm:$0xf] %v655
                  %v657 = vld [vmem:[%s485 + $0x2a8] sm:$0xf]
                  %658 = vst [vmem:[%s486 + $0x154] sm:$0xf] %v657
                  %v659 = vld [vmem:[%s485 + $0x2b0] sm:$0xf]
                  %660 = vst [vmem:[%s486 + $0x158] sm:$0xf] %v659
                  %v661 = vld [vmem:[%s485 + $0x2b8] sm:$0xf]
                  %662 = vst [vmem:[%s486 + $0x15c] sm:$0xf] %v661
                  %v663 = vld [vmem:[%s485 + $0x2c0] sm:$0xf]
                  %664 = vst [vmem:[%s486 + $0x160] sm:$0xf] %v663
                  %v665 = vld [vmem:[%s485 + $0x2c8] sm:$0xf]
                  %666 = vst [vmem:[%s486 + $0x164] sm:$0xf] %v665
                  %v667 = vld [vmem:[%s485 + $0x2d0] sm:$0xf]
                  %668 = vst [vmem:[%s486 + $0x168] sm:$0xf] %v667
                  %v669 = vld [vmem:[%s485 + $0x2d8] sm:$0xf]
                  %670 = vst [vmem:[%s486 + $0x16c] sm:$0xf] %v669
                  %v671 = vld [vmem:[%s485 + $0x2e0] sm:$0xf]
                  %672 = vst [vmem:[%s486 + $0x170] sm:$0xf] %v671
                  %v673 = vld [vmem:[%s485 + $0x2e8] sm:$0xf]
                  %674 = vst [vmem:[%s486 + $0x174] sm:$0xf] %v673
                  %v675 = vld [vmem:[%s485 + $0x2f0] sm:$0xf]
                  %676 = vst [vmem:[%s486 + $0x178] sm:$0xf] %v675
                  %v677 = vld [vmem:[%s485 + $0x2f8] sm:$0xf]
                  %678 = vst [vmem:[%s486 + $0x17c] sm:$0xf] %v677
                  %v679 = vld [vmem:[%s485 + $0x300] sm:$0xf]
                  %680 = vst [vmem:[%s486 + $0x180] sm:$0xf] %v679
                  %v681 = vld [vmem:[%s485 + $0x308] sm:$0xf]
                  %682 = vst [vmem:[%s486 + $0x184] sm:$0xf] %v681
                  %v683 = vld [vmem:[%s485 + $0x310] sm:$0xf]
                  %684 = vst [vmem:[%s486 + $0x188] sm:$0xf] %v683
                  %v685 = vld [vmem:[%s485 + $0x318] sm:$0xf]
                  %686 = vst [vmem:[%s486 + $0x18c] sm:$0xf] %v685
                  %v687 = vld [vmem:[%s485 + $0x320] sm:$0xf]
                  %688 = vst [vmem:[%s486 + $0x190] sm:$0xf] %v687
                  %v689 = vld [vmem:[%s485 + $0x328] sm:$0xf]
                  %690 = vst [vmem:[%s486 + $0x194] sm:$0xf] %v689
                  %v691 = vld [vmem:[%s485 + $0x330] sm:$0xf]
                  %692 = vst [vmem:[%s486 + $0x198] sm:$0xf] %v691
                  %v693 = vld [vmem:[%s485 + $0x338] sm:$0xf]
                  %694 = vst [vmem:[%s486 + $0x19c] sm:$0xf] %v693
                  %v695 = vld [vmem:[%s485 + $0x340] sm:$0xf]
                  %696 = vst [vmem:[%s486 + $0x1a0] sm:$0xf] %v695
                  %v697 = vld [vmem:[%s485 + $0x348] sm:$0xf]
                  %698 = vst [vmem:[%s486 + $0x1a4] sm:$0xf] %v697
                  %v699 = vld [vmem:[%s485 + $0x350] sm:$0xf]
                  %700 = vst [vmem:[%s486 + $0x1a8] sm:$0xf] %v699
                  %v701 = vld [vmem:[%s485 + $0x358] sm:$0xf]
                  %702 = vst [vmem:[%s486 + $0x1ac] sm:$0xf] %v701
                  %v703 = vld [vmem:[%s485 + $0x360] sm:$0xf]
                  %704 = vst [vmem:[%s486 + $0x1b0] sm:$0xf] %v703
                  %v705 = vld [vmem:[%s485 + $0x368] sm:$0xf]
                  %706 = vst [vmem:[%s486 + $0x1b4] sm:$0xf] %v705
                  %v707 = vld [vmem:[%s485 + $0x370] sm:$0xf]
                  %708 = vst [vmem:[%s486 + $0x1b8] sm:$0xf] %v707
                  %v709 = vld [vmem:[%s485 + $0x378] sm:$0xf]
                  %710 = vst [vmem:[%s486 + $0x1bc] sm:$0xf] %v709
                  %v711 = vld [vmem:[%s485 + $0x380] sm:$0xf]
                  %712 = vst [vmem:[%s486 + $0x1c0] sm:$0xf] %v711
                  %v713 = vld [vmem:[%s485 + $0x388] sm:$0xf]
                  %714 = vst [vmem:[%s486 + $0x1c4] sm:$0xf] %v713
                  %v715 = vld [vmem:[%s485 + $0x390] sm:$0xf]
                  %716 = vst [vmem:[%s486 + $0x1c8] sm:$0xf] %v715
                  %v717 = vld [vmem:[%s485 + $0x398] sm:$0xf]
                  %718 = vst [vmem:[%s486 + $0x1cc] sm:$0xf] %v717
                  %v719 = vld [vmem:[%s485 + $0x3a0] sm:$0xf]
                  %720 = vst [vmem:[%s486 + $0x1d0] sm:$0xf] %v719
                  %v721 = vld [vmem:[%s485 + $0x3a8] sm:$0xf]
                  %722 = vst [vmem:[%s486 + $0x1d4] sm:$0xf] %v721
                  %v723 = vld [vmem:[%s485 + $0x3b0] sm:$0xf]
                  %724 = vst [vmem:[%s486 + $0x1d8] sm:$0xf] %v723
                  %v725 = vld [vmem:[%s485 + $0x3b8] sm:$0xf]
                  %726 = vst [vmem:[%s486 + $0x1dc] sm:$0xf] %v725
                  %v727 = vld [vmem:[%s485 + $0x3c0] sm:$0xf]
                  %728 = vst [vmem:[%s486 + $0x1e0] sm:$0xf] %v727
                  %v729 = vld [vmem:[%s485 + $0x3c8] sm:$0xf]
                  %730 = vst [vmem:[%s486 + $0x1e4] sm:$0xf] %v729
                  %v731 = vld [vmem:[%s485 + $0x3d0] sm:$0xf]
                  %732 = vst [vmem:[%s486 + $0x1e8] sm:$0xf] %v731
                  %v733 = vld [vmem:[%s485 + $0x3d8] sm:$0xf]
                  %734 = vst [vmem:[%s486 + $0x1ec] sm:$0xf] %v733
                  %v735 = vld [vmem:[%s485 + $0x3e0] sm:$0xf]
                  %736 = vst [vmem:[%s486 + $0x1f0] sm:$0xf] %v735
                  %v737 = vld [vmem:[%s485 + $0x3e8] sm:$0xf]
                  %738 = vst [vmem:[%s486 + $0x1f4] sm:$0xf] %v737
                  %v739 = vld [vmem:[%s485 + $0x3f0] sm:$0xf]
                  %740 = vst [vmem:[%s486 + $0x1f8] sm:$0xf] %v739
                  %v741 = vld [vmem:[%s485 + $0x3f8] sm:$0xf]
                  %742 = vst [vmem:[%s486 + $0x1fc] sm:$0xf] %v741
                  %v743 = vld [vmem:[%s485 + $0x400] sm:$0xf]
                  %744 = vst [vmem:[%s486 + $0x200] sm:$0xf] %v743
                  %v745 = vld [vmem:[%s485 + $0x408] sm:$0xf]
                  %746 = vst [vmem:[%s486 + $0x204] sm:$0xf] %v745
                  %v747 = vld [vmem:[%s485 + $0x410] sm:$0xf]
                  %748 = vst [vmem:[%s486 + $0x208] sm:$0xf] %v747
                  %v749 = vld [vmem:[%s485 + $0x418] sm:$0xf]
                  %750 = vst [vmem:[%s486 + $0x20c] sm:$0xf] %v749
                  %v751 = vld [vmem:[%s485 + $0x420] sm:$0xf]
                  %752 = vst [vmem:[%s486 + $0x210] sm:$0xf] %v751
                  %v753 = vld [vmem:[%s485 + $0x428] sm:$0xf]
                  %754 = vst [vmem:[%s486 + $0x214] sm:$0xf] %v753
                  %v755 = vld [vmem:[%s485 + $0x430] sm:$0xf]
                  %756 = vst [vmem:[%s486 + $0x218] sm:$0xf] %v755
                  %v757 = vld [vmem:[%s485 + $0x438] sm:$0xf]
                  %758 = vst [vmem:[%s486 + $0x21c] sm:$0xf] %v757
                  %v759 = vld [vmem:[%s485 + $0x440] sm:$0xf]
                  %760 = vst [vmem:[%s486 + $0x220] sm:$0xf] %v759
                  %v761 = vld [vmem:[%s485 + $0x448] sm:$0xf]
                  %762 = vst [vmem:[%s486 + $0x224] sm:$0xf] %v761
                  %v763 = vld [vmem:[%s485 + $0x450] sm:$0xf]
                  %764 = vst [vmem:[%s486 + $0x228] sm:$0xf] %v763
                  %v765 = vld [vmem:[%s485 + $0x458] sm:$0xf]
                  %766 = vst [vmem:[%s486 + $0x22c] sm:$0xf] %v765
                  %v767 = vld [vmem:[%s485 + $0x460] sm:$0xf]
                  %768 = vst [vmem:[%s486 + $0x230] sm:$0xf] %v767
                  %v769 = vld [vmem:[%s485 + $0x468] sm:$0xf]
                  %770 = vst [vmem:[%s486 + $0x234] sm:$0xf] %v769
                  %v771 = vld [vmem:[%s485 + $0x470] sm:$0xf]
                  %772 = vst [vmem:[%s486 + $0x238] sm:$0xf] %v771
                  %v773 = vld [vmem:[%s485 + $0x478] sm:$0xf]
                  %774 = vst [vmem:[%s486 + $0x23c] sm:$0xf] %v773
                $region59: #{encoder_forward.8} parent=46 // loop_footer
                  %s484 = sadd.s32 1, %s480
                $region60: #{encoder_forward.8} parent=46 // loop_footer_branch
                  %479 = sbr.rel target = $region56
                $region61: #{encoder_forward.8} parent=46 // loop_exit
                  _
              $region47: #{encoder_forward.8} parent=31 // pred_fallthru
                _
            $region32: #{encoder_forward.8} parent=27 // pred_fallthru
              _
            // Predicated region
            $region33: #{encoder_forward.8} parent=27 // pred_check
              _
            $region34: #{encoder_forward.8} parent=27 // pred_check_branch
              %170 = sbr.rel (0) target = $region36
            $region35: #{encoder_forward.8} parent=27 // pred_region
              loop: start=0, step=1, limit=1
              $region37: #{encoder_forward.8} parent=35 // loop_pre_header
                _
              $region38: #{encoder_forward.8} parent=35 // loop_header
                %s173 = sphi 0, %s177
                %p174 = scmp.ge.s32.totalorder %s173, 1
                %s178 = sphi %s164, %s164
                %s179 = sphi %s162, %s162
              $region39: #{encoder_forward.8} parent=35 // loop_header_branch
                %176 = sbr.rel (%p174) target = $region43
              $region40: #{encoder_forward.8} parent=35 // loop_body
                %v180 = vld [vmem:[%s178] sm:$0xf]
                %181 = vst [vmem:[%s179] sm:$0xf] %v180
                %v182 = vld [vmem:[%s178 + $0x8] sm:$0xf]
                %183 = vst [vmem:[%s179 + $0x4] sm:$0xf] %v182
                %v184 = vld [vmem:[%s178 + $0x10] sm:$0xf]
                %185 = vst [vmem:[%s179 + $0x8] sm:$0xf] %v184
                %v186 = vld [vmem:[%s178 + $0x18] sm:$0xf]
                %187 = vst [vmem:[%s179 + $0xc] sm:$0xf] %v186
                %v188 = vld [vmem:[%s178 + $0x20] sm:$0xf]
                %189 = vst [vmem:[%s179 + $0x10] sm:$0xf] %v188
                %v190 = vld [vmem:[%s178 + $0x28] sm:$0xf]
                %191 = vst [vmem:[%s179 + $0x14] sm:$0xf] %v190
                %v192 = vld [vmem:[%s178 + $0x30] sm:$0xf]
                %193 = vst [vmem:[%s179 + $0x18] sm:$0xf] %v192
                %v194 = vld [vmem:[%s178 + $0x38] sm:$0xf]
                %195 = vst [vmem:[%s179 + $0x1c] sm:$0xf] %v194
                %v196 = vld [vmem:[%s178 + $0x40] sm:$0xf]
                %197 = vst [vmem:[%s179 + $0x20] sm:$0xf] %v196
                %v198 = vld [vmem:[%s178 + $0x48] sm:$0xf]
                %199 = vst [vmem:[%s179 + $0x24] sm:$0xf] %v198
                %v200 = vld [vmem:[%s178 + $0x50] sm:$0xf]
                %201 = vst [vmem:[%s179 + $0x28] sm:$0xf] %v200
                %v202 = vld [vmem:[%s178 + $0x58] sm:$0xf]
                %203 = vst [vmem:[%s179 + $0x2c] sm:$0xf] %v202
                %v204 = vld [vmem:[%s178 + $0x60] sm:$0xf]
                %205 = vst [vmem:[%s179 + $0x30] sm:$0xf] %v204
                %v206 = vld [vmem:[%s178 + $0x68] sm:$0xf]
                %207 = vst [vmem:[%s179 + $0x34] sm:$0xf] %v206
                %v208 = vld [vmem:[%s178 + $0x70] sm:$0xf]
                %209 = vst [vmem:[%s179 + $0x38] sm:$0xf] %v208
                %v210 = vld [vmem:[%s178 + $0x78] sm:$0xf]
                %211 = vst [vmem:[%s179 + $0x3c] sm:$0xf] %v210
                %v212 = vld [vmem:[%s178 + $0x80] sm:$0xf]
                %213 = vst [vmem:[%s179 + $0x40] sm:$0xf] %v212
                %v214 = vld [vmem:[%s178 + $0x88] sm:$0xf]
                %215 = vst [vmem:[%s179 + $0x44] sm:$0xf] %v214
                %v216 = vld [vmem:[%s178 + $0x90] sm:$0xf]
                %217 = vst [vmem:[%s179 + $0x48] sm:$0xf] %v216
                %v218 = vld [vmem:[%s178 + $0x98] sm:$0xf]
                %219 = vst [vmem:[%s179 + $0x4c] sm:$0xf] %v218
                %v220 = vld [vmem:[%s178 + $0xa0] sm:$0xf]
                %221 = vst [vmem:[%s179 + $0x50] sm:$0xf] %v220
                %v222 = vld [vmem:[%s178 + $0xa8] sm:$0xf]
                %223 = vst [vmem:[%s179 + $0x54] sm:$0xf] %v222
                %v224 = vld [vmem:[%s178 + $0xb0] sm:$0xf]
                %225 = vst [vmem:[%s179 + $0x58] sm:$0xf] %v224
                %v226 = vld [vmem:[%s178 + $0xb8] sm:$0xf]
                %227 = vst [vmem:[%s179 + $0x5c] sm:$0xf] %v226
                %v228 = vld [vmem:[%s178 + $0xc0] sm:$0xf]
                %229 = vst [vmem:[%s179 + $0x60] sm:$0xf] %v228
                %v230 = vld [vmem:[%s178 + $0xc8] sm:$0xf]
                %231 = vst [vmem:[%s179 + $0x64] sm:$0xf] %v230
                %v232 = vld [vmem:[%s178 + $0xd0] sm:$0xf]
                %233 = vst [vmem:[%s179 + $0x68] sm:$0xf] %v232
                %v234 = vld [vmem:[%s178 + $0xd8] sm:$0xf]
                %235 = vst [vmem:[%s179 + $0x6c] sm:$0xf] %v234
                %v236 = vld [vmem:[%s178 + $0xe0] sm:$0xf]
                %237 = vst [vmem:[%s179 + $0x70] sm:$0xf] %v236
                %v238 = vld [vmem:[%s178 + $0xe8] sm:$0xf]
                %239 = vst [vmem:[%s179 + $0x74] sm:$0xf] %v238
                %v240 = vld [vmem:[%s178 + $0xf0] sm:$0xf]
                %241 = vst [vmem:[%s179 + $0x78] sm:$0xf] %v240
                %v242 = vld [vmem:[%s178 + $0xf8] sm:$0xf]
                %243 = vst [vmem:[%s179 + $0x7c] sm:$0xf] %v242
                %v244 = vld [vmem:[%s178 + $0x100] sm:$0xf]
                %245 = vst [vmem:[%s179 + $0x80] sm:$0xf] %v244
                %v246 = vld [vmem:[%s178 + $0x108] sm:$0xf]
                %247 = vst [vmem:[%s179 + $0x84] sm:$0xf] %v246
                %v248 = vld [vmem:[%s178 + $0x110] sm:$0xf]
                %249 = vst [vmem:[%s179 + $0x88] sm:$0xf] %v248
                %v250 = vld [vmem:[%s178 + $0x118] sm:$0xf]
                %251 = vst [vmem:[%s179 + $0x8c] sm:$0xf] %v250
                %v252 = vld [vmem:[%s178 + $0x120] sm:$0xf]
                %253 = vst [vmem:[%s179 + $0x90] sm:$0xf] %v252
                %v254 = vld [vmem:[%s178 + $0x128] sm:$0xf]
                %255 = vst [vmem:[%s179 + $0x94] sm:$0xf] %v254
                %v256 = vld [vmem:[%s178 + $0x130] sm:$0xf]
                %257 = vst [vmem:[%s179 + $0x98] sm:$0xf] %v256
                %v258 = vld [vmem:[%s178 + $0x138] sm:$0xf]
                %259 = vst [vmem:[%s179 + $0x9c] sm:$0xf] %v258
                %v260 = vld [vmem:[%s178 + $0x140] sm:$0xf]
                %261 = vst [vmem:[%s179 + $0xa0] sm:$0xf] %v260
                %v262 = vld [vmem:[%s178 + $0x148] sm:$0xf]
                %263 = vst [vmem:[%s179 + $0xa4] sm:$0xf] %v262
                %v264 = vld [vmem:[%s178 + $0x150] sm:$0xf]
                %265 = vst [vmem:[%s179 + $0xa8] sm:$0xf] %v264
                %v266 = vld [vmem:[%s178 + $0x158] sm:$0xf]
                %267 = vst [vmem:[%s179 + $0xac] sm:$0xf] %v266
                %v268 = vld [vmem:[%s178 + $0x160] sm:$0xf]
                %269 = vst [vmem:[%s179 + $0xb0] sm:$0xf] %v268
                %v270 = vld [vmem:[%s178 + $0x168] sm:$0xf]
                %271 = vst [vmem:[%s179 + $0xb4] sm:$0xf] %v270
                %v272 = vld [vmem:[%s178 + $0x170] sm:$0xf]
                %273 = vst [vmem:[%s179 + $0xb8] sm:$0xf] %v272
                %v274 = vld [vmem:[%s178 + $0x178] sm:$0xf]
                %275 = vst [vmem:[%s179 + $0xbc] sm:$0xf] %v274
                %v276 = vld [vmem:[%s178 + $0x180] sm:$0xf]
                %277 = vst [vmem:[%s179 + $0xc0] sm:$0xf] %v276
                %v278 = vld [vmem:[%s178 + $0x188] sm:$0xf]
                %279 = vst [vmem:[%s179 + $0xc4] sm:$0xf] %v278
                %v280 = vld [vmem:[%s178 + $0x190] sm:$0xf]
                %281 = vst [vmem:[%s179 + $0xc8] sm:$0xf] %v280
                %v282 = vld [vmem:[%s178 + $0x198] sm:$0xf]
                %283 = vst [vmem:[%s179 + $0xcc] sm:$0xf] %v282
                %v284 = vld [vmem:[%s178 + $0x1a0] sm:$0xf]
                %285 = vst [vmem:[%s179 + $0xd0] sm:$0xf] %v284
                %v286 = vld [vmem:[%s178 + $0x1a8] sm:$0xf]
                %287 = vst [vmem:[%s179 + $0xd4] sm:$0xf] %v286
                %v288 = vld [vmem:[%s178 + $0x1b0] sm:$0xf]
                %289 = vst [vmem:[%s179 + $0xd8] sm:$0xf] %v288
                %v290 = vld [vmem:[%s178 + $0x1b8] sm:$0xf]
                %291 = vst [vmem:[%s179 + $0xdc] sm:$0xf] %v290
                %v292 = vld [vmem:[%s178 + $0x1c0] sm:$0xf]
                %293 = vst [vmem:[%s179 + $0xe0] sm:$0xf] %v292
                %v294 = vld [vmem:[%s178 + $0x1c8] sm:$0xf]
                %295 = vst [vmem:[%s179 + $0xe4] sm:$0xf] %v294
                %v296 = vld [vmem:[%s178 + $0x1d0] sm:$0xf]
                %297 = vst [vmem:[%s179 + $0xe8] sm:$0xf] %v296
                %v298 = vld [vmem:[%s178 + $0x1d8] sm:$0xf]
                %299 = vst [vmem:[%s179 + $0xec] sm:$0xf] %v298
                %v300 = vld [vmem:[%s178 + $0x1e0] sm:$0xf]
                %301 = vst [vmem:[%s179 + $0xf0] sm:$0xf] %v300
                %v302 = vld [vmem:[%s178 + $0x1e8] sm:$0xf]
                %303 = vst [vmem:[%s179 + $0xf4] sm:$0xf] %v302
                %v304 = vld [vmem:[%s178 + $0x1f0] sm:$0xf]
                %305 = vst [vmem:[%s179 + $0xf8] sm:$0xf] %v304
                %v306 = vld [vmem:[%s178 + $0x1f8] sm:$0xf]
                %307 = vst [vmem:[%s179 + $0xfc] sm:$0xf] %v306
                %v308 = vld [vmem:[%s178 + $0x200] sm:$0xf]
                %309 = vst [vmem:[%s179 + $0x100] sm:$0xf] %v308
                %v310 = vld [vmem:[%s178 + $0x208] sm:$0xf]
                %311 = vst [vmem:[%s179 + $0x104] sm:$0xf] %v310
                %v312 = vld [vmem:[%s178 + $0x210] sm:$0xf]
                %313 = vst [vmem:[%s179 + $0x108] sm:$0xf] %v312
                %v314 = vld [vmem:[%s178 + $0x218] sm:$0xf]
                %315 = vst [vmem:[%s179 + $0x10c] sm:$0xf] %v314
                %v316 = vld [vmem:[%s178 + $0x220] sm:$0xf]
                %317 = vst [vmem:[%s179 + $0x110] sm:$0xf] %v316
                %v318 = vld [vmem:[%s178 + $0x228] sm:$0xf]
                %319 = vst [vmem:[%s179 + $0x114] sm:$0xf] %v318
                %v320 = vld [vmem:[%s178 + $0x230] sm:$0xf]
                %321 = vst [vmem:[%s179 + $0x118] sm:$0xf] %v320
                %v322 = vld [vmem:[%s178 + $0x238] sm:$0xf]
                %323 = vst [vmem:[%s179 + $0x11c] sm:$0xf] %v322
                %v324 = vld [vmem:[%s178 + $0x240] sm:$0xf]
                %325 = vst [vmem:[%s179 + $0x120] sm:$0xf] %v324
                %v326 = vld [vmem:[%s178 + $0x248] sm:$0xf]
                %327 = vst [vmem:[%s179 + $0x124] sm:$0xf] %v326
                %v328 = vld [vmem:[%s178 + $0x250] sm:$0xf]
                %329 = vst [vmem:[%s179 + $0x128] sm:$0xf] %v328
                %v330 = vld [vmem:[%s178 + $0x258] sm:$0xf]
                %331 = vst [vmem:[%s179 + $0x12c] sm:$0xf] %v330
                %v332 = vld [vmem:[%s178 + $0x260] sm:$0xf]
                %333 = vst [vmem:[%s179 + $0x130] sm:$0xf] %v332
                %v334 = vld [vmem:[%s178 + $0x268] sm:$0xf]
                %335 = vst [vmem:[%s179 + $0x134] sm:$0xf] %v334
                %v336 = vld [vmem:[%s178 + $0x270] sm:$0xf]
                %337 = vst [vmem:[%s179 + $0x138] sm:$0xf] %v336
                %v338 = vld [vmem:[%s178 + $0x278] sm:$0xf]
                %339 = vst [vmem:[%s179 + $0x13c] sm:$0xf] %v338
                %v340 = vld [vmem:[%s178 + $0x280] sm:$0xf]
                %341 = vst [vmem:[%s179 + $0x140] sm:$0xf] %v340
                %v342 = vld [vmem:[%s178 + $0x288] sm:$0xf]
                %343 = vst [vmem:[%s179 + $0x144] sm:$0xf] %v342
                %v344 = vld [vmem:[%s178 + $0x290] sm:$0xf]
                %345 = vst [vmem:[%s179 + $0x148] sm:$0xf] %v344
                %v346 = vld [vmem:[%s178 + $0x298] sm:$0xf]
                %347 = vst [vmem:[%s179 + $0x14c] sm:$0xf] %v346
                %v348 = vld [vmem:[%s178 + $0x2a0] sm:$0xf]
                %349 = vst [vmem:[%s179 + $0x150] sm:$0xf] %v348
                %v350 = vld [vmem:[%s178 + $0x2a8] sm:$0xf]
                %351 = vst [vmem:[%s179 + $0x154] sm:$0xf] %v350
                %v352 = vld [vmem:[%s178 + $0x2b0] sm:$0xf]
                %353 = vst [vmem:[%s179 + $0x158] sm:$0xf] %v352
                %v354 = vld [vmem:[%s178 + $0x2b8] sm:$0xf]
                %355 = vst [vmem:[%s179 + $0x15c] sm:$0xf] %v354
                %v356 = vld [vmem:[%s178 + $0x2c0] sm:$0xf]
                %357 = vst [vmem:[%s179 + $0x160] sm:$0xf] %v356
                %v358 = vld [vmem:[%s178 + $0x2c8] sm:$0xf]
                %359 = vst [vmem:[%s179 + $0x164] sm:$0xf] %v358
                %v360 = vld [vmem:[%s178 + $0x2d0] sm:$0xf]
                %361 = vst [vmem:[%s179 + $0x168] sm:$0xf] %v360
                %v362 = vld [vmem:[%s178 + $0x2d8] sm:$0xf]
                %363 = vst [vmem:[%s179 + $0x16c] sm:$0xf] %v362
                %v364 = vld [vmem:[%s178 + $0x2e0] sm:$0xf]
                %365 = vst [vmem:[%s179 + $0x170] sm:$0xf] %v364
                %v366 = vld [vmem:[%s178 + $0x2e8] sm:$0xf]
                %367 = vst [vmem:[%s179 + $0x174] sm:$0xf] %v366
                %v368 = vld [vmem:[%s178 + $0x2f0] sm:$0xf]
                %369 = vst [vmem:[%s179 + $0x178] sm:$0xf] %v368
                %v370 = vld [vmem:[%s178 + $0x2f8] sm:$0xf]
                %371 = vst [vmem:[%s179 + $0x17c] sm:$0xf] %v370
                %v372 = vld [vmem:[%s178 + $0x300] sm:$0xf]
                %373 = vst [vmem:[%s179 + $0x180] sm:$0xf] %v372
                %v374 = vld [vmem:[%s178 + $0x308] sm:$0xf]
                %375 = vst [vmem:[%s179 + $0x184] sm:$0xf] %v374
                %v376 = vld [vmem:[%s178 + $0x310] sm:$0xf]
                %377 = vst [vmem:[%s179 + $0x188] sm:$0xf] %v376
                %v378 = vld [vmem:[%s178 + $0x318] sm:$0xf]
                %379 = vst [vmem:[%s179 + $0x18c] sm:$0xf] %v378
                %v380 = vld [vmem:[%s178 + $0x320] sm:$0xf]
                %381 = vst [vmem:[%s179 + $0x190] sm:$0xf] %v380
                %v382 = vld [vmem:[%s178 + $0x328] sm:$0xf]
                %383 = vst [vmem:[%s179 + $0x194] sm:$0xf] %v382
                %v384 = vld [vmem:[%s178 + $0x330] sm:$0xf]
                %385 = vst [vmem:[%s179 + $0x198] sm:$0xf] %v384
                %v386 = vld [vmem:[%s178 + $0x338] sm:$0xf]
                %387 = vst [vmem:[%s179 + $0x19c] sm:$0xf] %v386
                %v388 = vld [vmem:[%s178 + $0x340] sm:$0xf]
                %389 = vst [vmem:[%s179 + $0x1a0] sm:$0xf] %v388
                %v390 = vld [vmem:[%s178 + $0x348] sm:$0xf]
                %391 = vst [vmem:[%s179 + $0x1a4] sm:$0xf] %v390
                %v392 = vld [vmem:[%s178 + $0x350] sm:$0xf]
                %393 = vst [vmem:[%s179 + $0x1a8] sm:$0xf] %v392
                %v394 = vld [vmem:[%s178 + $0x358] sm:$0xf]
                %395 = vst [vmem:[%s179 + $0x1ac] sm:$0xf] %v394
                %v396 = vld [vmem:[%s178 + $0x360] sm:$0xf]
                %397 = vst [vmem:[%s179 + $0x1b0] sm:$0xf] %v396
                %v398 = vld [vmem:[%s178 + $0x368] sm:$0xf]
                %399 = vst [vmem:[%s179 + $0x1b4] sm:$0xf] %v398
                %v400 = vld [vmem:[%s178 + $0x370] sm:$0xf]
                %401 = vst [vmem:[%s179 + $0x1b8] sm:$0xf] %v400
                %v402 = vld [vmem:[%s178 + $0x378] sm:$0xf]
                %403 = vst [vmem:[%s179 + $0x1bc] sm:$0xf] %v402
                %v404 = vld [vmem:[%s178 + $0x380] sm:$0xf]
                %405 = vst [vmem:[%s179 + $0x1c0] sm:$0xf] %v404
                %v406 = vld [vmem:[%s178 + $0x388] sm:$0xf]
                %407 = vst [vmem:[%s179 + $0x1c4] sm:$0xf] %v406
                %v408 = vld [vmem:[%s178 + $0x390] sm:$0xf]
                %409 = vst [vmem:[%s179 + $0x1c8] sm:$0xf] %v408
                %v410 = vld [vmem:[%s178 + $0x398] sm:$0xf]
                %411 = vst [vmem:[%s179 + $0x1cc] sm:$0xf] %v410
                %v412 = vld [vmem:[%s178 + $0x3a0] sm:$0xf]
                %413 = vst [vmem:[%s179 + $0x1d0] sm:$0xf] %v412
                %v414 = vld [vmem:[%s178 + $0x3a8] sm:$0xf]
                %415 = vst [vmem:[%s179 + $0x1d4] sm:$0xf] %v414
                %v416 = vld [vmem:[%s178 + $0x3b0] sm:$0xf]
                %417 = vst [vmem:[%s179 + $0x1d8] sm:$0xf] %v416
                %v418 = vld [vmem:[%s178 + $0x3b8] sm:$0xf]
                %419 = vst [vmem:[%s179 + $0x1dc] sm:$0xf] %v418
                %v420 = vld [vmem:[%s178 + $0x3c0] sm:$0xf]
                %421 = vst [vmem:[%s179 + $0x1e0] sm:$0xf] %v420
                %v422 = vld [vmem:[%s178 + $0x3c8] sm:$0xf]
                %423 = vst [vmem:[%s179 + $0x1e4] sm:$0xf] %v422
                %v424 = vld [vmem:[%s178 + $0x3d0] sm:$0xf]
                %425 = vst [vmem:[%s179 + $0x1e8] sm:$0xf] %v424
                %v426 = vld [vmem:[%s178 + $0x3d8] sm:$0xf]
                %427 = vst [vmem:[%s179 + $0x1ec] sm:$0xf] %v426
                %v428 = vld [vmem:[%s178 + $0x3e0] sm:$0xf]
                %429 = vst [vmem:[%s179 + $0x1f0] sm:$0xf] %v428
                %v430 = vld [vmem:[%s178 + $0x3e8] sm:$0xf]
                %431 = vst [vmem:[%s179 + $0x1f4] sm:$0xf] %v430
                %v432 = vld [vmem:[%s178 + $0x3f0] sm:$0xf]
                %433 = vst [vmem:[%s179 + $0x1f8] sm:$0xf] %v432
                %v434 = vld [vmem:[%s178 + $0x3f8] sm:$0xf]
                %435 = vst [vmem:[%s179 + $0x1fc] sm:$0xf] %v434
                %v436 = vld [vmem:[%s178 + $0x400] sm:$0xf]
                %437 = vst [vmem:[%s179 + $0x200] sm:$0xf] %v436
                %v438 = vld [vmem:[%s178 + $0x408] sm:$0xf]
                %439 = vst [vmem:[%s179 + $0x204] sm:$0xf] %v438
                %v440 = vld [vmem:[%s178 + $0x410] sm:$0xf]
                %441 = vst [vmem:[%s179 + $0x208] sm:$0xf] %v440
                %v442 = vld [vmem:[%s178 + $0x418] sm:$0xf]
                %443 = vst [vmem:[%s179 + $0x20c] sm:$0xf] %v442
                %v444 = vld [vmem:[%s178 + $0x420] sm:$0xf]
                %445 = vst [vmem:[%s179 + $0x210] sm:$0xf] %v444
                %v446 = vld [vmem:[%s178 + $0x428] sm:$0xf]
                %447 = vst [vmem:[%s179 + $0x214] sm:$0xf] %v446
                %v448 = vld [vmem:[%s178 + $0x430] sm:$0xf]
                %449 = vst [vmem:[%s179 + $0x218] sm:$0xf] %v448
                %v450 = vld [vmem:[%s178 + $0x438] sm:$0xf]
                %451 = vst [vmem:[%s179 + $0x21c] sm:$0xf] %v450
                %v452 = vld [vmem:[%s178 + $0x440] sm:$0xf]
                %453 = vst [vmem:[%s179 + $0x220] sm:$0xf] %v452
                %v454 = vld [vmem:[%s178 + $0x448] sm:$0xf]
                %455 = vst [vmem:[%s179 + $0x224] sm:$0xf] %v454
                %v456 = vld [vmem:[%s178 + $0x450] sm:$0xf]
                %457 = vst [vmem:[%s179 + $0x228] sm:$0xf] %v456
                %v458 = vld [vmem:[%s178 + $0x458] sm:$0xf]
                %459 = vst [vmem:[%s179 + $0x22c] sm:$0xf] %v458
                %v460 = vld [vmem:[%s178 + $0x460] sm:$0xf]
                %461 = vst [vmem:[%s179 + $0x230] sm:$0xf] %v460
                %v462 = vld [vmem:[%s178 + $0x468] sm:$0xf]
                %463 = vst [vmem:[%s179 + $0x234] sm:$0xf] %v462
                %v464 = vld [vmem:[%s178 + $0x470] sm:$0xf]
                %465 = vst [vmem:[%s179 + $0x238] sm:$0xf] %v464
                %v466 = vld [vmem:[%s178 + $0x478] sm:$0xf]
                %467 = vst [vmem:[%s179 + $0x23c] sm:$0xf] %v466
              $region41: #{encoder_forward.8} parent=35 // loop_footer
                %s177 = sadd.s32 1, %s173
              $region42: #{encoder_forward.8} parent=35 // loop_footer_branch
                %172 = sbr.rel target = $region38
              $region43: #{encoder_forward.8} parent=35 // loop_exit
                _
            $region36: #{encoder_forward.8} parent=27 // pred_fallthru
              _
          $region28: #{encoder_forward.8} parent=23 // pred_fallthru
            _
          %775 = vnop
        $region24: #{encoder_forward.8} parent=19 // pred_fallthru
          _
        // Predicated region
        $region62: #{encoder_forward.8} parent=19 // pred_check
          %p776 = pneg %p93
        $region63: #{encoder_forward.8} parent=19 // pred_check_branch
          %778 = sbr.rel (%p776) target = $region65
        $region64: #{encoder_forward.8} parent=19 // pred_region
          %p779 = scmp.lt.s32.totalorder %s17, 1
          %s780 = scalar_select %p779, %s17, 1
          %s781 = scalar_lea.vmem %s2, %s780
        $region65: #{encoder_forward.8} parent=19 // pred_fallthru
          _
      $region20: #{encoder_forward.8} parent=5 // pred_fallthru
        _
      %p782 = scmp.le.s32.totalorder 1, %s9
      %p783 = scmp.lt.s32.totalorder %s9, 3
      %p784 = pnand %p782, %p783
      %p785 = pneg %p784
      // Predicated region
      $region66: #{encoder_forward.8} parent=5 // pred_check
        _
      $region67: #{encoder_forward.8} parent=5 // pred_check_branch
        %787 = sbr.rel (%p784) target = $region69
      $region68: #{encoder_forward.8} parent=5 // pred_region
        %s788 = ssub.s32 %s9, 1
        %s789 = sand.u32 %s60, 1
        %s790 = sand.u32 %s60, 1
        %s791 = smul.addr %s790, 576
        %s792 = scalar_lea.vmem [#allocation2], %s791
        // Predicated region
        $region70: #{encoder_forward.8} parent=68 // pred_check
          %p793 = pneg %p73
        $region71: #{encoder_forward.8} parent=68 // pred_check_branch
          %795 = sbr.rel (%p793) target = $region73
        $region72: #{encoder_forward.8} parent=68 // pred_region
          _
        $region73: #{encoder_forward.8} parent=68 // pred_fallthru
          _
        %s796 = smul.u32 4, %s18
        %p797 = scmp.lt.s32.totalorder %s796, 3
        %s798 = scalar_select %p797, %s796, 3
        %s799 = smul.addr %s798, 9
        %s800 = smul.addr %s799, 4
        %s801 = scalar_lea.vmem %s0, %s800
        %p802 = pneg %p47
        %p803 = pneg %p44
        %s804 = sand.u32 %s60, 1
        %s805 = sand.u32 %s60, 1
        %s806 = smul.addr %s805, 576
        %s807 = scalar_lea.vmem [#allocation2], %s806
        %p808 = pneg %p73
        %p809 = pneg %p70
        %p810 = scmp.lt.s32.totalorder %s19, 1
        %s811 = scalar_select %p810, %s19, 1
        %s812 = scalar_lea.vmem %s2, %s811
        %p813 = pneg %p99
        %p814 = pneg %p96
        %p815 = pneg %p127
        %p816 = pneg %p124
        %s817 = sand.u32 %s114, 1
        %s818 = sand.u32 %s114, 1
        %s819 = smul.addr %s818, 16
        %s820 = scalar_lea.vmem [#allocation3], %s819
        %s821 = smul.u32 4, %s18
        %p822 = scmp.lt.s32.totalorder %s821, 3
        %s823 = scalar_select %p822, %s821, 3
        %s824 = smul.addr %s823, 9
        %s825 = smul.addr %s824, 4
        %s826 = scalar_lea.vmem %s0, %s825
        %s827 = smul.u32 4, %s18
        %p828 = scmp.lt.s32.totalorder %s19, 1
        %s829 = scalar_select %p828, %s19, 1
        %s830 = scalar_lea.vmem %s2, %s829
        %s831 = smul.u32 4, %s18
        %v833 = vld [vmem:[%s826] sm:$0xff]
        %v834 = vld [vmem:[%s826 + $0x8] sm:$0xff]
        %v835 = vld [vmem:[%s826 + $0x10] sm:$0xff]
        %v836 = vld [vmem:[%s826 + $0x18] sm:$0xff]
        %v837 = vld [vmem:[%s826 + $0x20] sm:$0xf]
        %v838 = vld [vmem:[%s826 + $0x24] sm:$0xff]
        %v839 = vld [vmem:[%s826 + $0x2c] sm:$0xff]
        %v840 = vld [vmem:[%s826 + $0x34] sm:$0xff]
        %v841 = vld [vmem:[%s826 + $0x3c] sm:$0xff]
        %v842 = vld [vmem:[%s826 + $0x44] sm:$0xf]
        %v843 = vld [vmem:[%s826 + $0x48] sm:$0xff]
        %v844 = vld [vmem:[%s826 + $0x50] sm:$0xff]
        %v845 = vld [vmem:[%s826 + $0x58] sm:$0xff]
        %v846 = vld [vmem:[%s826 + $0x60] sm:$0xff]
        %v847 = vld [vmem:[%s826 + $0x68] sm:$0xf]
        %v848 = vld [vmem:[%s826 + $0x6c] sm:$0xff]
        %v849 = vld [vmem:[%s826 + $0x74] sm:$0xff]
        %v850 = vld [vmem:[%s826 + $0x7c] sm:$0xff]
        %v851 = vld [vmem:[%s826 + $0x84] sm:$0xff]
        %v852 = vld [vmem:[%s826 + $0x8c] sm:$0xf]
        %v853 = vld [vmem:[%s792] sm:$0xf]
        %v854 = vld [vmem:[%s792 + $0x4] sm:$0xf]
        %v855 = vld [vmem:[%s792 + $0x8] sm:$0xf]
        %v856 = vld [vmem:[%s792 + $0xc] sm:$0xf]
        %v857 = vld [vmem:[%s792 + $0x10] sm:$0xf]
        %v858 = vld [vmem:[%s792 + $0x14] sm:$0xf]
        %v859 = vld [vmem:[%s792 + $0x18] sm:$0xf]
        %v860 = vld [vmem:[%s792 + $0x1c] sm:$0xf]
        %v861 = vld [vmem:[%s792 + $0x20] sm:$0xf]
        %v862 = vld [vmem:[%s792 + $0x24] sm:$0xf]
        %v863 = vld [vmem:[%s792 + $0x28] sm:$0xf]
        %v864 = vld [vmem:[%s792 + $0x2c] sm:$0xf]
        %v865 = vld [vmem:[%s792 + $0x30] sm:$0xf]
        %v866 = vld [vmem:[%s792 + $0x34] sm:$0xf]
        %v867 = vld [vmem:[%s792 + $0x38] sm:$0xf]
        %v868 = vld [vmem:[%s792 + $0x3c] sm:$0xf]
        %v869 = vld [vmem:[%s792 + $0x40] sm:$0xf]
        %v870 = vld [vmem:[%s792 + $0x44] sm:$0xf]
        %v871 = vld [vmem:[%s792 + $0x48] sm:$0xf]
        %v872 = vld [vmem:[%s792 + $0x4c] sm:$0xf]
        %v873 = vld [vmem:[%s792 + $0x50] sm:$0xf]
        %v874 = vld [vmem:[%s792 + $0x54] sm:$0xf]
        %v875 = vld [vmem:[%s792 + $0x58] sm:$0xf]
        %v876 = vld [vmem:[%s792 + $0x5c] sm:$0xf]
        %v877 = vld [vmem:[%s792 + $0x60] sm:$0xf]
        %v878 = vld [vmem:[%s792 + $0x64] sm:$0xf]
        %v879 = vld [vmem:[%s792 + $0x68] sm:$0xf]
        %v880 = vld [vmem:[%s792 + $0x6c] sm:$0xf]
        %v881 = vld [vmem:[%s792 + $0x70] sm:$0xf]
        %v882 = vld [vmem:[%s792 + $0x74] sm:$0xf]
        %v883 = vld [vmem:[%s792 + $0x78] sm:$0xf]
        %v884 = vld [vmem:[%s792 + $0x7c] sm:$0xf]
        %v885 = vld [vmem:[%s792 + $0x80] sm:$0xf]
        %v886 = vld [vmem:[%s792 + $0x84] sm:$0xf]
        %v887 = vld [vmem:[%s792 + $0x88] sm:$0xf]
        %v888 = vld [vmem:[%s792 + $0x8c] sm:$0xf]
        %v889 = vld [vmem:[%s792 + $0x90] sm:$0xf]
        %v890 = vld [vmem:[%s792 + $0x94] sm:$0xf]
        %v891 = vld [vmem:[%s792 + $0x98] sm:$0xf]
        %v892 = vld [vmem:[%s792 + $0x9c] sm:$0xf]
        %v893 = vld [vmem:[%s792 + $0xa0] sm:$0xf]
        %v894 = vld [vmem:[%s792 + $0xa4] sm:$0xf]
        %v895 = vld [vmem:[%s792 + $0xa8] sm:$0xf]
        %v896 = vld [vmem:[%s792 + $0xac] sm:$0xf]
        %v897 = vld [vmem:[%s792 + $0xb0] sm:$0xf]
        %v898 = vld [vmem:[%s792 + $0xb4] sm:$0xf]
        %v899 = vld [vmem:[%s792 + $0xb8] sm:$0xf]
        %v900 = vld [vmem:[%s792 + $0xbc] sm:$0xf]
        %v901 = vld [vmem:[%s792 + $0xc0] sm:$0xf]
        %v902 = vld [vmem:[%s792 + $0xc4] sm:$0xf]
        %v903 = vld [vmem:[%s792 + $0xc8] sm:$0xf]
        %v904 = vld [vmem:[%s792 + $0xcc] sm:$0xf]
        %v905 = vld [vmem:[%s792 + $0xd0] sm:$0xf]
        %v906 = vld [vmem:[%s792 + $0xd4] sm:$0xf]
        %v907 = vld [vmem:[%s792 + $0xd8] sm:$0xf]
        %v908 = vld [vmem:[%s792 + $0xdc] sm:$0xf]
        %v909 = vld [vmem:[%s792 + $0xe0] sm:$0xf]
        %v910 = vld [vmem:[%s792 + $0xe4] sm:$0xf]
        %v911 = vld [vmem:[%s792 + $0xe8] sm:$0xf]
        %v912 = vld [vmem:[%s792 + $0xec] sm:$0xf]
        %v913 = vld [vmem:[%s792 + $0xf0] sm:$0xf]
        %v914 = vld [vmem:[%s792 + $0xf4] sm:$0xf]
        %v915 = vld [vmem:[%s792 + $0xf8] sm:$0xf]
        %v916 = vld [vmem:[%s792 + $0xfc] sm:$0xf]
        %v917 = vld [vmem:[%s792 + $0x100] sm:$0xf]
        %v918 = vld [vmem:[%s792 + $0x104] sm:$0xf]
        %v919 = vld [vmem:[%s792 + $0x108] sm:$0xf]
        %v920 = vld [vmem:[%s792 + $0x10c] sm:$0xf]
        %v921 = vld [vmem:[%s792 + $0x110] sm:$0xf]
        %v922 = vld [vmem:[%s792 + $0x114] sm:$0xf]
        %v923 = vld [vmem:[%s792 + $0x118] sm:$0xf]
        %v924 = vld [vmem:[%s792 + $0x11c] sm:$0xf]
        %v925 = vld [vmem:[%s792 + $0x120] sm:$0xf]
        %v926 = vld [vmem:[%s792 + $0x124] sm:$0xf]
        %v927 = vld [vmem:[%s792 + $0x128] sm:$0xf]
        %v928 = vld [vmem:[%s792 + $0x12c] sm:$0xf]
        %v929 = vld [vmem:[%s792 + $0x130] sm:$0xf]
        %v930 = vld [vmem:[%s792 + $0x134] sm:$0xf]
        %v931 = vld [vmem:[%s792 + $0x138] sm:$0xf]
        %v932 = vld [vmem:[%s792 + $0x13c] sm:$0xf]
        %v933 = vld [vmem:[%s792 + $0x140] sm:$0xf]
        %v934 = vld [vmem:[%s792 + $0x144] sm:$0xf]
        %v935 = vld [vmem:[%s792 + $0x148] sm:$0xf]
        %v936 = vld [vmem:[%s792 + $0x14c] sm:$0xf]
        %v937 = vld [vmem:[%s792 + $0x150] sm:$0xf]
        %v938 = vld [vmem:[%s792 + $0x154] sm:$0xf]
        %v939 = vld [vmem:[%s792 + $0x158] sm:$0xf]
        %v940 = vld [vmem:[%s792 + $0x15c] sm:$0xf]
        %v941 = vld [vmem:[%s792 + $0x160] sm:$0xf]
        %v942 = vld [vmem:[%s792 + $0x164] sm:$0xf]
        %v943 = vld [vmem:[%s792 + $0x168] sm:$0xf]
        %v944 = vld [vmem:[%s792 + $0x16c] sm:$0xf]
        %v945 = vld [vmem:[%s792 + $0x170] sm:$0xf]
        %v946 = vld [vmem:[%s792 + $0x174] sm:$0xf]
        %v947 = vld [vmem:[%s792 + $0x178] sm:$0xf]
        %v948 = vld [vmem:[%s792 + $0x17c] sm:$0xf]
        %v949 = vld [vmem:[%s792 + $0x180] sm:$0xf]
        %v950 = vld [vmem:[%s792 + $0x184] sm:$0xf]
        %v951 = vld [vmem:[%s792 + $0x188] sm:$0xf]
        %v952 = vld [vmem:[%s792 + $0x18c] sm:$0xf]
        %v953 = vld [vmem:[%s792 + $0x190] sm:$0xf]
        %v954 = vld [vmem:[%s792 + $0x194] sm:$0xf]
        %v955 = vld [vmem:[%s792 + $0x198] sm:$0xf]
        %v956 = vld [vmem:[%s792 + $0x19c] sm:$0xf]
        %v957 = vld [vmem:[%s792 + $0x1a0] sm:$0xf]
        %v958 = vld [vmem:[%s792 + $0x1a4] sm:$0xf]
        %v959 = vld [vmem:[%s792 + $0x1a8] sm:$0xf]
        %v960 = vld [vmem:[%s792 + $0x1ac] sm:$0xf]
        %v961 = vld [vmem:[%s792 + $0x1b0] sm:$0xf]
        %v962 = vld [vmem:[%s792 + $0x1b4] sm:$0xf]
        %v963 = vld [vmem:[%s792 + $0x1b8] sm:$0xf]
        %v964 = vld [vmem:[%s792 + $0x1bc] sm:$0xf]
        %v965 = vld [vmem:[%s792 + $0x1c0] sm:$0xf]
        %v966 = vld [vmem:[%s792 + $0x1c4] sm:$0xf]
        %v967 = vld [vmem:[%s792 + $0x1c8] sm:$0xf]
        %v968 = vld [vmem:[%s792 + $0x1cc] sm:$0xf]
        %v969 = vld [vmem:[%s792 + $0x1d0] sm:$0xf]
        %v970 = vld [vmem:[%s792 + $0x1d4] sm:$0xf]
        %v971 = vld [vmem:[%s792 + $0x1d8] sm:$0xf]
        %v972 = vld [vmem:[%s792 + $0x1dc] sm:$0xf]
        %v973 = vld [vmem:[%s792 + $0x1e0] sm:$0xf]
        %v974 = vld [vmem:[%s792 + $0x1e4] sm:$0xf]
        %v975 = vld [vmem:[%s792 + $0x1e8] sm:$0xf]
        %v976 = vld [vmem:[%s792 + $0x1ec] sm:$0xf]
        %v977 = vld [vmem:[%s792 + $0x1f0] sm:$0xf]
        %v978 = vld [vmem:[%s792 + $0x1f4] sm:$0xf]
        %v979 = vld [vmem:[%s792 + $0x1f8] sm:$0xf]
        %v980 = vld [vmem:[%s792 + $0x1fc] sm:$0xf]
        %v981 = vld [vmem:[%s792 + $0x200] sm:$0xf]
        %v982 = vld [vmem:[%s792 + $0x204] sm:$0xf]
        %v983 = vld [vmem:[%s792 + $0x208] sm:$0xf]
        %v984 = vld [vmem:[%s792 + $0x20c] sm:$0xf]
        %v985 = vld [vmem:[%s792 + $0x210] sm:$0xf]
        %v986 = vld [vmem:[%s792 + $0x214] sm:$0xf]
        %v987 = vld [vmem:[%s792 + $0x218] sm:$0xf]
        %v988 = vld [vmem:[%s792 + $0x21c] sm:$0xf]
        %v989 = vld [vmem:[%s792 + $0x220] sm:$0xf]
        %v990 = vld [vmem:[%s792 + $0x224] sm:$0xf]
        %v991 = vld [vmem:[%s792 + $0x228] sm:$0xf]
        %v992 = vld [vmem:[%s792 + $0x22c] sm:$0xf]
        %v993 = vld [vmem:[%s792 + $0x230] sm:$0xf]
        %v994 = vld [vmem:[%s792 + $0x234] sm:$0xf]
        %v995 = vld [vmem:[%s792 + $0x238] sm:$0xf]
        %v996 = vld [vmem:[%s792 + $0x23c] sm:$0xf]
        %v997 = vld [vmem:[%s830] sm:$0x1]
        %v999 = vlaneseq
        %v1000 = vshrl.u32 %v999, 7
        %v1001 = vsub.s32 0, %v1000
        %v1002 = vrot.slane %v997, %v1001
        %v1024 = vunpack.c.l.b16 %v833
        %v1025 = vunpack.c.h.b16 %v833
        %v1026 = vunpack.c.l.b16 %v834
        %v1027 = vunpack.c.h.b16 %v834
        %v1028 = vunpack.c.l.b16 %v835
        %v1029 = vunpack.c.h.b16 %v835
        %v1030 = vunpack.c.l.b16 %v836
        %v1031 = vunpack.c.h.b16 %v836
        %v1032 = vunpack.c.l.b16 %v837
        %v1033 = vunpack.c.l.b16 %v838
        %v1034 = vunpack.c.h.b16 %v838
        %v1035 = vunpack.c.l.b16 %v839
        %v1036 = vunpack.c.h.b16 %v839
        %v1037 = vunpack.c.l.b16 %v840
        %v1038 = vunpack.c.h.b16 %v840
        %v1039 = vunpack.c.l.b16 %v841
        %v1040 = vunpack.c.h.b16 %v841
        %v1041 = vunpack.c.l.b16 %v842
        %v1042 = vunpack.c.l.b16 %v843
        %v1043 = vunpack.c.h.b16 %v843
        %v1044 = vunpack.c.l.b16 %v844
        %v1045 = vunpack.c.h.b16 %v844
        %v1046 = vunpack.c.l.b16 %v845
        %v1047 = vunpack.c.h.b16 %v845
        %v1048 = vunpack.c.l.b16 %v846
        %v1049 = vunpack.c.h.b16 %v846
        %v1050 = vunpack.c.l.b16 %v847
        %v1051 = vunpack.c.l.b16 %v848
        %v1052 = vunpack.c.h.b16 %v848
        %v1053 = vunpack.c.l.b16 %v849
        %v1054 = vunpack.c.h.b16 %v849
        %v1055 = vunpack.c.l.b16 %v850
        %v1056 = vunpack.c.h.b16 %v850
        %v1057 = vunpack.c.l.b16 %v851
        %v1058 = vunpack.c.h.b16 %v851
        %v1059 = vunpack.c.l.b16 %v852
        %v1060 = vpack.c.b16 %v1033, %v1024
        %v1061 = vpack.c.b16 %v1034, %v1025
        %v1062 = vpack.c.b16 %v1035, %v1026
        %v1063 = vpack.c.b16 %v1036, %v1027
        %v1064 = vpack.c.b16 %v1037, %v1028
        %v1065 = vpack.c.b16 %v1038, %v1029
        %v1066 = vpack.c.b16 %v1039, %v1030
        %v1067 = vpack.c.b16 %v1040, %v1031
        %v1068 = vpack.c.b16 %v1041, %v1032
        %v1069 = vpack.c.b16 %v1051, %v1042
        %v1070 = vpack.c.b16 %v1052, %v1043
        %v1071 = vpack.c.b16 %v1053, %v1044
        %v1072 = vpack.c.b16 %v1054, %v1045
        %v1073 = vpack.c.b16 %v1055, %v1046
        %v1074 = vpack.c.b16 %v1056, %v1047
        %v1075 = vpack.c.b16 %v1057, %v1048
        %v1076 = vpack.c.b16 %v1058, %v1049
        %v1077 = vpack.c.b16 %v1059, %v1050
        %v1240 = vunpack.c.l.b16 %v853
        %v1241 = vunpack.c.l.b16 %v854
        %v1242 = vunpack.c.l.b16 %v855
        %v1243 = vunpack.c.l.b16 %v856
        %v1244 = vunpack.c.l.b16 %v857
        %v1245 = vunpack.c.l.b16 %v858
        %v1246 = vunpack.c.l.b16 %v859
        %v1247 = vunpack.c.l.b16 %v860
        %v1248 = vunpack.c.l.b16 %v861
        %v1249 = vunpack.c.l.b16 %v862
        %v1250 = vunpack.c.l.b16 %v863
        %v1251 = vunpack.c.l.b16 %v864
        %v1252 = vunpack.c.l.b16 %v865
        %v1253 = vunpack.c.l.b16 %v866
        %v1254 = vunpack.c.l.b16 %v867
        %v1255 = vunpack.c.l.b16 %v868
        %v1256 = vunpack.c.l.b16 %v869
        %v1257 = vunpack.c.l.b16 %v870
        %v1258 = vunpack.c.l.b16 %v871
        %v1259 = vunpack.c.l.b16 %v872
        %v1260 = vunpack.c.l.b16 %v873
        %v1261 = vunpack.c.l.b16 %v874
        %v1262 = vunpack.c.l.b16 %v875
        %v1263 = vunpack.c.l.b16 %v876
        %v1264 = vunpack.c.l.b16 %v877
        %v1265 = vunpack.c.l.b16 %v878
        %v1266 = vunpack.c.l.b16 %v879
        %v1267 = vunpack.c.l.b16 %v880
        %v1268 = vunpack.c.l.b16 %v881
        %v1269 = vunpack.c.l.b16 %v882
        %v1270 = vunpack.c.l.b16 %v883
        %v1271 = vunpack.c.l.b16 %v884
        %v1272 = vunpack.c.l.b16 %v885
        %v1273 = vunpack.c.l.b16 %v886
        %v1274 = vunpack.c.l.b16 %v887
        %v1275 = vunpack.c.l.b16 %v888
        %v1276 = vunpack.c.l.b16 %v889
        %v1277 = vunpack.c.l.b16 %v890
        %v1278 = vunpack.c.l.b16 %v891
        %v1279 = vunpack.c.l.b16 %v892
        %v1280 = vunpack.c.l.b16 %v893
        %v1281 = vunpack.c.l.b16 %v894
        %v1282 = vunpack.c.l.b16 %v895
        %v1283 = vunpack.c.l.b16 %v896
        %v1284 = vunpack.c.l.b16 %v897
        %v1285 = vunpack.c.l.b16 %v898
        %v1286 = vunpack.c.l.b16 %v899
        %v1287 = vunpack.c.l.b16 %v900
        %v1288 = vunpack.c.l.b16 %v901
        %v1289 = vunpack.c.l.b16 %v902
        %v1290 = vunpack.c.l.b16 %v903
        %v1291 = vunpack.c.l.b16 %v904
        %v1292 = vunpack.c.l.b16 %v905
        %v1293 = vunpack.c.l.b16 %v906
        %v1294 = vunpack.c.l.b16 %v907
        %v1295 = vunpack.c.l.b16 %v908
        %v1296 = vunpack.c.l.b16 %v909
        %v1297 = vunpack.c.l.b16 %v910
        %v1298 = vunpack.c.l.b16 %v911
        %v1299 = vunpack.c.l.b16 %v912
        %v1300 = vunpack.c.l.b16 %v913
        %v1301 = vunpack.c.l.b16 %v914
        %v1302 = vunpack.c.l.b16 %v915
        %v1303 = vunpack.c.l.b16 %v916
        %v1304 = vunpack.c.l.b16 %v917
        %v1305 = vunpack.c.l.b16 %v918
        %v1306 = vunpack.c.l.b16 %v919
        %v1307 = vunpack.c.l.b16 %v920
        %v1308 = vunpack.c.l.b16 %v921
        %v1309 = vunpack.c.l.b16 %v922
        %v1310 = vunpack.c.l.b16 %v923
        %v1311 = vunpack.c.l.b16 %v924
        %v1312 = vunpack.c.l.b16 %v925
        %v1313 = vunpack.c.l.b16 %v926
        %v1314 = vunpack.c.l.b16 %v927
        %v1315 = vunpack.c.l.b16 %v928
        %v1316 = vunpack.c.l.b16 %v929
        %v1317 = vunpack.c.l.b16 %v930
        %v1318 = vunpack.c.l.b16 %v931
        %v1319 = vunpack.c.l.b16 %v932
        %v1320 = vunpack.c.l.b16 %v933
        %v1321 = vunpack.c.l.b16 %v934
        %v1322 = vunpack.c.l.b16 %v935
        %v1323 = vunpack.c.l.b16 %v936
        %v1324 = vunpack.c.l.b16 %v937
        %v1325 = vunpack.c.l.b16 %v938
        %v1326 = vunpack.c.l.b16 %v939
        %v1327 = vunpack.c.l.b16 %v940
        %v1328 = vunpack.c.l.b16 %v941
        %v1329 = vunpack.c.l.b16 %v942
        %v1330 = vunpack.c.l.b16 %v943
        %v1331 = vunpack.c.l.b16 %v944
        %v1332 = vunpack.c.l.b16 %v945
        %v1333 = vunpack.c.l.b16 %v946
        %v1334 = vunpack.c.l.b16 %v947
        %v1335 = vunpack.c.l.b16 %v948
        %v1336 = vunpack.c.l.b16 %v949
        %v1337 = vunpack.c.l.b16 %v950
        %v1338 = vunpack.c.l.b16 %v951
        %v1339 = vunpack.c.l.b16 %v952
        %v1340 = vunpack.c.l.b16 %v953
        %v1341 = vunpack.c.l.b16 %v954
        %v1342 = vunpack.c.l.b16 %v955
        %v1343 = vunpack.c.l.b16 %v956
        %v1344 = vunpack.c.l.b16 %v957
        %v1345 = vunpack.c.l.b16 %v958
        %v1346 = vunpack.c.l.b16 %v959
        %v1347 = vunpack.c.l.b16 %v960
        %v1348 = vunpack.c.l.b16 %v961
        %v1349 = vunpack.c.l.b16 %v962
        %v1350 = vunpack.c.l.b16 %v963
        %v1351 = vunpack.c.l.b16 %v964
        %v1352 = vunpack.c.l.b16 %v965
        %v1353 = vunpack.c.l.b16 %v966
        %v1354 = vunpack.c.l.b16 %v967
        %v1355 = vunpack.c.l.b16 %v968
        %v1356 = vunpack.c.l.b16 %v969
        %v1357 = vunpack.c.l.b16 %v970
        %v1358 = vunpack.c.l.b16 %v971
        %v1359 = vunpack.c.l.b16 %v972
        %v1360 = vunpack.c.l.b16 %v973
        %v1361 = vunpack.c.l.b16 %v974
        %v1362 = vunpack.c.l.b16 %v975
        %v1363 = vunpack.c.l.b16 %v976
        %v1364 = vunpack.c.l.b16 %v977
        %v1365 = vunpack.c.l.b16 %v978
        %v1366 = vunpack.c.l.b16 %v979
        %v1367 = vunpack.c.l.b16 %v980
        %v1368 = vunpack.c.l.b16 %v981
        %v1369 = vunpack.c.l.b16 %v982
        %v1370 = vunpack.c.l.b16 %v983
        %v1371 = vunpack.c.l.b16 %v984
        %v1372 = vunpack.c.l.b16 %v985
        %v1373 = vunpack.c.l.b16 %v986
        %v1374 = vunpack.c.l.b16 %v987
        %v1375 = vunpack.c.l.b16 %v988
        %v1376 = vunpack.c.l.b16 %v989
        %v1377 = vunpack.c.l.b16 %v990
        %v1378 = vunpack.c.l.b16 %v991
        %v1379 = vunpack.c.l.b16 %v992
        %v1380 = vunpack.c.l.b16 %v993
        %v1381 = vunpack.c.l.b16 %v994
        %v1382 = vunpack.c.l.b16 %v995
        %v1383 = vunpack.c.l.b16 %v996
        %v1384 = vpack.c.b16 %v1241, %v1240
        %v1385 = vpack.c.b16 %v1243, %v1242
        %v1386 = vpack.c.b16 %v1245, %v1244
        %v1387 = vpack.c.b16 %v1247, %v1246
        %v1388 = vpack.c.b16 %v1249, %v1248
        %v1389 = vpack.c.b16 %v1251, %v1250
        %v1390 = vpack.c.b16 %v1253, %v1252
        %v1391 = vpack.c.b16 %v1255, %v1254
        %v1392 = vpack.c.b16 %v1257, %v1256
        %v1393 = vpack.c.b16 %v1259, %v1258
        %v1394 = vpack.c.b16 %v1261, %v1260
        %v1395 = vpack.c.b16 %v1263, %v1262
        %v1396 = vpack.c.b16 %v1265, %v1264
        %v1397 = vpack.c.b16 %v1267, %v1266
        %v1398 = vpack.c.b16 %v1269, %v1268
        %v1399 = vpack.c.b16 %v1271, %v1270
        %v1400 = vpack.c.b16 %v1273, %v1272
        %v1401 = vpack.c.b16 %v1275, %v1274
        %v1402 = vpack.c.b16 %v1277, %v1276
        %v1403 = vpack.c.b16 %v1279, %v1278
        %v1404 = vpack.c.b16 %v1281, %v1280
        %v1405 = vpack.c.b16 %v1283, %v1282
        %v1406 = vpack.c.b16 %v1285, %v1284
        %v1407 = vpack.c.b16 %v1287, %v1286
        %v1408 = vpack.c.b16 %v1289, %v1288
        %v1409 = vpack.c.b16 %v1291, %v1290
        %v1410 = vpack.c.b16 %v1293, %v1292
        %v1411 = vpack.c.b16 %v1295, %v1294
        %v1412 = vpack.c.b16 %v1297, %v1296
        %v1413 = vpack.c.b16 %v1299, %v1298
        %v1414 = vpack.c.b16 %v1301, %v1300
        %v1415 = vpack.c.b16 %v1303, %v1302
        %v1416 = vpack.c.b16 %v1305, %v1304
        %v1417 = vpack.c.b16 %v1307, %v1306
        %v1418 = vpack.c.b16 %v1309, %v1308
        %v1419 = vpack.c.b16 %v1311, %v1310
        %v1420 = vpack.c.b16 %v1313, %v1312
        %v1421 = vpack.c.b16 %v1315, %v1314
        %v1422 = vpack.c.b16 %v1317, %v1316
        %v1423 = vpack.c.b16 %v1319, %v1318
        %v1424 = vpack.c.b16 %v1321, %v1320
        %v1425 = vpack.c.b16 %v1323, %v1322
        %v1426 = vpack.c.b16 %v1325, %v1324
        %v1427 = vpack.c.b16 %v1327, %v1326
        %v1428 = vpack.c.b16 %v1329, %v1328
        %v1429 = vpack.c.b16 %v1331, %v1330
        %v1430 = vpack.c.b16 %v1333, %v1332
        %v1431 = vpack.c.b16 %v1335, %v1334
        %v1432 = vpack.c.b16 %v1337, %v1336
        %v1433 = vpack.c.b16 %v1339, %v1338
        %v1434 = vpack.c.b16 %v1341, %v1340
        %v1435 = vpack.c.b16 %v1343, %v1342
        %v1436 = vpack.c.b16 %v1345, %v1344
        %v1437 = vpack.c.b16 %v1347, %v1346
        %v1438 = vpack.c.b16 %v1349, %v1348
        %v1439 = vpack.c.b16 %v1351, %v1350
        %v1440 = vpack.c.b16 %v1353, %v1352
        %v1441 = vpack.c.b16 %v1355, %v1354
        %v1442 = vpack.c.b16 %v1357, %v1356
        %v1443 = vpack.c.b16 %v1359, %v1358
        %v1444 = vpack.c.b16 %v1361, %v1360
        %v1445 = vpack.c.b16 %v1363, %v1362
        %v1446 = vpack.c.b16 %v1365, %v1364
        %v1447 = vpack.c.b16 %v1367, %v1366
        %v1448 = vpack.c.b16 %v1369, %v1368
        %v1449 = vpack.c.b16 %v1371, %v1370
        %v1450 = vpack.c.b16 %v1373, %v1372
        %v1451 = vpack.c.b16 %v1375, %v1374
        %v1452 = vpack.c.b16 %v1377, %v1376
        %v1453 = vpack.c.b16 %v1379, %v1378
        %v1454 = vpack.c.b16 %v1381, %v1380
        %v1455 = vpack.c.b16 %v1383, %v1382
        %1528 = vmatprep.subr.bf16.mxu0 0
        %1529 = vmatpush1.bf16.msra.mxu0 %v1384
        %1530 = vmatprep.subr.bf16.mxu0 0
        %1531 = vmatpush1.bf16.msra.mxu0 %v1385
        %1532 = vmatprep.subr.bf16.mxu0 0
        %1533 = vmatpush1.bf16.msra.mxu0 %v1386
        %1534 = vmatprep.subr.bf16.mxu0 0
        %1535 = vmatpush1.bf16.msra.mxu0 %v1387
        %1536 = vmatprep.subr.bf16.mxu0 0
        %1537 = vmatpush1.bf16.msra.mxu0 %v1388
        %1538 = vmatprep.subr.bf16.mxu0 0
        %1539 = vmatpush1.bf16.msra.mxu0 %v1389
        %1540 = vmatprep.subr.bf16.mxu0 0
        %1541 = vmatpush1.bf16.msra.mxu0 %v1390
        %1542 = vmatprep.subr.bf16.mxu0 0
        %1543 = vmatpush1.bf16.msra.mxu0 %v1391
        %1544 = vmatprep.subr.bf16.mxu0 0
        %1545 = vmatpush1.bf16.msra.mxu0 %v1392
        %1546 = vmatprep.subr.bf16.mxu0 0
        %1547 = vmatpush1.bf16.msra.mxu0 %v1393
        %1548 = vmatprep.subr.bf16.mxu0 0
        %1549 = vmatpush1.bf16.msra.mxu0 %v1394
        %1550 = vmatprep.subr.bf16.mxu0 0
        %1551 = vmatpush1.bf16.msra.mxu0 %v1395
        %1552 = vmatprep.subr.bf16.mxu0 0
        %1553 = vmatpush1.bf16.msra.mxu0 %v1396
        %1554 = vmatprep.subr.bf16.mxu0 0
        %1555 = vmatpush1.bf16.msra.mxu0 %v1397
        %1556 = vmatprep.subr.bf16.mxu0 0
        %1557 = vmatpush1.bf16.msra.mxu0 %v1398
        %1558 = vmatprep.subr.bf16.mxu0 0
        %1559 = vmatpush1.bf16.msra.mxu0 %v1399
        %1560 = vmatprep.mubr.bf16.mxu0 %v1061
        %1561 = vmatmul.mubr.bf16.gmra.mrb[0].mxu0 %v1060
        %v1562 = vpop.f32.mrb[0].mxu0
        %v1563 = vadd.f32 %v1002, %v1562
        %v1564 = vpop.f32.mrb[0].mxu0
        %v1565 = vpop.f32.mrb[0].mxu0
        %v1566 = vadd.f32 %v1002, %v1565
        %v1567 = vpop.f32.mrb[0].mxu0
        %1568 = vmatprep.mubr.bf16.mxu0 %v1070
        %1569 = vmatmul.mubr.bf16.gmra.mrb[0].mxu0 %v1069
        %v1570 = vpop.f32.mrb[0].mxu0
        %v1571 = vadd.f32 %v1002, %v1570
        %v1572 = vpop.f32.mrb[0].mxu0
        %v1573 = vpop.f32.mrb[0].mxu0
        %v1574 = vadd.f32 %v1002, %v1573
        %v1575 = vpop.f32.mrb[0].mxu0
        %1576 = vdwg.mxu0
        %1577 = vmatprep.subr.bf16.mxu0 0
        %1578 = vmatpush1.bf16.msra.mxu0 %v1400
        %1579 = vmatprep.subr.bf16.mxu0 0
        %1580 = vmatpush1.bf16.msra.mxu0 %v1401
        %1581 = vmatprep.subr.bf16.mxu0 0
        %1582 = vmatpush1.bf16.msra.mxu0 %v1402
        %1583 = vmatprep.subr.bf16.mxu0 0
        %1584 = vmatpush1.bf16.msra.mxu0 %v1403
        %1585 = vmatprep.subr.bf16.mxu0 0
        %1586 = vmatpush1.bf16.msra.mxu0 %v1404
        %1587 = vmatprep.subr.bf16.mxu0 0
        %1588 = vmatpush1.bf16.msra.mxu0 %v1405
        %1589 = vmatprep.subr.bf16.mxu0 0
        %1590 = vmatpush1.bf16.msra.mxu0 %v1406
        %1591 = vmatprep.subr.bf16.mxu0 0
        %1592 = vmatpush1.bf16.msra.mxu0 %v1407
        %1593 = vmatprep.subr.bf16.mxu0 0
        %1594 = vmatpush1.bf16.msra.mxu0 %v1408
        %1595 = vmatprep.subr.bf16.mxu0 0
        %1596 = vmatpush1.bf16.msra.mxu0 %v1409
        %1597 = vmatprep.subr.bf16.mxu0 0
        %1598 = vmatpush1.bf16.msra.mxu0 %v1410
        %1599 = vmatprep.subr.bf16.mxu0 0
        %1600 = vmatpush1.bf16.msra.mxu0 %v1411
        %1601 = vmatprep.subr.bf16.mxu0 0
        %1602 = vmatpush1.bf16.msra.mxu0 %v1412
        %1603 = vmatprep.subr.bf16.mxu0 0
        %1604 = vmatpush1.bf16.msra.mxu0 %v1413
        %1605 = vmatprep.subr.bf16.mxu0 0
        %1606 = vmatpush1.bf16.msra.mxu0 %v1414
        %1607 = vmatprep.subr.bf16.mxu0 0
        %1608 = vmatpush1.bf16.msra.mxu0 %v1415
        %1609 = vmatprep.mubr.bf16.mxu0 %v1063
        %1610 = vmatmul.mubr.bf16.gmra.mrb[0].mxu0 %v1062
        %v1611 = vpop.f32.mrb[0].mxu0
        %v1612 = vadd.f32 %v1563, %v1611
        %v1613 = vpop.f32.mrb[0].mxu0
        %v1614 = vpop.f32.mrb[0].mxu0
        %v1615 = vadd.f32 %v1566, %v1614
        %v1616 = vpop.f32.mrb[0].mxu0
        %1617 = vmatprep.mubr.bf16.mxu0 %v1072
        %1618 = vmatmul.mubr.bf16.gmra.mrb[0].mxu0 %v1071
        %v1619 = vpop.f32.mrb[0].mxu0
        %v1620 = vadd.f32 %v1571, %v1619
        %v1621 = vpop.f32.mrb[0].mxu0
        %v1622 = vpop.f32.mrb[0].mxu0
        %v1623 = vadd.f32 %v1574, %v1622
        %v1624 = vpop.f32.mrb[0].mxu0
        %1625 = vdwg.mxu0
        %1626 = vmatprep.subr.bf16.mxu0 0
        %1627 = vmatpush1.bf16.msra.mxu0 %v1416
        %1628 = vmatprep.subr.bf16.mxu0 0
        %1629 = vmatpush1.bf16.msra.mxu0 %v1417
        %1630 = vmatprep.subr.bf16.mxu0 0
        %1631 = vmatpush1.bf16.msra.mxu0 %v1418
        %1632 = vmatprep.subr.bf16.mxu0 0
        %1633 = vmatpush1.bf16.msra.mxu0 %v1419
        %1634 = vmatprep.subr.bf16.mxu0 0
        %1635 = vmatpush1.bf16.msra.mxu0 %v1420
        %1636 = vmatprep.subr.bf16.mxu0 0
        %1637 = vmatpush1.bf16.msra.mxu0 %v1421
        %1638 = vmatprep.subr.bf16.mxu0 0
        %1639 = vmatpush1.bf16.msra.mxu0 %v1422
        %1640 = vmatprep.subr.bf16.mxu0 0
        %1641 = vmatpush1.bf16.msra.mxu0 %v1423
        %1642 = vmatprep.subr.bf16.mxu0 0
        %1643 = vmatpush1.bf16.msra.mxu0 %v1424
        %1644 = vmatprep.subr.bf16.mxu0 0
        %1645 = vmatpush1.bf16.msra.mxu0 %v1425
        %1646 = vmatprep.subr.bf16.mxu0 0
        %1647 = vmatpush1.bf16.msra.mxu0 %v1426
        %1648 = vmatprep.subr.bf16.mxu0 0
        %1649 = vmatpush1.bf16.msra.mxu0 %v1427
        %1650 = vmatprep.subr.bf16.mxu0 0
        %1651 = vmatpush1.bf16.msra.mxu0 %v1428
        %1652 = vmatprep.subr.bf16.mxu0 0
        %1653 = vmatpush1.bf16.msra.mxu0 %v1429
        %1654 = vmatprep.subr.bf16.mxu0 0
        %1655 = vmatpush1.bf16.msra.mxu0 %v1430
        %1656 = vmatprep.subr.bf16.mxu0 0
        %1657 = vmatpush1.bf16.msra.mxu0 %v1431
        %1658 = vmatprep.mubr.bf16.mxu0 %v1065
        %1659 = vmatmul.mubr.bf16.gmra.mrb[0].mxu0 %v1064
        %v1660 = vpop.f32.mrb[0].mxu0
        %v1661 = vadd.f32 %v1612, %v1660
        %v1662 = vpop.f32.mrb[0].mxu0
        %v1663 = vpop.f32.mrb[0].mxu0
        %v1664 = vadd.f32 %v1615, %v1663
        %v1665 = vpop.f32.mrb[0].mxu0
        %1666 = vmatprep.mubr.bf16.mxu0 %v1074
        %1667 = vmatmul.mubr.bf16.gmra.mrb[0].mxu0 %v1073
        %v1668 = vpop.f32.mrb[0].mxu0
        %v1669 = vadd.f32 %v1620, %v1668
        %v1670 = vpop.f32.mrb[0].mxu0
        %v1671 = vpop.f32.mrb[0].mxu0
        %v1672 = vadd.f32 %v1623, %v1671
        %v1673 = vpop.f32.mrb[0].mxu0
        %1674 = vdwg.mxu0
        %1675 = vmatprep.subr.bf16.mxu0 0
        %1676 = vmatpush1.bf16.msra.mxu0 %v1432
        %1677 = vmatprep.subr.bf16.mxu0 0
        %1678 = vmatpush1.bf16.msra.mxu0 %v1433
        %1679 = vmatprep.subr.bf16.mxu0 0
        %1680 = vmatpush1.bf16.msra.mxu0 %v1434
        %1681 = vmatprep.subr.bf16.mxu0 0
        %1682 = vmatpush1.bf16.msra.mxu0 %v1435
        %1683 = vmatprep.subr.bf16.mxu0 0
        %1684 = vmatpush1.bf16.msra.mxu0 %v1436
        %1685 = vmatprep.subr.bf16.mxu0 0
        %1686 = vmatpush1.bf16.msra.mxu0 %v1437
        %1687 = vmatprep.subr.bf16.mxu0 0
        %1688 = vmatpush1.bf16.msra.mxu0 %v1438
        %1689 = vmatprep.subr.bf16.mxu0 0
        %1690 = vmatpush1.bf16.msra.mxu0 %v1439
        %1691 = vmatprep.subr.bf16.mxu0 0
        %1692 = vmatpush1.bf16.msra.mxu0 %v1440
        %1693 = vmatprep.subr.bf16.mxu0 0
        %1694 = vmatpush1.bf16.msra.mxu0 %v1441
        %1695 = vmatprep.subr.bf16.mxu0 0
        %1696 = vmatpush1.bf16.msra.mxu0 %v1442
        %1697 = vmatprep.subr.bf16.mxu0 0
        %1698 = vmatpush1.bf16.msra.mxu0 %v1443
        %1699 = vmatprep.subr.bf16.mxu0 0
        %1700 = vmatpush1.bf16.msra.mxu0 %v1444
        %1701 = vmatprep.subr.bf16.mxu0 0
        %1702 = vmatpush1.bf16.msra.mxu0 %v1445
        %1703 = vmatprep.subr.bf16.mxu0 0
        %1704 = vmatpush1.bf16.msra.mxu0 %v1446
        %1705 = vmatprep.subr.bf16.mxu0 0
        %1706 = vmatpush1.bf16.msra.mxu0 %v1447
        %1707 = vmatprep.mubr.bf16.mxu0 %v1067
        %1708 = vmatmul.mubr.bf16.gmra.mrb[0].mxu0 %v1066
        %v1709 = vpop.f32.mrb[0].mxu0
        %v1710 = vadd.f32 %v1661, %v1709
        %v1711 = vpop.f32.mrb[0].mxu0
        %v1712 = vpop.f32.mrb[0].mxu0
        %v1713 = vadd.f32 %v1664, %v1712
        %v1714 = vpop.f32.mrb[0].mxu0
        %1715 = vmatprep.mubr.bf16.mxu0 %v1076
        %1716 = vmatmul.mubr.bf16.gmra.mrb[0].mxu0 %v1075
        %v1717 = vpop.f32.mrb[0].mxu0
        %v1718 = vadd.f32 %v1669, %v1717
        %v1719 = vpop.f32.mrb[0].mxu0
        %v1720 = vpop.f32.mrb[0].mxu0
        %v1721 = vadd.f32 %v1672, %v1720
        %v1722 = vpop.f32.mrb[0].mxu0
        %1723 = vdwg.mxu0
        %1724 = vmatprep.subr.bf16.mxu0 0
        %1725 = vmatpush1.bf16.msra.mxu0 %v1448
        %1726 = vmatprep.subr.bf16.mxu0 0
        %1727 = vmatpush1.bf16.msra.mxu0 %v1449
        %1728 = vmatprep.subr.bf16.mxu0 0
        %1729 = vmatpush1.bf16.msra.mxu0 %v1450
        %1730 = vmatprep.subr.bf16.mxu0 0
        %1731 = vmatpush1.bf16.msra.mxu0 %v1451
        %1732 = vmatprep.subr.bf16.mxu0 0
        %1733 = vmatpush1.bf16.msra.mxu0 %v1452
        %1734 = vmatprep.subr.bf16.mxu0 0
        %1735 = vmatpush1.bf16.msra.mxu0 %v1453
        %1736 = vmatprep.subr.bf16.mxu0 0
        %1737 = vmatpush1.bf16.msra.mxu0 %v1454
        %1738 = vmatprep.subr.bf16.mxu0 0
        %1739 = vmatpush1.bf16.msra.mxu0 %v1455
        %1740 = vmatprep.subr.bf16.mxu0 0
        %1741 = vmatpush1.bf16.msra.mxu0 0
        %1742 = vmatprep.subr.bf16.mxu0 0
        %1743 = vmatpush1.bf16.msra.mxu0 0
        %1744 = vmatprep.subr.bf16.mxu0 0
        %1745 = vmatpush1.bf16.msra.mxu0 0
        %1746 = vmatprep.subr.bf16.mxu0 0
        %1747 = vmatpush1.bf16.msra.mxu0 0
        %1748 = vmatprep.subr.bf16.mxu0 0
        %1749 = vmatpush1.bf16.msra.mxu0 0
        %1750 = vmatprep.subr.bf16.mxu0 0
        %1751 = vmatpush1.bf16.msra.mxu0 0
        %1752 = vmatprep.subr.bf16.mxu0 0
        %1753 = vmatpush1.bf16.msra.mxu0 0
        %1754 = vmatprep.subr.bf16.mxu0 0
        %1755 = vmatpush1.bf16.msra.mxu0 0
        %1756 = vmatprep.mubr.bf16.mxu0 0
        %1757 = vmatmul.mubr.bf16.gmra.mrb[0].mxu0 %v1068
        %v1758 = vpop.f32.mrb[0].mxu0
        %v1759 = vadd.f32 %v1710, %v1758
        %v1760 = vpop.f32.mrb[0].mxu0
        %v1761 = vpop.f32.mrb[0].mxu0
        %v1762 = vadd.f32 %v1713, %v1761
        %v1763 = vpop.f32.mrb[0].mxu0
        %1764 = vmatprep.mubr.bf16.mxu0 0
        %1765 = vmatmul.mubr.bf16.gmra.mrb[0].mxu0 %v1077
        %v1766 = vpop.f32.mrb[0].mxu0
        %v1767 = vadd.f32 %v1718, %v1766
        %v1768 = vpop.f32.mrb[0].mxu0
        %v1769 = vpop.f32.mrb[0].mxu0
        %v1770 = vadd.f32 %v1721, %v1769
        %v1771 = vpop.f32.mrb[0].mxu0
        %1772 = vdwg.mxu0
        %v1773 = vmul.f32 %v1759, 0.2
        %v1774 = vmul.f32 %v1762, 0.2
        %v1775 = vmul.f32 %v1767, 0.2
        %v1776 = vmul.f32 %v1770, 0.2
        %v1777 = vmax.f32 %v1759, %v1773
        %v1778 = vmax.f32 %v1762, %v1774
        %v1779 = vmax.f32 %v1767, %v1775
        %v1780 = vmax.f32 %v1770, %v1776
        %v1781 = vpack.c.bf16 %v1778, %v1777
        %v1782 = vpack.c.bf16 %v1780, %v1779
        %v1785 = vunpack.c.l.b16 %v1781
        %v1786 = vunpack.c.h.b16 %v1781
        %v1787 = vunpack.c.l.b16 %v1782
        %v1788 = vunpack.c.h.b16 %v1782
        %v1789 = vpack.c.b16 %v1785, %v1785
        %v1790 = vpack.c.b16 %v1786, %v1786
        %v1791 = vpack.c.b16 %v1787, %v1787
        %v1792 = vpack.c.b16 %v1788, %v1788
        %1797 = vst [vmem:[%s820] sm:$0xf] %v1789
        %1798 = vst [vmem:[%s820 + $0x4] sm:$0xf] %v1790
        %1799 = vst [vmem:[%s820 + $0x8] sm:$0xf] %v1791
        %1800 = vst [vmem:[%s820 + $0xc] sm:$0xf] %v1792
        %s1801 = sand.u32 %s114, 1
        %s1802 = sand.u32 %s114, 1
        %s1803 = smul.addr %s1802, 16
        %s1804 = scalar_lea.vmem [#allocation3], %s1803
        // Predicated region
        $region74: #{encoder_forward.8} parent=68 // pred_check
          %p1805 = pneg %p124
        $region75: #{encoder_forward.8} parent=68 // pred_check_branch
          %1807 = sbr.rel (%p1805) target = $region77
        $region76: #{encoder_forward.8} parent=68 // pred_region
          %s1808 = smul.u32 4, %s18
          %s1809 = smul.addr %s1808, 2
          %s1810 = sadd.s32 %s19, %s1809
          %s1811 = smul.addr %s1810, 4
          %s1812 = scalar_lea.vmem %s3, %s1811
          // Predicated region
          $region78: #{encoder_forward.8} parent=76 // pred_check
            _
          $region79: #{encoder_forward.8} parent=76 // pred_check_branch
            %1814 = sbr.rel (0) target = $region81
          $region80: #{encoder_forward.8} parent=76 // pred_region
            // Predicated region
            $region82: #{encoder_forward.8} parent=80 // pred_check
              _
            $region83: #{encoder_forward.8} parent=80 // pred_check_branch
              %1816 = sbr.rel target = $region85
            $region84: #{encoder_forward.8} parent=80 // pred_region
              // Predicated region
              $region97: #{encoder_forward.8} parent=84 // pred_check
                _
              $region98: #{encoder_forward.8} parent=84 // pred_check_branch
                %1837 = sbr.rel (0) target = $region100
              $region99: #{encoder_forward.8} parent=84 // pred_region
                loop: start=0, step=1, limit=1
                $region101: #{encoder_forward.8} parent=99 // loop_pre_header
                  _
                $region102: #{encoder_forward.8} parent=99 // loop_header
                  %s1839 = sphi 0, %s1843
                  %p1840 = scmp.ge.s32.totalorder %s1839, 1
                  %s1844 = sphi %s1804, %s1804
                  %s1845 = sphi %s1812, %s1812
                $region103: #{encoder_forward.8} parent=99 // loop_header_branch
                  %1842 = sbr.rel (%p1840) target = $region107
                $region104: #{encoder_forward.8} parent=99 // loop_body
                  _
                $region105: #{encoder_forward.8} parent=99 // loop_footer
                  %s1843 = sadd.s32 1, %s1839
                $region106: #{encoder_forward.8} parent=99 // loop_footer_branch
                  %1838 = sbr.rel target = $region102
                $region107: #{encoder_forward.8} parent=99 // loop_exit
                  _
                loop: start=0, step=1, limit=1
                $region108: #{encoder_forward.8} parent=99 // loop_pre_header
                  _
                $region109: #{encoder_forward.8} parent=99 // loop_header
                  %s1848 = sphi 0, %s1852
                  %p1849 = scmp.ge.s32.totalorder %s1848, 1
                  %s1853 = sphi %s1804, %s1804
                  %s1854 = sphi %s1812, %s1812
                $region110: #{encoder_forward.8} parent=99 // loop_header_branch
                  %1851 = sbr.rel (%p1849) target = $region114
                $region111: #{encoder_forward.8} parent=99 // loop_body
                  %v1855 = vld [vmem:[%s1853] sm:$0xf]
                  %1856 = vst [vmem:[%s1854] sm:$0xf] %v1855
                  %v1857 = vld [vmem:[%s1853 + $0x4] sm:$0xf]
                  %1858 = vst [vmem:[%s1854 + $0x8] sm:$0xf] %v1857
                  %v1859 = vld [vmem:[%s1853 + $0x8] sm:$0xf]
                  %1860 = vst [vmem:[%s1854 + $0x10] sm:$0xf] %v1859
                  %v1861 = vld [vmem:[%s1853 + $0xc] sm:$0xf]
                  %1862 = vst [vmem:[%s1854 + $0x18] sm:$0xf] %v1861
                $region112: #{encoder_forward.8} parent=99 // loop_footer
                  %s1852 = sadd.s32 1, %s1848
                $region113: #{encoder_forward.8} parent=99 // loop_footer_branch
                  %1847 = sbr.rel target = $region109
                $region114: #{encoder_forward.8} parent=99 // loop_exit
                  _
              $region100: #{encoder_forward.8} parent=84 // pred_fallthru
                _
            $region85: #{encoder_forward.8} parent=80 // pred_fallthru
              _
            // Predicated region
            $region86: #{encoder_forward.8} parent=80 // pred_check
              _
            $region87: #{encoder_forward.8} parent=80 // pred_check_branch
              %1818 = sbr.rel (0) target = $region89
            $region88: #{encoder_forward.8} parent=80 // pred_region
              loop: start=0, step=1, limit=1
              $region90: #{encoder_forward.8} parent=88 // loop_pre_header
                _
              $region91: #{encoder_forward.8} parent=88 // loop_header
                %s1821 = sphi 0, %s1825
                %p1822 = scmp.ge.s32.totalorder %s1821, 1
                %s1826 = sphi %s1804, %s1804
                %s1827 = sphi %s1812, %s1812
              $region92: #{encoder_forward.8} parent=88 // loop_header_branch
                %1824 = sbr.rel (%p1822) target = $region96
              $region93: #{encoder_forward.8} parent=88 // loop_body
                %v1828 = vld [vmem:[%s1826] sm:$0xf]
                %1829 = vst [vmem:[%s1827] sm:$0xf] %v1828
                %v1830 = vld [vmem:[%s1826 + $0x4] sm:$0xf]
                %1831 = vst [vmem:[%s1827 + $0x8] sm:$0xf] %v1830
                %v1832 = vld [vmem:[%s1826 + $0x8] sm:$0xf]
                %1833 = vst [vmem:[%s1827 + $0x10] sm:$0xf] %v1832
                %v1834 = vld [vmem:[%s1826 + $0xc] sm:$0xf]
                %1835 = vst [vmem:[%s1827 + $0x18] sm:$0xf] %v1834
              $region94: #{encoder_forward.8} parent=88 // loop_footer
                %s1825 = sadd.s32 1, %s1821
              $region95: #{encoder_forward.8} parent=88 // loop_footer_branch
                %1820 = sbr.rel target = $region91
              $region96: #{encoder_forward.8} parent=88 // loop_exit
                _
            $region89: #{encoder_forward.8} parent=80 // pred_fallthru
              _
          $region81: #{encoder_forward.8} parent=76 // pred_fallthru
            _
          %1863 = vnop
        $region77: #{encoder_forward.8} parent=68 // pred_fallthru
          _
      $region69: #{encoder_forward.8} parent=5 // pred_fallthru
        _
      %p1864 = scmp.le.s32.totalorder 2, %s9
      // Predicated region
      $region115: #{encoder_forward.8} parent=5 // pred_check
        %p1865 = pneg %p1864
      $region116: #{encoder_forward.8} parent=5 // pred_check_branch
        %1867 = sbr.rel (%p1865) target = $region118
      $region117: #{encoder_forward.8} parent=5 // pred_region
        %s1868 = ssub.s32 %s9, 2
        // Predicated region
        $region119: #{encoder_forward.8} parent=117 // pred_check
          %p1869 = pneg %p130
        $region120: #{encoder_forward.8} parent=117 // pred_check_branch
          %1871 = sbr.rel (%p1869) target = $region122
        $region121: #{encoder_forward.8} parent=117 // pred_region
          %s1872 = sand.u32 %s115, 1
          %s1873 = sand.u32 %s115, 1
          %s1874 = smul.addr %s1873, 16
          %s1875 = scalar_lea.vmem [#allocation3], %s1874
        $region122: #{encoder_forward.8} parent=117 // pred_fallthru
          _
      $region118: #{encoder_forward.8} parent=5 // pred_fallthru
        _
    $region6: #{encoder_forward.8} parent=1 // loop_footer
      %s13 = sadd.s32 1, %s9
    $region7: #{encoder_forward.8} parent=1 // loop_footer_branch
      %8 = sbr.rel target = $region3
    $region8: #{encoder_forward.8} parent=1 // loop_exit
      _

// kernel: encoder_forward.7
$region0: #{encoder_forward.7}
  #allocation0 [shape = 'u32[]', space=smem, size = 0x4, offset = 0x4, fixed_abs, tag = 'smem constant byte address 0x4 - core index']
  #allocation1 [shape = 'u32[144,128]{1,0:T(1,128)}', space=vmem, size = 0x12000, scoped, tag = 'internal scratch']
  %s0 = inlined_call_operand.vmem [shape: bf16[128,1152], index: 0, kind: input, shape index: {}]
  %s1 = inlined_call_operand.vmem [shape: bf16[1152,128], index: 1, kind: input, shape index: {}]
  %s2 = inlined_call_operand.vmem [shape: f32[1,128], index: 2, kind: input, shape index: {}]
  %s3 = inlined_call_operand.vmem [shape: bf16[128,128], index: 3, kind: output, shape index: {}]
  %s4 = sld [smem:[#allocation0]]
  $region45: #{encoder_forward.7} parent=0
    _
  %s6 = ssub.s32 1, %s4
  %s7 = scalar_select 0, %s6, %s4
  loop: start=0, step=1, limit=4
  $region2: #{encoder_forward.7} parent=0 // loop_pre_header
    _
  $region3: #{encoder_forward.7} parent=0 // loop_header
    %s9 = sphi 0, %s13
    %p10 = scmp.ge.s32.totalorder %s9, 4
    %s16 = sphi 0, %s28
    %s17 = sphi 0, %s24
    %s18 = sphi 0, %s16
    %s19 = sphi 0, %s17
    %s20 = sphi 0, %s18
    %s21 = sphi 0, %s19
    %s31 = sphi 0, %s33
    %s34 = sphi 0, %s31
    %s35 = sphi 0, %s34
    %s51 = sphi 0, %s35
    %s57 = sphi 0, %s59
    %s60 = sphi 0, %s57
    %s61 = sphi 0, %s60
    %s77 = sphi 0, %s61
    %s83 = sphi 0, %s85
    %s86 = sphi 0, %s83
    %s87 = sphi 0, %s86
    %s103 = sphi 0, %s87
    %s111 = sphi 0, %s113
    %s114 = sphi 0, %s111
    %s115 = sphi 0, %s114
    %s131 = sphi 0, %s115
  $region4: #{encoder_forward.7} parent=0 // loop_header_branch
    %12 = sbr.rel (%p10) target = $region8
  $region5: #{encoder_forward.7} parent=0 // loop_body
    %s14 = ssub.s32 %s9, 1
    %s15 = ssub.s32 %s9, 2
    %s22 = sadd.s32 1, %s17
    %p23 = scmp.ge.s32.totalorder %s22, 1
    %s24 = scalar_select %p23, 0, %s22
    %s25 = sadd.s32 1, %s16
    %s26 = scalar_select %p23, %s25, %s16
    %p27 = scmp.ge.s32.totalorder %s26, 2
    %s28 = scalar_select %p27, 0, %s26
    %s29 = ssub.s32 %s16, %s28
    %p30 = scmp.eq.s32.totalorder %s29, 0
    %s32 = sadd.s32 %s31, 1
    %s33 = scalar_select %p30, %s31, %s32
    %p36 = pneg %p30
    %p37 = scmp.eq.s32.totalorder %s9, 1
    %p38 = por %p36, %p37
    %p39 = scmp.ne.s32.totalorder %s31, %s34
    %p40 = scmp.eq.s32.totalorder %s9, 0
    %p41 = por %p39, %p40
    %p42 = scmp.ne.s32.totalorder %s31, %s34
    %p43 = scmp.eq.s32.totalorder %s14, 1
    %p44 = por %p42, %p43
    %p45 = scmp.ne.s32.totalorder %s34, %s35
    %p46 = scmp.eq.s32.totalorder %s14, 0
    %p47 = por %p45, %p46
    %p48 = scmp.ne.s32.totalorder %s34, %s35
    %p49 = scmp.eq.s32.totalorder %s15, 1
    %p50 = por %p48, %p49
    %p52 = scmp.ne.s32.totalorder %s35, %s51
    %p53 = scmp.eq.s32.totalorder %s15, 0
    %p54 = por %p52, %p53
    %s55 = ssub.s32 %s17, %s24
    %p56 = scmp.eq.s32.totalorder %s55, 0
    %s58 = sadd.s32 %s57, 1
    %s59 = scalar_select %p56, %s57, %s58
    %p62 = pneg %p56
    %p63 = scmp.eq.s32.totalorder %s9, 1
    %p64 = por %p62, %p63
    %p65 = scmp.ne.s32.totalorder %s57, %s60
    %p66 = scmp.eq.s32.totalorder %s9, 0
    %p67 = por %p65, %p66
    %p68 = scmp.ne.s32.totalorder %s57, %s60
    %p69 = scmp.eq.s32.totalorder %s14, 1
    %p70 = por %p68, %p69
    %p71 = scmp.ne.s32.totalorder %s60, %s61
    %p72 = scmp.eq.s32.totalorder %s14, 0
    %p73 = por %p71, %p72
    %p74 = scmp.ne.s32.totalorder %s60, %s61
    %p75 = scmp.eq.s32.totalorder %s15, 1
    %p76 = por %p74, %p75
    %p78 = scmp.ne.s32.totalorder %s61, %s77
    %p79 = scmp.eq.s32.totalorder %s15, 0
    %p80 = por %p78, %p79
    %s81 = ssub.s32 %s17, %s24
    %p82 = scmp.eq.s32.totalorder %s81, 0
    %s84 = sadd.s32 %s83, 1
    %s85 = scalar_select %p82, %s83, %s84
    %p88 = pneg %p82
    %p89 = scmp.eq.s32.totalorder %s9, 1
    %p90 = por %p88, %p89
    %p91 = scmp.ne.s32.totalorder %s83, %s86
    %p92 = scmp.eq.s32.totalorder %s9, 0
    %p93 = por %p91, %p92
    %p94 = scmp.ne.s32.totalorder %s83, %s86
    %p95 = scmp.eq.s32.totalorder %s14, 1
    %p96 = por %p94, %p95
    %p97 = scmp.ne.s32.totalorder %s86, %s87
    %p98 = scmp.eq.s32.totalorder %s14, 0
    %p99 = por %p97, %p98
    %p100 = scmp.ne.s32.totalorder %s86, %s87
    %p101 = scmp.eq.s32.totalorder %s15, 1
    %p102 = por %p100, %p101
    %p104 = scmp.ne.s32.totalorder %s87, %s103
    %p105 = scmp.eq.s32.totalorder %s15, 0
    %p106 = por %p104, %p105
    %s107 = ssub.s32 %s16, %s28
    %s108 = ssub.s32 %s17, %s24
    %s109 = sor.u32 %s107, %s108
    %p110 = scmp.eq.s32.totalorder %s109, 0
    %s112 = sadd.s32 %s111, 1
    %s113 = scalar_select %p110, %s111, %s112
    %p116 = pneg %p110
    %p117 = scmp.eq.s32.totalorder %s9, 1
    %p118 = por %p116, %p117
    %p119 = scmp.ne.s32.totalorder %s111, %s114
    %p120 = scmp.eq.s32.totalorder %s9, 0
    %p121 = por %p119, %p120
    %p122 = scmp.ne.s32.totalorder %s111, %s114
    %p123 = scmp.eq.s32.totalorder %s14, 1
    %p124 = por %p122, %p123
    %p125 = scmp.ne.s32.totalorder %s114, %s115
    %p126 = scmp.eq.s32.totalorder %s14, 0
    %p127 = por %p125, %p126
    %p128 = scmp.ne.s32.totalorder %s114, %s115
    %p129 = scmp.eq.s32.totalorder %s15, 1
    %p130 = por %p128, %p129
    %p132 = scmp.ne.s32.totalorder %s115, %s131
    %p133 = scmp.eq.s32.totalorder %s15, 0
    %p134 = por %p132, %p133
    %p135 = scmp.le.s32.totalorder 1, %s9
    %p136 = scmp.lt.s32.totalorder %s9, 3
    %p137 = pnand %p135, %p136
    %p138 = pneg %p137
    // Predicated region
    $region9: #{encoder_forward.7} parent=5 // pred_check
      _
    $region10: #{encoder_forward.7} parent=5 // pred_check_branch
      %140 = sbr.rel (%p137) target = $region12
    $region11: #{encoder_forward.7} parent=5 // pred_region
      %s141 = ssub.s32 %s9, 1
      // Predicated region
      $region13: #{encoder_forward.7} parent=11 // pred_check
        %p142 = pneg %p73
      $region14: #{encoder_forward.7} parent=11 // pred_check_branch
        %144 = sbr.rel (%p142) target = $region16
      $region15: #{encoder_forward.7} parent=11 // pred_region
        %p145 = scmp.lt.s32.totalorder %s19, 0
        %s146 = scalar_select %p145, %s19, 0
        %s147 = smul.addr %s146, 4
        %s148 = scalar_lea.vmem %s1, %s147
      $region16: #{encoder_forward.7} parent=11 // pred_fallthru
        _
      // Predicated region
      $region17: #{encoder_forward.7} parent=11 // pred_check
        %p149 = pneg %p99
      $region18: #{encoder_forward.7} parent=11 // pred_check_branch
        %151 = sbr.rel (%p149) target = $region20
      $region19: #{encoder_forward.7} parent=11 // pred_region
        %p152 = scmp.lt.s32.totalorder %s19, 0
        %s153 = scalar_select %p152, %s19, 0
        %s154 = scalar_lea.vmem %s2, %s153
      $region20: #{encoder_forward.7} parent=11 // pred_fallthru
        _
    $region12: #{encoder_forward.7} parent=5 // pred_fallthru
      _
    %p155 = scmp.lt.s32.totalorder %s9, 2
    // Predicated region
    $region21: #{encoder_forward.7} parent=5 // pred_check
      %p156 = pneg %p155
    $region22: #{encoder_forward.7} parent=5 // pred_check_branch
      %158 = sbr.rel (%p156) target = $region24
    $region23: #{encoder_forward.7} parent=5 // pred_region
      // Predicated region
      $region25: #{encoder_forward.7} parent=23 // pred_check
        %p159 = pneg %p41
      $region26: #{encoder_forward.7} parent=23 // pred_check_branch
        %161 = sbr.rel (%p159) target = $region28
      $region27: #{encoder_forward.7} parent=23 // pred_region
        %s162 = smul.u32 8, %s16
        %p163 = scmp.lt.s32.totalorder %s162, 15
        %s164 = scalar_select %p163, %s162, 15
        %s165 = smul.addr %s164, 9
        %s166 = smul.addr %s165, 4
        %s167 = scalar_lea.vmem %s0, %s166
        %s168 = smul.u32 8, %s16
      $region28: #{encoder_forward.7} parent=23 // pred_fallthru
        _
    $region24: #{encoder_forward.7} parent=5 // pred_fallthru
      _
    %p169 = scmp.le.s32.totalorder 1, %s9
    %p170 = scmp.lt.s32.totalorder %s9, 3
    %p171 = pnand %p169, %p170
    %p172 = pneg %p171
    // Predicated region
    $region29: #{encoder_forward.7} parent=5 // pred_check
      _
    $region30: #{encoder_forward.7} parent=5 // pred_check_branch
      %174 = sbr.rel (%p171) target = $region32
    $region31: #{encoder_forward.7} parent=5 // pred_region
      %s175 = ssub.s32 %s9, 1
      %s176 = smul.u32 8, %s18
      %p177 = scmp.lt.s32.totalorder %s176, 15
      %s178 = scalar_select %p177, %s176, 15
      %s179 = smul.addr %s178, 9
      %s180 = smul.addr %s179, 4
      %s181 = scalar_lea.vmem %s0, %s180
      %p182 = pneg %p47
      %p183 = pneg %p44
      %p184 = scmp.lt.s32.totalorder %s19, 0
      %s185 = scalar_select %p184, %s19, 0
      %s186 = smul.addr %s185, 4
      %s187 = scalar_lea.vmem %s1, %s186
      %p188 = pneg %p73
      %p189 = pneg %p70
      %p190 = scmp.lt.s32.totalorder %s19, 0
      %s191 = scalar_select %p190, %s19, 0
      %s192 = scalar_lea.vmem %s2, %s191
      %p193 = pneg %p99
      %p194 = pneg %p96
      %p195 = pneg %p127
      %p196 = pneg %p124
      %s197 = smul.u32 8, %s18
      %p198 = scmp.lt.s32.totalorder %s197, 15
      %s199 = scalar_select %p198, %s197, 15
      %p200 = scmp.lt.s32.totalorder %s19, 0
      %s201 = scalar_select %p200, %s19, 0
      %s202 = sadd.s32 %s201, %s199
      %s203 = smul.addr %s202, 4
      %s204 = scalar_lea.vmem %s3, %s203
      %s205 = smul.u32 8, %s18
      %p206 = scmp.lt.s32.totalorder %s205, 15
      %s207 = scalar_select %p206, %s205, 15
      %s208 = smul.addr %s207, 9
      %s209 = smul.addr %s208, 4
      %s210 = scalar_lea.vmem %s0, %s209
      %s211 = smul.u32 8, %s18
      %p212 = scmp.lt.s32.totalorder %s19, 0
      %s213 = scalar_select %p212, %s19, 0
      %s214 = smul.addr %s213, 4
      %s215 = scalar_lea.vmem %s1, %s214
      %p216 = scmp.lt.s32.totalorder %s19, 0
      %s217 = scalar_select %p216, %s19, 0
      %s218 = scalar_lea.vmem %s2, %s217
      %s219 = smul.u32 8, %s18
      %p220 = scmp.lt.s32.totalorder %s219, 15
      %s221 = scalar_select %p220, %s219, 15
      %p222 = scmp.lt.s32.totalorder %s19, 0
      %s223 = scalar_select %p222, %s19, 0
      %s224 = sadd.s32 %s223, %s221
      %s225 = smul.addr %s224, 4
      %s226 = scalar_lea.vmem %s3, %s225
      %s227 = smul.u32 8, %s18
      %v229 = vld [vmem:[%s210] sm:$0xff]
      %v230 = vld [vmem:[%s210 + $0x8] sm:$0xff]
      %v231 = vld [vmem:[%s210 + $0x10] sm:$0xff]
      %v232 = vld [vmem:[%s210 + $0x18] sm:$0xff]
      %v233 = vld [vmem:[%s210 + $0x20] sm:$0xf]
      %v234 = vld [vmem:[%s210 + $0x24] sm:$0xff]
      %v235 = vld [vmem:[%s210 + $0x2c] sm:$0xff]
      %v236 = vld [vmem:[%s210 + $0x34] sm:$0xff]
      %v237 = vld [vmem:[%s210 + $0x3c] sm:$0xff]
      %v238 = vld [vmem:[%s210 + $0x44] sm:$0xf]
      %v239 = vld [vmem:[%s210 + $0x48] sm:$0xff]
      %v240 = vld [vmem:[%s210 + $0x50] sm:$0xff]
      %v241 = vld [vmem:[%s210 + $0x58] sm:$0xff]
      %v242 = vld [vmem:[%s210 + $0x60] sm:$0xff]
      %v243 = vld [vmem:[%s210 + $0x68] sm:$0xf]
      %v244 = vld [vmem:[%s210 + $0x6c] sm:$0xff]
      %v245 = vld [vmem:[%s210 + $0x74] sm:$0xff]
      %v246 = vld [vmem:[%s210 + $0x7c] sm:$0xff]
      %v247 = vld [vmem:[%s210 + $0x84] sm:$0xff]
      %v248 = vld [vmem:[%s210 + $0x8c] sm:$0xf]
      %v249 = vld [vmem:[%s210 + $0x90] sm:$0xff]
      %v250 = vld [vmem:[%s210 + $0x98] sm:$0xff]
      %v251 = vld [vmem:[%s210 + $0xa0] sm:$0xff]
      %v252 = vld [vmem:[%s210 + $0xa8] sm:$0xff]
      %v253 = vld [vmem:[%s210 + $0xb0] sm:$0xf]
      %v254 = vld [vmem:[%s210 + $0xb4] sm:$0xff]
      %v255 = vld [vmem:[%s210 + $0xbc] sm:$0xff]
      %v256 = vld [vmem:[%s210 + $0xc4] sm:$0xff]
      %v257 = vld [vmem:[%s210 + $0xcc] sm:$0xff]
      %v258 = vld [vmem:[%s210 + $0xd4] sm:$0xf]
      %v259 = vld [vmem:[%s210 + $0xd8] sm:$0xff]
      %v260 = vld [vmem:[%s210 + $0xe0] sm:$0xff]
      %v261 = vld [vmem:[%s210 + $0xe8] sm:$0xff]
      %v262 = vld [vmem:[%s210 + $0xf0] sm:$0xff]
      %v263 = vld [vmem:[%s210 + $0xf8] sm:$0xf]
      %v264 = vld [vmem:[%s210 + $0xfc] sm:$0xff]
      %v265 = vld [vmem:[%s210 + $0x104] sm:$0xff]
      %v266 = vld [vmem:[%s210 + $0x10c] sm:$0xff]
      %v267 = vld [vmem:[%s210 + $0x114] sm:$0xff]
      %v268 = vld [vmem:[%s210 + $0x11c] sm:$0xf]
      %v269 = vld [vmem:[%s215] sm:$0xf]
      %v270 = vld [vmem:[%s215 + $0x4] sm:$0xf]
      %v271 = vld [vmem:[%s215 + $0x8] sm:$0xf]
      %v272 = vld [vmem:[%s215 + $0xc] sm:$0xf]
      %v273 = vld [vmem:[%s215 + $0x10] sm:$0xf]
      %v274 = vld [vmem:[%s215 + $0x14] sm:$0xf]
      %v275 = vld [vmem:[%s215 + $0x18] sm:$0xf]
      %v276 = vld [vmem:[%s215 + $0x1c] sm:$0xf]
      %v277 = vld [vmem:[%s215 + $0x20] sm:$0xf]
      %v278 = vld [vmem:[%s215 + $0x24] sm:$0xf]
      %v279 = vld [vmem:[%s215 + $0x28] sm:$0xf]
      %v280 = vld [vmem:[%s215 + $0x2c] sm:$0xf]
      %v281 = vld [vmem:[%s215 + $0x30] sm:$0xf]
      %v282 = vld [vmem:[%s215 + $0x34] sm:$0xf]
      %v283 = vld [vmem:[%s215 + $0x38] sm:$0xf]
      %v284 = vld [vmem:[%s215 + $0x3c] sm:$0xf]
      %v285 = vld [vmem:[%s215 + $0x40] sm:$0xf]
      %v286 = vld [vmem:[%s215 + $0x44] sm:$0xf]
      %v287 = vld [vmem:[%s215 + $0x48] sm:$0xf]
      %v288 = vld [vmem:[%s215 + $0x4c] sm:$0xf]
      %v289 = vld [vmem:[%s215 + $0x50] sm:$0xf]
      %v290 = vld [vmem:[%s215 + $0x54] sm:$0xf]
      %v291 = vld [vmem:[%s215 + $0x58] sm:$0xf]
      %v292 = vld [vmem:[%s215 + $0x5c] sm:$0xf]
      %v293 = vld [vmem:[%s215 + $0x60] sm:$0xf]
      %v294 = vld [vmem:[%s215 + $0x64] sm:$0xf]
      %v295 = vld [vmem:[%s215 + $0x68] sm:$0xf]
      %v296 = vld [vmem:[%s215 + $0x6c] sm:$0xf]
      %v297 = vld [vmem:[%s215 + $0x70] sm:$0xf]
      %v298 = vld [vmem:[%s215 + $0x74] sm:$0xf]
      %v299 = vld [vmem:[%s215 + $0x78] sm:$0xf]
      %v300 = vld [vmem:[%s215 + $0x7c] sm:$0xf]
      %v301 = vld [vmem:[%s215 + $0x80] sm:$0xf]
      %v302 = vld [vmem:[%s215 + $0x84] sm:$0xf]
      %v303 = vld [vmem:[%s215 + $0x88] sm:$0xf]
      %v304 = vld [vmem:[%s215 + $0x8c] sm:$0xf]
      %v305 = vld [vmem:[%s215 + $0x90] sm:$0xf]
      %v306 = vld [vmem:[%s215 + $0x94] sm:$0xf]
      %v307 = vld [vmem:[%s215 + $0x98] sm:$0xf]
      %v308 = vld [vmem:[%s215 + $0x9c] sm:$0xf]
      %v309 = vld [vmem:[%s215 + $0xa0] sm:$0xf]
      %v310 = vld [vmem:[%s215 + $0xa4] sm:$0xf]
      %v311 = vld [vmem:[%s215 + $0xa8] sm:$0xf]
      %v312 = vld [vmem:[%s215 + $0xac] sm:$0xf]
      %v313 = vld [vmem:[%s215 + $0xb0] sm:$0xf]
      %v314 = vld [vmem:[%s215 + $0xb4] sm:$0xf]
      %v315 = vld [vmem:[%s215 + $0xb8] sm:$0xf]
      %v316 = vld [vmem:[%s215 + $0xbc] sm:$0xf]
      %v317 = vld [vmem:[%s215 + $0xc0] sm:$0xf]
      %v318 = vld [vmem:[%s215 + $0xc4] sm:$0xf]
      %v319 = vld [vmem:[%s215 + $0xc8] sm:$0xf]
      %v320 = vld [vmem:[%s215 + $0xcc] sm:$0xf]
      %v321 = vld [vmem:[%s215 + $0xd0] sm:$0xf]
      %v322 = vld [vmem:[%s215 + $0xd4] sm:$0xf]
      %v323 = vld [vmem:[%s215 + $0xd8] sm:$0xf]
      %v324 = vld [vmem:[%s215 + $0xdc] sm:$0xf]
      %v325 = vld [vmem:[%s215 + $0xe0] sm:$0xf]
      %v326 = vld [vmem:[%s215 + $0xe4] sm:$0xf]
      %v327 = vld [vmem:[%s215 + $0xe8] sm:$0xf]
      %v328 = vld [vmem:[%s215 + $0xec] sm:$0xf]
      %v329 = vld [vmem:[%s215 + $0xf0] sm:$0xf]
      %v330 = vld [vmem:[%s215 + $0xf4] sm:$0xf]
      %v331 = vld [vmem:[%s215 + $0xf8] sm:$0xf]
      %v332 = vld [vmem:[%s215 + $0xfc] sm:$0xf]
      %v333 = vld [vmem:[%s215 + $0x100] sm:$0xf]
      %v334 = vld [vmem:[%s215 + $0x104] sm:$0xf]
      %v335 = vld [vmem:[%s215 + $0x108] sm:$0xf]
      %v336 = vld [vmem:[%s215 + $0x10c] sm:$0xf]
      %v337 = vld [vmem:[%s215 + $0x110] sm:$0xf]
      %v338 = vld [vmem:[%s215 + $0x114] sm:$0xf]
      %v339 = vld [vmem:[%s215 + $0x118] sm:$0xf]
      %v340 = vld [vmem:[%s215 + $0x11c] sm:$0xf]
      %v341 = vld [vmem:[%s215 + $0x120] sm:$0xf]
      %v342 = vld [vmem:[%s215 + $0x124] sm:$0xf]
      %v343 = vld [vmem:[%s215 + $0x128] sm:$0xf]
      %v344 = vld [vmem:[%s215 + $0x12c] sm:$0xf]
      %v345 = vld [vmem:[%s215 + $0x130] sm:$0xf]
      %v346 = vld [vmem:[%s215 + $0x134] sm:$0xf]
      %v347 = vld [vmem:[%s215 + $0x138] sm:$0xf]
      %v348 = vld [vmem:[%s215 + $0x13c] sm:$0xf]
      %v349 = vld [vmem:[%s215 + $0x140] sm:$0xf]
      %v350 = vld [vmem:[%s215 + $0x144] sm:$0xf]
      %v351 = vld [vmem:[%s215 + $0x148] sm:$0xf]
      %v352 = vld [vmem:[%s215 + $0x14c] sm:$0xf]
      %v353 = vld [vmem:[%s215 + $0x150] sm:$0xf]
      %v354 = vld [vmem:[%s215 + $0x154] sm:$0xf]
      %v355 = vld [vmem:[%s215 + $0x158] sm:$0xf]
      %v356 = vld [vmem:[%s215 + $0x15c] sm:$0xf]
      %v357 = vld [vmem:[%s215 + $0x160] sm:$0xf]
      %v358 = vld [vmem:[%s215 + $0x164] sm:$0xf]
      %v359 = vld [vmem:[%s215 + $0x168] sm:$0xf]
      %v360 = vld [vmem:[%s215 + $0x16c] sm:$0xf]
      %v361 = vld [vmem:[%s215 + $0x170] sm:$0xf]
      %v362 = vld [vmem:[%s215 + $0x174] sm:$0xf]
      %v363 = vld [vmem:[%s215 + $0x178] sm:$0xf]
      %v364 = vld [vmem:[%s215 + $0x17c] sm:$0xf]
      %v365 = vld [vmem:[%s215 + $0x180] sm:$0xf]
      %v366 = vld [vmem:[%s215 + $0x184] sm:$0xf]
      %v367 = vld [vmem:[%s215 + $0x188] sm:$0xf]
      %v368 = vld [vmem:[%s215 + $0x18c] sm:$0xf]
      %v369 = vld [vmem:[%s215 + $0x190] sm:$0xf]
      %v370 = vld [vmem:[%s215 + $0x194] sm:$0xf]
      %v371 = vld [vmem:[%s215 + $0x198] sm:$0xf]
      %v372 = vld [vmem:[%s215 + $0x19c] sm:$0xf]
      %v373 = vld [vmem:[%s215 + $0x1a0] sm:$0xf]
      %v374 = vld [vmem:[%s215 + $0x1a4] sm:$0xf]
      %v375 = vld [vmem:[%s215 + $0x1a8] sm:$0xf]
      %v376 = vld [vmem:[%s215 + $0x1ac] sm:$0xf]
      %v377 = vld [vmem:[%s215 + $0x1b0] sm:$0xf]
      %v378 = vld [vmem:[%s215 + $0x1b4] sm:$0xf]
      %v379 = vld [vmem:[%s215 + $0x1b8] sm:$0xf]
      %v380 = vld [vmem:[%s215 + $0x1bc] sm:$0xf]
      %v381 = vld [vmem:[%s215 + $0x1c0] sm:$0xf]
      %v382 = vld [vmem:[%s215 + $0x1c4] sm:$0xf]
      %v383 = vld [vmem:[%s215 + $0x1c8] sm:$0xf]
      %v384 = vld [vmem:[%s215 + $0x1cc] sm:$0xf]
      %v385 = vld [vmem:[%s215 + $0x1d0] sm:$0xf]
      %v386 = vld [vmem:[%s215 + $0x1d4] sm:$0xf]
      %v387 = vld [vmem:[%s215 + $0x1d8] sm:$0xf]
      %v388 = vld [vmem:[%s215 + $0x1dc] sm:$0xf]
      %v389 = vld [vmem:[%s215 + $0x1e0] sm:$0xf]
      %v390 = vld [vmem:[%s215 + $0x1e4] sm:$0xf]
      %v391 = vld [vmem:[%s215 + $0x1e8] sm:$0xf]
      %v392 = vld [vmem:[%s215 + $0x1ec] sm:$0xf]
      %v393 = vld [vmem:[%s215 + $0x1f0] sm:$0xf]
      %v394 = vld [vmem:[%s215 + $0x1f4] sm:$0xf]
      %v395 = vld [vmem:[%s215 + $0x1f8] sm:$0xf]
      %v396 = vld [vmem:[%s215 + $0x1fc] sm:$0xf]
      %v397 = vld [vmem:[%s215 + $0x200] sm:$0xf]
      %v398 = vld [vmem:[%s215 + $0x204] sm:$0xf]
      %v399 = vld [vmem:[%s215 + $0x208] sm:$0xf]
      %v400 = vld [vmem:[%s215 + $0x20c] sm:$0xf]
      %v401 = vld [vmem:[%s215 + $0x210] sm:$0xf]
      %v402 = vld [vmem:[%s215 + $0x214] sm:$0xf]
      %v403 = vld [vmem:[%s215 + $0x218] sm:$0xf]
      %v404 = vld [vmem:[%s215 + $0x21c] sm:$0xf]
      %v405 = vld [vmem:[%s215 + $0x220] sm:$0xf]
      %v406 = vld [vmem:[%s215 + $0x224] sm:$0xf]
      %v407 = vld [vmem:[%s215 + $0x228] sm:$0xf]
      %v408 = vld [vmem:[%s215 + $0x22c] sm:$0xf]
      %v409 = vld [vmem:[%s215 + $0x230] sm:$0xf]
      %v410 = vld [vmem:[%s215 + $0x234] sm:$0xf]
      %v411 = vld [vmem:[%s215 + $0x238] sm:$0xf]
      %v412 = vld [vmem:[%s215 + $0x23c] sm:$0xf]
      %v413 = vld [vmem:[%s218] sm:$0x1]
      %v415 = vlaneseq
      %v416 = vshrl.u32 %v415, 7
      %v417 = vsub.s32 0, %v416
      %v418 = vrot.slane %v413, %v417
      %v460 = vunpack.c.l.b16 %v229
      %v461 = vunpack.c.h.b16 %v229
      %v462 = vunpack.c.l.b16 %v230
      %v463 = vunpack.c.h.b16 %v230
      %v464 = vunpack.c.l.b16 %v231
      %v465 = vunpack.c.h.b16 %v231
      %v466 = vunpack.c.l.b16 %v232
      %v467 = vunpack.c.h.b16 %v232
      %v468 = vunpack.c.l.b16 %v233
      %v469 = vunpack.c.l.b16 %v234
      %v470 = vunpack.c.h.b16 %v234
      %v471 = vunpack.c.l.b16 %v235
      %v472 = vunpack.c.h.b16 %v235
      %v473 = vunpack.c.l.b16 %v236
      %v474 = vunpack.c.h.b16 %v236
      %v475 = vunpack.c.l.b16 %v237
      %v476 = vunpack.c.h.b16 %v237
      %v477 = vunpack.c.l.b16 %v238
      %v478 = vunpack.c.l.b16 %v239
      %v479 = vunpack.c.h.b16 %v239
      %v480 = vunpack.c.l.b16 %v240
      %v481 = vunpack.c.h.b16 %v240
      %v482 = vunpack.c.l.b16 %v241
      %v483 = vunpack.c.h.b16 %v241
      %v484 = vunpack.c.l.b16 %v242
      %v485 = vunpack.c.h.b16 %v242
      %v486 = vunpack.c.l.b16 %v243
      %v487 = vunpack.c.l.b16 %v244
      %v488 = vunpack.c.h.b16 %v244
      %v489 = vunpack.c.l.b16 %v245
      %v490 = vunpack.c.h.b16 %v245
      %v491 = vunpack.c.l.b16 %v246
      %v492 = vunpack.c.h.b16 %v246
      %v493 = vunpack.c.l.b16 %v247
      %v494 = vunpack.c.h.b16 %v247
      %v495 = vunpack.c.l.b16 %v248
      %v496 = vunpack.c.l.b16 %v249
      %v497 = vunpack.c.h.b16 %v249
      %v498 = vunpack.c.l.b16 %v250
      %v499 = vunpack.c.h.b16 %v250
      %v500 = vunpack.c.l.b16 %v251
      %v501 = vunpack.c.h.b16 %v251
      %v502 = vunpack.c.l.b16 %v252
      %v503 = vunpack.c.h.b16 %v252
      %v504 = vunpack.c.l.b16 %v253
      %v505 = vunpack.c.l.b16 %v254
      %v506 = vunpack.c.h.b16 %v254
      %v507 = vunpack.c.l.b16 %v255
      %v508 = vunpack.c.h.b16 %v255
      %v509 = vunpack.c.l.b16 %v256
      %v510 = vunpack.c.h.b16 %v256
      %v511 = vunpack.c.l.b16 %v257
      %v512 = vunpack.c.h.b16 %v257
      %v513 = vunpack.c.l.b16 %v258
      %v514 = vunpack.c.l.b16 %v259
      %v515 = vunpack.c.h.b16 %v259
      %v516 = vunpack.c.l.b16 %v260
      %v517 = vunpack.c.h.b16 %v260
      %v518 = vunpack.c.l.b16 %v261
      %v519 = vunpack.c.h.b16 %v261
      %v520 = vunpack.c.l.b16 %v262
      %v521 = vunpack.c.h.b16 %v262
      %v522 = vunpack.c.l.b16 %v263
      %v523 = vunpack.c.l.b16 %v264
      %v524 = vunpack.c.h.b16 %v264
      %v525 = vunpack.c.l.b16 %v265
      %v526 = vunpack.c.h.b16 %v265
      %v527 = vunpack.c.l.b16 %v266
      %v528 = vunpack.c.h.b16 %v266
      %v529 = vunpack.c.l.b16 %v267
      %v530 = vunpack.c.h.b16 %v267
      %v531 = vunpack.c.l.b16 %v268
      %v532 = vpack.c.b16 %v469, %v460
      %v533 = vpack.c.b16 %v470, %v461
      %v534 = vpack.c.b16 %v471, %v462
      %v535 = vpack.c.b16 %v472, %v463
      %v536 = vpack.c.b16 %v473, %v464
      %v537 = vpack.c.b16 %v474, %v465
      %v538 = vpack.c.b16 %v475, %v466
      %v539 = vpack.c.b16 %v476, %v467
      %v540 = vpack.c.b16 %v477, %v468
      %v541 = vpack.c.b16 %v487, %v478
      %v542 = vpack.c.b16 %v488, %v479
      %v543 = vpack.c.b16 %v489, %v480
      %v544 = vpack.c.b16 %v490, %v481
      %v545 = vpack.c.b16 %v491, %v482
      %v546 = vpack.c.b16 %v492, %v483
      %v547 = vpack.c.b16 %v493, %v484
      %v548 = vpack.c.b16 %v494, %v485
      %v549 = vpack.c.b16 %v495, %v486
      %v550 = vpack.c.b16 %v505, %v496
      %v551 = vpack.c.b16 %v506, %v497
      %v552 = vpack.c.b16 %v507, %v498
      %v553 = vpack.c.b16 %v508, %v499
      %v554 = vpack.c.b16 %v509, %v500
      %v555 = vpack.c.b16 %v510, %v501
      %v556 = vpack.c.b16 %v511, %v502
      %v557 = vpack.c.b16 %v512, %v503
      %v558 = vpack.c.b16 %v513, %v504
      %v559 = vpack.c.b16 %v523, %v514
      %v560 = vpack.c.b16 %v524, %v515
      %v561 = vpack.c.b16 %v525, %v516
      %v562 = vpack.c.b16 %v526, %v517
      %v563 = vpack.c.b16 %v527, %v518
      %v564 = vpack.c.b16 %v528, %v519
      %v565 = vpack.c.b16 %v529, %v520
      %v566 = vpack.c.b16 %v530, %v521
      %v567 = vpack.c.b16 %v531, %v522
      %v748 = vunpack.c.l.b16 %v269
      %v749 = vunpack.c.l.b16 %v270
      %v750 = vunpack.c.l.b16 %v271
      %v751 = vunpack.c.l.b16 %v272
      %v752 = vunpack.c.l.b16 %v273
      %v753 = vunpack.c.l.b16 %v274
      %v754 = vunpack.c.l.b16 %v275
      %v755 = vunpack.c.l.b16 %v276
      %v756 = vunpack.c.l.b16 %v277
      %v757 = vunpack.c.l.b16 %v278
      %v758 = vunpack.c.l.b16 %v279
      %v759 = vunpack.c.l.b16 %v280
      %v760 = vunpack.c.l.b16 %v281
      %v761 = vunpack.c.l.b16 %v282
      %v762 = vunpack.c.l.b16 %v283
      %v763 = vunpack.c.l.b16 %v284
      %v764 = vunpack.c.l.b16 %v285
      %v765 = vunpack.c.l.b16 %v286
      %v766 = vunpack.c.l.b16 %v287
      %v767 = vunpack.c.l.b16 %v288
      %v768 = vunpack.c.l.b16 %v289
      %v769 = vunpack.c.l.b16 %v290
      %v770 = vunpack.c.l.b16 %v291
      %v771 = vunpack.c.l.b16 %v292
      %v772 = vunpack.c.l.b16 %v293
      %v773 = vunpack.c.l.b16 %v294
      %v774 = vunpack.c.l.b16 %v295
      %v775 = vunpack.c.l.b16 %v296
      %v776 = vunpack.c.l.b16 %v297
      %v777 = vunpack.c.l.b16 %v298
      %v778 = vunpack.c.l.b16 %v299
      %v779 = vunpack.c.l.b16 %v300
      %v780 = vunpack.c.l.b16 %v301
      %v781 = vunpack.c.l.b16 %v302
      %v782 = vunpack.c.l.b16 %v303
      %v783 = vunpack.c.l.b16 %v304
      %v784 = vunpack.c.l.b16 %v305
      %v785 = vunpack.c.l.b16 %v306
      %v786 = vunpack.c.l.b16 %v307
      %v787 = vunpack.c.l.b16 %v308
      %v788 = vunpack.c.l.b16 %v309
      %v789 = vunpack.c.l.b16 %v310
      %v790 = vunpack.c.l.b16 %v311
      %v791 = vunpack.c.l.b16 %v312
      %v792 = vunpack.c.l.b16 %v313
      %v793 = vunpack.c.l.b16 %v314
      %v794 = vunpack.c.l.b16 %v315
      %v795 = vunpack.c.l.b16 %v316
      %v796 = vunpack.c.l.b16 %v317
      %v797 = vunpack.c.l.b16 %v318
      %v798 = vunpack.c.l.b16 %v319
      %v799 = vunpack.c.l.b16 %v320
      %v800 = vunpack.c.l.b16 %v321
      %v801 = vunpack.c.l.b16 %v322
      %v802 = vunpack.c.l.b16 %v323
      %v803 = vunpack.c.l.b16 %v324
      %v804 = vunpack.c.l.b16 %v325
      %v805 = vunpack.c.l.b16 %v326
      %v806 = vunpack.c.l.b16 %v327
      %v807 = vunpack.c.l.b16 %v328
      %v808 = vunpack.c.l.b16 %v329
      %v809 = vunpack.c.l.b16 %v330
      %v810 = vunpack.c.l.b16 %v331
      %v811 = vunpack.c.l.b16 %v332
      %v812 = vunpack.c.l.b16 %v333
      %v813 = vunpack.c.l.b16 %v334
      %v814 = vunpack.c.l.b16 %v335
      %v815 = vunpack.c.l.b16 %v336
      %v816 = vunpack.c.l.b16 %v337
      %v817 = vunpack.c.l.b16 %v338
      %v818 = vunpack.c.l.b16 %v339
      %v819 = vunpack.c.l.b16 %v340
      %v820 = vunpack.c.l.b16 %v341
      %v821 = vunpack.c.l.b16 %v342
      %v822 = vunpack.c.l.b16 %v343
      %v823 = vunpack.c.l.b16 %v344
      %v824 = vunpack.c.l.b16 %v345
      %v825 = vunpack.c.l.b16 %v346
      %v826 = vunpack.c.l.b16 %v347
      %v827 = vunpack.c.l.b16 %v348
      %v828 = vunpack.c.l.b16 %v349
      %v829 = vunpack.c.l.b16 %v350
      %v830 = vunpack.c.l.b16 %v351
      %v831 = vunpack.c.l.b16 %v352
      %v832 = vunpack.c.l.b16 %v353
      %v833 = vunpack.c.l.b16 %v354
      %v834 = vunpack.c.l.b16 %v355
      %v835 = vunpack.c.l.b16 %v356
      %v836 = vunpack.c.l.b16 %v357
      %v837 = vunpack.c.l.b16 %v358
      %v838 = vunpack.c.l.b16 %v359
      %v839 = vunpack.c.l.b16 %v360
      %v840 = vunpack.c.l.b16 %v361
      %v841 = vunpack.c.l.b16 %v362
      %v842 = vunpack.c.l.b16 %v363
      %v843 = vunpack.c.l.b16 %v364
      %v844 = vunpack.c.l.b16 %v365
      %v845 = vunpack.c.l.b16 %v366
      %v846 = vunpack.c.l.b16 %v367
      %v847 = vunpack.c.l.b16 %v368
      %v848 = vunpack.c.l.b16 %v369
      %v849 = vunpack.c.l.b16 %v370
      %v850 = vunpack.c.l.b16 %v371
      %v851 = vunpack.c.l.b16 %v372
      %v852 = vunpack.c.l.b16 %v373
      %v853 = vunpack.c.l.b16 %v374
      %v854 = vunpack.c.l.b16 %v375
      %v855 = vunpack.c.l.b16 %v376
      %v856 = vunpack.c.l.b16 %v377
      %v857 = vunpack.c.l.b16 %v378
      %v858 = vunpack.c.l.b16 %v379
      %v859 = vunpack.c.l.b16 %v380
      %v860 = vunpack.c.l.b16 %v381
      %v861 = vunpack.c.l.b16 %v382
      %v862 = vunpack.c.l.b16 %v383
      %v863 = vunpack.c.l.b16 %v384
      %v864 = vunpack.c.l.b16 %v385
      %v865 = vunpack.c.l.b16 %v386
      %v866 = vunpack.c.l.b16 %v387
      %v867 = vunpack.c.l.b16 %v388
      %v868 = vunpack.c.l.b16 %v389
      %v869 = vunpack.c.l.b16 %v390
      %v870 = vunpack.c.l.b16 %v391
      %v871 = vunpack.c.l.b16 %v392
      %v872 = vunpack.c.l.b16 %v393
      %v873 = vunpack.c.l.b16 %v394
      %v874 = vunpack.c.l.b16 %v395
      %v875 = vunpack.c.l.b16 %v396
      %v876 = vunpack.c.l.b16 %v397
      %v877 = vunpack.c.l.b16 %v398
      %v878 = vunpack.c.l.b16 %v399
      %v879 = vunpack.c.l.b16 %v400
      %v880 = vunpack.c.l.b16 %v401
      %v881 = vunpack.c.l.b16 %v402
      %v882 = vunpack.c.l.b16 %v403
      %v883 = vunpack.c.l.b16 %v404
      %v884 = vunpack.c.l.b16 %v405
      %v885 = vunpack.c.l.b16 %v406
      %v886 = vunpack.c.l.b16 %v407
      %v887 = vunpack.c.l.b16 %v408
      %v888 = vunpack.c.l.b16 %v409
      %v889 = vunpack.c.l.b16 %v410
      %v890 = vunpack.c.l.b16 %v411
      %v891 = vunpack.c.l.b16 %v412
      %v892 = vpack.c.b16 %v749, %v748
      %v893 = vpack.c.b16 %v751, %v750
      %v894 = vpack.c.b16 %v753, %v752
      %v895 = vpack.c.b16 %v755, %v754
      %v896 = vpack.c.b16 %v757, %v756
      %v897 = vpack.c.b16 %v759, %v758
      %v898 = vpack.c.b16 %v761, %v760
      %v899 = vpack.c.b16 %v763, %v762
      %v900 = vpack.c.b16 %v765, %v764
      %v901 = vpack.c.b16 %v767, %v766
      %v902 = vpack.c.b16 %v769, %v768
      %v903 = vpack.c.b16 %v771, %v770
      %v904 = vpack.c.b16 %v773, %v772
      %v905 = vpack.c.b16 %v775, %v774
      %v906 = vpack.c.b16 %v777, %v776
      %v907 = vpack.c.b16 %v779, %v778
      %v908 = vpack.c.b16 %v781, %v780
      %v909 = vpack.c.b16 %v783, %v782
      %v910 = vpack.c.b16 %v785, %v784
      %v911 = vpack.c.b16 %v787, %v786
      %v912 = vpack.c.b16 %v789, %v788
      %v913 = vpack.c.b16 %v791, %v790
      %v914 = vpack.c.b16 %v793, %v792
      %v915 = vpack.c.b16 %v795, %v794
      %v916 = vpack.c.b16 %v797, %v796
      %v917 = vpack.c.b16 %v799, %v798
      %v918 = vpack.c.b16 %v801, %v800
      %v919 = vpack.c.b16 %v803, %v802
      %v920 = vpack.c.b16 %v805, %v804
      %v921 = vpack.c.b16 %v807, %v806
      %v922 = vpack.c.b16 %v809, %v808
      %v923 = vpack.c.b16 %v811, %v810
      %v924 = vpack.c.b16 %v813, %v812
      %v925 = vpack.c.b16 %v815, %v814
      %v926 = vpack.c.b16 %v817, %v816
      %v927 = vpack.c.b16 %v819, %v818
      %v928 = vpack.c.b16 %v821, %v820
      %v929 = vpack.c.b16 %v823, %v822
      %v930 = vpack.c.b16 %v825, %v824
      %v931 = vpack.c.b16 %v827, %v826
      %v932 = vpack.c.b16 %v829, %v828
      %v933 = vpack.c.b16 %v831, %v830
      %v934 = vpack.c.b16 %v833, %v832
      %v935 = vpack.c.b16 %v835, %v834
      %v936 = vpack.c.b16 %v837, %v836
      %v937 = vpack.c.b16 %v839, %v838
      %v938 = vpack.c.b16 %v841, %v840
      %v939 = vpack.c.b16 %v843, %v842
      %v940 = vpack.c.b16 %v845, %v844
      %v941 = vpack.c.b16 %v847, %v846
      %v942 = vpack.c.b16 %v849, %v848
      %v943 = vpack.c.b16 %v851, %v850
      %v944 = vpack.c.b16 %v853, %v852
      %v945 = vpack.c.b16 %v855, %v854
      %v946 = vpack.c.b16 %v857, %v856
      %v947 = vpack.c.b16 %v859, %v858
      %v948 = vpack.c.b16 %v861, %v860
      %v949 = vpack.c.b16 %v863, %v862
      %v950 = vpack.c.b16 %v865, %v864
      %v951 = vpack.c.b16 %v867, %v866
      %v952 = vpack.c.b16 %v869, %v868
      %v953 = vpack.c.b16 %v871, %v870
      %v954 = vpack.c.b16 %v873, %v872
      %v955 = vpack.c.b16 %v875, %v874
      %v956 = vpack.c.b16 %v877, %v876
      %v957 = vpack.c.b16 %v879, %v878
      %v958 = vpack.c.b16 %v881, %v880
      %v959 = vpack.c.b16 %v883, %v882
      %v960 = vpack.c.b16 %v885, %v884
      %v961 = vpack.c.b16 %v887, %v886
      %v962 = vpack.c.b16 %v889, %v888
      %v963 = vpack.c.b16 %v891, %v890
      %1036 = vmatprep.subr.bf16.mxu0 0
      %1037 = vmatpush1.bf16.msra.mxu0 %v892
      %1038 = vmatprep.subr.bf16.mxu0 0
      %1039 = vmatpush1.bf16.msra.mxu0 %v893
      %1040 = vmatprep.subr.bf16.mxu0 0
      %1041 = vmatpush1.bf16.msra.mxu0 %v894
      %1042 = vmatprep.subr.bf16.mxu0 0
      %1043 = vmatpush1.bf16.msra.mxu0 %v895
      %1044 = vmatprep.subr.bf16.mxu0 0
      %1045 = vmatpush1.bf16.msra.mxu0 %v896
      %1046 = vmatprep.subr.bf16.mxu0 0
      %1047 = vmatpush1.bf16.msra.mxu0 %v897
      %1048 = vmatprep.subr.bf16.mxu0 0
      %1049 = vmatpush1.bf16.msra.mxu0 %v898
      %1050 = vmatprep.subr.bf16.mxu0 0
      %1051 = vmatpush1.bf16.msra.mxu0 %v899
      %1052 = vmatprep.subr.bf16.mxu0 0
      %1053 = vmatpush1.bf16.msra.mxu0 %v900
      %1054 = vmatprep.subr.bf16.mxu0 0
      %1055 = vmatpush1.bf16.msra.mxu0 %v901
      %1056 = vmatprep.subr.bf16.mxu0 0
      %1057 = vmatpush1.bf16.msra.mxu0 %v902
      %1058 = vmatprep.subr.bf16.mxu0 0
      %1059 = vmatpush1.bf16.msra.mxu0 %v903
      %1060 = vmatprep.subr.bf16.mxu0 0
      %1061 = vmatpush1.bf16.msra.mxu0 %v904
      %1062 = vmatprep.subr.bf16.mxu0 0
      %1063 = vmatpush1.bf16.msra.mxu0 %v905
      %1064 = vmatprep.subr.bf16.mxu0 0
      %1065 = vmatpush1.bf16.msra.mxu0 %v906
      %1066 = vmatprep.subr.bf16.mxu0 0
      %1067 = vmatpush1.bf16.msra.mxu0 %v907
      %1068 = vmatprep.mubr.bf16.mxu0 %v533
      %1069 = vmatmul.mubr.bf16.gmra.mrb[0].mxu0 %v532
      %v1070 = vpop.f32.mrb[0].mxu0
      %v1071 = vadd.f32 %v418, %v1070
      %v1072 = vpop.f32.mrb[0].mxu0
      %v1073 = vpop.f32.mrb[0].mxu0
      %v1074 = vadd.f32 %v418, %v1073
      %v1075 = vpop.f32.mrb[0].mxu0
      %1076 = vmatprep.mubr.bf16.mxu0 %v542
      %1077 = vmatmul.mubr.bf16.gmra.mrb[0].mxu0 %v541
      %v1078 = vpop.f32.mrb[0].mxu0
      %v1079 = vadd.f32 %v418, %v1078
      %v1080 = vpop.f32.mrb[0].mxu0
      %v1081 = vpop.f32.mrb[0].mxu0
      %v1082 = vadd.f32 %v418, %v1081
      %v1083 = vpop.f32.mrb[0].mxu0
      %1084 = vmatprep.mubr.bf16.mxu0 %v551
      %1085 = vmatmul.mubr.bf16.gmra.mrb[0].mxu0 %v550
      %v1086 = vpop.f32.mrb[0].mxu0
      %v1087 = vadd.f32 %v418, %v1086
      %v1088 = vpop.f32.mrb[0].mxu0
      %v1089 = vpop.f32.mrb[0].mxu0
      %v1090 = vadd.f32 %v418, %v1089
      %v1091 = vpop.f32.mrb[0].mxu0
      %1092 = vmatprep.mubr.bf16.mxu0 %v560
      %1093 = vmatmul.mubr.bf16.gmra.mrb[0].mxu0 %v559
      %v1094 = vpop.f32.mrb[0].mxu0
      %v1095 = vadd.f32 %v418, %v1094
      %v1096 = vpop.f32.mrb[0].mxu0
      %v1097 = vpop.f32.mrb[0].mxu0
      %v1098 = vadd.f32 %v418, %v1097
      %v1099 = vpop.f32.mrb[0].mxu0
      %1100 = vdwg.mxu0
      %1101 = vmatprep.subr.bf16.mxu0 0
      %1102 = vmatpush1.bf16.msra.mxu0 %v908
      %1103 = vmatprep.subr.bf16.mxu0 0
      %1104 = vmatpush1.bf16.msra.mxu0 %v909
      %1105 = vmatprep.subr.bf16.mxu0 0
      %1106 = vmatpush1.bf16.msra.mxu0 %v910
      %1107 = vmatprep.subr.bf16.mxu0 0
      %1108 = vmatpush1.bf16.msra.mxu0 %v911
      %1109 = vmatprep.subr.bf16.mxu0 0
      %1110 = vmatpush1.bf16.msra.mxu0 %v912
      %1111 = vmatprep.subr.bf16.mxu0 0
      %1112 = vmatpush1.bf16.msra.mxu0 %v913
      %1113 = vmatprep.subr.bf16.mxu0 0
      %1114 = vmatpush1.bf16.msra.mxu0 %v914
      %1115 = vmatprep.subr.bf16.mxu0 0
      %1116 = vmatpush1.bf16.msra.mxu0 %v915
      %1117 = vmatprep.subr.bf16.mxu0 0
      %1118 = vmatpush1.bf16.msra.mxu0 %v916
      %1119 = vmatprep.subr.bf16.mxu0 0
      %1120 = vmatpush1.bf16.msra.mxu0 %v917
      %1121 = vmatprep.subr.bf16.mxu0 0
      %1122 = vmatpush1.bf16.msra.mxu0 %v918
      %1123 = vmatprep.subr.bf16.mxu0 0
      %1124 = vmatpush1.bf16.msra.mxu0 %v919
      %1125 = vmatprep.subr.bf16.mxu0 0
      %1126 = vmatpush1.bf16.msra.mxu0 %v920
      %1127 = vmatprep.subr.bf16.mxu0 0
      %1128 = vmatpush1.bf16.msra.mxu0 %v921
      %1129 = vmatprep.subr.bf16.mxu0 0
      %1130 = vmatpush1.bf16.msra.mxu0 %v922
      %1131 = vmatprep.subr.bf16.mxu0 0
      %1132 = vmatpush1.bf16.msra.mxu0 %v923
      %1133 = vmatprep.mubr.bf16.mxu0 %v535
      %1134 = vmatmul.mubr.bf16.gmra.mrb[0].mxu0 %v534
      %v1135 = vpop.f32.mrb[0].mxu0
      %v1136 = vadd.f32 %v1071, %v1135
      %v1137 = vpop.f32.mrb[0].mxu0
      %v1138 = vpop.f32.mrb[0].mxu0
      %v1139 = vadd.f32 %v1074, %v1138
      %v1140 = vpop.f32.mrb[0].mxu0
      %1141 = vmatprep.mubr.bf16.mxu0 %v544
      %1142 = vmatmul.mubr.bf16.gmra.mrb[0].mxu0 %v543
      %v1143 = vpop.f32.mrb[0].mxu0
      %v1144 = vadd.f32 %v1079, %v1143
      %v1145 = vpop.f32.mrb[0].mxu0
      %v1146 = vpop.f32.mrb[0].mxu0
      %v1147 = vadd.f32 %v1082, %v1146
      %v1148 = vpop.f32.mrb[0].mxu0
      %1149 = vmatprep.mubr.bf16.mxu0 %v553
      %1150 = vmatmul.mubr.bf16.gmra.mrb[0].mxu0 %v552
      %v1151 = vpop.f32.mrb[0].mxu0
      %v1152 = vadd.f32 %v1087, %v1151
      %v1153 = vpop.f32.mrb[0].mxu0
      %v1154 = vpop.f32.mrb[0].mxu0
      %v1155 = vadd.f32 %v1090, %v1154
      %v1156 = vpop.f32.mrb[0].mxu0
      %1157 = vmatprep.mubr.bf16.mxu0 %v562
      %1158 = vmatmul.mubr.bf16.gmra.mrb[0].mxu0 %v561
      %v1159 = vpop.f32.mrb[0].mxu0
      %v1160 = vadd.f32 %v1095, %v1159
      %v1161 = vpop.f32.mrb[0].mxu0
      %v1162 = vpop.f32.mrb[0].mxu0
      %v1163 = vadd.f32 %v1098, %v1162
      %v1164 = vpop.f32.mrb[0].mxu0
      %1165 = vdwg.mxu0
      %1166 = vmatprep.subr.bf16.mxu0 0
      %1167 = vmatpush1.bf16.msra.mxu0 %v924
      %1168 = vmatprep.subr.bf16.mxu0 0
      %1169 = vmatpush1.bf16.msra.mxu0 %v925
      %1170 = vmatprep.subr.bf16.mxu0 0
      %1171 = vmatpush1.bf16.msra.mxu0 %v926
      %1172 = vmatprep.subr.bf16.mxu0 0
      %1173 = vmatpush1.bf16.msra.mxu0 %v927
      %1174 = vmatprep.subr.bf16.mxu0 0
      %1175 = vmatpush1.bf16.msra.mxu0 %v928
      %1176 = vmatprep.subr.bf16.mxu0 0
      %1177 = vmatpush1.bf16.msra.mxu0 %v929
      %1178 = vmatprep.subr.bf16.mxu0 0
      %1179 = vmatpush1.bf16.msra.mxu0 %v930
      %1180 = vmatprep.subr.bf16.mxu0 0
      %1181 = vmatpush1.bf16.msra.mxu0 %v931
      %1182 = vmatprep.subr.bf16.mxu0 0
      %1183 = vmatpush1.bf16.msra.mxu0 %v932
      %1184 = vmatprep.subr.bf16.mxu0 0
      %1185 = vmatpush1.bf16.msra.mxu0 %v933
      %1186 = vmatprep.subr.bf16.mxu0 0
      %1187 = vmatpush1.bf16.msra.mxu0 %v934
      %1188 = vmatprep.subr.bf16.mxu0 0
      %1189 = vmatpush1.bf16.msra.mxu0 %v935
      %1190 = vmatprep.subr.bf16.mxu0 0
      %1191 = vmatpush1.bf16.msra.mxu0 %v936
      %1192 = vmatprep.subr.bf16.mxu0 0
      %1193 = vmatpush1.bf16.msra.mxu0 %v937
      %1194 = vmatprep.subr.bf16.mxu0 0
      %1195 = vmatpush1.bf16.msra.mxu0 %v938
      %1196 = vmatprep.subr.bf16.mxu0 0
      %1197 = vmatpush1.bf16.msra.mxu0 %v939
      %1198 = vmatprep.mubr.bf16.mxu0 %v537
      %1199 = vmatmul.mubr.bf16.gmra.mrb[0].mxu0 %v536
      %v1200 = vpop.f32.mrb[0].mxu0
      %v1201 = vadd.f32 %v1136, %v1200
      %v1202 = vpop.f32.mrb[0].mxu0
      %v1203 = vpop.f32.mrb[0].mxu0
      %v1204 = vadd.f32 %v1139, %v1203
      %v1205 = vpop.f32.mrb[0].mxu0
      %1206 = vmatprep.mubr.bf16.mxu0 %v546
      %1207 = vmatmul.mubr.bf16.gmra.mrb[0].mxu0 %v545
      %v1208 = vpop.f32.mrb[0].mxu0
      %v1209 = vadd.f32 %v1144, %v1208
      %v1210 = vpop.f32.mrb[0].mxu0
      %v1211 = vpop.f32.mrb[0].mxu0
      %v1212 = vadd.f32 %v1147, %v1211
      %v1213 = vpop.f32.mrb[0].mxu0
      %1214 = vmatprep.mubr.bf16.mxu0 %v555
      %1215 = vmatmul.mubr.bf16.gmra.mrb[0].mxu0 %v554
      %v1216 = vpop.f32.mrb[0].mxu0
      %v1217 = vadd.f32 %v1152, %v1216
      %v1218 = vpop.f32.mrb[0].mxu0
      %v1219 = vpop.f32.mrb[0].mxu0
      %v1220 = vadd.f32 %v1155, %v1219
      %v1221 = vpop.f32.mrb[0].mxu0
      %1222 = vmatprep.mubr.bf16.mxu0 %v564
      %1223 = vmatmul.mubr.bf16.gmra.mrb[0].mxu0 %v563
      %v1224 = vpop.f32.mrb[0].mxu0
      %v1225 = vadd.f32 %v1160, %v1224
      %v1226 = vpop.f32.mrb[0].mxu0
      %v1227 = vpop.f32.mrb[0].mxu0
      %v1228 = vadd.f32 %v1163, %v1227
      %v1229 = vpop.f32.mrb[0].mxu0
      %1230 = vdwg.mxu0
      %1231 = vmatprep.subr.bf16.mxu0 0
      %1232 = vmatpush1.bf16.msra.mxu0 %v940
      %1233 = vmatprep.subr.bf16.mxu0 0
      %1234 = vmatpush1.bf16.msra.mxu0 %v941
      %1235 = vmatprep.subr.bf16.mxu0 0
      %1236 = vmatpush1.bf16.msra.mxu0 %v942
      %1237 = vmatprep.subr.bf16.mxu0 0
      %1238 = vmatpush1.bf16.msra.mxu0 %v943
      %1239 = vmatprep.subr.bf16.mxu0 0
      %1240 = vmatpush1.bf16.msra.mxu0 %v944
      %1241 = vmatprep.subr.bf16.mxu0 0
      %1242 = vmatpush1.bf16.msra.mxu0 %v945
      %1243 = vmatprep.subr.bf16.mxu0 0
      %1244 = vmatpush1.bf16.msra.mxu0 %v946
      %1245 = vmatprep.subr.bf16.mxu0 0
      %1246 = vmatpush1.bf16.msra.mxu0 %v947
      %1247 = vmatprep.subr.bf16.mxu0 0
      %1248 = vmatpush1.bf16.msra.mxu0 %v948
      %1249 = vmatprep.subr.bf16.mxu0 0
      %1250 = vmatpush1.bf16.msra.mxu0 %v949
      %1251 = vmatprep.subr.bf16.mxu0 0
      %1252 = vmatpush1.bf16.msra.mxu0 %v950
      %1253 = vmatprep.subr.bf16.mxu0 0
      %1254 = vmatpush1.bf16.msra.mxu0 %v951
      %1255 = vmatprep.subr.bf16.mxu0 0
      %1256 = vmatpush1.bf16.msra.mxu0 %v952
      %1257 = vmatprep.subr.bf16.mxu0 0
      %1258 = vmatpush1.bf16.msra.mxu0 %v953
      %1259 = vmatprep.subr.bf16.mxu0 0
      %1260 = vmatpush1.bf16.msra.mxu0 %v954
      %1261 = vmatprep.subr.bf16.mxu0 0
      %1262 = vmatpush1.bf16.msra.mxu0 %v955
      %1263 = vmatprep.mubr.bf16.mxu0 %v539
      %1264 = vmatmul.mubr.bf16.gmra.mrb[0].mxu0 %v538
      %v1265 = vpop.f32.mrb[0].mxu0
      %v1266 = vadd.f32 %v1201, %v1265
      %v1267 = vpop.f32.mrb[0].mxu0
      %v1268 = vpop.f32.mrb[0].mxu0
      %v1269 = vadd.f32 %v1204, %v1268
      %v1270 = vpop.f32.mrb[0].mxu0
      %1271 = vmatprep.mubr.bf16.mxu0 %v548
      %1272 = vmatmul.mubr.bf16.gmra.mrb[0].mxu0 %v547
      %v1273 = vpop.f32.mrb[0].mxu0
      %v1274 = vadd.f32 %v1209, %v1273
      %v1275 = vpop.f32.mrb[0].mxu0
      %v1276 = vpop.f32.mrb[0].mxu0
      %v1277 = vadd.f32 %v1212, %v1276
      %v1278 = vpop.f32.mrb[0].mxu0
      %1279 = vmatprep.mubr.bf16.mxu0 %v557
      %1280 = vmatmul.mubr.bf16.gmra.mrb[0].mxu0 %v556
      %v1281 = vpop.f32.mrb[0].mxu0
      %v1282 = vadd.f32 %v1217, %v1281
      %v1283 = vpop.f32.mrb[0].mxu0
      %v1284 = vpop.f32.mrb[0].mxu0
      %v1285 = vadd.f32 %v1220, %v1284
      %v1286 = vpop.f32.mrb[0].mxu0
      %1287 = vmatprep.mubr.bf16.mxu0 %v566
      %1288 = vmatmul.mubr.bf16.gmra.mrb[0].mxu0 %v565
      %v1289 = vpop.f32.mrb[0].mxu0
      %v1290 = vadd.f32 %v1225, %v1289
      %v1291 = vpop.f32.mrb[0].mxu0
      %v1292 = vpop.f32.mrb[0].mxu0
      %v1293 = vadd.f32 %v1228, %v1292
      %v1294 = vpop.f32.mrb[0].mxu0
      %1295 = vdwg.mxu0
      %1296 = vmatprep.subr.bf16.mxu0 0
      %1297 = vmatpush1.bf16.msra.mxu0 %v956
      %1298 = vmatprep.subr.bf16.mxu0 0
      %1299 = vmatpush1.bf16.msra.mxu0 %v957
      %1300 = vmatprep.subr.bf16.mxu0 0
      %1301 = vmatpush1.bf16.msra.mxu0 %v958
      %1302 = vmatprep.subr.bf16.mxu0 0
      %1303 = vmatpush1.bf16.msra.mxu0 %v959
      %1304 = vmatprep.subr.bf16.mxu0 0
      %1305 = vmatpush1.bf16.msra.mxu0 %v960
      %1306 = vmatprep.subr.bf16.mxu0 0
      %1307 = vmatpush1.bf16.msra.mxu0 %v961
      %1308 = vmatprep.subr.bf16.mxu0 0
      %1309 = vmatpush1.bf16.msra.mxu0 %v962
      %1310 = vmatprep.subr.bf16.mxu0 0
      %1311 = vmatpush1.bf16.msra.mxu0 %v963
      %1312 = vmatprep.subr.bf16.mxu0 0
      %1313 = vmatpush1.bf16.msra.mxu0 0
      %1314 = vmatprep.subr.bf16.mxu0 0
      %1315 = vmatpush1.bf16.msra.mxu0 0
      %1316 = vmatprep.subr.bf16.mxu0 0
      %1317 = vmatpush1.bf16.msra.mxu0 0
      %1318 = vmatprep.subr.bf16.mxu0 0
      %1319 = vmatpush1.bf16.msra.mxu0 0
      %1320 = vmatprep.subr.bf16.mxu0 0
      %1321 = vmatpush1.bf16.msra.mxu0 0
      %1322 = vmatprep.subr.bf16.mxu0 0
      %1323 = vmatpush1.bf16.msra.mxu0 0
      %1324 = vmatprep.subr.bf16.mxu0 0
      %1325 = vmatpush1.bf16.msra.mxu0 0
      %1326 = vmatprep.subr.bf16.mxu0 0
      %1327 = vmatpush1.bf16.msra.mxu0 0
      %1328 = vmatprep.mubr.bf16.mxu0 0
      %1329 = vmatmul.mubr.bf16.gmra.mrb[0].mxu0 %v540
      %v1330 = vpop.f32.mrb[0].mxu0
      %v1331 = vadd.f32 %v1266, %v1330
      %v1332 = vpop.f32.mrb[0].mxu0
      %v1333 = vpop.f32.mrb[0].mxu0
      %v1334 = vadd.f32 %v1269, %v1333
      %v1335 = vpop.f32.mrb[0].mxu0
      %1336 = vmatprep.mubr.bf16.mxu0 0
      %1337 = vmatmul.mubr.bf16.gmra.mrb[0].mxu0 %v549
      %v1338 = vpop.f32.mrb[0].mxu0
      %v1339 = vadd.f32 %v1274, %v1338
      %v1340 = vpop.f32.mrb[0].mxu0
      %v1341 = vpop.f32.mrb[0].mxu0
      %v1342 = vadd.f32 %v1277, %v1341
      %v1343 = vpop.f32.mrb[0].mxu0
      %1344 = vmatprep.mubr.bf16.mxu0 0
      %1345 = vmatmul.mubr.bf16.gmra.mrb[0].mxu0 %v558
      %v1346 = vpop.f32.mrb[0].mxu0
      %v1347 = vadd.f32 %v1282, %v1346
      %v1348 = vpop.f32.mrb[0].mxu0
      %v1349 = vpop.f32.mrb[0].mxu0
      %v1350 = vadd.f32 %v1285, %v1349
      %v1351 = vpop.f32.mrb[0].mxu0
      %1352 = vmatprep.mubr.bf16.mxu0 0
      %1353 = vmatmul.mubr.bf16.gmra.mrb[0].mxu0 %v567
      %v1354 = vpop.f32.mrb[0].mxu0
      %v1355 = vadd.f32 %v1290, %v1354
      %v1356 = vpop.f32.mrb[0].mxu0
      %v1357 = vpop.f32.mrb[0].mxu0
      %v1358 = vadd.f32 %v1293, %v1357
      %v1359 = vpop.f32.mrb[0].mxu0
      %1360 = vdwg.mxu0
      %v1361 = vmul.f32 %v1331, 0.2
      %v1362 = vmul.f32 %v1334, 0.2
      %v1363 = vmul.f32 %v1339, 0.2
      %v1364 = vmul.f32 %v1342, 0.2
      %v1365 = vmul.f32 %v1347, 0.2
      %v1366 = vmul.f32 %v1350, 0.2
      %v1367 = vmul.f32 %v1355, 0.2
      %v1368 = vmul.f32 %v1358, 0.2
      %v1369 = vmax.f32 %v1331, %v1361
      %v1370 = vmax.f32 %v1334, %v1362
      %v1371 = vmax.f32 %v1339, %v1363
      %v1372 = vmax.f32 %v1342, %v1364
      %v1373 = vmax.f32 %v1347, %v1365
      %v1374 = vmax.f32 %v1350, %v1366
      %v1375 = vmax.f32 %v1355, %v1367
      %v1376 = vmax.f32 %v1358, %v1368
      %v1377 = vpack.c.bf16 %v1370, %v1369
      %v1378 = vpack.c.bf16 %v1372, %v1371
      %v1379 = vpack.c.bf16 %v1374, %v1373
      %v1380 = vpack.c.bf16 %v1376, %v1375
      %v1385 = vunpack.c.l.b16 %v1377
      %v1386 = vunpack.c.h.b16 %v1377
      %v1387 = vunpack.c.l.b16 %v1378
      %v1388 = vunpack.c.h.b16 %v1378
      %v1389 = vunpack.c.l.b16 %v1379
      %v1390 = vunpack.c.h.b16 %v1379
      %v1391 = vunpack.c.l.b16 %v1380
      %v1392 = vunpack.c.h.b16 %v1380
      %v1393 = vpack.c.b16 %v1385, %v1385
      %v1394 = vpack.c.b16 %v1386, %v1386
      %v1395 = vpack.c.b16 %v1387, %v1387
      %v1396 = vpack.c.b16 %v1388, %v1388
      %v1397 = vpack.c.b16 %v1389, %v1389
      %v1398 = vpack.c.b16 %v1390, %v1390
      %v1399 = vpack.c.b16 %v1391, %v1391
      %v1400 = vpack.c.b16 %v1392, %v1392
      %1409 = vst [vmem:[%s226] sm:$0xf] %v1393
      %1410 = vst [vmem:[%s226 + $0x4] sm:$0xf] %v1394
      %1411 = vst [vmem:[%s226 + $0x8] sm:$0xf] %v1395
      %1412 = vst [vmem:[%s226 + $0xc] sm:$0xf] %v1396
      %1413 = vst [vmem:[%s226 + $0x10] sm:$0xf] %v1397
      %1414 = vst [vmem:[%s226 + $0x14] sm:$0xf] %v1398
      %1415 = vst [vmem:[%s226 + $0x18] sm:$0xf] %v1399
      %1416 = vst [vmem:[%s226 + $0x1c] sm:$0xf] %v1400
      %s1417 = smul.u32 8, %s18
      %p1418 = scmp.lt.s32.totalorder %s1417, 15
      %s1419 = scalar_select %p1418, %s1417, 15
      %p1420 = scmp.lt.s32.totalorder %s19, 0
      %s1421 = scalar_select %p1420, %s19, 0
      %s1422 = sadd.s32 %s1421, %s1419
      %s1423 = smul.addr %s1422, 4
      %s1424 = scalar_lea.vmem %s3, %s1423
      // Predicated region
      $region33: #{encoder_forward.7} parent=31 // pred_check
        %p1425 = pneg %p124
      $region34: #{encoder_forward.7} parent=31 // pred_check_branch
        %1427 = sbr.rel (%p1425) target = $region36
      $region35: #{encoder_forward.7} parent=31 // pred_region
        %s1428 = smul.u32 8, %s18
      $region36: #{encoder_forward.7} parent=31 // pred_fallthru
        _
    $region32: #{encoder_forward.7} parent=5 // pred_fallthru
      _
    %p1429 = scmp.le.s32.totalorder 2, %s9
    // Predicated region
    $region37: #{encoder_forward.7} parent=5 // pred_check
      %p1430 = pneg %p1429
    $region38: #{encoder_forward.7} parent=5 // pred_check_branch
      %1432 = sbr.rel (%p1430) target = $region40
    $region39: #{encoder_forward.7} parent=5 // pred_region
      %s1433 = ssub.s32 %s9, 2
      // Predicated region
      $region41: #{encoder_forward.7} parent=39 // pred_check
        %p1434 = pneg %p130
      $region42: #{encoder_forward.7} parent=39 // pred_check_branch
        %1436 = sbr.rel (%p1434) target = $region44
      $region43: #{encoder_forward.7} parent=39 // pred_region
        %s1437 = smul.u32 8, %s20
        %p1438 = scmp.lt.s32.totalorder %s1437, 15
        %s1439 = scalar_select %p1438, %s1437, 15
        %p1440 = scmp.lt.s32.totalorder %s21, 0
        %s1441 = scalar_select %p1440, %s21, 0
        %s1442 = sadd.s32 %s1441, %s1439
        %s1443 = smul.addr %s1442, 4
        %s1444 = scalar_lea.vmem %s3, %s1443
      $region44: #{encoder_forward.7} parent=39 // pred_fallthru
        _
    $region40: #{encoder_forward.7} parent=5 // pred_fallthru
      _
  $region6: #{encoder_forward.7} parent=0 // loop_footer
    %s13 = sadd.s32 1, %s9
  $region7: #{encoder_forward.7} parent=0 // loop_footer_branch
    %8 = sbr.rel target = $region3
  $region8: #{encoder_forward.7} parent=0 // loop_exit
    _

// kernel: encoder_forward.9
$region0: #{encoder_forward.9}
  #allocation0 [shape = 'u32[]', space=smem, size = 0x4, offset = 0x4, fixed_abs, tag = 'smem constant byte address 0x4 - core index']
  #allocation1 [shape = 'u32[144,128]{1,0:T(1,128)}', space=vmem, size = 0x12000, scoped, tag = 'internal scratch']
  %s0 = inlined_call_operand.vmem [shape: bf16[2,4096], index: 0, kind: input, shape index: {}]
  %s1 = inlined_call_operand.vmem [shape: bf16[4096,32], index: 1, kind: input, shape index: {}]
  %s2 = inlined_call_operand.vmem [shape: f32[1,32], index: 2, kind: input, shape index: {}]
  %s3 = inlined_call_operand.hbm [shape: f32[2,32], index: 3, kind: output, shape index: {}]
  %s4 = sld [smem:[#allocation0]]
  $region22: #{encoder_forward.9} parent=0
    _
  %s6 = ssub.s32 1, %s4
  %s7 = scalar_select 0, %s6, %s4
  $region1: #{encoder_forward.9} parent=0
    #allocation2 [shape = 'u8[1024]{0}', space=vmem, size = 0x400, scoped, tag = 'output window, operand 0, single buffered']
    #allocation3 [shape = 's32[1]{0}', space=sflag, size = 0x4, scoped, tag = 'scoped memory for encoder_forward.9']
    %8 = vsyncpa [#allocation3], 0
    // Predicated region
    $region2: #{encoder_forward.9} parent=1 // pred_check
      _
    $region3: #{encoder_forward.9} parent=1 // pred_check_branch
      %10 = sbr.rel (0) target = $region5
    $region4: #{encoder_forward.9} parent=1 // pred_region
      _
    $region5: #{encoder_forward.9} parent=1 // pred_fallthru
      _
    // Predicated region
    $region6: #{encoder_forward.9} parent=1 // pred_check
      _
    $region7: #{encoder_forward.9} parent=1 // pred_check_branch
      %12 = sbr.rel (0) target = $region9
    $region8: #{encoder_forward.9} parent=1 // pred_region
      _
    $region9: #{encoder_forward.9} parent=1 // pred_fallthru
      _
    // Predicated region
    $region10: #{encoder_forward.9} parent=1 // pred_check
      _
    $region11: #{encoder_forward.9} parent=1 // pred_check_branch
      %14 = sbr.rel (0) target = $region13
    $region12: #{encoder_forward.9} parent=1 // pred_region
      _
    $region13: #{encoder_forward.9} parent=1 // pred_fallthru
      _
    %v16 = vld [vmem:[%s0] sm:$0xff]
    %v17 = vld [vmem:[%s0 + $0x8] sm:$0xff]
    %v18 = vld [vmem:[%s0 + $0x10] sm:$0xff]
    %v19 = vld [vmem:[%s0 + $0x18] sm:$0xff]
    %v20 = vld [vmem:[%s1] sm:$0xf]
    %v21 = vld [vmem:[%s1 + $0x4] sm:$0xf]
    %v22 = vld [vmem:[%s1 + $0x8] sm:$0xf]
    %v23 = vld [vmem:[%s1 + $0xc] sm:$0xf]
    %v24 = vld [vmem:[%s1 + $0x10] sm:$0xf]
    %v25 = vld [vmem:[%s1 + $0x14] sm:$0xf]
    %v26 = vld [vmem:[%s1 + $0x18] sm:$0xf]
    %v27 = vld [vmem:[%s1 + $0x1c] sm:$0xf]
    %v28 = vld [vmem:[%s1 + $0x20] sm:$0xf]
    %v29 = vld [vmem:[%s1 + $0x24] sm:$0xf]
    %v30 = vld [vmem:[%s1 + $0x28] sm:$0xf]
    %v31 = vld [vmem:[%s1 + $0x2c] sm:$0xf]
    %v32 = vld [vmem:[%s1 + $0x30] sm:$0xf]
    %v33 = vld [vmem:[%s1 + $0x34] sm:$0xf]
    %v34 = vld [vmem:[%s1 + $0x38] sm:$0xf]
    %v35 = vld [vmem:[%s1 + $0x3c] sm:$0xf]
    %v36 = vld [vmem:[%s1 + $0x40] sm:$0xf]
    %v37 = vld [vmem:[%s1 + $0x44] sm:$0xf]
    %v38 = vld [vmem:[%s1 + $0x48] sm:$0xf]
    %v39 = vld [vmem:[%s1 + $0x4c] sm:$0xf]
    %v40 = vld [vmem:[%s1 + $0x50] sm:$0xf]
    %v41 = vld [vmem:[%s1 + $0x54] sm:$0xf]
    %v42 = vld [vmem:[%s1 + $0x58] sm:$0xf]
    %v43 = vld [vmem:[%s1 + $0x5c] sm:$0xf]
    %v44 = vld [vmem:[%s1 + $0x60] sm:$0xf]
    %v45 = vld [vmem:[%s1 + $0x64] sm:$0xf]
    %v46 = vld [vmem:[%s1 + $0x68] sm:$0xf]
    %v47 = vld [vmem:[%s1 + $0x6c] sm:$0xf]
    %v48 = vld [vmem:[%s1 + $0x70] sm:$0xf]
    %v49 = vld [vmem:[%s1 + $0x74] sm:$0xf]
    %v50 = vld [vmem:[%s1 + $0x78] sm:$0xf]
    %v51 = vld [vmem:[%s1 + $0x7c] sm:$0xf]
    %v52 = vld [vmem:[%s1 + $0x80] sm:$0xf]
    %v53 = vld [vmem:[%s1 + $0x84] sm:$0xf]
    %v54 = vld [vmem:[%s1 + $0x88] sm:$0xf]
    %v55 = vld [vmem:[%s1 + $0x8c] sm:$0xf]
    %v56 = vld [vmem:[%s1 + $0x90] sm:$0xf]
    %v57 = vld [vmem:[%s1 + $0x94] sm:$0xf]
    %v58 = vld [vmem:[%s1 + $0x98] sm:$0xf]
    %v59 = vld [vmem:[%s1 + $0x9c] sm:$0xf]
    %v60 = vld [vmem:[%s1 + $0xa0] sm:$0xf]
    %v61 = vld [vmem:[%s1 + $0xa4] sm:$0xf]
    %v62 = vld [vmem:[%s1 + $0xa8] sm:$0xf]
    %v63 = vld [vmem:[%s1 + $0xac] sm:$0xf]
    %v64 = vld [vmem:[%s1 + $0xb0] sm:$0xf]
    %v65 = vld [vmem:[%s1 + $0xb4] sm:$0xf]
    %v66 = vld [vmem:[%s1 + $0xb8] sm:$0xf]
    %v67 = vld [vmem:[%s1 + $0xbc] sm:$0xf]
    %v68 = vld [vmem:[%s1 + $0xc0] sm:$0xf]
    %v69 = vld [vmem:[%s1 + $0xc4] sm:$0xf]
    %v70 = vld [vmem:[%s1 + $0xc8] sm:$0xf]
    %v71 = vld [vmem:[%s1 + $0xcc] sm:$0xf]
    %v72 = vld [vmem:[%s1 + $0xd0] sm:$0xf]
    %v73 = vld [vmem:[%s1 + $0xd4] sm:$0xf]
    %v74 = vld [vmem:[%s1 + $0xd8] sm:$0xf]
    %v75 = vld [vmem:[%s1 + $0xdc] sm:$0xf]
    %v76 = vld [vmem:[%s1 + $0xe0] sm:$0xf]
    %v77 = vld [vmem:[%s1 + $0xe4] sm:$0xf]
    %v78 = vld [vmem:[%s1 + $0xe8] sm:$0xf]
    %v79 = vld [vmem:[%s1 + $0xec] sm:$0xf]
    %v80 = vld [vmem:[%s1 + $0xf0] sm:$0xf]
    %v81 = vld [vmem:[%s1 + $0xf4] sm:$0xf]
    %v82 = vld [vmem:[%s1 + $0xf8] sm:$0xf]
    %v83 = vld [vmem:[%s1 + $0xfc] sm:$0xf]
    %v84 = vld [vmem:[%s1 + $0x100] sm:$0xf]
    %v85 = vld [vmem:[%s1 + $0x104] sm:$0xf]
    %v86 = vld [vmem:[%s1 + $0x108] sm:$0xf]
    %v87 = vld [vmem:[%s1 + $0x10c] sm:$0xf]
    %v88 = vld [vmem:[%s1 + $0x110] sm:$0xf]
    %v89 = vld [vmem:[%s1 + $0x114] sm:$0xf]
    %v90 = vld [vmem:[%s1 + $0x118] sm:$0xf]
    %v91 = vld [vmem:[%s1 + $0x11c] sm:$0xf]
    %v92 = vld [vmem:[%s1 + $0x120] sm:$0xf]
    %v93 = vld [vmem:[%s1 + $0x124] sm:$0xf]
    %v94 = vld [vmem:[%s1 + $0x128] sm:$0xf]
    %v95 = vld [vmem:[%s1 + $0x12c] sm:$0xf]
    %v96 = vld [vmem:[%s1 + $0x130] sm:$0xf]
    %v97 = vld [vmem:[%s1 + $0x134] sm:$0xf]
    %v98 = vld [vmem:[%s1 + $0x138] sm:$0xf]
    %v99 = vld [vmem:[%s1 + $0x13c] sm:$0xf]
    %v100 = vld [vmem:[%s1 + $0x140] sm:$0xf]
    %v101 = vld [vmem:[%s1 + $0x144] sm:$0xf]
    %v102 = vld [vmem:[%s1 + $0x148] sm:$0xf]
    %v103 = vld [vmem:[%s1 + $0x14c] sm:$0xf]
    %v104 = vld [vmem:[%s1 + $0x150] sm:$0xf]
    %v105 = vld [vmem:[%s1 + $0x154] sm:$0xf]
    %v106 = vld [vmem:[%s1 + $0x158] sm:$0xf]
    %v107 = vld [vmem:[%s1 + $0x15c] sm:$0xf]
    %v108 = vld [vmem:[%s1 + $0x160] sm:$0xf]
    %v109 = vld [vmem:[%s1 + $0x164] sm:$0xf]
    %v110 = vld [vmem:[%s1 + $0x168] sm:$0xf]
    %v111 = vld [vmem:[%s1 + $0x16c] sm:$0xf]
    %v112 = vld [vmem:[%s1 + $0x170] sm:$0xf]
    %v113 = vld [vmem:[%s1 + $0x174] sm:$0xf]
    %v114 = vld [vmem:[%s1 + $0x178] sm:$0xf]
    %v115 = vld [vmem:[%s1 + $0x17c] sm:$0xf]
    %v116 = vld [vmem:[%s1 + $0x180] sm:$0xf]
    %v117 = vld [vmem:[%s1 + $0x184] sm:$0xf]
    %v118 = vld [vmem:[%s1 + $0x188] sm:$0xf]
    %v119 = vld [vmem:[%s1 + $0x18c] sm:$0xf]
    %v120 = vld [vmem:[%s1 + $0x190] sm:$0xf]
    %v121 = vld [vmem:[%s1 + $0x194] sm:$0xf]
    %v122 = vld [vmem:[%s1 + $0x198] sm:$0xf]
    %v123 = vld [vmem:[%s1 + $0x19c] sm:$0xf]
    %v124 = vld [vmem:[%s1 + $0x1a0] sm:$0xf]
    %v125 = vld [vmem:[%s1 + $0x1a4] sm:$0xf]
    %v126 = vld [vmem:[%s1 + $0x1a8] sm:$0xf]
    %v127 = vld [vmem:[%s1 + $0x1ac] sm:$0xf]
    %v128 = vld [vmem:[%s1 + $0x1b0] sm:$0xf]
    %v129 = vld [vmem:[%s1 + $0x1b4] sm:$0xf]
    %v130 = vld [vmem:[%s1 + $0x1b8] sm:$0xf]
    %v131 = vld [vmem:[%s1 + $0x1bc] sm:$0xf]
    %v132 = vld [vmem:[%s1 + $0x1c0] sm:$0xf]
    %v133 = vld [vmem:[%s1 + $0x1c4] sm:$0xf]
    %v134 = vld [vmem:[%s1 + $0x1c8] sm:$0xf]
    %v135 = vld [vmem:[%s1 + $0x1cc] sm:$0xf]
    %v136 = vld [vmem:[%s1 + $0x1d0] sm:$0xf]
    %v137 = vld [vmem:[%s1 + $0x1d4] sm:$0xf]
    %v138 = vld [vmem:[%s1 + $0x1d8] sm:$0xf]
    %v139 = vld [vmem:[%s1 + $0x1dc] sm:$0xf]
    %v140 = vld [vmem:[%s1 + $0x1e0] sm:$0xf]
    %v141 = vld [vmem:[%s1 + $0x1e4] sm:$0xf]
    %v142 = vld [vmem:[%s1 + $0x1e8] sm:$0xf]
    %v143 = vld [vmem:[%s1 + $0x1ec] sm:$0xf]
    %v144 = vld [vmem:[%s1 + $0x1f0] sm:$0xf]
    %v145 = vld [vmem:[%s1 + $0x1f4] sm:$0xf]
    %v146 = vld [vmem:[%s1 + $0x1f8] sm:$0xf]
    %v147 = vld [vmem:[%s1 + $0x1fc] sm:$0xf]
    %v148 = vld [vmem:[%s1 + $0x200] sm:$0xf]
    %v149 = vld [vmem:[%s1 + $0x204] sm:$0xf]
    %v150 = vld [vmem:[%s1 + $0x208] sm:$0xf]
    %v151 = vld [vmem:[%s1 + $0x20c] sm:$0xf]
    %v152 = vld [vmem:[%s1 + $0x210] sm:$0xf]
    %v153 = vld [vmem:[%s1 + $0x214] sm:$0xf]
    %v154 = vld [vmem:[%s1 + $0x218] sm:$0xf]
    %v155 = vld [vmem:[%s1 + $0x21c] sm:$0xf]
    %v156 = vld [vmem:[%s1 + $0x220] sm:$0xf]
    %v157 = vld [vmem:[%s1 + $0x224] sm:$0xf]
    %v158 = vld [vmem:[%s1 + $0x228] sm:$0xf]
    %v159 = vld [vmem:[%s1 + $0x22c] sm:$0xf]
    %v160 = vld [vmem:[%s1 + $0x230] sm:$0xf]
    %v161 = vld [vmem:[%s1 + $0x234] sm:$0xf]
    %v162 = vld [vmem:[%s1 + $0x238] sm:$0xf]
    %v163 = vld [vmem:[%s1 + $0x23c] sm:$0xf]
    %v164 = vld [vmem:[%s1 + $0x240] sm:$0xf]
    %v165 = vld [vmem:[%s1 + $0x244] sm:$0xf]
    %v166 = vld [vmem:[%s1 + $0x248] sm:$0xf]
    %v167 = vld [vmem:[%s1 + $0x24c] sm:$0xf]
    %v168 = vld [vmem:[%s1 + $0x250] sm:$0xf]
    %v169 = vld [vmem:[%s1 + $0x254] sm:$0xf]
    %v170 = vld [vmem:[%s1 + $0x258] sm:$0xf]
    %v171 = vld [vmem:[%s1 + $0x25c] sm:$0xf]
    %v172 = vld [vmem:[%s1 + $0x260] sm:$0xf]
    %v173 = vld [vmem:[%s1 + $0x264] sm:$0xf]
    %v174 = vld [vmem:[%s1 + $0x268] sm:$0xf]
    %v175 = vld [vmem:[%s1 + $0x26c] sm:$0xf]
    %v176 = vld [vmem:[%s1 + $0x270] sm:$0xf]
    %v177 = vld [vmem:[%s1 + $0x274] sm:$0xf]
    %v178 = vld [vmem:[%s1 + $0x278] sm:$0xf]
    %v179 = vld [vmem:[%s1 + $0x27c] sm:$0xf]
    %v180 = vld [vmem:[%s1 + $0x280] sm:$0xf]
    %v181 = vld [vmem:[%s1 + $0x284] sm:$0xf]
    %v182 = vld [vmem:[%s1 + $0x288] sm:$0xf]
    %v183 = vld [vmem:[%s1 + $0x28c] sm:$0xf]
    %v184 = vld [vmem:[%s1 + $0x290] sm:$0xf]
    %v185 = vld [vmem:[%s1 + $0x294] sm:$0xf]
    %v186 = vld [vmem:[%s1 + $0x298] sm:$0xf]
    %v187 = vld [vmem:[%s1 + $0x29c] sm:$0xf]
    %v188 = vld [vmem:[%s1 + $0x2a0] sm:$0xf]
    %v189 = vld [vmem:[%s1 + $0x2a4] sm:$0xf]
    %v190 = vld [vmem:[%s1 + $0x2a8] sm:$0xf]
    %v191 = vld [vmem:[%s1 + $0x2ac] sm:$0xf]
    %v192 = vld [vmem:[%s1 + $0x2b0] sm:$0xf]
    %v193 = vld [vmem:[%s1 + $0x2b4] sm:$0xf]
    %v194 = vld [vmem:[%s1 + $0x2b8] sm:$0xf]
    %v195 = vld [vmem:[%s1 + $0x2bc] sm:$0xf]
    %v196 = vld [vmem:[%s1 + $0x2c0] sm:$0xf]
    %v197 = vld [vmem:[%s1 + $0x2c4] sm:$0xf]
    %v198 = vld [vmem:[%s1 + $0x2c8] sm:$0xf]
    %v199 = vld [vmem:[%s1 + $0x2cc] sm:$0xf]
    %v200 = vld [vmem:[%s1 + $0x2d0] sm:$0xf]
    %v201 = vld [vmem:[%s1 + $0x2d4] sm:$0xf]
    %v202 = vld [vmem:[%s1 + $0x2d8] sm:$0xf]
    %v203 = vld [vmem:[%s1 + $0x2dc] sm:$0xf]
    %v204 = vld [vmem:[%s1 + $0x2e0] sm:$0xf]
    %v205 = vld [vmem:[%s1 + $0x2e4] sm:$0xf]
    %v206 = vld [vmem:[%s1 + $0x2e8] sm:$0xf]
    %v207 = vld [vmem:[%s1 + $0x2ec] sm:$0xf]
    %v208 = vld [vmem:[%s1 + $0x2f0] sm:$0xf]
    %v209 = vld [vmem:[%s1 + $0x2f4] sm:$0xf]
    %v210 = vld [vmem:[%s1 + $0x2f8] sm:$0xf]
    %v211 = vld [vmem:[%s1 + $0x2fc] sm:$0xf]
    %v212 = vld [vmem:[%s1 + $0x300] sm:$0xf]
    %v213 = vld [vmem:[%s1 + $0x304] sm:$0xf]
    %v214 = vld [vmem:[%s1 + $0x308] sm:$0xf]
    %v215 = vld [vmem:[%s1 + $0x30c] sm:$0xf]
    %v216 = vld [vmem:[%s1 + $0x310] sm:$0xf]
    %v217 = vld [vmem:[%s1 + $0x314] sm:$0xf]
    %v218 = vld [vmem:[%s1 + $0x318] sm:$0xf]
    %v219 = vld [vmem:[%s1 + $0x31c] sm:$0xf]
    %v220 = vld [vmem:[%s1 + $0x320] sm:$0xf]
    %v221 = vld [vmem:[%s1 + $0x324] sm:$0xf]
    %v222 = vld [vmem:[%s1 + $0x328] sm:$0xf]
    %v223 = vld [vmem:[%s1 + $0x32c] sm:$0xf]
    %v224 = vld [vmem:[%s1 + $0x330] sm:$0xf]
    %v225 = vld [vmem:[%s1 + $0x334] sm:$0xf]
    %v226 = vld [vmem:[%s1 + $0x338] sm:$0xf]
    %v227 = vld [vmem:[%s1 + $0x33c] sm:$0xf]
    %v228 = vld [vmem:[%s1 + $0x340] sm:$0xf]
    %v229 = vld [vmem:[%s1 + $0x344] sm:$0xf]
    %v230 = vld [vmem:[%s1 + $0x348] sm:$0xf]
    %v231 = vld [vmem:[%s1 + $0x34c] sm:$0xf]
    %v232 = vld [vmem:[%s1 + $0x350] sm:$0xf]
    %v233 = vld [vmem:[%s1 + $0x354] sm:$0xf]
    %v234 = vld [vmem:[%s1 + $0x358] sm:$0xf]
    %v235 = vld [vmem:[%s1 + $0x35c] sm:$0xf]
    %v236 = vld [vmem:[%s1 + $0x360] sm:$0xf]
    %v237 = vld [vmem:[%s1 + $0x364] sm:$0xf]
    %v238 = vld [vmem:[%s1 + $0x368] sm:$0xf]
    %v239 = vld [vmem:[%s1 + $0x36c] sm:$0xf]
    %v240 = vld [vmem:[%s1 + $0x370] sm:$0xf]
    %v241 = vld [vmem:[%s1 + $0x374] sm:$0xf]
    %v242 = vld [vmem:[%s1 + $0x378] sm:$0xf]
    %v243 = vld [vmem:[%s1 + $0x37c] sm:$0xf]
    %v244 = vld [vmem:[%s1 + $0x380] sm:$0xf]
    %v245 = vld [vmem:[%s1 + $0x384] sm:$0xf]
    %v246 = vld [vmem:[%s1 + $0x388] sm:$0xf]
    %v247 = vld [vmem:[%s1 + $0x38c] sm:$0xf]
    %v248 = vld [vmem:[%s1 + $0x390] sm:$0xf]
    %v249 = vld [vmem:[%s1 + $0x394] sm:$0xf]
    %v250 = vld [vmem:[%s1 + $0x398] sm:$0xf]
    %v251 = vld [vmem:[%s1 + $0x39c] sm:$0xf]
    %v252 = vld [vmem:[%s1 + $0x3a0] sm:$0xf]
    %v253 = vld [vmem:[%s1 + $0x3a4] sm:$0xf]
    %v254 = vld [vmem:[%s1 + $0x3a8] sm:$0xf]
    %v255 = vld [vmem:[%s1 + $0x3ac] sm:$0xf]
    %v256 = vld [vmem:[%s1 + $0x3b0] sm:$0xf]
    %v257 = vld [vmem:[%s1 + $0x3b4] sm:$0xf]
    %v258 = vld [vmem:[%s1 + $0x3b8] sm:$0xf]
    %v259 = vld [vmem:[%s1 + $0x3bc] sm:$0xf]
    %v260 = vld [vmem:[%s1 + $0x3c0] sm:$0xf]
    %v261 = vld [vmem:[%s1 + $0x3c4] sm:$0xf]
    %v262 = vld [vmem:[%s1 + $0x3c8] sm:$0xf]
    %v263 = vld [vmem:[%s1 + $0x3cc] sm:$0xf]
    %v264 = vld [vmem:[%s1 + $0x3d0] sm:$0xf]
    %v265 = vld [vmem:[%s1 + $0x3d4] sm:$0xf]
    %v266 = vld [vmem:[%s1 + $0x3d8] sm:$0xf]
    %v267 = vld [vmem:[%s1 + $0x3dc] sm:$0xf]
    %v268 = vld [vmem:[%s1 + $0x3e0] sm:$0xf]
    %v269 = vld [vmem:[%s1 + $0x3e4] sm:$0xf]
    %v270 = vld [vmem:[%s1 + $0x3e8] sm:$0xf]
    %v271 = vld [vmem:[%s1 + $0x3ec] sm:$0xf]
    %v272 = vld [vmem:[%s1 + $0x3f0] sm:$0xf]
    %v273 = vld [vmem:[%s1 + $0x3f4] sm:$0xf]
    %v274 = vld [vmem:[%s1 + $0x3f8] sm:$0xf]
    %v275 = vld [vmem:[%s1 + $0x3fc] sm:$0xf]
    %v276 = vld [vmem:[%s1 + $0x400] sm:$0xf]
    %v277 = vld [vmem:[%s1 + $0x404] sm:$0xf]
    %v278 = vld [vmem:[%s1 + $0x408] sm:$0xf]
    %v279 = vld [vmem:[%s1 + $0x40c] sm:$0xf]
    %v280 = vld [vmem:[%s1 + $0x410] sm:$0xf]
    %v281 = vld [vmem:[%s1 + $0x414] sm:$0xf]
    %v282 = vld [vmem:[%s1 + $0x418] sm:$0xf]
    %v283 = vld [vmem:[%s1 + $0x41c] sm:$0xf]
    %v284 = vld [vmem:[%s1 + $0x420] sm:$0xf]
    %v285 = vld [vmem:[%s1 + $0x424] sm:$0xf]
    %v286 = vld [vmem:[%s1 + $0x428] sm:$0xf]
    %v287 = vld [vmem:[%s1 + $0x42c] sm:$0xf]
    %v288 = vld [vmem:[%s1 + $0x430] sm:$0xf]
    %v289 = vld [vmem:[%s1 + $0x434] sm:$0xf]
    %v290 = vld [vmem:[%s1 + $0x438] sm:$0xf]
    %v291 = vld [vmem:[%s1 + $0x43c] sm:$0xf]
    %v292 = vld [vmem:[%s1 + $0x440] sm:$0xf]
    %v293 = vld [vmem:[%s1 + $0x444] sm:$0xf]
    %v294 = vld [vmem:[%s1 + $0x448] sm:$0xf]
    %v295 = vld [vmem:[%s1 + $0x44c] sm:$0xf]
    %v296 = vld [vmem:[%s1 + $0x450] sm:$0xf]
    %v297 = vld [vmem:[%s1 + $0x454] sm:$0xf]
    %v298 = vld [vmem:[%s1 + $0x458] sm:$0xf]
    %v299 = vld [vmem:[%s1 + $0x45c] sm:$0xf]
    %v300 = vld [vmem:[%s1 + $0x460] sm:$0xf]
    %v301 = vld [vmem:[%s1 + $0x464] sm:$0xf]
    %v302 = vld [vmem:[%s1 + $0x468] sm:$0xf]
    %v303 = vld [vmem:[%s1 + $0x46c] sm:$0xf]
    %v304 = vld [vmem:[%s1 + $0x470] sm:$0xf]
    %v305 = vld [vmem:[%s1 + $0x474] sm:$0xf]
    %v306 = vld [vmem:[%s1 + $0x478] sm:$0xf]
    %v307 = vld [vmem:[%s1 + $0x47c] sm:$0xf]
    %v308 = vld [vmem:[%s1 + $0x480] sm:$0xf]
    %v309 = vld [vmem:[%s1 + $0x484] sm:$0xf]
    %v310 = vld [vmem:[%s1 + $0x488] sm:$0xf]
    %v311 = vld [vmem:[%s1 + $0x48c] sm:$0xf]
    %v312 = vld [vmem:[%s1 + $0x490] sm:$0xf]
    %v313 = vld [vmem:[%s1 + $0x494] sm:$0xf]
    %v314 = vld [vmem:[%s1 + $0x498] sm:$0xf]
    %v315 = vld [vmem:[%s1 + $0x49c] sm:$0xf]
    %v316 = vld [vmem:[%s1 + $0x4a0] sm:$0xf]
    %v317 = vld [vmem:[%s1 + $0x4a4] sm:$0xf]
    %v318 = vld [vmem:[%s1 + $0x4a8] sm:$0xf]
    %v319 = vld [vmem:[%s1 + $0x4ac] sm:$0xf]
    %v320 = vld [vmem:[%s1 + $0x4b0] sm:$0xf]
    %v321 = vld [vmem:[%s1 + $0x4b4] sm:$0xf]
    %v322 = vld [vmem:[%s1 + $0x4b8] sm:$0xf]
    %v323 = vld [vmem:[%s1 + $0x4bc] sm:$0xf]
    %v324 = vld [vmem:[%s1 + $0x4c0] sm:$0xf]
    %v325 = vld [vmem:[%s1 + $0x4c4] sm:$0xf]
    %v326 = vld [vmem:[%s1 + $0x4c8] sm:$0xf]
    %v327 = vld [vmem:[%s1 + $0x4cc] sm:$0xf]
    %v328 = vld [vmem:[%s1 + $0x4d0] sm:$0xf]
    %v329 = vld [vmem:[%s1 + $0x4d4] sm:$0xf]
    %v330 = vld [vmem:[%s1 + $0x4d8] sm:$0xf]
    %v331 = vld [vmem:[%s1 + $0x4dc] sm:$0xf]
    %v332 = vld [vmem:[%s1 + $0x4e0] sm:$0xf]
    %v333 = vld [vmem:[%s1 + $0x4e4] sm:$0xf]
    %v334 = vld [vmem:[%s1 + $0x4e8] sm:$0xf]
    %v335 = vld [vmem:[%s1 + $0x4ec] sm:$0xf]
    %v336 = vld [vmem:[%s1 + $0x4f0] sm:$0xf]
    %v337 = vld [vmem:[%s1 + $0x4f4] sm:$0xf]
    %v338 = vld [vmem:[%s1 + $0x4f8] sm:$0xf]
    %v339 = vld [vmem:[%s1 + $0x4fc] sm:$0xf]
    %v340 = vld [vmem:[%s1 + $0x500] sm:$0xf]
    %v341 = vld [vmem:[%s1 + $0x504] sm:$0xf]
    %v342 = vld [vmem:[%s1 + $0x508] sm:$0xf]
    %v343 = vld [vmem:[%s1 + $0x50c] sm:$0xf]
    %v344 = vld [vmem:[%s1 + $0x510] sm:$0xf]
    %v345 = vld [vmem:[%s1 + $0x514] sm:$0xf]
    %v346 = vld [vmem:[%s1 + $0x518] sm:$0xf]
    %v347 = vld [vmem:[%s1 + $0x51c] sm:$0xf]
    %v348 = vld [vmem:[%s1 + $0x520] sm:$0xf]
    %v349 = vld [vmem:[%s1 + $0x524] sm:$0xf]
    %v350 = vld [vmem:[%s1 + $0x528] sm:$0xf]
    %v351 = vld [vmem:[%s1 + $0x52c] sm:$0xf]
    %v352 = vld [vmem:[%s1 + $0x530] sm:$0xf]
    %v353 = vld [vmem:[%s1 + $0x534] sm:$0xf]
    %v354 = vld [vmem:[%s1 + $0x538] sm:$0xf]
    %v355 = vld [vmem:[%s1 + $0x53c] sm:$0xf]
    %v356 = vld [vmem:[%s1 + $0x540] sm:$0xf]
    %v357 = vld [vmem:[%s1 + $0x544] sm:$0xf]
    %v358 = vld [vmem:[%s1 + $0x548] sm:$0xf]
    %v359 = vld [vmem:[%s1 + $0x54c] sm:$0xf]
    %v360 = vld [vmem:[%s1 + $0x550] sm:$0xf]
    %v361 = vld [vmem:[%s1 + $0x554] sm:$0xf]
    %v362 = vld [vmem:[%s1 + $0x558] sm:$0xf]
    %v363 = vld [vmem:[%s1 + $0x55c] sm:$0xf]
    %v364 = vld [vmem:[%s1 + $0x560] sm:$0xf]
    %v365 = vld [vmem:[%s1 + $0x564] sm:$0xf]
    %v366 = vld [vmem:[%s1 + $0x568] sm:$0xf]
    %v367 = vld [vmem:[%s1 + $0x56c] sm:$0xf]
    %v368 = vld [vmem:[%s1 + $0x570] sm:$0xf]
    %v369 = vld [vmem:[%s1 + $0x574] sm:$0xf]
    %v370 = vld [vmem:[%s1 + $0x578] sm:$0xf]
    %v371 = vld [vmem:[%s1 + $0x57c] sm:$0xf]
    %v372 = vld [vmem:[%s1 + $0x580] sm:$0xf]
    %v373 = vld [vmem:[%s1 + $0x584] sm:$0xf]
    %v374 = vld [vmem:[%s1 + $0x588] sm:$0xf]
    %v375 = vld [vmem:[%s1 + $0x58c] sm:$0xf]
    %v376 = vld [vmem:[%s1 + $0x590] sm:$0xf]
    %v377 = vld [vmem:[%s1 + $0x594] sm:$0xf]
    %v378 = vld [vmem:[%s1 + $0x598] sm:$0xf]
    %v379 = vld [vmem:[%s1 + $0x59c] sm:$0xf]
    %v380 = vld [vmem:[%s1 + $0x5a0] sm:$0xf]
    %v381 = vld [vmem:[%s1 + $0x5a4] sm:$0xf]
    %v382 = vld [vmem:[%s1 + $0x5a8] sm:$0xf]
    %v383 = vld [vmem:[%s1 + $0x5ac] sm:$0xf]
    %v384 = vld [vmem:[%s1 + $0x5b0] sm:$0xf]
    %v385 = vld [vmem:[%s1 + $0x5b4] sm:$0xf]
    %v386 = vld [vmem:[%s1 + $0x5b8] sm:$0xf]
    %v387 = vld [vmem:[%s1 + $0x5bc] sm:$0xf]
    %v388 = vld [vmem:[%s1 + $0x5c0] sm:$0xf]
    %v389 = vld [vmem:[%s1 + $0x5c4] sm:$0xf]
    %v390 = vld [vmem:[%s1 + $0x5c8] sm:$0xf]
    %v391 = vld [vmem:[%s1 + $0x5cc] sm:$0xf]
    %v392 = vld [vmem:[%s1 + $0x5d0] sm:$0xf]
    %v393 = vld [vmem:[%s1 + $0x5d4] sm:$0xf]
    %v394 = vld [vmem:[%s1 + $0x5d8] sm:$0xf]
    %v395 = vld [vmem:[%s1 + $0x5dc] sm:$0xf]
    %v396 = vld [vmem:[%s1 + $0x5e0] sm:$0xf]
    %v397 = vld [vmem:[%s1 + $0x5e4] sm:$0xf]
    %v398 = vld [vmem:[%s1 + $0x5e8] sm:$0xf]
    %v399 = vld [vmem:[%s1 + $0x5ec] sm:$0xf]
    %v400 = vld [vmem:[%s1 + $0x5f0] sm:$0xf]
    %v401 = vld [vmem:[%s1 + $0x5f4] sm:$0xf]
    %v402 = vld [vmem:[%s1 + $0x5f8] sm:$0xf]
    %v403 = vld [vmem:[%s1 + $0x5fc] sm:$0xf]
    %v404 = vld [vmem:[%s1 + $0x600] sm:$0xf]
    %v405 = vld [vmem:[%s1 + $0x604] sm:$0xf]
    %v406 = vld [vmem:[%s1 + $0x608] sm:$0xf]
    %v407 = vld [vmem:[%s1 + $0x60c] sm:$0xf]
    %v408 = vld [vmem:[%s1 + $0x610] sm:$0xf]
    %v409 = vld [vmem:[%s1 + $0x614] sm:$0xf]
    %v410 = vld [vmem:[%s1 + $0x618] sm:$0xf]
    %v411 = vld [vmem:[%s1 + $0x61c] sm:$0xf]
    %v412 = vld [vmem:[%s1 + $0x620] sm:$0xf]
    %v413 = vld [vmem:[%s1 + $0x624] sm:$0xf]
    %v414 = vld [vmem:[%s1 + $0x628] sm:$0xf]
    %v415 = vld [vmem:[%s1 + $0x62c] sm:$0xf]
    %v416 = vld [vmem:[%s1 + $0x630] sm:$0xf]
    %v417 = vld [vmem:[%s1 + $0x634] sm:$0xf]
    %v418 = vld [vmem:[%s1 + $0x638] sm:$0xf]
    %v419 = vld [vmem:[%s1 + $0x63c] sm:$0xf]
    %v420 = vld [vmem:[%s1 + $0x640] sm:$0xf]
    %v421 = vld [vmem:[%s1 + $0x644] sm:$0xf]
    %v422 = vld [vmem:[%s1 + $0x648] sm:$0xf]
    %v423 = vld [vmem:[%s1 + $0x64c] sm:$0xf]
    %v424 = vld [vmem:[%s1 + $0x650] sm:$0xf]
    %v425 = vld [vmem:[%s1 + $0x654] sm:$0xf]
    %v426 = vld [vmem:[%s1 + $0x658] sm:$0xf]
    %v427 = vld [vmem:[%s1 + $0x65c] sm:$0xf]
    %v428 = vld [vmem:[%s1 + $0x660] sm:$0xf]
    %v429 = vld [vmem:[%s1 + $0x664] sm:$0xf]
    %v430 = vld [vmem:[%s1 + $0x668] sm:$0xf]
    %v431 = vld [vmem:[%s1 + $0x66c] sm:$0xf]
    %v432 = vld [vmem:[%s1 + $0x670] sm:$0xf]
    %v433 = vld [vmem:[%s1 + $0x674] sm:$0xf]
    %v434 = vld [vmem:[%s1 + $0x678] sm:$0xf]
    %v435 = vld [vmem:[%s1 + $0x67c] sm:$0xf]
    %v436 = vld [vmem:[%s1 + $0x680] sm:$0xf]
    %v437 = vld [vmem:[%s1 + $0x684] sm:$0xf]
    %v438 = vld [vmem:[%s1 + $0x688] sm:$0xf]
    %v439 = vld [vmem:[%s1 + $0x68c] sm:$0xf]
    %v440 = vld [vmem:[%s1 + $0x690] sm:$0xf]
    %v441 = vld [vmem:[%s1 + $0x694] sm:$0xf]
    %v442 = vld [vmem:[%s1 + $0x698] sm:$0xf]
    %v443 = vld [vmem:[%s1 + $0x69c] sm:$0xf]
    %v444 = vld [vmem:[%s1 + $0x6a0] sm:$0xf]
    %v445 = vld [vmem:[%s1 + $0x6a4] sm:$0xf]
    %v446 = vld [vmem:[%s1 + $0x6a8] sm:$0xf]
    %v447 = vld [vmem:[%s1 + $0x6ac] sm:$0xf]
    %v448 = vld [vmem:[%s1 + $0x6b0] sm:$0xf]
    %v449 = vld [vmem:[%s1 + $0x6b4] sm:$0xf]
    %v450 = vld [vmem:[%s1 + $0x6b8] sm:$0xf]
    %v451 = vld [vmem:[%s1 + $0x6bc] sm:$0xf]
    %v452 = vld [vmem:[%s1 + $0x6c0] sm:$0xf]
    %v453 = vld [vmem:[%s1 + $0x6c4] sm:$0xf]
    %v454 = vld [vmem:[%s1 + $0x6c8] sm:$0xf]
    %v455 = vld [vmem:[%s1 + $0x6cc] sm:$0xf]
    %v456 = vld [vmem:[%s1 + $0x6d0] sm:$0xf]
    %v457 = vld [vmem:[%s1 + $0x6d4] sm:$0xf]
    %v458 = vld [vmem:[%s1 + $0x6d8] sm:$0xf]
    %v459 = vld [vmem:[%s1 + $0x6dc] sm:$0xf]
    %v460 = vld [vmem:[%s1 + $0x6e0] sm:$0xf]
    %v461 = vld [vmem:[%s1 + $0x6e4] sm:$0xf]
    %v462 = vld [vmem:[%s1 + $0x6e8] sm:$0xf]
    %v463 = vld [vmem:[%s1 + $0x6ec] sm:$0xf]
    %v464 = vld [vmem:[%s1 + $0x6f0] sm:$0xf]
    %v465 = vld [vmem:[%s1 + $0x6f4] sm:$0xf]
    %v466 = vld [vmem:[%s1 + $0x6f8] sm:$0xf]
    %v467 = vld [vmem:[%s1 + $0x6fc] sm:$0xf]
    %v468 = vld [vmem:[%s1 + $0x700] sm:$0xf]
    %v469 = vld [vmem:[%s1 + $0x704] sm:$0xf]
    %v470 = vld [vmem:[%s1 + $0x708] sm:$0xf]
    %v471 = vld [vmem:[%s1 + $0x70c] sm:$0xf]
    %v472 = vld [vmem:[%s1 + $0x710] sm:$0xf]
    %v473 = vld [vmem:[%s1 + $0x714] sm:$0xf]
    %v474 = vld [vmem:[%s1 + $0x718] sm:$0xf]
    %v475 = vld [vmem:[%s1 + $0x71c] sm:$0xf]
    %v476 = vld [vmem:[%s1 + $0x720] sm:$0xf]
    %v477 = vld [vmem:[%s1 + $0x724] sm:$0xf]
    %v478 = vld [vmem:[%s1 + $0x728] sm:$0xf]
    %v479 = vld [vmem:[%s1 + $0x72c] sm:$0xf]
    %v480 = vld [vmem:[%s1 + $0x730] sm:$0xf]
    %v481 = vld [vmem:[%s1 + $0x734] sm:$0xf]
    %v482 = vld [vmem:[%s1 + $0x738] sm:$0xf]
    %v483 = vld [vmem:[%s1 + $0x73c] sm:$0xf]
    %v484 = vld [vmem:[%s1 + $0x740] sm:$0xf]
    %v485 = vld [vmem:[%s1 + $0x744] sm:$0xf]
    %v486 = vld [vmem:[%s1 + $0x748] sm:$0xf]
    %v487 = vld [vmem:[%s1 + $0x74c] sm:$0xf]
    %v488 = vld [vmem:[%s1 + $0x750] sm:$0xf]
    %v489 = vld [vmem:[%s1 + $0x754] sm:$0xf]
    %v490 = vld [vmem:[%s1 + $0x758] sm:$0xf]
    %v491 = vld [vmem:[%s1 + $0x75c] sm:$0xf]
    %v492 = vld [vmem:[%s1 + $0x760] sm:$0xf]
    %v493 = vld [vmem:[%s1 + $0x764] sm:$0xf]
    %v494 = vld [vmem:[%s1 + $0x768] sm:$0xf]
    %v495 = vld [vmem:[%s1 + $0x76c] sm:$0xf]
    %v496 = vld [vmem:[%s1 + $0x770] sm:$0xf]
    %v497 = vld [vmem:[%s1 + $0x774] sm:$0xf]
    %v498 = vld [vmem:[%s1 + $0x778] sm:$0xf]
    %v499 = vld [vmem:[%s1 + $0x77c] sm:$0xf]
    %v500 = vld [vmem:[%s1 + $0x780] sm:$0xf]
    %v501 = vld [vmem:[%s1 + $0x784] sm:$0xf]
    %v502 = vld [vmem:[%s1 + $0x788] sm:$0xf]
    %v503 = vld [vmem:[%s1 + $0x78c] sm:$0xf]
    %v504 = vld [vmem:[%s1 + $0x790] sm:$0xf]
    %v505 = vld [vmem:[%s1 + $0x794] sm:$0xf]
    %v506 = vld [vmem:[%s1 + $0x798] sm:$0xf]
    %v507 = vld [vmem:[%s1 + $0x79c] sm:$0xf]
    %v508 = vld [vmem:[%s1 + $0x7a0] sm:$0xf]
    %v509 = vld [vmem:[%s1 + $0x7a4] sm:$0xf]
    %v510 = vld [vmem:[%s1 + $0x7a8] sm:$0xf]
    %v511 = vld [vmem:[%s1 + $0x7ac] sm:$0xf]
    %v512 = vld [vmem:[%s1 + $0x7b0] sm:$0xf]
    %v513 = vld [vmem:[%s1 + $0x7b4] sm:$0xf]
    %v514 = vld [vmem:[%s1 + $0x7b8] sm:$0xf]
    %v515 = vld [vmem:[%s1 + $0x7bc] sm:$0xf]
    %v516 = vld [vmem:[%s1 + $0x7c0] sm:$0xf]
    %v517 = vld [vmem:[%s1 + $0x7c4] sm:$0xf]
    %v518 = vld [vmem:[%s1 + $0x7c8] sm:$0xf]
    %v519 = vld [vmem:[%s1 + $0x7cc] sm:$0xf]
    %v520 = vld [vmem:[%s1 + $0x7d0] sm:$0xf]
    %v521 = vld [vmem:[%s1 + $0x7d4] sm:$0xf]
    %v522 = vld [vmem:[%s1 + $0x7d8] sm:$0xf]
    %v523 = vld [vmem:[%s1 + $0x7dc] sm:$0xf]
    %v524 = vld [vmem:[%s1 + $0x7e0] sm:$0xf]
    %v525 = vld [vmem:[%s1 + $0x7e4] sm:$0xf]
    %v526 = vld [vmem:[%s1 + $0x7e8] sm:$0xf]
    %v527 = vld [vmem:[%s1 + $0x7ec] sm:$0xf]
    %v528 = vld [vmem:[%s1 + $0x7f0] sm:$0xf]
    %v529 = vld [vmem:[%s1 + $0x7f4] sm:$0xf]
    %v530 = vld [vmem:[%s1 + $0x7f8] sm:$0xf]
    %v531 = vld [vmem:[%s1 + $0x7fc] sm:$0xf]
    %v532 = vld [vmem:[%s2] sm:$0x1]
    %v534 = vlaneseq
    %v535 = vshrl.u32 %v534, 7
    %v536 = vsub.s32 0, %v535
    %v537 = vrot.slane %v532, %v536
    %v543 = vcombine.high %v16, %v16
    %v545 = vunpack.c.l.s4 1966171168
    %v546 = vunpack.c.0.s8 %v545
    %v547 = vlaneseq
    %v548 = vshrl.u32 %v547, 7
    %v549 = vsub.s32 %v546, %v548
    %v550 = vrot.slane %v16, %v549
    %v552 = vunpack.c.l.s4 1966171168
    %v553 = vunpack.c.0.s8 %v552
    %v554 = vlaneseq
    %v555 = vshrl.u32 %v554, 7
    %v556 = vsub.s32 %v553, %v555
    %v557 = vrot.slane %v543, %v556
    %v558 = vcombine.high %v550, %v550
    %v559 = vcombine.high %v557, %v557
    %v561 = vunpack.c.l.s4 1966171168
    %v562 = vunpack.c.0.s8 %v561
    %v563 = vlaneseq
    %v564 = vshrl.u32 %v563, 7
    %v565 = vsub.s32 %v562, %v564
    %v566 = vrot.slane %v550, %v565
    %v568 = vunpack.c.l.s4 1966171168
    %v569 = vunpack.c.0.s8 %v568
    %v570 = vlaneseq
    %v571 = vshrl.u32 %v570, 7
    %v572 = vsub.s32 %v569, %v571
    %v573 = vrot.slane %v557, %v572
    %v575 = vunpack.c.l.s4 1966171168
    %v576 = vunpack.c.0.s8 %v575
    %v577 = vlaneseq
    %v578 = vshrl.u32 %v577, 7
    %v579 = vsub.s32 %v576, %v578
    %v580 = vrot.slane %v558, %v579
    %v582 = vunpack.c.l.s4 1966171168
    %v583 = vunpack.c.0.s8 %v582
    %v584 = vlaneseq
    %v585 = vshrl.u32 %v584, 7
    %v586 = vsub.s32 %v583, %v585
    %v587 = vrot.slane %v559, %v586
    %v588 = vcombine.high %v566, %v566
    %v589 = vcombine.high %v573, %v573
    %v590 = vcombine.high %v580, %v580
    %v591 = vcombine.high %v587, %v587
    %v592 = vcombine.high %v17, %v17
    %v594 = vunpack.c.l.s4 1966171168
    %v595 = vunpack.c.0.s8 %v594
    %v596 = vlaneseq
    %v597 = vshrl.u32 %v596, 7
    %v598 = vsub.s32 %v595, %v597
    %v599 = vrot.slane %v17, %v598
    %v601 = vunpack.c.l.s4 1966171168
    %v602 = vunpack.c.0.s8 %v601
    %v603 = vlaneseq
    %v604 = vshrl.u32 %v603, 7
    %v605 = vsub.s32 %v602, %v604
    %v606 = vrot.slane %v592, %v605
    %v607 = vcombine.high %v599, %v599
    %v608 = vcombine.high %v606, %v606
    %v610 = vunpack.c.l.s4 1966171168
    %v611 = vunpack.c.0.s8 %v610
    %v612 = vlaneseq
    %v613 = vshrl.u32 %v612, 7
    %v614 = vsub.s32 %v611, %v613
    %v615 = vrot.slane %v599, %v614
    %v617 = vunpack.c.l.s4 1966171168
    %v618 = vunpack.c.0.s8 %v617
    %v619 = vlaneseq
    %v620 = vshrl.u32 %v619, 7
    %v621 = vsub.s32 %v618, %v620
    %v622 = vrot.slane %v606, %v621
    %v624 = vunpack.c.l.s4 1966171168
    %v625 = vunpack.c.0.s8 %v624
    %v626 = vlaneseq
    %v627 = vshrl.u32 %v626, 7
    %v628 = vsub.s32 %v625, %v627
    %v629 = vrot.slane %v607, %v628
    %v631 = vunpack.c.l.s4 1966171168
    %v632 = vunpack.c.0.s8 %v631
    %v633 = vlaneseq
    %v634 = vshrl.u32 %v633, 7
    %v635 = vsub.s32 %v632, %v634
    %v636 = vrot.slane %v608, %v635
    %v637 = vcombine.high %v615, %v615
    %v638 = vcombine.high %v622, %v622
    %v639 = vcombine.high %v629, %v629
    %v640 = vcombine.high %v636, %v636
    %v641 = vcombine.high %v18, %v18
    %v643 = vunpack.c.l.s4 1966171168
    %v644 = vunpack.c.0.s8 %v643
    %v645 = vlaneseq
    %v646 = vshrl.u32 %v645, 7
    %v647 = vsub.s32 %v644, %v646
    %v648 = vrot.slane %v18, %v647
    %v650 = vunpack.c.l.s4 1966171168
    %v651 = vunpack.c.0.s8 %v650
    %v652 = vlaneseq
    %v653 = vshrl.u32 %v652, 7
    %v654 = vsub.s32 %v651, %v653
    %v655 = vrot.slane %v641, %v654
    %v656 = vcombine.high %v648, %v648
    %v657 = vcombine.high %v655, %v655
    %v659 = vunpack.c.l.s4 1966171168
    %v660 = vunpack.c.0.s8 %v659
    %v661 = vlaneseq
    %v662 = vshrl.u32 %v661, 7
    %v663 = vsub.s32 %v660, %v662
    %v664 = vrot.slane %v648, %v663
    %v666 = vunpack.c.l.s4 1966171168
    %v667 = vunpack.c.0.s8 %v666
    %v668 = vlaneseq
    %v669 = vshrl.u32 %v668, 7
    %v670 = vsub.s32 %v667, %v669
    %v671 = vrot.slane %v655, %v670
    %v673 = vunpack.c.l.s4 1966171168
    %v674 = vunpack.c.0.s8 %v673
    %v675 = vlaneseq
    %v676 = vshrl.u32 %v675, 7
    %v677 = vsub.s32 %v674, %v676
    %v678 = vrot.slane %v656, %v677
    %v680 = vunpack.c.l.s4 1966171168
    %v681 = vunpack.c.0.s8 %v680
    %v682 = vlaneseq
    %v683 = vshrl.u32 %v682, 7
    %v684 = vsub.s32 %v681, %v683
    %v685 = vrot.slane %v657, %v684
    %v686 = vcombine.high %v664, %v664
    %v687 = vcombine.high %v671, %v671
    %v688 = vcombine.high %v678, %v678
    %v689 = vcombine.high %v685, %v685
    %v690 = vcombine.high %v19, %v19
    %v692 = vunpack.c.l.s4 1966171168
    %v693 = vunpack.c.0.s8 %v692
    %v694 = vlaneseq
    %v695 = vshrl.u32 %v694, 7
    %v696 = vsub.s32 %v693, %v695
    %v697 = vrot.slane %v19, %v696
    %v699 = vunpack.c.l.s4 1966171168
    %v700 = vunpack.c.0.s8 %v699
    %v701 = vlaneseq
    %v702 = vshrl.u32 %v701, 7
    %v703 = vsub.s32 %v700, %v702
    %v704 = vrot.slane %v690, %v703
    %v705 = vcombine.high %v697, %v697
    %v706 = vcombine.high %v704, %v704
    %v708 = vunpack.c.l.s4 1966171168
    %v709 = vunpack.c.0.s8 %v708
    %v710 = vlaneseq
    %v711 = vshrl.u32 %v710, 7
    %v712 = vsub.s32 %v709, %v711
    %v713 = vrot.slane %v697, %v712
    %v715 = vunpack.c.l.s4 1966171168
    %v716 = vunpack.c.0.s8 %v715
    %v717 = vlaneseq
    %v718 = vshrl.u32 %v717, 7
    %v719 = vsub.s32 %v716, %v718
    %v720 = vrot.slane %v704, %v719
    %v722 = vunpack.c.l.s4 1966171168
    %v723 = vunpack.c.0.s8 %v722
    %v724 = vlaneseq
    %v725 = vshrl.u32 %v724, 7
    %v726 = vsub.s32 %v723, %v725
    %v727 = vrot.slane %v705, %v726
    %v729 = vunpack.c.l.s4 1966171168
    %v730 = vunpack.c.0.s8 %v729
    %v731 = vlaneseq
    %v732 = vshrl.u32 %v731, 7
    %v733 = vsub.s32 %v730, %v732
    %v734 = vrot.slane %v706, %v733
    %v735 = vcombine.high %v713, %v713
    %v736 = vcombine.high %v720, %v720
    %v737 = vcombine.high %v727, %v727
    %v738 = vcombine.high %v734, %v734
    %v1283 = vunpack.c.l.b16 %v20
    %v1284 = vunpack.c.l.b16 %v21
    %v1285 = vunpack.c.l.b16 %v22
    %v1286 = vunpack.c.l.b16 %v23
    %v1287 = vunpack.c.l.b16 %v24
    %v1288 = vunpack.c.l.b16 %v25
    %v1289 = vunpack.c.l.b16 %v26
    %v1290 = vunpack.c.l.b16 %v27
    %v1291 = vunpack.c.l.b16 %v28
    %v1292 = vunpack.c.l.b16 %v29
    %v1293 = vunpack.c.l.b16 %v30
    %v1294 = vunpack.c.l.b16 %v31
    %v1295 = vunpack.c.l.b16 %v32
    %v1296 = vunpack.c.l.b16 %v33
    %v1297 = vunpack.c.l.b16 %v34
    %v1298 = vunpack.c.l.b16 %v35
    %v1299 = vunpack.c.l.b16 %v36
    %v1300 = vunpack.c.l.b16 %v37
    %v1301 = vunpack.c.l.b16 %v38
    %v1302 = vunpack.c.l.b16 %v39
    %v1303 = vunpack.c.l.b16 %v40
    %v1304 = vunpack.c.l.b16 %v41
    %v1305 = vunpack.c.l.b16 %v42
    %v1306 = vunpack.c.l.b16 %v43
    %v1307 = vunpack.c.l.b16 %v44
    %v1308 = vunpack.c.l.b16 %v45
    %v1309 = vunpack.c.l.b16 %v46
    %v1310 = vunpack.c.l.b16 %v47
    %v1311 = vunpack.c.l.b16 %v48
    %v1312 = vunpack.c.l.b16 %v49
    %v1313 = vunpack.c.l.b16 %v50
    %v1314 = vunpack.c.l.b16 %v51
    %v1315 = vunpack.c.l.b16 %v52
    %v1316 = vunpack.c.l.b16 %v53
    %v1317 = vunpack.c.l.b16 %v54
    %v1318 = vunpack.c.l.b16 %v55
    %v1319 = vunpack.c.l.b16 %v56
    %v1320 = vunpack.c.l.b16 %v57
    %v1321 = vunpack.c.l.b16 %v58
    %v1322 = vunpack.c.l.b16 %v59
    %v1323 = vunpack.c.l.b16 %v60
    %v1324 = vunpack.c.l.b16 %v61
    %v1325 = vunpack.c.l.b16 %v62
    %v1326 = vunpack.c.l.b16 %v63
    %v1327 = vunpack.c.l.b16 %v64
    %v1328 = vunpack.c.l.b16 %v65
    %v1329 = vunpack.c.l.b16 %v66
    %v1330 = vunpack.c.l.b16 %v67
    %v1331 = vunpack.c.l.b16 %v68
    %v1332 = vunpack.c.l.b16 %v69
    %v1333 = vunpack.c.l.b16 %v70
    %v1334 = vunpack.c.l.b16 %v71
    %v1335 = vunpack.c.l.b16 %v72
    %v1336 = vunpack.c.l.b16 %v73
    %v1337 = vunpack.c.l.b16 %v74
    %v1338 = vunpack.c.l.b16 %v75
    %v1339 = vunpack.c.l.b16 %v76
    %v1340 = vunpack.c.l.b16 %v77
    %v1341 = vunpack.c.l.b16 %v78
    %v1342 = vunpack.c.l.b16 %v79
    %v1343 = vunpack.c.l.b16 %v80
    %v1344 = vunpack.c.l.b16 %v81
    %v1345 = vunpack.c.l.b16 %v82
    %v1346 = vunpack.c.l.b16 %v83
    %v1347 = vunpack.c.l.b16 %v84
    %v1348 = vunpack.c.l.b16 %v85
    %v1349 = vunpack.c.l.b16 %v86
    %v1350 = vunpack.c.l.b16 %v87
    %v1351 = vunpack.c.l.b16 %v88
    %v1352 = vunpack.c.l.b16 %v89
    %v1353 = vunpack.c.l.b16 %v90
    %v1354 = vunpack.c.l.b16 %v91
    %v1355 = vunpack.c.l.b16 %v92
    %v1356 = vunpack.c.l.b16 %v93
    %v1357 = vunpack.c.l.b16 %v94
    %v1358 = vunpack.c.l.b16 %v95
    %v1359 = vunpack.c.l.b16 %v96
    %v1360 = vunpack.c.l.b16 %v97
    %v1361 = vunpack.c.l.b16 %v98
    %v1362 = vunpack.c.l.b16 %v99
    %v1363 = vunpack.c.l.b16 %v100
    %v1364 = vunpack.c.l.b16 %v101
    %v1365 = vunpack.c.l.b16 %v102
    %v1366 = vunpack.c.l.b16 %v103
    %v1367 = vunpack.c.l.b16 %v104
    %v1368 = vunpack.c.l.b16 %v105
    %v1369 = vunpack.c.l.b16 %v106
    %v1370 = vunpack.c.l.b16 %v107
    %v1371 = vunpack.c.l.b16 %v108
    %v1372 = vunpack.c.l.b16 %v109
    %v1373 = vunpack.c.l.b16 %v110
    %v1374 = vunpack.c.l.b16 %v111
    %v1375 = vunpack.c.l.b16 %v112
    %v1376 = vunpack.c.l.b16 %v113
    %v1377 = vunpack.c.l.b16 %v114
    %v1378 = vunpack.c.l.b16 %v115
    %v1379 = vunpack.c.l.b16 %v116
    %v1380 = vunpack.c.l.b16 %v117
    %v1381 = vunpack.c.l.b16 %v118
    %v1382 = vunpack.c.l.b16 %v119
    %v1383 = vunpack.c.l.b16 %v120
    %v1384 = vunpack.c.l.b16 %v121
    %v1385 = vunpack.c.l.b16 %v122
    %v1386 = vunpack.c.l.b16 %v123
    %v1387 = vunpack.c.l.b16 %v124
    %v1388 = vunpack.c.l.b16 %v125
    %v1389 = vunpack.c.l.b16 %v126
    %v1390 = vunpack.c.l.b16 %v127
    %v1391 = vunpack.c.l.b16 %v128
    %v1392 = vunpack.c.l.b16 %v129
    %v1393 = vunpack.c.l.b16 %v130
    %v1394 = vunpack.c.l.b16 %v131
    %v1395 = vunpack.c.l.b16 %v132
    %v1396 = vunpack.c.l.b16 %v133
    %v1397 = vunpack.c.l.b16 %v134
    %v1398 = vunpack.c.l.b16 %v135
    %v1399 = vunpack.c.l.b16 %v136
    %v1400 = vunpack.c.l.b16 %v137
    %v1401 = vunpack.c.l.b16 %v138
    %v1402 = vunpack.c.l.b16 %v139
    %v1403 = vunpack.c.l.b16 %v140
    %v1404 = vunpack.c.l.b16 %v141
    %v1405 = vunpack.c.l.b16 %v142
    %v1406 = vunpack.c.l.b16 %v143
    %v1407 = vunpack.c.l.b16 %v144
    %v1408 = vunpack.c.l.b16 %v145
    %v1409 = vunpack.c.l.b16 %v146
    %v1410 = vunpack.c.l.b16 %v147
    %v1411 = vunpack.c.l.b16 %v148
    %v1412 = vunpack.c.l.b16 %v149
    %v1413 = vunpack.c.l.b16 %v150
    %v1414 = vunpack.c.l.b16 %v151
    %v1415 = vunpack.c.l.b16 %v152
    %v1416 = vunpack.c.l.b16 %v153
    %v1417 = vunpack.c.l.b16 %v154
    %v1418 = vunpack.c.l.b16 %v155
    %v1419 = vunpack.c.l.b16 %v156
    %v1420 = vunpack.c.l.b16 %v157
    %v1421 = vunpack.c.l.b16 %v158
    %v1422 = vunpack.c.l.b16 %v159
    %v1423 = vunpack.c.l.b16 %v160
    %v1424 = vunpack.c.l.b16 %v161
    %v1425 = vunpack.c.l.b16 %v162
    %v1426 = vunpack.c.l.b16 %v163
    %v1427 = vunpack.c.l.b16 %v164
    %v1428 = vunpack.c.l.b16 %v165
    %v1429 = vunpack.c.l.b16 %v166
    %v1430 = vunpack.c.l.b16 %v167
    %v1431 = vunpack.c.l.b16 %v168
    %v1432 = vunpack.c.l.b16 %v169
    %v1433 = vunpack.c.l.b16 %v170
    %v1434 = vunpack.c.l.b16 %v171
    %v1435 = vunpack.c.l.b16 %v172
    %v1436 = vunpack.c.l.b16 %v173
    %v1437 = vunpack.c.l.b16 %v174
    %v1438 = vunpack.c.l.b16 %v175
    %v1439 = vunpack.c.l.b16 %v176
    %v1440 = vunpack.c.l.b16 %v177
    %v1441 = vunpack.c.l.b16 %v178
    %v1442 = vunpack.c.l.b16 %v179
    %v1443 = vunpack.c.l.b16 %v180
    %v1444 = vunpack.c.l.b16 %v181
    %v1445 = vunpack.c.l.b16 %v182
    %v1446 = vunpack.c.l.b16 %v183
    %v1447 = vunpack.c.l.b16 %v184
    %v1448 = vunpack.c.l.b16 %v185
    %v1449 = vunpack.c.l.b16 %v186
    %v1450 = vunpack.c.l.b16 %v187
    %v1451 = vunpack.c.l.b16 %v188
    %v1452 = vunpack.c.l.b16 %v189
    %v1453 = vunpack.c.l.b16 %v190
    %v1454 = vunpack.c.l.b16 %v191
    %v1455 = vunpack.c.l.b16 %v192
    %v1456 = vunpack.c.l.b16 %v193
    %v1457 = vunpack.c.l.b16 %v194
    %v1458 = vunpack.c.l.b16 %v195
    %v1459 = vunpack.c.l.b16 %v196
    %v1460 = vunpack.c.l.b16 %v197
    %v1461 = vunpack.c.l.b16 %v198
    %v1462 = vunpack.c.l.b16 %v199
    %v1463 = vunpack.c.l.b16 %v200
    %v1464 = vunpack.c.l.b16 %v201
    %v1465 = vunpack.c.l.b16 %v202
    %v1466 = vunpack.c.l.b16 %v203
    %v1467 = vunpack.c.l.b16 %v204
    %v1468 = vunpack.c.l.b16 %v205
    %v1469 = vunpack.c.l.b16 %v206
    %v1470 = vunpack.c.l.b16 %v207
    %v1471 = vunpack.c.l.b16 %v208
    %v1472 = vunpack.c.l.b16 %v209
    %v1473 = vunpack.c.l.b16 %v210
    %v1474 = vunpack.c.l.b16 %v211
    %v1475 = vunpack.c.l.b16 %v212
    %v1476 = vunpack.c.l.b16 %v213
    %v1477 = vunpack.c.l.b16 %v214
    %v1478 = vunpack.c.l.b16 %v215
    %v1479 = vunpack.c.l.b16 %v216
    %v1480 = vunpack.c.l.b16 %v217
    %v1481 = vunpack.c.l.b16 %v218
    %v1482 = vunpack.c.l.b16 %v219
    %v1483 = vunpack.c.l.b16 %v220
    %v1484 = vunpack.c.l.b16 %v221
    %v1485 = vunpack.c.l.b16 %v222
    %v1486 = vunpack.c.l.b16 %v223
    %v1487 = vunpack.c.l.b16 %v224
    %v1488 = vunpack.c.l.b16 %v225
    %v1489 = vunpack.c.l.b16 %v226
    %v1490 = vunpack.c.l.b16 %v227
    %v1491 = vunpack.c.l.b16 %v228
    %v1492 = vunpack.c.l.b16 %v229
    %v1493 = vunpack.c.l.b16 %v230
    %v1494 = vunpack.c.l.b16 %v231
    %v1495 = vunpack.c.l.b16 %v232
    %v1496 = vunpack.c.l.b16 %v233
    %v1497 = vunpack.c.l.b16 %v234
    %v1498 = vunpack.c.l.b16 %v235
    %v1499 = vunpack.c.l.b16 %v236
    %v1500 = vunpack.c.l.b16 %v237
    %v1501 = vunpack.c.l.b16 %v238
    %v1502 = vunpack.c.l.b16 %v239
    %v1503 = vunpack.c.l.b16 %v240
    %v1504 = vunpack.c.l.b16 %v241
    %v1505 = vunpack.c.l.b16 %v242
    %v1506 = vunpack.c.l.b16 %v243
    %v1507 = vunpack.c.l.b16 %v244
    %v1508 = vunpack.c.l.b16 %v245
    %v1509 = vunpack.c.l.b16 %v246
    %v1510 = vunpack.c.l.b16 %v247
    %v1511 = vunpack.c.l.b16 %v248
    %v1512 = vunpack.c.l.b16 %v249
    %v1513 = vunpack.c.l.b16 %v250
    %v1514 = vunpack.c.l.b16 %v251
    %v1515 = vunpack.c.l.b16 %v252
    %v1516 = vunpack.c.l.b16 %v253
    %v1517 = vunpack.c.l.b16 %v254
    %v1518 = vunpack.c.l.b16 %v255
    %v1519 = vunpack.c.l.b16 %v256
    %v1520 = vunpack.c.l.b16 %v257
    %v1521 = vunpack.c.l.b16 %v258
    %v1522 = vunpack.c.l.b16 %v259
    %v1523 = vunpack.c.l.b16 %v260
    %v1524 = vunpack.c.l.b16 %v261
    %v1525 = vunpack.c.l.b16 %v262
    %v1526 = vunpack.c.l.b16 %v263
    %v1527 = vunpack.c.l.b16 %v264
    %v1528 = vunpack.c.l.b16 %v265
    %v1529 = vunpack.c.l.b16 %v266
    %v1530 = vunpack.c.l.b16 %v267
    %v1531 = vunpack.c.l.b16 %v268
    %v1532 = vunpack.c.l.b16 %v269
    %v1533 = vunpack.c.l.b16 %v270
    %v1534 = vunpack.c.l.b16 %v271
    %v1535 = vunpack.c.l.b16 %v272
    %v1536 = vunpack.c.l.b16 %v273
    %v1537 = vunpack.c.l.b16 %v274
    %v1538 = vunpack.c.l.b16 %v275
    %v1539 = vunpack.c.l.b16 %v276
    %v1540 = vunpack.c.l.b16 %v277
    %v1541 = vunpack.c.l.b16 %v278
    %v1542 = vunpack.c.l.b16 %v279
    %v1543 = vunpack.c.l.b16 %v280
    %v1544 = vunpack.c.l.b16 %v281
    %v1545 = vunpack.c.l.b16 %v282
    %v1546 = vunpack.c.l.b16 %v283
    %v1547 = vunpack.c.l.b16 %v284
    %v1548 = vunpack.c.l.b16 %v285
    %v1549 = vunpack.c.l.b16 %v286
    %v1550 = vunpack.c.l.b16 %v287
    %v1551 = vunpack.c.l.b16 %v288
    %v1552 = vunpack.c.l.b16 %v289
    %v1553 = vunpack.c.l.b16 %v290
    %v1554 = vunpack.c.l.b16 %v291
    %v1555 = vunpack.c.l.b16 %v292
    %v1556 = vunpack.c.l.b16 %v293
    %v1557 = vunpack.c.l.b16 %v294
    %v1558 = vunpack.c.l.b16 %v295
    %v1559 = vunpack.c.l.b16 %v296
    %v1560 = vunpack.c.l.b16 %v297
    %v1561 = vunpack.c.l.b16 %v298
    %v1562 = vunpack.c.l.b16 %v299
    %v1563 = vunpack.c.l.b16 %v300
    %v1564 = vunpack.c.l.b16 %v301
    %v1565 = vunpack.c.l.b16 %v302
    %v1566 = vunpack.c.l.b16 %v303
    %v1567 = vunpack.c.l.b16 %v304
    %v1568 = vunpack.c.l.b16 %v305
    %v1569 = vunpack.c.l.b16 %v306
    %v1570 = vunpack.c.l.b16 %v307
    %v1571 = vunpack.c.l.b16 %v308
    %v1572 = vunpack.c.l.b16 %v309
    %v1573 = vunpack.c.l.b16 %v310
    %v1574 = vunpack.c.l.b16 %v311
    %v1575 = vunpack.c.l.b16 %v312
    %v1576 = vunpack.c.l.b16 %v313
    %v1577 = vunpack.c.l.b16 %v314
    %v1578 = vunpack.c.l.b16 %v315
    %v1579 = vunpack.c.l.b16 %v316
    %v1580 = vunpack.c.l.b16 %v317
    %v1581 = vunpack.c.l.b16 %v318
    %v1582 = vunpack.c.l.b16 %v319
    %v1583 = vunpack.c.l.b16 %v320
    %v1584 = vunpack.c.l.b16 %v321
    %v1585 = vunpack.c.l.b16 %v322
    %v1586 = vunpack.c.l.b16 %v323
    %v1587 = vunpack.c.l.b16 %v324
    %v1588 = vunpack.c.l.b16 %v325
    %v1589 = vunpack.c.l.b16 %v326
    %v1590 = vunpack.c.l.b16 %v327
    %v1591 = vunpack.c.l.b16 %v328
    %v1592 = vunpack.c.l.b16 %v329
    %v1593 = vunpack.c.l.b16 %v330
    %v1594 = vunpack.c.l.b16 %v331
    %v1595 = vunpack.c.l.b16 %v332
    %v1596 = vunpack.c.l.b16 %v333
    %v1597 = vunpack.c.l.b16 %v334
    %v1598 = vunpack.c.l.b16 %v335
    %v1599 = vunpack.c.l.b16 %v336
    %v1600 = vunpack.c.l.b16 %v337
    %v1601 = vunpack.c.l.b16 %v338
    %v1602 = vunpack.c.l.b16 %v339
    %v1603 = vunpack.c.l.b16 %v340
    %v1604 = vunpack.c.l.b16 %v341
    %v1605 = vunpack.c.l.b16 %v342
    %v1606 = vunpack.c.l.b16 %v343
    %v1607 = vunpack.c.l.b16 %v344
    %v1608 = vunpack.c.l.b16 %v345
    %v1609 = vunpack.c.l.b16 %v346
    %v1610 = vunpack.c.l.b16 %v347
    %v1611 = vunpack.c.l.b16 %v348
    %v1612 = vunpack.c.l.b16 %v349
    %v1613 = vunpack.c.l.b16 %v350
    %v1614 = vunpack.c.l.b16 %v351
    %v1615 = vunpack.c.l.b16 %v352
    %v1616 = vunpack.c.l.b16 %v353
    %v1617 = vunpack.c.l.b16 %v354
    %v1618 = vunpack.c.l.b16 %v355
    %v1619 = vunpack.c.l.b16 %v356
    %v1620 = vunpack.c.l.b16 %v357
    %v1621 = vunpack.c.l.b16 %v358
    %v1622 = vunpack.c.l.b16 %v359
    %v1623 = vunpack.c.l.b16 %v360
    %v1624 = vunpack.c.l.b16 %v361
    %v1625 = vunpack.c.l.b16 %v362
    %v1626 = vunpack.c.l.b16 %v363
    %v1627 = vunpack.c.l.b16 %v364
    %v1628 = vunpack.c.l.b16 %v365
    %v1629 = vunpack.c.l.b16 %v366
    %v1630 = vunpack.c.l.b16 %v367
    %v1631 = vunpack.c.l.b16 %v368
    %v1632 = vunpack.c.l.b16 %v369
    %v1633 = vunpack.c.l.b16 %v370
    %v1634 = vunpack.c.l.b16 %v371
    %v1635 = vunpack.c.l.b16 %v372
    %v1636 = vunpack.c.l.b16 %v373
    %v1637 = vunpack.c.l.b16 %v374
    %v1638 = vunpack.c.l.b16 %v375
    %v1639 = vunpack.c.l.b16 %v376
    %v1640 = vunpack.c.l.b16 %v377
    %v1641 = vunpack.c.l.b16 %v378
    %v1642 = vunpack.c.l.b16 %v379
    %v1643 = vunpack.c.l.b16 %v380
    %v1644 = vunpack.c.l.b16 %v381
    %v1645 = vunpack.c.l.b16 %v382
    %v1646 = vunpack.c.l.b16 %v383
    %v1647 = vunpack.c.l.b16 %v384
    %v1648 = vunpack.c.l.b16 %v385
    %v1649 = vunpack.c.l.b16 %v386
    %v1650 = vunpack.c.l.b16 %v387
    %v1651 = vunpack.c.l.b16 %v388
    %v1652 = vunpack.c.l.b16 %v389
    %v1653 = vunpack.c.l.b16 %v390
    %v1654 = vunpack.c.l.b16 %v391
    %v1655 = vunpack.c.l.b16 %v392
    %v1656 = vunpack.c.l.b16 %v393
    %v1657 = vunpack.c.l.b16 %v394
    %v1658 = vunpack.c.l.b16 %v395
    %v1659 = vunpack.c.l.b16 %v396
    %v1660 = vunpack.c.l.b16 %v397
    %v1661 = vunpack.c.l.b16 %v398
    %v1662 = vunpack.c.l.b16 %v399
    %v1663 = vunpack.c.l.b16 %v400
    %v1664 = vunpack.c.l.b16 %v401
    %v1665 = vunpack.c.l.b16 %v402
    %v1666 = vunpack.c.l.b16 %v403
    %v1667 = vunpack.c.l.b16 %v404
    %v1668 = vunpack.c.l.b16 %v405
    %v1669 = vunpack.c.l.b16 %v406
    %v1670 = vunpack.c.l.b16 %v407
    %v1671 = vunpack.c.l.b16 %v408
    %v1672 = vunpack.c.l.b16 %v409
    %v1673 = vunpack.c.l.b16 %v410
    %v1674 = vunpack.c.l.b16 %v411
    %v1675 = vunpack.c.l.b16 %v412
    %v1676 = vunpack.c.l.b16 %v413
    %v1677 = vunpack.c.l.b16 %v414
    %v1678 = vunpack.c.l.b16 %v415
    %v1679 = vunpack.c.l.b16 %v416
    %v1680 = vunpack.c.l.b16 %v417
    %v1681 = vunpack.c.l.b16 %v418
    %v1682 = vunpack.c.l.b16 %v419
    %v1683 = vunpack.c.l.b16 %v420
    %v1684 = vunpack.c.l.b16 %v421
    %v1685 = vunpack.c.l.b16 %v422
    %v1686 = vunpack.c.l.b16 %v423
    %v1687 = vunpack.c.l.b16 %v424
    %v1688 = vunpack.c.l.b16 %v425
    %v1689 = vunpack.c.l.b16 %v426
    %v1690 = vunpack.c.l.b16 %v427
    %v1691 = vunpack.c.l.b16 %v428
    %v1692 = vunpack.c.l.b16 %v429
    %v1693 = vunpack.c.l.b16 %v430
    %v1694 = vunpack.c.l.b16 %v431
    %v1695 = vunpack.c.l.b16 %v432
    %v1696 = vunpack.c.l.b16 %v433
    %v1697 = vunpack.c.l.b16 %v434
    %v1698 = vunpack.c.l.b16 %v435
    %v1699 = vunpack.c.l.b16 %v436
    %v1700 = vunpack.c.l.b16 %v437
    %v1701 = vunpack.c.l.b16 %v438
    %v1702 = vunpack.c.l.b16 %v439
    %v1703 = vunpack.c.l.b16 %v440
    %v1704 = vunpack.c.l.b16 %v441
    %v1705 = vunpack.c.l.b16 %v442
    %v1706 = vunpack.c.l.b16 %v443
    %v1707 = vunpack.c.l.b16 %v444
    %v1708 = vunpack.c.l.b16 %v445
    %v1709 = vunpack.c.l.b16 %v446
    %v1710 = vunpack.c.l.b16 %v447
    %v1711 = vunpack.c.l.b16 %v448
    %v1712 = vunpack.c.l.b16 %v449
    %v1713 = vunpack.c.l.b16 %v450
    %v1714 = vunpack.c.l.b16 %v451
    %v1715 = vunpack.c.l.b16 %v452
    %v1716 = vunpack.c.l.b16 %v453
    %v1717 = vunpack.c.l.b16 %v454
    %v1718 = vunpack.c.l.b16 %v455
    %v1719 = vunpack.c.l.b16 %v456
    %v1720 = vunpack.c.l.b16 %v457
    %v1721 = vunpack.c.l.b16 %v458
    %v1722 = vunpack.c.l.b16 %v459
    %v1723 = vunpack.c.l.b16 %v460
    %v1724 = vunpack.c.l.b16 %v461
    %v1725 = vunpack.c.l.b16 %v462
    %v1726 = vunpack.c.l.b16 %v463
    %v1727 = vunpack.c.l.b16 %v464
    %v1728 = vunpack.c.l.b16 %v465
    %v1729 = vunpack.c.l.b16 %v466
    %v1730 = vunpack.c.l.b16 %v467
    %v1731 = vunpack.c.l.b16 %v468
    %v1732 = vunpack.c.l.b16 %v469
    %v1733 = vunpack.c.l.b16 %v470
    %v1734 = vunpack.c.l.b16 %v471
    %v1735 = vunpack.c.l.b16 %v472
    %v1736 = vunpack.c.l.b16 %v473
    %v1737 = vunpack.c.l.b16 %v474
    %v1738 = vunpack.c.l.b16 %v475
    %v1739 = vunpack.c.l.b16 %v476
    %v1740 = vunpack.c.l.b16 %v477
    %v1741 = vunpack.c.l.b16 %v478
    %v1742 = vunpack.c.l.b16 %v479
    %v1743 = vunpack.c.l.b16 %v480
    %v1744 = vunpack.c.l.b16 %v481
    %v1745 = vunpack.c.l.b16 %v482
    %v1746 = vunpack.c.l.b16 %v483
    %v1747 = vunpack.c.l.b16 %v484
    %v1748 = vunpack.c.l.b16 %v485
    %v1749 = vunpack.c.l.b16 %v486
    %v1750 = vunpack.c.l.b16 %v487
    %v1751 = vunpack.c.l.b16 %v488
    %v1752 = vunpack.c.l.b16 %v489
    %v1753 = vunpack.c.l.b16 %v490
    %v1754 = vunpack.c.l.b16 %v491
    %v1755 = vunpack.c.l.b16 %v492
    %v1756 = vunpack.c.l.b16 %v493
    %v1757 = vunpack.c.l.b16 %v494
    %v1758 = vunpack.c.l.b16 %v495
    %v1759 = vunpack.c.l.b16 %v496
    %v1760 = vunpack.c.l.b16 %v497
    %v1761 = vunpack.c.l.b16 %v498
    %v1762 = vunpack.c.l.b16 %v499
    %v1763 = vunpack.c.l.b16 %v500
    %v1764 = vunpack.c.l.b16 %v501
    %v1765 = vunpack.c.l.b16 %v502
    %v1766 = vunpack.c.l.b16 %v503
    %v1767 = vunpack.c.l.b16 %v504
    %v1768 = vunpack.c.l.b16 %v505
    %v1769 = vunpack.c.l.b16 %v506
    %v1770 = vunpack.c.l.b16 %v507
    %v1771 = vunpack.c.l.b16 %v508
    %v1772 = vunpack.c.l.b16 %v509
    %v1773 = vunpack.c.l.b16 %v510
    %v1774 = vunpack.c.l.b16 %v511
    %v1775 = vunpack.c.l.b16 %v512
    %v1776 = vunpack.c.l.b16 %v513
    %v1777 = vunpack.c.l.b16 %v514
    %v1778 = vunpack.c.l.b16 %v515
    %v1779 = vunpack.c.l.b16 %v516
    %v1780 = vunpack.c.l.b16 %v517
    %v1781 = vunpack.c.l.b16 %v518
    %v1782 = vunpack.c.l.b16 %v519
    %v1783 = vunpack.c.l.b16 %v520
    %v1784 = vunpack.c.l.b16 %v521
    %v1785 = vunpack.c.l.b16 %v522
    %v1786 = vunpack.c.l.b16 %v523
    %v1787 = vunpack.c.l.b16 %v524
    %v1788 = vunpack.c.l.b16 %v525
    %v1789 = vunpack.c.l.b16 %v526
    %v1790 = vunpack.c.l.b16 %v527
    %v1791 = vunpack.c.l.b16 %v528
    %v1792 = vunpack.c.l.b16 %v529
    %v1793 = vunpack.c.l.b16 %v530
    %v1794 = vunpack.c.l.b16 %v531
    %v1795 = vpack.c.b16 %v1284, %v1283
    %v1796 = vpack.c.b16 %v1286, %v1285
    %v1797 = vpack.c.b16 %v1288, %v1287
    %v1798 = vpack.c.b16 %v1290, %v1289
    %v1799 = vpack.c.b16 %v1292, %v1291
    %v1800 = vpack.c.b16 %v1294, %v1293
    %v1801 = vpack.c.b16 %v1296, %v1295
    %v1802 = vpack.c.b16 %v1298, %v1297
    %v1803 = vpack.c.b16 %v1300, %v1299
    %v1804 = vpack.c.b16 %v1302, %v1301
    %v1805 = vpack.c.b16 %v1304, %v1303
    %v1806 = vpack.c.b16 %v1306, %v1305
    %v1807 = vpack.c.b16 %v1308, %v1307
    %v1808 = vpack.c.b16 %v1310, %v1309
    %v1809 = vpack.c.b16 %v1312, %v1311
    %v1810 = vpack.c.b16 %v1314, %v1313
    %v1811 = vpack.c.b16 %v1316, %v1315
    %v1812 = vpack.c.b16 %v1318, %v1317
    %v1813 = vpack.c.b16 %v1320, %v1319
    %v1814 = vpack.c.b16 %v1322, %v1321
    %v1815 = vpack.c.b16 %v1324, %v1323
    %v1816 = vpack.c.b16 %v1326, %v1325
    %v1817 = vpack.c.b16 %v1328, %v1327
    %v1818 = vpack.c.b16 %v1330, %v1329
    %v1819 = vpack.c.b16 %v1332, %v1331
    %v1820 = vpack.c.b16 %v1334, %v1333
    %v1821 = vpack.c.b16 %v1336, %v1335
    %v1822 = vpack.c.b16 %v1338, %v1337
    %v1823 = vpack.c.b16 %v1340, %v1339
    %v1824 = vpack.c.b16 %v1342, %v1341
    %v1825 = vpack.c.b16 %v1344, %v1343
    %v1826 = vpack.c.b16 %v1346, %v1345
    %v1827 = vpack.c.b16 %v1348, %v1347
    %v1828 = vpack.c.b16 %v1350, %v1349
    %v1829 = vpack.c.b16 %v1352, %v1351
    %v1830 = vpack.c.b16 %v1354, %v1353
    %v1831 = vpack.c.b16 %v1356, %v1355
    %v1832 = vpack.c.b16 %v1358, %v1357
    %v1833 = vpack.c.b16 %v1360, %v1359
    %v1834 = vpack.c.b16 %v1362, %v1361
    %v1835 = vpack.c.b16 %v1364, %v1363
    %v1836 = vpack.c.b16 %v1366, %v1365
    %v1837 = vpack.c.b16 %v1368, %v1367
    %v1838 = vpack.c.b16 %v1370, %v1369
    %v1839 = vpack.c.b16 %v1372, %v1371
    %v1840 = vpack.c.b16 %v1374, %v1373
    %v1841 = vpack.c.b16 %v1376, %v1375
    %v1842 = vpack.c.b16 %v1378, %v1377
    %v1843 = vpack.c.b16 %v1380, %v1379
    %v1844 = vpack.c.b16 %v1382, %v1381
    %v1845 = vpack.c.b16 %v1384, %v1383
    %v1846 = vpack.c.b16 %v1386, %v1385
    %v1847 = vpack.c.b16 %v1388, %v1387
    %v1848 = vpack.c.b16 %v1390, %v1389
    %v1849 = vpack.c.b16 %v1392, %v1391
    %v1850 = vpack.c.b16 %v1394, %v1393
    %v1851 = vpack.c.b16 %v1396, %v1395
    %v1852 = vpack.c.b16 %v1398, %v1397
    %v1853 = vpack.c.b16 %v1400, %v1399
    %v1854 = vpack.c.b16 %v1402, %v1401
    %v1855 = vpack.c.b16 %v1404, %v1403
    %v1856 = vpack.c.b16 %v1406, %v1405
    %v1857 = vpack.c.b16 %v1408, %v1407
    %v1858 = vpack.c.b16 %v1410, %v1409
    %v1859 = vpack.c.b16 %v1412, %v1411
    %v1860 = vpack.c.b16 %v1414, %v1413
    %v1861 = vpack.c.b16 %v1416, %v1415
    %v1862 = vpack.c.b16 %v1418, %v1417
    %v1863 = vpack.c.b16 %v1420, %v1419
    %v1864 = vpack.c.b16 %v1422, %v1421
    %v1865 = vpack.c.b16 %v1424, %v1423
    %v1866 = vpack.c.b16 %v1426, %v1425
    %v1867 = vpack.c.b16 %v1428, %v1427
    %v1868 = vpack.c.b16 %v1430, %v1429
    %v1869 = vpack.c.b16 %v1432, %v1431
    %v1870 = vpack.c.b16 %v1434, %v1433
    %v1871 = vpack.c.b16 %v1436, %v1435
    %v1872 = vpack.c.b16 %v1438, %v1437
    %v1873 = vpack.c.b16 %v1440, %v1439
    %v1874 = vpack.c.b16 %v1442, %v1441
    %v1875 = vpack.c.b16 %v1444, %v1443
    %v1876 = vpack.c.b16 %v1446, %v1445
    %v1877 = vpack.c.b16 %v1448, %v1447
    %v1878 = vpack.c.b16 %v1450, %v1449
    %v1879 = vpack.c.b16 %v1452, %v1451
    %v1880 = vpack.c.b16 %v1454, %v1453
    %v1881 = vpack.c.b16 %v1456, %v1455
    %v1882 = vpack.c.b16 %v1458, %v1457
    %v1883 = vpack.c.b16 %v1460, %v1459
    %v1884 = vpack.c.b16 %v1462, %v1461
    %v1885 = vpack.c.b16 %v1464, %v1463
    %v1886 = vpack.c.b16 %v1466, %v1465
    %v1887 = vpack.c.b16 %v1468, %v1467
    %v1888 = vpack.c.b16 %v1470, %v1469
    %v1889 = vpack.c.b16 %v1472, %v1471
    %v1890 = vpack.c.b16 %v1474, %v1473
    %v1891 = vpack.c.b16 %v1476, %v1475
    %v1892 = vpack.c.b16 %v1478, %v1477
    %v1893 = vpack.c.b16 %v1480, %v1479
    %v1894 = vpack.c.b16 %v1482, %v1481
    %v1895 = vpack.c.b16 %v1484, %v1483
    %v1896 = vpack.c.b16 %v1486, %v1485
    %v1897 = vpack.c.b16 %v1488, %v1487
    %v1898 = vpack.c.b16 %v1490, %v1489
    %v1899 = vpack.c.b16 %v1492, %v1491
    %v1900 = vpack.c.b16 %v1494, %v1493
    %v1901 = vpack.c.b16 %v1496, %v1495
    %v1902 = vpack.c.b16 %v1498, %v1497
    %v1903 = vpack.c.b16 %v1500, %v1499
    %v1904 = vpack.c.b16 %v1502, %v1501
    %v1905 = vpack.c.b16 %v1504, %v1503
    %v1906 = vpack.c.b16 %v1506, %v1505
    %v1907 = vpack.c.b16 %v1508, %v1507
    %v1908 = vpack.c.b16 %v1510, %v1509
    %v1909 = vpack.c.b16 %v1512, %v1511
    %v1910 = vpack.c.b16 %v1514, %v1513
    %v1911 = vpack.c.b16 %v1516, %v1515
    %v1912 = vpack.c.b16 %v1518, %v1517
    %v1913 = vpack.c.b16 %v1520, %v1519
    %v1914 = vpack.c.b16 %v1522, %v1521
    %v1915 = vpack.c.b16 %v1524, %v1523
    %v1916 = vpack.c.b16 %v1526, %v1525
    %v1917 = vpack.c.b16 %v1528, %v1527
    %v1918 = vpack.c.b16 %v1530, %v1529
    %v1919 = vpack.c.b16 %v1532, %v1531
    %v1920 = vpack.c.b16 %v1534, %v1533
    %v1921 = vpack.c.b16 %v1536, %v1535
    %v1922 = vpack.c.b16 %v1538, %v1537
    %v1923 = vpack.c.b16 %v1540, %v1539
    %v1924 = vpack.c.b16 %v1542, %v1541
    %v1925 = vpack.c.b16 %v1544, %v1543
    %v1926 = vpack.c.b16 %v1546, %v1545
    %v1927 = vpack.c.b16 %v1548, %v1547
    %v1928 = vpack.c.b16 %v1550, %v1549
    %v1929 = vpack.c.b16 %v1552, %v1551
    %v1930 = vpack.c.b16 %v1554, %v1553
    %v1931 = vpack.c.b16 %v1556, %v1555
    %v1932 = vpack.c.b16 %v1558, %v1557
    %v1933 = vpack.c.b16 %v1560, %v1559
    %v1934 = vpack.c.b16 %v1562, %v1561
    %v1935 = vpack.c.b16 %v1564, %v1563
    %v1936 = vpack.c.b16 %v1566, %v1565
    %v1937 = vpack.c.b16 %v1568, %v1567
    %v1938 = vpack.c.b16 %v1570, %v1569
    %v1939 = vpack.c.b16 %v1572, %v1571
    %v1940 = vpack.c.b16 %v1574, %v1573
    %v1941 = vpack.c.b16 %v1576, %v1575
    %v1942 = vpack.c.b16 %v1578, %v1577
    %v1943 = vpack.c.b16 %v1580, %v1579
    %v1944 = vpack.c.b16 %v1582, %v1581
    %v1945 = vpack.c.b16 %v1584, %v1583
    %v1946 = vpack.c.b16 %v1586, %v1585
    %v1947 = vpack.c.b16 %v1588, %v1587
    %v1948 = vpack.c.b16 %v1590, %v1589
    %v1949 = vpack.c.b16 %v1592, %v1591
    %v1950 = vpack.c.b16 %v1594, %v1593
    %v1951 = vpack.c.b16 %v1596, %v1595
    %v1952 = vpack.c.b16 %v1598, %v1597
    %v1953 = vpack.c.b16 %v1600, %v1599
    %v1954 = vpack.c.b16 %v1602, %v1601
    %v1955 = vpack.c.b16 %v1604, %v1603
    %v1956 = vpack.c.b16 %v1606, %v1605
    %v1957 = vpack.c.b16 %v1608, %v1607
    %v1958 = vpack.c.b16 %v1610, %v1609
    %v1959 = vpack.c.b16 %v1612, %v1611
    %v1960 = vpack.c.b16 %v1614, %v1613
    %v1961 = vpack.c.b16 %v1616, %v1615
    %v1962 = vpack.c.b16 %v1618, %v1617
    %v1963 = vpack.c.b16 %v1620, %v1619
    %v1964 = vpack.c.b16 %v1622, %v1621
    %v1965 = vpack.c.b16 %v1624, %v1623
    %v1966 = vpack.c.b16 %v1626, %v1625
    %v1967 = vpack.c.b16 %v1628, %v1627
    %v1968 = vpack.c.b16 %v1630, %v1629
    %v1969 = vpack.c.b16 %v1632, %v1631
    %v1970 = vpack.c.b16 %v1634, %v1633
    %v1971 = vpack.c.b16 %v1636, %v1635
    %v1972 = vpack.c.b16 %v1638, %v1637
    %v1973 = vpack.c.b16 %v1640, %v1639
    %v1974 = vpack.c.b16 %v1642, %v1641
    %v1975 = vpack.c.b16 %v1644, %v1643
    %v1976 = vpack.c.b16 %v1646, %v1645
    %v1977 = vpack.c.b16 %v1648, %v1647
    %v1978 = vpack.c.b16 %v1650, %v1649
    %v1979 = vpack.c.b16 %v1652, %v1651
    %v1980 = vpack.c.b16 %v1654, %v1653
    %v1981 = vpack.c.b16 %v1656, %v1655
    %v1982 = vpack.c.b16 %v1658, %v1657
    %v1983 = vpack.c.b16 %v1660, %v1659
    %v1984 = vpack.c.b16 %v1662, %v1661
    %v1985 = vpack.c.b16 %v1664, %v1663
    %v1986 = vpack.c.b16 %v1666, %v1665
    %v1987 = vpack.c.b16 %v1668, %v1667
    %v1988 = vpack.c.b16 %v1670, %v1669
    %v1989 = vpack.c.b16 %v1672, %v1671
    %v1990 = vpack.c.b16 %v1674, %v1673
    %v1991 = vpack.c.b16 %v1676, %v1675
    %v1992 = vpack.c.b16 %v1678, %v1677
    %v1993 = vpack.c.b16 %v1680, %v1679
    %v1994 = vpack.c.b16 %v1682, %v1681
    %v1995 = vpack.c.b16 %v1684, %v1683
    %v1996 = vpack.c.b16 %v1686, %v1685
    %v1997 = vpack.c.b16 %v1688, %v1687
    %v1998 = vpack.c.b16 %v1690, %v1689
    %v1999 = vpack.c.b16 %v1692, %v1691
    %v2000 = vpack.c.b16 %v1694, %v1693
    %v2001 = vpack.c.b16 %v1696, %v1695
    %v2002 = vpack.c.b16 %v1698, %v1697
    %v2003 = vpack.c.b16 %v1700, %v1699
    %v2004 = vpack.c.b16 %v1702, %v1701
    %v2005 = vpack.c.b16 %v1704, %v1703
    %v2006 = vpack.c.b16 %v1706, %v1705
    %v2007 = vpack.c.b16 %v1708, %v1707
    %v2008 = vpack.c.b16 %v1710, %v1709
    %v2009 = vpack.c.b16 %v1712, %v1711
    %v2010 = vpack.c.b16 %v1714, %v1713
    %v2011 = vpack.c.b16 %v1716, %v1715
    %v2012 = vpack.c.b16 %v1718, %v1717
    %v2013 = vpack.c.b16 %v1720, %v1719
    %v2014 = vpack.c.b16 %v1722, %v1721
    %v2015 = vpack.c.b16 %v1724, %v1723
    %v2016 = vpack.c.b16 %v1726, %v1725
    %v2017 = vpack.c.b16 %v1728, %v1727
    %v2018 = vpack.c.b16 %v1730, %v1729
    %v2019 = vpack.c.b16 %v1732, %v1731
    %v2020 = vpack.c.b16 %v1734, %v1733
    %v2021 = vpack.c.b16 %v1736, %v1735
    %v2022 = vpack.c.b16 %v1738, %v1737
    %v2023 = vpack.c.b16 %v1740, %v1739
    %v2024 = vpack.c.b16 %v1742, %v1741
    %v2025 = vpack.c.b16 %v1744, %v1743
    %v2026 = vpack.c.b16 %v1746, %v1745
    %v2027 = vpack.c.b16 %v1748, %v1747
    %v2028 = vpack.c.b16 %v1750, %v1749
    %v2029 = vpack.c.b16 %v1752, %v1751
    %v2030 = vpack.c.b16 %v1754, %v1753
    %v2031 = vpack.c.b16 %v1756, %v1755
    %v2032 = vpack.c.b16 %v1758, %v1757
    %v2033 = vpack.c.b16 %v1760, %v1759
    %v2034 = vpack.c.b16 %v1762, %v1761
    %v2035 = vpack.c.b16 %v1764, %v1763
    %v2036 = vpack.c.b16 %v1766, %v1765
    %v2037 = vpack.c.b16 %v1768, %v1767
    %v2038 = vpack.c.b16 %v1770, %v1769
    %v2039 = vpack.c.b16 %v1772, %v1771
    %v2040 = vpack.c.b16 %v1774, %v1773
    %v2041 = vpack.c.b16 %v1776, %v1775
    %v2042 = vpack.c.b16 %v1778, %v1777
    %v2043 = vpack.c.b16 %v1780, %v1779
    %v2044 = vpack.c.b16 %v1782, %v1781
    %v2045 = vpack.c.b16 %v1784, %v1783
    %v2046 = vpack.c.b16 %v1786, %v1785
    %v2047 = vpack.c.b16 %v1788, %v1787
    %v2048 = vpack.c.b16 %v1790, %v1789
    %v2049 = vpack.c.b16 %v1792, %v1791
    %v2050 = vpack.c.b16 %v1794, %v1793
    %2307 = vmatprep.subr.bf16.mxu0 0
    %2308 = vmatpush1.bf16.msra.mxu0 %v1795
    %2309 = vmatprep.subr.bf16.mxu0 0
    %2310 = vmatpush1.bf16.msra.mxu0 %v1796
    %2311 = vmatprep.subr.bf16.mxu0 0
    %2312 = vmatpush1.bf16.msra.mxu0 %v1797
    %2313 = vmatprep.subr.bf16.mxu0 0
    %2314 = vmatpush1.bf16.msra.mxu0 %v1798
    %2315 = vmatprep.subr.bf16.mxu0 0
    %2316 = vmatpush1.bf16.msra.mxu0 %v1799
    %2317 = vmatprep.subr.bf16.mxu0 0
    %2318 = vmatpush1.bf16.msra.mxu0 %v1800
    %2319 = vmatprep.subr.bf16.mxu0 0
    %2320 = vmatpush1.bf16.msra.mxu0 %v1801
    %2321 = vmatprep.subr.bf16.mxu0 0
    %2322 = vmatpush1.bf16.msra.mxu0 %v1802
    %2323 = vmatprep.subr.bf16.mxu0 0
    %2324 = vmatpush1.bf16.msra.mxu0 %v1803
    %2325 = vmatprep.subr.bf16.mxu0 0
    %2326 = vmatpush1.bf16.msra.mxu0 %v1804
    %2327 = vmatprep.subr.bf16.mxu0 0
    %2328 = vmatpush1.bf16.msra.mxu0 %v1805
    %2329 = vmatprep.subr.bf16.mxu0 0
    %2330 = vmatpush1.bf16.msra.mxu0 %v1806
    %2331 = vmatprep.subr.bf16.mxu0 0
    %2332 = vmatpush1.bf16.msra.mxu0 %v1807
    %2333 = vmatprep.subr.bf16.mxu0 0
    %2334 = vmatpush1.bf16.msra.mxu0 %v1808
    %2335 = vmatprep.subr.bf16.mxu0 0
    %2336 = vmatpush1.bf16.msra.mxu0 %v1809
    %2337 = vmatprep.subr.bf16.mxu0 0
    %2338 = vmatpush1.bf16.msra.mxu0 %v1810
    %2339 = vmatprep.mubr.bf16.mxu0 %v580
    %2340 = vmatmul.mubr.bf16.gmra.mrb[0].mxu0 %v566
    %v2341 = vpop.f32.mrb[0].mxu0
    %v2342 = vadd.f32 %v537, %v2341
    %v2343 = vpop.f32.mrb[0].mxu0
    %v2344 = vpop.f32.mrb[0].mxu0
    %v2345 = vpop.f32.mrb[0].mxu0
    %2346 = vdwg.mxu0
    %2347 = vmatprep.subr.bf16.mxu0 0
    %2348 = vmatpush1.bf16.msra.mxu0 %v1811
    %2349 = vmatprep.subr.bf16.mxu0 0
    %2350 = vmatpush1.bf16.msra.mxu0 %v1812
    %2351 = vmatprep.subr.bf16.mxu0 0
    %2352 = vmatpush1.bf16.msra.mxu0 %v1813
    %2353 = vmatprep.subr.bf16.mxu0 0
    %2354 = vmatpush1.bf16.msra.mxu0 %v1814
    %2355 = vmatprep.subr.bf16.mxu0 0
    %2356 = vmatpush1.bf16.msra.mxu0 %v1815
    %2357 = vmatprep.subr.bf16.mxu0 0
    %2358 = vmatpush1.bf16.msra.mxu0 %v1816
    %2359 = vmatprep.subr.bf16.mxu0 0
    %2360 = vmatpush1.bf16.msra.mxu0 %v1817
    %2361 = vmatprep.subr.bf16.mxu0 0
    %2362 = vmatpush1.bf16.msra.mxu0 %v1818
    %2363 = vmatprep.subr.bf16.mxu0 0
    %2364 = vmatpush1.bf16.msra.mxu0 %v1819
    %2365 = vmatprep.subr.bf16.mxu0 0
    %2366 = vmatpush1.bf16.msra.mxu0 %v1820
    %2367 = vmatprep.subr.bf16.mxu0 0
    %2368 = vmatpush1.bf16.msra.mxu0 %v1821
    %2369 = vmatprep.subr.bf16.mxu0 0
    %2370 = vmatpush1.bf16.msra.mxu0 %v1822
    %2371 = vmatprep.subr.bf16.mxu0 0
    %2372 = vmatpush1.bf16.msra.mxu0 %v1823
    %2373 = vmatprep.subr.bf16.mxu0 0
    %2374 = vmatpush1.bf16.msra.mxu0 %v1824
    %2375 = vmatprep.subr.bf16.mxu0 0
    %2376 = vmatpush1.bf16.msra.mxu0 %v1825
    %2377 = vmatprep.subr.bf16.mxu0 0
    %2378 = vmatpush1.bf16.msra.mxu0 %v1826
    %2379 = vmatprep.mubr.bf16.mxu0 %v590
    %2380 = vmatmul.mubr.bf16.gmra.mrb[0].mxu0 %v588
    %v2381 = vpop.f32.mrb[0].mxu0
    %v2382 = vadd.f32 %v2342, %v2381
    %v2383 = vpop.f32.mrb[0].mxu0
    %v2384 = vpop.f32.mrb[0].mxu0
    %v2385 = vpop.f32.mrb[0].mxu0
    %2386 = vdwg.mxu0
    %2387 = vmatprep.subr.bf16.mxu0 0
    %2388 = vmatpush1.bf16.msra.mxu0 %v1827
    %2389 = vmatprep.subr.bf16.mxu0 0
    %2390 = vmatpush1.bf16.msra.mxu0 %v1828
    %2391 = vmatprep.subr.bf16.mxu0 0
    %2392 = vmatpush1.bf16.msra.mxu0 %v1829
    %2393 = vmatprep.subr.bf16.mxu0 0
    %2394 = vmatpush1.bf16.msra.mxu0 %v1830
    %2395 = vmatprep.subr.bf16.mxu0 0
    %2396 = vmatpush1.bf16.msra.mxu0 %v1831
    %2397 = vmatprep.subr.bf16.mxu0 0
    %2398 = vmatpush1.bf16.msra.mxu0 %v1832
    %2399 = vmatprep.subr.bf16.mxu0 0
    %2400 = vmatpush1.bf16.msra.mxu0 %v1833
    %2401 = vmatprep.subr.bf16.mxu0 0
    %2402 = vmatpush1.bf16.msra.mxu0 %v1834
    %2403 = vmatprep.subr.bf16.mxu0 0
    %2404 = vmatpush1.bf16.msra.mxu0 %v1835
    %2405 = vmatprep.subr.bf16.mxu0 0
    %2406 = vmatpush1.bf16.msra.mxu0 %v1836
    %2407 = vmatprep.subr.bf16.mxu0 0
    %2408 = vmatpush1.bf16.msra.mxu0 %v1837
    %2409 = vmatprep.subr.bf16.mxu0 0
    %2410 = vmatpush1.bf16.msra.mxu0 %v1838
    %2411 = vmatprep.subr.bf16.mxu0 0
    %2412 = vmatpush1.bf16.msra.mxu0 %v1839
    %2413 = vmatprep.subr.bf16.mxu0 0
    %2414 = vmatpush1.bf16.msra.mxu0 %v1840
    %2415 = vmatprep.subr.bf16.mxu0 0
    %2416 = vmatpush1.bf16.msra.mxu0 %v1841
    %2417 = vmatprep.subr.bf16.mxu0 0
    %2418 = vmatpush1.bf16.msra.mxu0 %v1842
    %2419 = vmatprep.mubr.bf16.mxu0 %v587
    %2420 = vmatmul.mubr.bf16.gmra.mrb[0].mxu0 %v573
    %v2421 = vpop.f32.mrb[0].mxu0
    %v2422 = vadd.f32 %v2382, %v2421
    %v2423 = vpop.f32.mrb[0].mxu0
    %v2424 = vpop.f32.mrb[0].mxu0
    %v2425 = vpop.f32.mrb[0].mxu0
    %2426 = vdwg.mxu0
    %2427 = vmatprep.subr.bf16.mxu0 0
    %2428 = vmatpush1.bf16.msra.mxu0 %v1843
    %2429 = vmatprep.subr.bf16.mxu0 0
    %2430 = vmatpush1.bf16.msra.mxu0 %v1844
    %2431 = vmatprep.subr.bf16.mxu0 0
    %2432 = vmatpush1.bf16.msra.mxu0 %v1845
    %2433 = vmatprep.subr.bf16.mxu0 0
    %2434 = vmatpush1.bf16.msra.mxu0 %v1846
    %2435 = vmatprep.subr.bf16.mxu0 0
    %2436 = vmatpush1.bf16.msra.mxu0 %v1847
    %2437 = vmatprep.subr.bf16.mxu0 0
    %2438 = vmatpush1.bf16.msra.mxu0 %v1848
    %2439 = vmatprep.subr.bf16.mxu0 0
    %2440 = vmatpush1.bf16.msra.mxu0 %v1849
    %2441 = vmatprep.subr.bf16.mxu0 0
    %2442 = vmatpush1.bf16.msra.mxu0 %v1850
    %2443 = vmatprep.subr.bf16.mxu0 0
    %2444 = vmatpush1.bf16.msra.mxu0 %v1851
    %2445 = vmatprep.subr.bf16.mxu0 0
    %2446 = vmatpush1.bf16.msra.mxu0 %v1852
    %2447 = vmatprep.subr.bf16.mxu0 0
    %2448 = vmatpush1.bf16.msra.mxu0 %v1853
    %2449 = vmatprep.subr.bf16.mxu0 0
    %2450 = vmatpush1.bf16.msra.mxu0 %v1854
    %2451 = vmatprep.subr.bf16.mxu0 0
    %2452 = vmatpush1.bf16.msra.mxu0 %v1855
    %2453 = vmatprep.subr.bf16.mxu0 0
    %2454 = vmatpush1.bf16.msra.mxu0 %v1856
    %2455 = vmatprep.subr.bf16.mxu0 0
    %2456 = vmatpush1.bf16.msra.mxu0 %v1857
    %2457 = vmatprep.subr.bf16.mxu0 0
    %2458 = vmatpush1.bf16.msra.mxu0 %v1858
    %2459 = vmatprep.mubr.bf16.mxu0 %v591
    %2460 = vmatmul.mubr.bf16.gmra.mrb[0].mxu0 %v589
    %v2461 = vpop.f32.mrb[0].mxu0
    %v2462 = vadd.f32 %v2422, %v2461
    %v2463 = vpop.f32.mrb[0].mxu0
    %v2464 = vpop.f32.mrb[0].mxu0
    %v2465 = vpop.f32.mrb[0].mxu0
    %2466 = vdwg.mxu0
    %2467 = vmatprep.subr.bf16.mxu0 0
    %2468 = vmatpush1.bf16.msra.mxu0 %v1859
    %2469 = vmatprep.subr.bf16.mxu0 0
    %2470 = vmatpush1.bf16.msra.mxu0 %v1860
    %2471 = vmatprep.subr.bf16.mxu0 0
    %2472 = vmatpush1.bf16.msra.mxu0 %v1861
    %2473 = vmatprep.subr.bf16.mxu0 0
    %2474 = vmatpush1.bf16.msra.mxu0 %v1862
    %2475 = vmatprep.subr.bf16.mxu0 0
    %2476 = vmatpush1.bf16.msra.mxu0 %v1863
    %2477 = vmatprep.subr.bf16.mxu0 0
    %2478 = vmatpush1.bf16.msra.mxu0 %v1864
    %2479 = vmatprep.subr.bf16.mxu0 0
    %2480 = vmatpush1.bf16.msra.mxu0 %v1865
    %2481 = vmatprep.subr.bf16.mxu0 0
    %2482 = vmatpush1.bf16.msra.mxu0 %v1866
    %2483 = vmatprep.subr.bf16.mxu0 0
    %2484 = vmatpush1.bf16.msra.mxu0 %v1867
    %2485 = vmatprep.subr.bf16.mxu0 0
    %2486 = vmatpush1.bf16.msra.mxu0 %v1868
    %2487 = vmatprep.subr.bf16.mxu0 0
    %2488 = vmatpush1.bf16.msra.mxu0 %v1869
    %2489 = vmatprep.subr.bf16.mxu0 0
    %2490 = vmatpush1.bf16.msra.mxu0 %v1870
    %2491 = vmatprep.subr.bf16.mxu0 0
    %2492 = vmatpush1.bf16.msra.mxu0 %v1871
    %2493 = vmatprep.subr.bf16.mxu0 0
    %2494 = vmatpush1.bf16.msra.mxu0 %v1872
    %2495 = vmatprep.subr.bf16.mxu0 0
    %2496 = vmatpush1.bf16.msra.mxu0 %v1873
    %2497 = vmatprep.subr.bf16.mxu0 0
    %2498 = vmatpush1.bf16.msra.mxu0 %v1874
    %2499 = vmatprep.mubr.bf16.mxu0 %v629
    %2500 = vmatmul.mubr.bf16.gmra.mrb[0].mxu0 %v615
    %v2501 = vpop.f32.mrb[0].mxu0
    %v2502 = vadd.f32 %v2462, %v2501
    %v2503 = vpop.f32.mrb[0].mxu0
    %v2504 = vpop.f32.mrb[0].mxu0
    %v2505 = vpop.f32.mrb[0].mxu0
    %2506 = vdwg.mxu0
    %2507 = vmatprep.subr.bf16.mxu0 0
    %2508 = vmatpush1.bf16.msra.mxu0 %v1875
    %2509 = vmatprep.subr.bf16.mxu0 0
    %2510 = vmatpush1.bf16.msra.mxu0 %v1876
    %2511 = vmatprep.subr.bf16.mxu0 0
    %2512 = vmatpush1.bf16.msra.mxu0 %v1877
    %2513 = vmatprep.subr.bf16.mxu0 0
    %2514 = vmatpush1.bf16.msra.mxu0 %v1878
    %2515 = vmatprep.subr.bf16.mxu0 0
    %2516 = vmatpush1.bf16.msra.mxu0 %v1879
    %2517 = vmatprep.subr.bf16.mxu0 0
    %2518 = vmatpush1.bf16.msra.mxu0 %v1880
    %2519 = vmatprep.subr.bf16.mxu0 0
    %2520 = vmatpush1.bf16.msra.mxu0 %v1881
    %2521 = vmatprep.subr.bf16.mxu0 0
    %2522 = vmatpush1.bf16.msra.mxu0 %v1882
    %2523 = vmatprep.subr.bf16.mxu0 0
    %2524 = vmatpush1.bf16.msra.mxu0 %v1883
    %2525 = vmatprep.subr.bf16.mxu0 0
    %2526 = vmatpush1.bf16.msra.mxu0 %v1884
    %2527 = vmatprep.subr.bf16.mxu0 0
    %2528 = vmatpush1.bf16.msra.mxu0 %v1885
    %2529 = vmatprep.subr.bf16.mxu0 0
    %2530 = vmatpush1.bf16.msra.mxu0 %v1886
    %2531 = vmatprep.subr.bf16.mxu0 0
    %2532 = vmatpush1.bf16.msra.mxu0 %v1887
    %2533 = vmatprep.subr.bf16.mxu0 0
    %2534 = vmatpush1.bf16.msra.mxu0 %v1888
    %2535 = vmatprep.subr.bf16.mxu0 0
    %2536 = vmatpush1.bf16.msra.mxu0 %v1889
    %2537 = vmatprep.subr.bf16.mxu0 0
    %2538 = vmatpush1.bf16.msra.mxu0 %v1890
    %2539 = vmatprep.mubr.bf16.mxu0 %v639
    %2540 = vmatmul.mubr.bf16.gmra.mrb[0].mxu0 %v637
    %v2541 = vpop.f32.mrb[0].mxu0
    %v2542 = vadd.f32 %v2502, %v2541
    %v2543 = vpop.f32.mrb[0].mxu0
    %v2544 = vpop.f32.mrb[0].mxu0
    %v2545 = vpop.f32.mrb[0].mxu0
    %2546 = vdwg.mxu0
    %2547 = vmatprep.subr.bf16.mxu0 0
    %2548 = vmatpush1.bf16.msra.mxu0 %v1891
    %2549 = vmatprep.subr.bf16.mxu0 0
    %2550 = vmatpush1.bf16.msra.mxu0 %v1892
    %2551 = vmatprep.subr.bf16.mxu0 0
    %2552 = vmatpush1.bf16.msra.mxu0 %v1893
    %2553 = vmatprep.subr.bf16.mxu0 0
    %2554 = vmatpush1.bf16.msra.mxu0 %v1894
    %2555 = vmatprep.subr.bf16.mxu0 0
    %2556 = vmatpush1.bf16.msra.mxu0 %v1895
    %2557 = vmatprep.subr.bf16.mxu0 0
    %2558 = vmatpush1.bf16.msra.mxu0 %v1896
    %2559 = vmatprep.subr.bf16.mxu0 0
    %2560 = vmatpush1.bf16.msra.mxu0 %v1897
    %2561 = vmatprep.subr.bf16.mxu0 0
    %2562 = vmatpush1.bf16.msra.mxu0 %v1898
    %2563 = vmatprep.subr.bf16.mxu0 0
    %2564 = vmatpush1.bf16.msra.mxu0 %v1899
    %2565 = vmatprep.subr.bf16.mxu0 0
    %2566 = vmatpush1.bf16.msra.mxu0 %v1900
    %2567 = vmatprep.subr.bf16.mxu0 0
    %2568 = vmatpush1.bf16.msra.mxu0 %v1901
    %2569 = vmatprep.subr.bf16.mxu0 0
    %2570 = vmatpush1.bf16.msra.mxu0 %v1902
    %2571 = vmatprep.subr.bf16.mxu0 0
    %2572 = vmatpush1.bf16.msra.mxu0 %v1903
    %2573 = vmatprep.subr.bf16.mxu0 0
    %2574 = vmatpush1.bf16.msra.mxu0 %v1904
    %2575 = vmatprep.subr.bf16.mxu0 0
    %2576 = vmatpush1.bf16.msra.mxu0 %v1905
    %2577 = vmatprep.subr.bf16.mxu0 0
    %2578 = vmatpush1.bf16.msra.mxu0 %v1906
    %2579 = vmatprep.mubr.bf16.mxu0 %v636
    %2580 = vmatmul.mubr.bf16.gmra.mrb[0].mxu0 %v622
    %v2581 = vpop.f32.mrb[0].mxu0
    %v2582 = vadd.f32 %v2542, %v2581
    %v2583 = vpop.f32.mrb[0].mxu0
    %v2584 = vpop.f32.mrb[0].mxu0
    %v2585 = vpop.f32.mrb[0].mxu0
    %2586 = vdwg.mxu0
    %2587 = vmatprep.subr.bf16.mxu0 0
    %2588 = vmatpush1.bf16.msra.mxu0 %v1907
    %2589 = vmatprep.subr.bf16.mxu0 0
    %2590 = vmatpush1.bf16.msra.mxu0 %v1908
    %2591 = vmatprep.subr.bf16.mxu0 0
    %2592 = vmatpush1.bf16.msra.mxu0 %v1909
    %2593 = vmatprep.subr.bf16.mxu0 0
    %2594 = vmatpush1.bf16.msra.mxu0 %v1910
    %2595 = vmatprep.subr.bf16.mxu0 0
    %2596 = vmatpush1.bf16.msra.mxu0 %v1911
    %2597 = vmatprep.subr.bf16.mxu0 0
    %2598 = vmatpush1.bf16.msra.mxu0 %v1912
    %2599 = vmatprep.subr.bf16.mxu0 0
    %2600 = vmatpush1.bf16.msra.mxu0 %v1913
    %2601 = vmatprep.subr.bf16.mxu0 0
    %2602 = vmatpush1.bf16.msra.mxu0 %v1914
    %2603 = vmatprep.subr.bf16.mxu0 0
    %2604 = vmatpush1.bf16.msra.mxu0 %v1915
    %2605 = vmatprep.subr.bf16.mxu0 0
    %2606 = vmatpush1.bf16.msra.mxu0 %v1916
    %2607 = vmatprep.subr.bf16.mxu0 0
    %2608 = vmatpush1.bf16.msra.mxu0 %v1917
    %2609 = vmatprep.subr.bf16.mxu0 0
    %2610 = vmatpush1.bf16.msra.mxu0 %v1918
    %2611 = vmatprep.subr.bf16.mxu0 0
    %2612 = vmatpush1.bf16.msra.mxu0 %v1919
    %2613 = vmatprep.subr.bf16.mxu0 0
    %2614 = vmatpush1.bf16.msra.mxu0 %v1920
    %2615 = vmatprep.subr.bf16.mxu0 0
    %2616 = vmatpush1.bf16.msra.mxu0 %v1921
    %2617 = vmatprep.subr.bf16.mxu0 0
    %2618 = vmatpush1.bf16.msra.mxu0 %v1922
    %2619 = vmatprep.mubr.bf16.mxu0 %v640
    %2620 = vmatmul.mubr.bf16.gmra.mrb[0].mxu0 %v638
    %v2621 = vpop.f32.mrb[0].mxu0
    %v2622 = vadd.f32 %v2582, %v2621
    %v2623 = vpop.f32.mrb[0].mxu0
    %v2624 = vpop.f32.mrb[0].mxu0
    %v2625 = vpop.f32.mrb[0].mxu0
    %2626 = vdwg.mxu0
    %2627 = vmatprep.subr.bf16.mxu0 0
    %2628 = vmatpush1.bf16.msra.mxu0 %v1923
    %2629 = vmatprep.subr.bf16.mxu0 0
    %2630 = vmatpush1.bf16.msra.mxu0 %v1924
    %2631 = vmatprep.subr.bf16.mxu0 0
    %2632 = vmatpush1.bf16.msra.mxu0 %v1925
    %2633 = vmatprep.subr.bf16.mxu0 0
    %2634 = vmatpush1.bf16.msra.mxu0 %v1926
    %2635 = vmatprep.subr.bf16.mxu0 0
    %2636 = vmatpush1.bf16.msra.mxu0 %v1927
    %2637 = vmatprep.subr.bf16.mxu0 0
    %2638 = vmatpush1.bf16.msra.mxu0 %v1928
    %2639 = vmatprep.subr.bf16.mxu0 0
    %2640 = vmatpush1.bf16.msra.mxu0 %v1929
    %2641 = vmatprep.subr.bf16.mxu0 0
    %2642 = vmatpush1.bf16.msra.mxu0 %v1930
    %2643 = vmatprep.subr.bf16.mxu0 0
    %2644 = vmatpush1.bf16.msra.mxu0 %v1931
    %2645 = vmatprep.subr.bf16.mxu0 0
    %2646 = vmatpush1.bf16.msra.mxu0 %v1932
    %2647 = vmatprep.subr.bf16.mxu0 0
    %2648 = vmatpush1.bf16.msra.mxu0 %v1933
    %2649 = vmatprep.subr.bf16.mxu0 0
    %2650 = vmatpush1.bf16.msra.mxu0 %v1934
    %2651 = vmatprep.subr.bf16.mxu0 0
    %2652 = vmatpush1.bf16.msra.mxu0 %v1935
    %2653 = vmatprep.subr.bf16.mxu0 0
    %2654 = vmatpush1.bf16.msra.mxu0 %v1936
    %2655 = vmatprep.subr.bf16.mxu0 0
    %2656 = vmatpush1.bf16.msra.mxu0 %v1937
    %2657 = vmatprep.subr.bf16.mxu0 0
    %2658 = vmatpush1.bf16.msra.mxu0 %v1938
    %2659 = vmatprep.mubr.bf16.mxu0 %v678
    %2660 = vmatmul.mubr.bf16.gmra.mrb[0].mxu0 %v664
    %v2661 = vpop.f32.mrb[0].mxu0
    %v2662 = vadd.f32 %v2622, %v2661
    %v2663 = vpop.f32.mrb[0].mxu0
    %v2664 = vpop.f32.mrb[0].mxu0
    %v2665 = vpop.f32.mrb[0].mxu0
    %2666 = vdwg.mxu0
    %2667 = vmatprep.subr.bf16.mxu0 0
    %2668 = vmatpush1.bf16.msra.mxu0 %v1939
    %2669 = vmatprep.subr.bf16.mxu0 0
    %2670 = vmatpush1.bf16.msra.mxu0 %v1940
    %2671 = vmatprep.subr.bf16.mxu0 0
    %2672 = vmatpush1.bf16.msra.mxu0 %v1941
    %2673 = vmatprep.subr.bf16.mxu0 0
    %2674 = vmatpush1.bf16.msra.mxu0 %v1942
    %2675 = vmatprep.subr.bf16.mxu0 0
    %2676 = vmatpush1.bf16.msra.mxu0 %v1943
    %2677 = vmatprep.subr.bf16.mxu0 0
    %2678 = vmatpush1.bf16.msra.mxu0 %v1944
    %2679 = vmatprep.subr.bf16.mxu0 0
    %2680 = vmatpush1.bf16.msra.mxu0 %v1945
    %2681 = vmatprep.subr.bf16.mxu0 0
    %2682 = vmatpush1.bf16.msra.mxu0 %v1946
    %2683 = vmatprep.subr.bf16.mxu0 0
    %2684 = vmatpush1.bf16.msra.mxu0 %v1947
    %2685 = vmatprep.subr.bf16.mxu0 0
    %2686 = vmatpush1.bf16.msra.mxu0 %v1948
    %2687 = vmatprep.subr.bf16.mxu0 0
    %2688 = vmatpush1.bf16.msra.mxu0 %v1949
    %2689 = vmatprep.subr.bf16.mxu0 0
    %2690 = vmatpush1.bf16.msra.mxu0 %v1950
    %2691 = vmatprep.subr.bf16.mxu0 0
    %2692 = vmatpush1.bf16.msra.mxu0 %v1951
    %2693 = vmatprep.subr.bf16.mxu0 0
    %2694 = vmatpush1.bf16.msra.mxu0 %v1952
    %2695 = vmatprep.subr.bf16.mxu0 0
    %2696 = vmatpush1.bf16.msra.mxu0 %v1953
    %2697 = vmatprep.subr.bf16.mxu0 0
    %2698 = vmatpush1.bf16.msra.mxu0 %v1954
    %2699 = vmatprep.mubr.bf16.mxu0 %v688
    %2700 = vmatmul.mubr.bf16.gmra.mrb[0].mxu0 %v686
    %v2701 = vpop.f32.mrb[0].mxu0
    %v2702 = vadd.f32 %v2662, %v2701
    %v2703 = vpop.f32.mrb[0].mxu0
    %v2704 = vpop.f32.mrb[0].mxu0
    %v2705 = vpop.f32.mrb[0].mxu0
    %2706 = vdwg.mxu0
    %2707 = vmatprep.subr.bf16.mxu0 0
    %2708 = vmatpush1.bf16.msra.mxu0 %v1955
    %2709 = vmatprep.subr.bf16.mxu0 0
    %2710 = vmatpush1.bf16.msra.mxu0 %v1956
    %2711 = vmatprep.subr.bf16.mxu0 0
    %2712 = vmatpush1.bf16.msra.mxu0 %v1957
    %2713 = vmatprep.subr.bf16.mxu0 0
    %2714 = vmatpush1.bf16.msra.mxu0 %v1958
    %2715 = vmatprep.subr.bf16.mxu0 0
    %2716 = vmatpush1.bf16.msra.mxu0 %v1959
    %2717 = vmatprep.subr.bf16.mxu0 0
    %2718 = vmatpush1.bf16.msra.mxu0 %v1960
    %2719 = vmatprep.subr.bf16.mxu0 0
    %2720 = vmatpush1.bf16.msra.mxu0 %v1961
    %2721 = vmatprep.subr.bf16.mxu0 0
    %2722 = vmatpush1.bf16.msra.mxu0 %v1962
    %2723 = vmatprep.subr.bf16.mxu0 0
    %2724 = vmatpush1.bf16.msra.mxu0 %v1963
    %2725 = vmatprep.subr.bf16.mxu0 0
    %2726 = vmatpush1.bf16.msra.mxu0 %v1964
    %2727 = vmatprep.subr.bf16.mxu0 0
    %2728 = vmatpush1.bf16.msra.mxu0 %v1965
    %2729 = vmatprep.subr.bf16.mxu0 0
    %2730 = vmatpush1.bf16.msra.mxu0 %v1966
    %2731 = vmatprep.subr.bf16.mxu0 0
    %2732 = vmatpush1.bf16.msra.mxu0 %v1967
    %2733 = vmatprep.subr.bf16.mxu0 0
    %2734 = vmatpush1.bf16.msra.mxu0 %v1968
    %2735 = vmatprep.subr.bf16.mxu0 0
    %2736 = vmatpush1.bf16.msra.mxu0 %v1969
    %2737 = vmatprep.subr.bf16.mxu0 0
    %2738 = vmatpush1.bf16.msra.mxu0 %v1970
    %2739 = vmatprep.mubr.bf16.mxu0 %v685
    %2740 = vmatmul.mubr.bf16.gmra.mrb[0].mxu0 %v671
    %v2741 = vpop.f32.mrb[0].mxu0
    %v2742 = vadd.f32 %v2702, %v2741
    %v2743 = vpop.f32.mrb[0].mxu0
    %v2744 = vpop.f32.mrb[0].mxu0
    %v2745 = vpop.f32.mrb[0].mxu0
    %2746 = vdwg.mxu0
    %2747 = vmatprep.subr.bf16.mxu0 0
    %2748 = vmatpush1.bf16.msra.mxu0 %v1971
    %2749 = vmatprep.subr.bf16.mxu0 0
    %2750 = vmatpush1.bf16.msra.mxu0 %v1972
    %2751 = vmatprep.subr.bf16.mxu0 0
    %2752 = vmatpush1.bf16.msra.mxu0 %v1973
    %2753 = vmatprep.subr.bf16.mxu0 0
    %2754 = vmatpush1.bf16.msra.mxu0 %v1974
    %2755 = vmatprep.subr.bf16.mxu0 0
    %2756 = vmatpush1.bf16.msra.mxu0 %v1975
    %2757 = vmatprep.subr.bf16.mxu0 0
    %2758 = vmatpush1.bf16.msra.mxu0 %v1976
    %2759 = vmatprep.subr.bf16.mxu0 0
    %2760 = vmatpush1.bf16.msra.mxu0 %v1977
    %2761 = vmatprep.subr.bf16.mxu0 0
    %2762 = vmatpush1.bf16.msra.mxu0 %v1978
    %2763 = vmatprep.subr.bf16.mxu0 0
    %2764 = vmatpush1.bf16.msra.mxu0 %v1979
    %2765 = vmatprep.subr.bf16.mxu0 0
    %2766 = vmatpush1.bf16.msra.mxu0 %v1980
    %2767 = vmatprep.subr.bf16.mxu0 0
    %2768 = vmatpush1.bf16.msra.mxu0 %v1981
    %2769 = vmatprep.subr.bf16.mxu0 0
    %2770 = vmatpush1.bf16.msra.mxu0 %v1982
    %2771 = vmatprep.subr.bf16.mxu0 0
    %2772 = vmatpush1.bf16.msra.mxu0 %v1983
    %2773 = vmatprep.subr.bf16.mxu0 0
    %2774 = vmatpush1.bf16.msra.mxu0 %v1984
    %2775 = vmatprep.subr.bf16.mxu0 0
    %2776 = vmatpush1.bf16.msra.mxu0 %v1985
    %2777 = vmatprep.subr.bf16.mxu0 0
    %2778 = vmatpush1.bf16.msra.mxu0 %v1986
    %2779 = vmatprep.mubr.bf16.mxu0 %v689
    %2780 = vmatmul.mubr.bf16.gmra.mrb[0].mxu0 %v687
    %v2781 = vpop.f32.mrb[0].mxu0
    %v2782 = vadd.f32 %v2742, %v2781
    %v2783 = vpop.f32.mrb[0].mxu0
    %v2784 = vpop.f32.mrb[0].mxu0
    %v2785 = vpop.f32.mrb[0].mxu0
    %2786 = vdwg.mxu0
    %2787 = vmatprep.subr.bf16.mxu0 0
    %2788 = vmatpush1.bf16.msra.mxu0 %v1987
    %2789 = vmatprep.subr.bf16.mxu0 0
    %2790 = vmatpush1.bf16.msra.mxu0 %v1988
    %2791 = vmatprep.subr.bf16.mxu0 0
    %2792 = vmatpush1.bf16.msra.mxu0 %v1989
    %2793 = vmatprep.subr.bf16.mxu0 0
    %2794 = vmatpush1.bf16.msra.mxu0 %v1990
    %2795 = vmatprep.subr.bf16.mxu0 0
    %2796 = vmatpush1.bf16.msra.mxu0 %v1991
    %2797 = vmatprep.subr.bf16.mxu0 0
    %2798 = vmatpush1.bf16.msra.mxu0 %v1992
    %2799 = vmatprep.subr.bf16.mxu0 0
    %2800 = vmatpush1.bf16.msra.mxu0 %v1993
    %2801 = vmatprep.subr.bf16.mxu0 0
    %2802 = vmatpush1.bf16.msra.mxu0 %v1994
    %2803 = vmatprep.subr.bf16.mxu0 0
    %2804 = vmatpush1.bf16.msra.mxu0 %v1995
    %2805 = vmatprep.subr.bf16.mxu0 0
    %2806 = vmatpush1.bf16.msra.mxu0 %v1996
    %2807 = vmatprep.subr.bf16.mxu0 0
    %2808 = vmatpush1.bf16.msra.mxu0 %v1997
    %2809 = vmatprep.subr.bf16.mxu0 0
    %2810 = vmatpush1.bf16.msra.mxu0 %v1998
    %2811 = vmatprep.subr.bf16.mxu0 0
    %2812 = vmatpush1.bf16.msra.mxu0 %v1999
    %2813 = vmatprep.subr.bf16.mxu0 0
    %2814 = vmatpush1.bf16.msra.mxu0 %v2000
    %2815 = vmatprep.subr.bf16.mxu0 0
    %2816 = vmatpush1.bf16.msra.mxu0 %v2001
    %2817 = vmatprep.subr.bf16.mxu0 0
    %2818 = vmatpush1.bf16.msra.mxu0 %v2002
    %2819 = vmatprep.mubr.bf16.mxu0 %v727
    %2820 = vmatmul.mubr.bf16.gmra.mrb[0].mxu0 %v713
    %v2821 = vpop.f32.mrb[0].mxu0
    %v2822 = vadd.f32 %v2782, %v2821
    %v2823 = vpop.f32.mrb[0].mxu0
    %v2824 = vpop.f32.mrb[0].mxu0
    %v2825 = vpop.f32.mrb[0].mxu0
    %2826 = vdwg.mxu0
    %2827 = vmatprep.subr.bf16.mxu0 0
    %2828 = vmatpush1.bf16.msra.mxu0 %v2003
    %2829 = vmatprep.subr.bf16.mxu0 0
    %2830 = vmatpush1.bf16.msra.mxu0 %v2004
    %2831 = vmatprep.subr.bf16.mxu0 0
    %2832 = vmatpush1.bf16.msra.mxu0 %v2005
    %2833 = vmatprep.subr.bf16.mxu0 0
    %2834 = vmatpush1.bf16.msra.mxu0 %v2006
    %2835 = vmatprep.subr.bf16.mxu0 0
    %2836 = vmatpush1.bf16.msra.mxu0 %v2007
    %2837 = vmatprep.subr.bf16.mxu0 0
    %2838 = vmatpush1.bf16.msra.mxu0 %v2008
    %2839 = vmatprep.subr.bf16.mxu0 0
    %2840 = vmatpush1.bf16.msra.mxu0 %v2009
    %2841 = vmatprep.subr.bf16.mxu0 0
    %2842 = vmatpush1.bf16.msra.mxu0 %v2010
    %2843 = vmatprep.subr.bf16.mxu0 0
    %2844 = vmatpush1.bf16.msra.mxu0 %v2011
    %2845 = vmatprep.subr.bf16.mxu0 0
    %2846 = vmatpush1.bf16.msra.mxu0 %v2012
    %2847 = vmatprep.subr.bf16.mxu0 0
    %2848 = vmatpush1.bf16.msra.mxu0 %v2013
    %2849 = vmatprep.subr.bf16.mxu0 0
    %2850 = vmatpush1.bf16.msra.mxu0 %v2014
    %2851 = vmatprep.subr.bf16.mxu0 0
    %2852 = vmatpush1.bf16.msra.mxu0 %v2015
    %2853 = vmatprep.subr.bf16.mxu0 0
    %2854 = vmatpush1.bf16.msra.mxu0 %v2016
    %2855 = vmatprep.subr.bf16.mxu0 0
    %2856 = vmatpush1.bf16.msra.mxu0 %v2017
    %2857 = vmatprep.subr.bf16.mxu0 0
    %2858 = vmatpush1.bf16.msra.mxu0 %v2018
    %2859 = vmatprep.mubr.bf16.mxu0 %v737
    %2860 = vmatmul.mubr.bf16.gmra.mrb[0].mxu0 %v735
    %v2861 = vpop.f32.mrb[0].mxu0
    %v2862 = vadd.f32 %v2822, %v2861
    %v2863 = vpop.f32.mrb[0].mxu0
    %v2864 = vpop.f32.mrb[0].mxu0
    %v2865 = vpop.f32.mrb[0].mxu0
    %2866 = vdwg.mxu0
    %2867 = vmatprep.subr.bf16.mxu0 0
    %2868 = vmatpush1.bf16.msra.mxu0 %v2019
    %2869 = vmatprep.subr.bf16.mxu0 0
    %2870 = vmatpush1.bf16.msra.mxu0 %v2020
    %2871 = vmatprep.subr.bf16.mxu0 0
    %2872 = vmatpush1.bf16.msra.mxu0 %v2021
    %2873 = vmatprep.subr.bf16.mxu0 0
    %2874 = vmatpush1.bf16.msra.mxu0 %v2022
    %2875 = vmatprep.subr.bf16.mxu0 0
    %2876 = vmatpush1.bf16.msra.mxu0 %v2023
    %2877 = vmatprep.subr.bf16.mxu0 0
    %2878 = vmatpush1.bf16.msra.mxu0 %v2024
    %2879 = vmatprep.subr.bf16.mxu0 0
    %2880 = vmatpush1.bf16.msra.mxu0 %v2025
    %2881 = vmatprep.subr.bf16.mxu0 0
    %2882 = vmatpush1.bf16.msra.mxu0 %v2026
    %2883 = vmatprep.subr.bf16.mxu0 0
    %2884 = vmatpush1.bf16.msra.mxu0 %v2027
    %2885 = vmatprep.subr.bf16.mxu0 0
    %2886 = vmatpush1.bf16.msra.mxu0 %v2028
    %2887 = vmatprep.subr.bf16.mxu0 0
    %2888 = vmatpush1.bf16.msra.mxu0 %v2029
    %2889 = vmatprep.subr.bf16.mxu0 0
    %2890 = vmatpush1.bf16.msra.mxu0 %v2030
    %2891 = vmatprep.subr.bf16.mxu0 0
    %2892 = vmatpush1.bf16.msra.mxu0 %v2031
    %2893 = vmatprep.subr.bf16.mxu0 0
    %2894 = vmatpush1.bf16.msra.mxu0 %v2032
    %2895 = vmatprep.subr.bf16.mxu0 0
    %2896 = vmatpush1.bf16.msra.mxu0 %v2033
    %2897 = vmatprep.subr.bf16.mxu0 0
    %2898 = vmatpush1.bf16.msra.mxu0 %v2034
    %2899 = vmatprep.mubr.bf16.mxu0 %v734
    %2900 = vmatmul.mubr.bf16.gmra.mrb[0].mxu0 %v720
    %v2901 = vpop.f32.mrb[0].mxu0
    %v2902 = vadd.f32 %v2862, %v2901
    %v2903 = vpop.f32.mrb[0].mxu0
    %v2904 = vpop.f32.mrb[0].mxu0
    %v2905 = vpop.f32.mrb[0].mxu0
    %2906 = vdwg.mxu0
    %2907 = vmatprep.subr.bf16.mxu0 0
    %2908 = vmatpush1.bf16.msra.mxu0 %v2035
    %2909 = vmatprep.subr.bf16.mxu0 0
    %2910 = vmatpush1.bf16.msra.mxu0 %v2036
    %2911 = vmatprep.subr.bf16.mxu0 0
    %2912 = vmatpush1.bf16.msra.mxu0 %v2037
    %2913 = vmatprep.subr.bf16.mxu0 0
    %2914 = vmatpush1.bf16.msra.mxu0 %v2038
    %2915 = vmatprep.subr.bf16.mxu0 0
    %2916 = vmatpush1.bf16.msra.mxu0 %v2039
    %2917 = vmatprep.subr.bf16.mxu0 0
    %2918 = vmatpush1.bf16.msra.mxu0 %v2040
    %2919 = vmatprep.subr.bf16.mxu0 0
    %2920 = vmatpush1.bf16.msra.mxu0 %v2041
    %2921 = vmatprep.subr.bf16.mxu0 0
    %2922 = vmatpush1.bf16.msra.mxu0 %v2042
    %2923 = vmatprep.subr.bf16.mxu0 0
    %2924 = vmatpush1.bf16.msra.mxu0 %v2043
    %2925 = vmatprep.subr.bf16.mxu0 0
    %2926 = vmatpush1.bf16.msra.mxu0 %v2044
    %2927 = vmatprep.subr.bf16.mxu0 0
    %2928 = vmatpush1.bf16.msra.mxu0 %v2045
    %2929 = vmatprep.subr.bf16.mxu0 0
    %2930 = vmatpush1.bf16.msra.mxu0 %v2046
    %2931 = vmatprep.subr.bf16.mxu0 0
    %2932 = vmatpush1.bf16.msra.mxu0 %v2047
    %2933 = vmatprep.subr.bf16.mxu0 0
    %2934 = vmatpush1.bf16.msra.mxu0 %v2048
    %2935 = vmatprep.subr.bf16.mxu0 0
    %2936 = vmatpush1.bf16.msra.mxu0 %v2049
    %2937 = vmatprep.subr.bf16.mxu0 0
    %2938 = vmatpush1.bf16.msra.mxu0 %v2050
    %2939 = vmatprep.mubr.bf16.mxu0 %v738
    %2940 = vmatmul.mubr.bf16.gmra.mrb[0].mxu0 %v736
    %v2941 = vpop.f32.mrb[0].mxu0
    %v2942 = vadd.f32 %v2902, %v2941
    %v2943 = vpop.f32.mrb[0].mxu0
    %v2944 = vpop.f32.mrb[0].mxu0
    %v2945 = vpop.f32.mrb[0].mxu0
    %2946 = vdwg.mxu0
    %v2947 = vmul.f32 %v2942, 0.2
    %v2948 = vmax.f32 %v2942, %v2947
    %vm2949 = vcmask 254976
    %2950 = vst.msk [vmem:[#allocation2] sm:$0x3] %vm2949, %v2948
    // Predicated region
    $region14: #{encoder_forward.9} parent=1 // pred_check
      _
    $region15: #{encoder_forward.9} parent=1 // pred_check_branch
      %2952 = sbr.rel (0) target = $region17
    $region16: #{encoder_forward.9} parent=1 // pred_region
      %s2954 = ssub.s32 32, 32
      %2955 = vsyncadd [#allocation3], %s2954
      %s2957 = sshll.u32 [#allocation2], 4
      %s2958 = int_to_ptr.vmem [resolvable:$true] %s2957
      %2960 = dma.vmem_to_hbm [thread:$0]  %s2958, 32, %s3, [#allocation3]
    $region17: #{encoder_forward.9} parent=1 // pred_fallthru
      _
    // Predicated region
    $region18: #{encoder_forward.9} parent=1 // pred_check
      _
    $region19: #{encoder_forward.9} parent=1 // pred_check_branch
      %2962 = sbr.rel (0) target = $region21
    $region20: #{encoder_forward.9} parent=1 // pred_region
      %2963 = dma.done [#allocation3], 32
    $region21: #{encoder_forward.9} parent=1 // pred_fallthru
      _
    %2964 = vsyncpa [#allocation3], 1

</llo_original>
